<compile_context>
chip_gen: v7x
topology: tpu7x:2x2x1
jax: 0.10.0
libtpu: 0.0.40
codegen_flags: <defaults>
</compile_context>

<pallas_src>
import functools
import math

import jax
import jax.numpy as jnp
from jax import lax
from jax.experimental import pallas as pl
from jax.experimental.pallas import tpu as pltpu


# ----------------------------- Pallas kernel ---------------------------------

def _decoder_layer_kernel(tgt_ref, mem_ref, w_ref, b_ref, out_ref, *,
                          nb, L, S, E, dff, nhead, hd, mm_dtype):
    """Full decoder layer for one block of `nb` batch elements.

    tgt_ref: (nb*L, E) f32   mem_ref: (nb*S, E) f32
    w_ref:   (E, 8E + 2*dff) mm_dtype   (packed weight slab)
    b_ref:   (1, 9E + dff)   f32        (packed bias slab)
    out_ref: (nb*L, E) f32
    """
    x = tgt_ref[...]          # (R, E)   R = nb*L
    mem = mem_ref[...]        # (RM, E)  RM = nb*S

    def proj(a, w_cols, b_cols):
        # One lane-dense MXU matmul: (rows, E) @ (E, width) + bias.
        y = lax.dot_general(a.astype(mm_dtype), w_ref[:, w_cols],
                            (((1,), (0,)), ((), ())),
                            preferred_element_type=jnp.float32)
        return y + b_ref[:, b_cols]

    def attention(q3, kv3, k_off, v_off):
        # q3: (nb, Lq, >=E), kv3: (nb, Lk, ...) -- already mm_dtype.
        # Per-head score / p@v (these genuinely need the batch dim); the
        # softmax scale is already folded into Wq/bq.
        outs = []
        for h in range(nhead):
            q_h = q3[:, :, h * hd:(h + 1) * hd]
            k_h = kv3[:, :, k_off + h * hd:k_off + (h + 1) * hd]
            v_h = kv3[:, :, v_off + h * hd:v_off + (h + 1) * hd]
            s = lax.dot_general(q_h, k_h, (((2,), (2,)), ((0,), (0,))),
                                preferred_element_type=jnp.float32)
            s = s - jnp.max(s, axis=-1, keepdims=True)
            p = jnp.exp(s)
            p = p / jnp.sum(p, axis=-1, keepdims=True)      # exact softmax
            outs.append(lax.dot_general(p.astype(mm_dtype), v_h,
                                        (((2,), (1,)), ((0,), (0,))),
                                        preferred_element_type=jnp.float32))
        return jnp.concatenate(outs, axis=-1)               # (nb, Lq, E) f32

    # --- self-attention + residual (dropout1 is identity) ---
    qkv = proj(x, slice(0, 3 * E), slice(0, 3 * E))          # (R, 3E)
    qkv3 = qkv.reshape(nb, L, 3 * E).astype(mm_dtype)
    o_sa = attention(qkv3, qkv3, k_off=E, v_off=2 * E).reshape(nb * L, E)
    x = x + proj(o_sa, slice(3 * E, 4 * E), slice(3 * E, 4 * E))

    # --- cross-attention with memory + residual (dropout2 identity) ---
    q = proj(x, slice(4 * E, 5 * E), slice(4 * E, 5 * E))     # (R, E)
    kv = proj(mem, slice(5 * E, 7 * E), slice(5 * E, 7 * E))  # (RM, 2E)
    q3 = q.reshape(nb, L, E).astype(mm_dtype)
    kv3 = kv.reshape(nb, S, 2 * E).astype(mm_dtype)
    o_ca = attention(q3, kv3, k_off=0, v_off=E).reshape(nb * L, E)
    x = x + proj(o_ca, slice(7 * E, 8 * E), slice(7 * E, 8 * E))

    # --- feed-forward + residual ---
    # activation is LeakyReLU(negative_slope=True == 1.0) == identity; dropouts
    # are identities, so only the two linears remain.
    h1 = proj(x, slice(8 * E, 8 * E + dff), slice(8 * E, 8 * E + dff))   # (R, dff)
    # linear2 weight is kept in PyTorch (E, dff) orientation in the slab;
    # contract its dim 1 with dff (i.e. h1 @ W2^T) directly on the MXU.
    ffn = lax.dot_general(h1.astype(mm_dtype),
                          w_ref[:, 8 * E + dff:8 * E + 2 * dff],
                          (((1,), (1,)), ((), ())),
                          preferred_element_type=jnp.float32)
    ffn = ffn + b_ref[:, 8 * E + dff:9 * E + dff]
    x = x + ffn

    out_ref[...] = x


# ------------------------------- wrapper --------------------------------------

def _pack_weights(params, *, nhead, E, dff, matmul_dtype):
    """Pack all layer weights into one (E, 8E+2*dff) slab + one (1, 9E+dff) bias slab."""
    hd = E // nhead
    scale = 1.0 / math.sqrt(hd)
    f32 = jnp.float32

    def attn_mats(prefix):
        wi = params[f"{prefix}_in_proj_w"].astype(f32)   # (3E, E) PyTorch (out,in)
        bi = params[f"{prefix}_in_proj_b"].astype(f32)   # (3E,)
        wq = wi[:E].T * scale                            # fold 1/sqrt(hd) into Q
        bq = bi[:E] * scale
        wk = wi[E:2 * E].T
        bk = bi[E:2 * E]
        wv = wi[2 * E:].T
        bv = bi[2 * E:]
        wo = params[f"{prefix}_out_proj_w"].astype(f32).T   # (E, E)
        bo = params[f"{prefix}_out_proj_b"].astype(f32)
        return wq, bq, wk, bk, wv, bv, wo, bo

    wq_s, bq_s, wk_s, bk_s, wv_s, bv_s, wo_s, bo_s = attn_mats("self")
    wq_c, bq_c, wk_c, bk_c, wv_c, bv_c, wo_c, bo_c = attn_mats("cross")
    w1 = params["linear1_w"].astype(f32).T              # (E, dff)
    b1 = params["linear1_b"].astype(f32)                # (dff,)
    w2 = params["linear2_w"].astype(f32)                 # (E, dff) -- used transposed
    b2 = params["linear2_b"].astype(f32)                 # (E,)

    # Column layout (kernel slices with the same static offsets):
    #  [Wq_s|Wk_s|Wv_s | Wo_s | Wq_c | Wk_c|Wv_c | Wo_c | W1 | W2]
    w_slab = jnp.concatenate(
        [wq_s, wk_s, wv_s, wo_s, wq_c, wk_c, wv_c, wo_c, w1, w2],
        axis=1).astype(matmul_dtype)                      # (E, 8E + 2*dff)
    b_slab = jnp.concatenate(
        [bq_s, bk_s, bv_s, bo_s, bq_c, bk_c, bv_c, bo_c, b1, b2]
    ).reshape(1, -1).astype(f32)                          # (1, 9E + dff)
    return w_slab, b_slab


def transformer_decoder_layer_batch_major(tgt, memory, params, *, nhead,
                                          batch_block=8,
                                          matmul_dtype=jnp.float32):
    """Decoder layer on batch-major activations. tgt: (N, L, E), memory: (N, S, E)."""
    N, L, E = tgt.shape
    S = memory.shape[1]
    assert E % nhead == 0
    hd = E // nhead
    dff = params["linear1_w"].shape[0]

    w_slab, b_slab = _pack_weights(params, nhead=nhead, E=E, dff=dff,
                                   matmul_dtype=matmul_dtype)

    # Block the batch: NB elements per grid step (multiple-of-8 sublane fill).
    NB = min(batch_block, N)
    n_blocks = pl.cdiv(N, NB)
    N_pad = n_blocks * NB
    tgt_f = tgt.astype(jnp.float32)
    mem_f = memory.astype(jnp.float32)
    if N_pad != N:
        pad = N_pad - N
        tgt_f = jnp.concatenate([tgt_f, jnp.zeros((pad, L, E), jnp.float32)], axis=0)
        mem_f = jnp.concatenate([mem_f, jnp.zeros((pad, S, E), jnp.float32)], axis=0)

    # Lane-contiguous activation slabs: each grid step reads/writes (NB*L, E).
    tgt2 = tgt_f.reshape(N_pad * L, E)
    mem2 = mem_f.reshape(N_pad * S, E)

    kernel = functools.partial(_decoder_layer_kernel, nb=NB, L=L, S=S, E=E,
                               dff=dff, nhead=nhead, hd=hd,
                               mm_dtype=matmul_dtype)

    # Only split across TensorCores (v7x) when there is enough per-core work.
    sem = ("parallel",) if n_blocks >= 8 else ("arbitrary",)

    out = pl.pallas_call(
        kernel,
        out_shape=jax.ShapeDtypeStruct((N_pad * L, E), jnp.float32),
        grid=(n_blocks,),
        in_specs=[
            pl.BlockSpec((NB * L, E), lambda i: (i, 0)),
            pl.BlockSpec((NB * S, E), lambda i: (i, 0)),
            pl.BlockSpec(w_slab.shape, lambda i: (0, 0)),
            pl.BlockSpec(b_slab.shape, lambda i: (0, 0)),
        ],
        out_specs=pl.BlockSpec((NB * L, E), lambda i: (i, 0)),
        compiler_params=pltpu.CompilerParams(dimension_semantics=sem),
    )(tgt2, mem2, w_slab, b_slab)

    return out.reshape(N_pad, L, E)[:N]


def transformer_decoder_layer(tgt, memory, params, *, nhead, batch_block=8,
                              matmul_dtype=jnp.float32):
    """Seq-first (L, N, E) interface matching the PyTorch module.

    # TODO(synk): the surrounding TranAD model should produce/consume
    # batch-major (N, L, E) and call transformer_decoder_layer_batch_major
    # directly to avoid these two HBM transposes around the kernel.
    """
    out = transformer_decoder_layer_batch_major(
        jnp.transpose(tgt, (1, 0, 2)), jnp.transpose(memory, (1, 0, 2)),
        params, nhead=nhead, batch_block=batch_block, matmul_dtype=matmul_dtype)
    return jnp.transpose(out, (1, 0, 2))


# ---------------- pure-JAX reference (mirrors PyTorch semantics) ----------------

def _ref_mha(q_in, kv_in, wi, bi, wo, bo, nhead):
    # wi: (3E, E), bi: (3E,), wo: (E, E), bo: (E,)  — PyTorch orientation
    E = q_in.shape[-1]
    hd = E // nhead
    q = q_in @ wi[:E].T + bi[:E]
    k = kv_in @ wi[E:2 * E].T + bi[E:2 * E]
    v = kv_in @ wi[2 * E:].T + bi[2 * E:]
    L, S = q.shape[0], k.shape[0]
    q = q.reshape(L, nhead, hd).transpose(1, 0, 2)
    k = k.reshape(S, nhead, hd).transpose(1, 0, 2)
    v = v.reshape(S, nhead, hd).transpose(1, 0, 2)
    s = jnp.einsum("hld,hsd->hls", q, k) / math.sqrt(hd)
    p = jax.nn.softmax(s, axis=-1)
    o = jnp.einsum("hls,hsd->hld", p, v)
    o = o.transpose(1, 0, 2).reshape(L, E)
    return o @ wo.T + bo


def reference_forward_batch_major(tgt, memory, params, *, nhead):
    # tgt: (N, L, E), memory: (N, S, E)
    N = tgt.shape[0]
    outs = []
    for b in range(N):
        x = tgt[b]
        mem = memory[b]
        x = x + _ref_mha(x, x, params["self_in_proj_w"], params["self_in_proj_b"],
                         params["self_out_proj_w"], params["self_out_proj_b"], nhead)
        x = x + _ref_mha(x, mem, params["cross_in_proj_w"], params["cross_in_proj_b"],
                         params["cross_out_proj_w"], params["cross_out_proj_b"], nhead)
        h = x @ params["linear1_w"].T + params["linear1_b"]
        h = jnp.where(h >= 0, h, 1.0 * h)  # LeakyReLU(slope=1.0) == identity
        x = x + (h @ params["linear2_w"].T + params["linear2_b"])
        outs.append(x)
    return jnp.stack(outs, axis=0)


if __name__ == "__main__":
    N, L, S = 16, 8, 8          # batch, tgt seq len, memory seq len
    E, nhead, dff = 32, 4, 16   # d_model, heads, dim_feedforward

    key = jax.random.PRNGKey(0)
    ks = jax.random.split(key, 16)

    def rand(k, shape, scale=0.1):
        return (scale * jax.random.normal(k, shape)).astype(jnp.float32)

    params = {
        "self_in_proj_w":  rand(ks[0], (3 * E, E)),
        "self_in_proj_b":  rand(ks[1], (3 * E,)),
        "self_out_proj_w": rand(ks[2], (E, E)),
        "self_out_proj_b": rand(ks[3], (E,)),
        "cross_in_proj_w":  rand(ks[4], (3 * E, E)),
        "cross_in_proj_b":  rand(ks[5], (3 * E,)),
        "cross_out_proj_w": rand(ks[6], (E, E)),
        "cross_out_proj_b": rand(ks[7], (E,)),
        "linear1_w": rand(ks[8], (dff, E)),
        "linear1_b": rand(ks[9], (dff,)),
        "linear2_w": rand(ks[10], (E, dff)),
        "linear2_b": rand(ks[11], (E,)),
    }

    tgt = rand(ks[12], (N, L, E), scale=1.0)      # batch-major
    memory = rand(ks[13], (N, S, E), scale=1.0)

    ref = reference_forward_batch_major(tgt, memory, params, nhead=nhead)

    # f32 path (recommended on v5e): exact softmax, tight agreement.
    out = transformer_decoder_layer_batch_major(tgt, memory, params, nhead=nhead,
                                                batch_block=8)
    out = jax.block_until_ready(out)
    assert out.shape == (N, L, E)
    assert jnp.allclose(out, ref, atol=5e-4, rtol=5e-4), "f32 kernel mismatch"

    # bf16 MXU-operand path (recommended on v6e/v7x): f32 accumulation,
    # f32 softmax stats / residuals.
    out_bf16 = transformer_decoder_layer_batch_major(
        tgt, memory, params, nhead=nhead, batch_block=8,
        matmul_dtype=jnp.bfloat16)
    out_bf16 = jax.block_until_ready(out_bf16)
    assert jnp.allclose(out_bf16, ref, atol=5e-2, rtol=5e-2), "bf16 kernel mismatch"

    print("KERNEL_OK")
</pallas_src>

<mosaic_0001>
module attributes {stable_mosaic.version = 11 : i64} {
  func.func @_decoder_layer_kernel(%arg0: i32, %arg1: memref<64x32xf32, #tpu.memory_space<vmem>>, %arg2: memref<64x32xf32, #tpu.memory_space<vmem>>, %arg3: memref<32x288xf32, #tpu.memory_space<vmem>>, %arg4: memref<1x304xf32, #tpu.memory_space<vmem>>, %arg5: memref<64x32xf32, #tpu.memory_space<vmem>>) attributes {dimension_semantics = [#tpu.dimension_semantics<arbitrary>], iteration_bounds = array<i64: 2>, scalar_prefetch = 0 : i64, scratch_operands = 0 : i64, tpu.core_type = #tpu.core_type<tc>, window_params = [{transform_indices = @transform_0, window_bounds = array<i64: 64, 32>}, {transform_indices = @transform_1, window_bounds = array<i64: 64, 32>}, {pipeline_mode = #tpu.pipeline_mode<synchronous>, transform_indices = @transform_2, window_bounds = array<i64: 32, 288>}, {pipeline_mode = #tpu.pipeline_mode<synchronous>, transform_indices = @transform_3, window_bounds = array<i64: 1, 304>}, {transform_indices = @transform_4, window_bounds = array<i64: 64, 32>}]} {
    %c0 = arith.constant 0 : index
    %c0_0 = arith.constant 0 : index
    %0 = vector.load %arg1[%c0, %c0_0] : memref<64x32xf32, #tpu.memory_space<vmem>>, vector<64x32xf32>
    %c0_1 = arith.constant 0 : index
    %c0_2 = arith.constant 0 : index
    %1 = vector.load %arg2[%c0_1, %c0_2] : memref<64x32xf32, #tpu.memory_space<vmem>>, vector<64x32xf32>
    %c0_3 = arith.constant 0 : index
    %c0_4 = arith.constant 0 : index
    %2 = vector.load %arg3[%c0_3, %c0_4] : memref<32x288xf32, #tpu.memory_space<vmem>>, vector<32x96xf32>
    %cst = arith.constant dense<0.000000e+00> : vector<64x96xf32>
    %3 = tpu.matmul %0, %2, %cst {dimension_numbers = #tpu.dot_dimension_numbers<[1], [0], [0], [1], [0, 0, 1, 1], [], []>} : vector<64x32xf32>, vector<32x96xf32>, vector<64x96xf32> -> vector<64x96xf32>
    %c0_5 = arith.constant 0 : index
    %c0_6 = arith.constant 0 : index
    %4 = vector.load %arg4[%c0_5, %c0_6] : memref<1x304xf32, #tpu.memory_space<vmem>>, vector<1x96xf32>
    %5 = vector.broadcast %4 : vector<1x96xf32> to vector<64x96xf32>
    %6 = arith.addf %3, %5 : vector<64x96xf32>
    %7 = vector.shape_cast %6 : vector<64x96xf32> to vector<8x8x96xf32>
    %8 = vector.extract_strided_slice %7 {offsets = [0, 0, 0], sizes = [8, 8, 8], strides = [1, 1, 1]} : vector<8x8x96xf32> to vector<8x8x8xf32>
    %9 = vector.extract_strided_slice %7 {offsets = [0, 0, 32], sizes = [8, 8, 8], strides = [1, 1, 1]} : vector<8x8x96xf32> to vector<8x8x8xf32>
    %10 = vector.extract_strided_slice %7 {offsets = [0, 0, 64], sizes = [8, 8, 8], strides = [1, 1, 1]} : vector<8x8x96xf32> to vector<8x8x8xf32>
    %cst_7 = arith.constant dense<0.000000e+00> : vector<8x8x8xf32>
    %11 = tpu.matmul %8, %9, %cst_7 {dimension_numbers = #tpu.dot_dimension_numbers<[2], [2], [1], [1], [0, 0, 0, 1, 1, 1], [0], [0]>} : vector<8x8x8xf32>, vector<8x8x8xf32>, vector<8x8x8xf32> -> vector<8x8x8xf32>
    %cst_8 = arith.constant dense<0xFF800000> : vector<8x8xf32>
    %12 = vector.multi_reduction <maximumf>, %11, %cst_8 [2] : vector<8x8x8xf32> to vector<8x8xf32>
    %13 = vector.shape_cast %12 : vector<8x8xf32> to vector<8x8x1xf32>
    %14 = vector.broadcast %13 : vector<8x8x1xf32> to vector<8x8x8xf32>
    %15 = arith.subf %11, %14 : vector<8x8x8xf32>
    %16 = math.exp %15 : vector<8x8x8xf32>
    %cst_9 = arith.constant dense<0.000000e+00> : vector<8x8xf32>
    %17 = vector.multi_reduction <add>, %16, %cst_9 [2] : vector<8x8x8xf32> to vector<8x8xf32>
    %18 = vector.shape_cast %17 : vector<8x8xf32> to vector<8x8x1xf32>
    %19 = vector.broadcast %18 : vector<8x8x1xf32> to vector<8x8x8xf32>
    %20 = arith.divf %16, %19 : vector<8x8x8xf32>
    %cst_10 = arith.constant dense<0.000000e+00> : vector<8x8x8xf32>
    %21 = tpu.matmul %20, %10, %cst_10 {dimension_numbers = #tpu.dot_dimension_numbers<[2], [1], [1], [2], [0, 0, 0, 1, 1, 2], [0], [0]>} : vector<8x8x8xf32>, vector<8x8x8xf32>, vector<8x8x8xf32> -> vector<8x8x8xf32>
    %22 = vector.extract_strided_slice %7 {offsets = [0, 0, 8], sizes = [8, 8, 8], strides = [1, 1, 1]} : vector<8x8x96xf32> to vector<8x8x8xf32>
    %23 = vector.extract_strided_slice %7 {offsets = [0, 0, 40], sizes = [8, 8, 8], strides = [1, 1, 1]} : vector<8x8x96xf32> to vector<8x8x8xf32>
    %24 = vector.extract_strided_slice %7 {offsets = [0, 0, 72], sizes = [8, 8, 8], strides = [1, 1, 1]} : vector<8x8x96xf32> to vector<8x8x8xf32>
    %cst_11 = arith.constant dense<0.000000e+00> : vector<8x8x8xf32>
    %25 = tpu.matmul %22, %23, %cst_11 {dimension_numbers = #tpu.dot_dimension_numbers<[2], [2], [1], [1], [0, 0, 0, 1, 1, 1], [0], [0]>} : vector<8x8x8xf32>, vector<8x8x8xf32>, vector<8x8x8xf32> -> vector<8x8x8xf32>
    %cst_12 = arith.constant dense<0xFF800000> : vector<8x8xf32>
    %26 = vector.multi_reduction <maximumf>, %25, %cst_12 [2] : vector<8x8x8xf32> to vector<8x8xf32>
    %27 = vector.shape_cast %26 : vector<8x8xf32> to vector<8x8x1xf32>
    %28 = vector.broadcast %27 : vector<8x8x1xf32> to vector<8x8x8xf32>
    %29 = arith.subf %25, %28 : vector<8x8x8xf32>
    %30 = math.exp %29 : vector<8x8x8xf32>
    %cst_13 = arith.constant dense<0.000000e+00> : vector<8x8xf32>
    %31 = vector.multi_reduction <add>, %30, %cst_13 [2] : vector<8x8x8xf32> to vector<8x8xf32>
    %32 = vector.shape_cast %31 : vector<8x8xf32> to vector<8x8x1xf32>
    %33 = vector.broadcast %32 : vector<8x8x1xf32> to vector<8x8x8xf32>
    %34 = arith.divf %30, %33 : vector<8x8x8xf32>
    %cst_14 = arith.constant dense<0.000000e+00> : vector<8x8x8xf32>
    %35 = tpu.matmul %34, %24, %cst_14 {dimension_numbers = #tpu.dot_dimension_numbers<[2], [1], [1], [2], [0, 0, 0, 1, 1, 2], [0], [0]>} : vector<8x8x8xf32>, vector<8x8x8xf32>, vector<8x8x8xf32> -> vector<8x8x8xf32>
    %36 = vector.extract_strided_slice %7 {offsets = [0, 0, 16], sizes = [8, 8, 8], strides = [1, 1, 1]} : vector<8x8x96xf32> to vector<8x8x8xf32>
    %37 = vector.extract_strided_slice %7 {offsets = [0, 0, 48], sizes = [8, 8, 8], strides = [1, 1, 1]} : vector<8x8x96xf32> to vector<8x8x8xf32>
    %38 = vector.extract_strided_slice %7 {offsets = [0, 0, 80], sizes = [8, 8, 8], strides = [1, 1, 1]} : vector<8x8x96xf32> to vector<8x8x8xf32>
    %cst_15 = arith.constant dense<0.000000e+00> : vector<8x8x8xf32>
    %39 = tpu.matmul %36, %37, %cst_15 {dimension_numbers = #tpu.dot_dimension_numbers<[2], [2], [1], [1], [0, 0, 0, 1, 1, 1], [0], [0]>} : vector<8x8x8xf32>, vector<8x8x8xf32>, vector<8x8x8xf32> -> vector<8x8x8xf32>
    %cst_16 = arith.constant dense<0xFF800000> : vector<8x8xf32>
    %40 = vector.multi_reduction <maximumf>, %39, %cst_16 [2] : vector<8x8x8xf32> to vector<8x8xf32>
    %41 = vector.shape_cast %40 : vector<8x8xf32> to vector<8x8x1xf32>
    %42 = vector.broadcast %41 : vector<8x8x1xf32> to vector<8x8x8xf32>
    %43 = arith.subf %39, %42 : vector<8x8x8xf32>
    %44 = math.exp %43 : vector<8x8x8xf32>
    %cst_17 = arith.constant dense<0.000000e+00> : vector<8x8xf32>
    %45 = vector.multi_reduction <add>, %44, %cst_17 [2] : vector<8x8x8xf32> to vector<8x8xf32>
    %46 = vector.shape_cast %45 : vector<8x8xf32> to vector<8x8x1xf32>
    %47 = vector.broadcast %46 : vector<8x8x1xf32> to vector<8x8x8xf32>
    %48 = arith.divf %44, %47 : vector<8x8x8xf32>
    %cst_18 = arith.constant dense<0.000000e+00> : vector<8x8x8xf32>
    %49 = tpu.matmul %48, %38, %cst_18 {dimension_numbers = #tpu.dot_dimension_numbers<[2], [1], [1], [2], [0, 0, 0, 1, 1, 2], [0], [0]>} : vector<8x8x8xf32>, vector<8x8x8xf32>, vector<8x8x8xf32> -> vector<8x8x8xf32>
    %50 = vector.extract_strided_slice %7 {offsets = [0, 0, 24], sizes = [8, 8, 8], strides = [1, 1, 1]} : vector<8x8x96xf32> to vector<8x8x8xf32>
    %51 = vector.extract_strided_slice %7 {offsets = [0, 0, 56], sizes = [8, 8, 8], strides = [1, 1, 1]} : vector<8x8x96xf32> to vector<8x8x8xf32>
    %52 = vector.extract_strided_slice %7 {offsets = [0, 0, 88], sizes = [8, 8, 8], strides = [1, 1, 1]} : vector<8x8x96xf32> to vector<8x8x8xf32>
    %cst_19 = arith.constant dense<0.000000e+00> : vector<8x8x8xf32>
    %53 = tpu.matmul %50, %51, %cst_19 {dimension_numbers = #tpu.dot_dimension_numbers<[2], [2], [1], [1], [0, 0, 0, 1, 1, 1], [0], [0]>} : vector<8x8x8xf32>, vector<8x8x8xf32>, vector<8x8x8xf32> -> vector<8x8x8xf32>
    %cst_20 = arith.constant dense<0xFF800000> : vector<8x8xf32>
    %54 = vector.multi_reduction <maximumf>, %53, %cst_20 [2] : vector<8x8x8xf32> to vector<8x8xf32>
    %55 = vector.shape_cast %54 : vector<8x8xf32> to vector<8x8x1xf32>
    %56 = vector.broadcast %55 : vector<8x8x1xf32> to vector<8x8x8xf32>
    %57 = arith.subf %53, %56 : vector<8x8x8xf32>
    %58 = math.exp %57 : vector<8x8x8xf32>
    %cst_21 = arith.constant dense<0.000000e+00> : vector<8x8xf32>
    %59 = vector.multi_reduction <add>, %58, %cst_21 [2] : vector<8x8x8xf32> to vector<8x8xf32>
    %60 = vector.shape_cast %59 : vector<8x8xf32> to vector<8x8x1xf32>
    %61 = vector.broadcast %60 : vector<8x8x1xf32> to vector<8x8x8xf32>
    %62 = arith.divf %58, %61 : vector<8x8x8xf32>
    %cst_22 = arith.constant dense<0.000000e+00> : vector<8x8x8xf32>
    %63 = tpu.matmul %62, %52, %cst_22 {dimension_numbers = #tpu.dot_dimension_numbers<[2], [1], [1], [2], [0, 0, 0, 1, 1, 2], [0], [0]>} : vector<8x8x8xf32>, vector<8x8x8xf32>, vector<8x8x8xf32> -> vector<8x8x8xf32>
    %64 = tpu.concatenate %21, %35, %49, %63 in 2 : vector<8x8x8xf32>, vector<8x8x8xf32>, vector<8x8x8xf32>, vector<8x8x8xf32> -> vector<8x8x32xf32>
    %65 = vector.shape_cast %64 : vector<8x8x32xf32> to vector<64x32xf32>
    %c0_23 = arith.constant 0 : index
    %c96 = arith.constant 96 : index
    %66 = vector.load %arg3[%c0_23, %c96] : memref<32x288xf32, #tpu.memory_space<vmem>>, vector<32x32xf32>
    %cst_24 = arith.constant dense<0.000000e+00> : vector<64x32xf32>
    %67 = tpu.matmul %65, %66, %cst_24 {dimension_numbers = #tpu.dot_dimension_numbers<[1], [0], [0], [1], [0, 0, 1, 1], [], []>} : vector<64x32xf32>, vector<32x32xf32>, vector<64x32xf32> -> vector<64x32xf32>
    %c0_25 = arith.constant 0 : index
    %c96_26 = arith.constant 96 : index
    %68 = vector.load %arg4[%c0_25, %c96_26] : memref<1x304xf32, #tpu.memory_space<vmem>>, vector<1x32xf32>
    %69 = vector.broadcast %68 : vector<1x32xf32> to vector<64x32xf32>
    %70 = arith.addf %67, %69 : vector<64x32xf32>
    %71 = arith.addf %0, %70 : vector<64x32xf32>
    %c0_27 = arith.constant 0 : index
    %c128 = arith.constant 128 : index
    %72 = vector.load %arg3[%c0_27, %c128] : memref<32x288xf32, #tpu.memory_space<vmem>>, vector<32x32xf32>
    %cst_28 = arith.constant dense<0.000000e+00> : vector<64x32xf32>
    %73 = tpu.matmul %71, %72, %cst_28 {dimension_numbers = #tpu.dot_dimension_numbers<[1], [0], [0], [1], [0, 0, 1, 1], [], []>} : vector<64x32xf32>, vector<32x32xf32>, vector<64x32xf32> -> vector<64x32xf32>
    %c0_29 = arith.constant 0 : index
    %c128_30 = arith.constant 128 : index
    %74 = vector.load %arg4[%c0_29, %c128_30] : memref<1x304xf32, #tpu.memory_space<vmem>>, vector<1x32xf32>
    %75 = vector.broadcast %74 : vector<1x32xf32> to vector<64x32xf32>
    %76 = arith.addf %73, %75 : vector<64x32xf32>
    %c0_31 = arith.constant 0 : index
    %c160 = arith.constant 160 : index
    %77 = vector.load %arg3[%c0_31, %c160] : memref<32x288xf32, #tpu.memory_space<vmem>>, vector<32x64xf32>
    %cst_32 = arith.constant dense<0.000000e+00> : vector<64x64xf32>
    %78 = tpu.matmul %1, %77, %cst_32 {dimension_numbers = #tpu.dot_dimension_numbers<[1], [0], [0], [1], [0, 0, 1, 1], [], []>} : vector<64x32xf32>, vector<32x64xf32>, vector<64x64xf32> -> vector<64x64xf32>
    %c0_33 = arith.constant 0 : index
    %c160_34 = arith.constant 160 : index
    %79 = vector.load %arg4[%c0_33, %c160_34] : memref<1x304xf32, #tpu.memory_space<vmem>>, vector<1x64xf32>
    %80 = vector.broadcast %79 : vector<1x64xf32> to vector<64x64xf32>
    %81 = arith.addf %78, %80 : vector<64x64xf32>
    %82 = vector.shape_cast %76 : vector<64x32xf32> to vector<8x8x32xf32>
    %83 = vector.shape_cast %81 : vector<64x64xf32> to vector<8x8x64xf32>
    %84 = vector.extract_strided_slice %82 {offsets = [0, 0, 0], sizes = [8, 8, 8], strides = [1, 1, 1]} : vector<8x8x32xf32> to vector<8x8x8xf32>
    %85 = vector.extract_strided_slice %83 {offsets = [0, 0, 0], sizes = [8, 8, 8], strides = [1, 1, 1]} : vector<8x8x64xf32> to vector<8x8x8xf32>
    %86 = vector.extract_strided_slice %83 {offsets = [0, 0, 32], sizes = [8, 8, 8], strides = [1, 1, 1]} : vector<8x8x64xf32> to vector<8x8x8xf32>
    %cst_35 = arith.constant dense<0.000000e+00> : vector<8x8x8xf32>
    %87 = tpu.matmul %84, %85, %cst_35 {dimension_numbers = #tpu.dot_dimension_numbers<[2], [2], [1], [1], [0, 0, 0, 1, 1, 1], [0], [0]>} : vector<8x8x8xf32>, vector<8x8x8xf32>, vector<8x8x8xf32> -> vector<8x8x8xf32>
    %cst_36 = arith.constant dense<0xFF800000> : vector<8x8xf32>
    %88 = vector.multi_reduction <maximumf>, %87, %cst_36 [2] : vector<8x8x8xf32> to vector<8x8xf32>
    %89 = vector.shape_cast %88 : vector<8x8xf32> to vector<8x8x1xf32>
    %90 = vector.broadcast %89 : vector<8x8x1xf32> to vector<8x8x8xf32>
    %91 = arith.subf %87, %90 : vector<8x8x8xf32>
    %92 = math.exp %91 : vector<8x8x8xf32>
    %cst_37 = arith.constant dense<0.000000e+00> : vector<8x8xf32>
    %93 = vector.multi_reduction <add>, %92, %cst_37 [2] : vector<8x8x8xf32> to vector<8x8xf32>
    %94 = vector.shape_cast %93 : vector<8x8xf32> to vector<8x8x1xf32>
    %95 = vector.broadcast %94 : vector<8x8x1xf32> to vector<8x8x8xf32>
    %96 = arith.divf %92, %95 : vector<8x8x8xf32>
    %cst_38 = arith.constant dense<0.000000e+00> : vector<8x8x8xf32>
    %97 = tpu.matmul %96, %86, %cst_38 {dimension_numbers = #tpu.dot_dimension_numbers<[2], [1], [1], [2], [0, 0, 0, 1, 1, 2], [0], [0]>} : vector<8x8x8xf32>, vector<8x8x8xf32>, vector<8x8x8xf32> -> vector<8x8x8xf32>
    %98 = vector.extract_strided_slice %82 {offsets = [0, 0, 8], sizes = [8, 8, 8], strides = [1, 1, 1]} : vector<8x8x32xf32> to vector<8x8x8xf32>
    %99 = vector.extract_strided_slice %83 {offsets = [0, 0, 8], sizes = [8, 8, 8], strides = [1, 1, 1]} : vector<8x8x64xf32> to vector<8x8x8xf32>
    %100 = vector.extract_strided_slice %83 {offsets = [0, 0, 40], sizes = [8, 8, 8], strides = [1, 1, 1]} : vector<8x8x64xf32> to vector<8x8x8xf32>
    %cst_39 = arith.constant dense<0.000000e+00> : vector<8x8x8xf32>
    %101 = tpu.matmul %98, %99, %cst_39 {dimension_numbers = #tpu.dot_dimension_numbers<[2], [2], [1], [1], [0, 0, 0, 1, 1, 1], [0], [0]>} : vector<8x8x8xf32>, vector<8x8x8xf32>, vector<8x8x8xf32> -> vector<8x8x8xf32>
    %cst_40 = arith.constant dense<0xFF800000> : vector<8x8xf32>
    %102 = vector.multi_reduction <maximumf>, %101, %cst_40 [2] : vector<8x8x8xf32> to vector<8x8xf32>
    %103 = vector.shape_cast %102 : vector<8x8xf32> to vector<8x8x1xf32>
    %104 = vector.broadcast %103 : vector<8x8x1xf32> to vector<8x8x8xf32>
    %105 = arith.subf %101, %104 : vector<8x8x8xf32>
    %106 = math.exp %105 : vector<8x8x8xf32>
    %cst_41 = arith.constant dense<0.000000e+00> : vector<8x8xf32>
    %107 = vector.multi_reduction <add>, %106, %cst_41 [2] : vector<8x8x8xf32> to vector<8x8xf32>
    %108 = vector.shape_cast %107 : vector<8x8xf32> to vector<8x8x1xf32>
    %109 = vector.broadcast %108 : vector<8x8x1xf32> to vector<8x8x8xf32>
    %110 = arith.divf %106, %109 : vector<8x8x8xf32>
    %cst_42 = arith.constant dense<0.000000e+00> : vector<8x8x8xf32>
    %111 = tpu.matmul %110, %100, %cst_42 {dimension_numbers = #tpu.dot_dimension_numbers<[2], [1], [1], [2], [0, 0, 0, 1, 1, 2], [0], [0]>} : vector<8x8x8xf32>, vector<8x8x8xf32>, vector<8x8x8xf32> -> vector<8x8x8xf32>
    %112 = vector.extract_strided_slice %82 {offsets = [0, 0, 16], sizes = [8, 8, 8], strides = [1, 1, 1]} : vector<8x8x32xf32> to vector<8x8x8xf32>
    %113 = vector.extract_strided_slice %83 {offsets = [0, 0, 16], sizes = [8, 8, 8], strides = [1, 1, 1]} : vector<8x8x64xf32> to vector<8x8x8xf32>
    %114 = vector.extract_strided_slice %83 {offsets = [0, 0, 48], sizes = [8, 8, 8], strides = [1, 1, 1]} : vector<8x8x64xf32> to vector<8x8x8xf32>
    %cst_43 = arith.constant dense<0.000000e+00> : vector<8x8x8xf32>
    %115 = tpu.matmul %112, %113, %cst_43 {dimension_numbers = #tpu.dot_dimension_numbers<[2], [2], [1], [1], [0, 0, 0, 1, 1, 1], [0], [0]>} : vector<8x8x8xf32>, vector<8x8x8xf32>, vector<8x8x8xf32> -> vector<8x8x8xf32>
    %cst_44 = arith.constant dense<0xFF800000> : vector<8x8xf32>
    %116 = vector.multi_reduction <maximumf>, %115, %cst_44 [2] : vector<8x8x8xf32> to vector<8x8xf32>
    %117 = vector.shape_cast %116 : vector<8x8xf32> to vector<8x8x1xf32>
    %118 = vector.broadcast %117 : vector<8x8x1xf32> to vector<8x8x8xf32>
    %119 = arith.subf %115, %118 : vector<8x8x8xf32>
    %120 = math.exp %119 : vector<8x8x8xf32>
    %cst_45 = arith.constant dense<0.000000e+00> : vector<8x8xf32>
    %121 = vector.multi_reduction <add>, %120, %cst_45 [2] : vector<8x8x8xf32> to vector<8x8xf32>
    %122 = vector.shape_cast %121 : vector<8x8xf32> to vector<8x8x1xf32>
    %123 = vector.broadcast %122 : vector<8x8x1xf32> to vector<8x8x8xf32>
    %124 = arith.divf %120, %123 : vector<8x8x8xf32>
    %cst_46 = arith.constant dense<0.000000e+00> : vector<8x8x8xf32>
    %125 = tpu.matmul %124, %114, %cst_46 {dimension_numbers = #tpu.dot_dimension_numbers<[2], [1], [1], [2], [0, 0, 0, 1, 1, 2], [0], [0]>} : vector<8x8x8xf32>, vector<8x8x8xf32>, vector<8x8x8xf32> -> vector<8x8x8xf32>
    %126 = vector.extract_strided_slice %82 {offsets = [0, 0, 24], sizes = [8, 8, 8], strides = [1, 1, 1]} : vector<8x8x32xf32> to vector<8x8x8xf32>
    %127 = vector.extract_strided_slice %83 {offsets = [0, 0, 24], sizes = [8, 8, 8], strides = [1, 1, 1]} : vector<8x8x64xf32> to vector<8x8x8xf32>
    %128 = vector.extract_strided_slice %83 {offsets = [0, 0, 56], sizes = [8, 8, 8], strides = [1, 1, 1]} : vector<8x8x64xf32> to vector<8x8x8xf32>
    %cst_47 = arith.constant dense<0.000000e+00> : vector<8x8x8xf32>
    %129 = tpu.matmul %126, %127, %cst_47 {dimension_numbers = #tpu.dot_dimension_numbers<[2], [2], [1], [1], [0, 0, 0, 1, 1, 1], [0], [0]>} : vector<8x8x8xf32>, vector<8x8x8xf32>, vector<8x8x8xf32> -> vector<8x8x8xf32>
    %cst_48 = arith.constant dense<0xFF800000> : vector<8x8xf32>
    %130 = vector.multi_reduction <maximumf>, %129, %cst_48 [2] : vector<8x8x8xf32> to vector<8x8xf32>
    %131 = vector.shape_cast %130 : vector<8x8xf32> to vector<8x8x1xf32>
    %132 = vector.broadcast %131 : vector<8x8x1xf32> to vector<8x8x8xf32>
    %133 = arith.subf %129, %132 : vector<8x8x8xf32>
    %134 = math.exp %133 : vector<8x8x8xf32>
    %cst_49 = arith.constant dense<0.000000e+00> : vector<8x8xf32>
    %135 = vector.multi_reduction <add>, %134, %cst_49 [2] : vector<8x8x8xf32> to vector<8x8xf32>
    %136 = vector.shape_cast %135 : vector<8x8xf32> to vector<8x8x1xf32>
    %137 = vector.broadcast %136 : vector<8x8x1xf32> to vector<8x8x8xf32>
    %138 = arith.divf %134, %137 : vector<8x8x8xf32>
    %cst_50 = arith.constant dense<0.000000e+00> : vector<8x8x8xf32>
    %139 = tpu.matmul %138, %128, %cst_50 {dimension_numbers = #tpu.dot_dimension_numbers<[2], [1], [1], [2], [0, 0, 0, 1, 1, 2], [0], [0]>} : vector<8x8x8xf32>, vector<8x8x8xf32>, vector<8x8x8xf32> -> vector<8x8x8xf32>
    %140 = tpu.concatenate %97, %111, %125, %139 in 2 : vector<8x8x8xf32>, vector<8x8x8xf32>, vector<8x8x8xf32>, vector<8x8x8xf32> -> vector<8x8x32xf32>
    %141 = vector.shape_cast %140 : vector<8x8x32xf32> to vector<64x32xf32>
    %c0_51 = arith.constant 0 : index
    %c224 = arith.constant 224 : index
    %142 = vector.load %arg3[%c0_51, %c224] : memref<32x288xf32, #tpu.memory_space<vmem>>, vector<32x32xf32>
    %cst_52 = arith.constant dense<0.000000e+00> : vector<64x32xf32>
    %143 = tpu.matmul %141, %142, %cst_52 {dimension_numbers = #tpu.dot_dimension_numbers<[1], [0], [0], [1], [0, 0, 1, 1], [], []>} : vector<64x32xf32>, vector<32x32xf32>, vector<64x32xf32> -> vector<64x32xf32>
    %c0_53 = arith.constant 0 : index
    %c224_54 = arith.constant 224 : index
    %144 = vector.load %arg4[%c0_53, %c224_54] : memref<1x304xf32, #tpu.memory_space<vmem>>, vector<1x32xf32>
    %145 = vector.broadcast %144 : vector<1x32xf32> to vector<64x32xf32>
    %146 = arith.addf %143, %145 : vector<64x32xf32>
    %147 = arith.addf %71, %146 : vector<64x32xf32>
    %c0_55 = arith.constant 0 : index
    %c256 = arith.constant 256 : index
    %148 = vector.load %arg3[%c0_55, %c256] : memref<32x288xf32, #tpu.memory_space<vmem>>, vector<32x16xf32>
    %cst_56 = arith.constant dense<0.000000e+00> : vector<64x16xf32>
    %149 = tpu.matmul %147, %148, %cst_56 {dimension_numbers = #tpu.dot_dimension_numbers<[1], [0], [0], [1], [0, 0, 1, 1], [], []>} : vector<64x32xf32>, vector<32x16xf32>, vector<64x16xf32> -> vector<64x16xf32>
    %c0_57 = arith.constant 0 : index
    %c256_58 = arith.constant 256 : index
    %150 = vector.load %arg4[%c0_57, %c256_58] : memref<1x304xf32, #tpu.memory_space<vmem>>, vector<1x16xf32>
    %151 = vector.broadcast %150 : vector<1x16xf32> to vector<64x16xf32>
    %152 = arith.addf %149, %151 : vector<64x16xf32>
    %c0_59 = arith.constant 0 : index
    %c272 = arith.constant 272 : index
    %153 = vector.load %arg3[%c0_59, %c272] : memref<32x288xf32, #tpu.memory_space<vmem>>, vector<32x16xf32>
    %cst_60 = arith.constant dense<0.000000e+00> : vector<64x32xf32>
    %154 = tpu.matmul %152, %153, %cst_60 {dimension_numbers = #tpu.dot_dimension_numbers<[1], [1], [0], [0], [0, 0, 1, 0], [], []>} : vector<64x16xf32>, vector<32x16xf32>, vector<64x32xf32> -> vector<64x32xf32>
    %c0_61 = arith.constant 0 : index
    %c272_62 = arith.constant 272 : index
    %155 = vector.load %arg4[%c0_61, %c272_62] : memref<1x304xf32, #tpu.memory_space<vmem>>, vector<1x32xf32>
    %156 = vector.broadcast %155 : vector<1x32xf32> to vector<64x32xf32>
    %157 = arith.addf %154, %156 : vector<64x32xf32>
    %158 = arith.addf %147, %157 : vector<64x32xf32>
    %c0_63 = arith.constant 0 : index
    %c0_64 = arith.constant 0 : index
    %159 = vector.load %arg5[%c0_63, %c0_64] : memref<64x32xf32, #tpu.memory_space<vmem>>, vector<64x32xf32>
    tpu.vector_store %arg5[%c0_63, %c0_64], %158 {strides = array<i32>} : memref<64x32xf32, #tpu.memory_space<vmem>>, vector<64x32xf32>,
    return
  }
  func.func @transform_0(%arg0: i32) -> (i32, i32) {
    %c0_i32 = arith.constant 0 : i32
    %c0_i32_0 = arith.constant 0 : i32
    return %arg0, %c0_i32 : i32, i32
  }
  func.func @transform_1(%arg0: i32) -> (i32, i32) {
    %c0_i32 = arith.constant 0 : i32
    %c0_i32_0 = arith.constant 0 : i32
    return %arg0, %c0_i32 : i32, i32
  }
  func.func @transform_2(%arg0: i32) -> (i32, i32) {
    %c0_i32 = arith.constant 0 : i32
    %c0_i32_0 = arith.constant 0 : i32
    %c0_i32_1 = arith.constant 0 : i32
    return %c0_i32, %c0_i32_0 : i32, i32
  }
  func.func @transform_3(%arg0: i32) -> (i32, i32) {
    %c0_i32 = arith.constant 0 : i32
    %c0_i32_0 = arith.constant 0 : i32
    %c0_i32_1 = arith.constant 0 : i32
    return %c0_i32, %c0_i32_0 : i32, i32
  }
  func.func @transform_4(%arg0: i32) -> (i32, i32) {
    %c0_i32 = arith.constant 0 : i32
    %c0_i32_0 = arith.constant 0 : i32
    return %arg0, %c0_i32 : i32, i32
  }
}

</mosaic_0001>

<llo_original>
// kernel: tpu_custom_call.1
$region0: #{tpu_custom_call.1}
  #allocation0 [shape = 'u32[]', space=smem, size = 0x4, offset = 0x4, fixed_abs, tag = 'smem constant byte address 0x4 - core index']
  #allocation1 [shape = 'u32[144,128]{1,0:T(1,128)}', space=vmem, size = 0x12000, scoped, tag = 'internal scratch']
  %s0 = inlined_call_operand.vmem [shape: f32[128,32], index: 0, kind: input, shape index: {}]
  %s1 = inlined_call_operand.vmem [shape: f32[128,32], index: 1, kind: input, shape index: {}]
  %s2 = inlined_call_operand.vmem [shape: f32[32,288], index: 2, kind: input, shape index: {}]
  %s3 = inlined_call_operand.vmem [shape: f32[1,304], index: 3, kind: input, shape index: {}]
  %s4 = inlined_call_operand.vmem [shape: f32[128,32], index: 4, kind: output, shape index: {}]
  %s5 = sld [smem:[#allocation0]]
  $region49: #{tpu_custom_call.1} parent=0
    _
  %s7 = ssub.s32 1, %s5
  %s8 = scalar_select 0, %s7, %s5
  loop: start=0, step=1, limit=4
  $region2: #{tpu_custom_call.1} parent=0 // loop_pre_header
    _
  $region3: #{tpu_custom_call.1} parent=0 // loop_header
    %s10 = sphi 0, %s14
    %p11 = scmp.ge.s32.totalorder %s10, 4
    %s20 = sphi 0, %s22
    %s23 = sphi 0, %s20
    %s24 = sphi 0, %s23
    %s40 = sphi 0, %s24
    %s46 = sphi 0, %s48
    %s49 = sphi 0, %s46
    %s50 = sphi 0, %s49
    %s66 = sphi 0, %s50
    %s70 = sphi 0, %s70
    %s72 = sphi 0, %s70
    %s73 = sphi 0, %s72
    %s87 = sphi 0, %s73
    %s91 = sphi 0, %s91
    %s93 = sphi 0, %s91
    %s94 = sphi 0, %s93
    %s108 = sphi 0, %s94
    %s114 = sphi 0, %s116
    %s117 = sphi 0, %s114
    %s118 = sphi 0, %s117
    %s134 = sphi 0, %s118
  $region4: #{tpu_custom_call.1} parent=0 // loop_header_branch
    %13 = sbr.rel (%p11) target = $region8
  $region5: #{tpu_custom_call.1} parent=0 // loop_body
    %s15 = ssub.s32 %s10, 1
    %s16 = ssub.s32 %s10, 2
    %s17 = sadd.s32 %s10, 1
    %s18 = ssub.s32 %s10, %s17
    %p19 = scmp.eq.s32.totalorder %s18, 0
    %s21 = sadd.s32 %s20, 1
    %s22 = scalar_select %p19, %s20, %s21
    %p25 = pneg %p19
    %p26 = scmp.eq.s32.totalorder %s10, 1
    %p27 = por %p25, %p26
    %p28 = scmp.ne.s32.totalorder %s20, %s23
    %p29 = scmp.eq.s32.totalorder %s10, 0
    %p30 = por %p28, %p29
    %p31 = scmp.ne.s32.totalorder %s20, %s23
    %p32 = scmp.eq.s32.totalorder %s15, 1
    %p33 = por %p31, %p32
    %p34 = scmp.ne.s32.totalorder %s23, %s24
    %p35 = scmp.eq.s32.totalorder %s15, 0
    %p36 = por %p34, %p35
    %p37 = scmp.ne.s32.totalorder %s23, %s24
    %p38 = scmp.eq.s32.totalorder %s16, 1
    %p39 = por %p37, %p38
    %p41 = scmp.ne.s32.totalorder %s24, %s40
    %p42 = scmp.eq.s32.totalorder %s16, 0
    %p43 = por %p41, %p42
    %s44 = ssub.s32 %s10, %s17
    %p45 = scmp.eq.s32.totalorder %s44, 0
    %s47 = sadd.s32 %s46, 1
    %s48 = scalar_select %p45, %s46, %s47
    %p51 = pneg %p45
    %p52 = scmp.eq.s32.totalorder %s10, 1
    %p53 = por %p51, %p52
    %p54 = scmp.ne.s32.totalorder %s46, %s49
    %p55 = scmp.eq.s32.totalorder %s10, 0
    %p56 = por %p54, %p55
    %p57 = scmp.ne.s32.totalorder %s46, %s49
    %p58 = scmp.eq.s32.totalorder %s15, 1
    %p59 = por %p57, %p58
    %p60 = scmp.ne.s32.totalorder %s49, %s50
    %p61 = scmp.eq.s32.totalorder %s15, 0
    %p62 = por %p60, %p61
    %p63 = scmp.ne.s32.totalorder %s49, %s50
    %p64 = scmp.eq.s32.totalorder %s16, 1
    %p65 = por %p63, %p64
    %p67 = scmp.ne.s32.totalorder %s50, %s66
    %p68 = scmp.eq.s32.totalorder %s16, 0
    %p69 = por %p67, %p68
    %s71 = sadd.s32 %s70, 1
    %p74 = scmp.eq.s32.totalorder %s10, 1
    %p75 = scmp.ne.s32.totalorder %s70, %s72
    %p76 = scmp.eq.s32.totalorder %s10, 0
    %p77 = por %p75, %p76
    %p78 = scmp.ne.s32.totalorder %s70, %s72
    %p79 = scmp.eq.s32.totalorder %s15, 1
    %p80 = por %p78, %p79
    %p81 = scmp.ne.s32.totalorder %s72, %s73
    %p82 = scmp.eq.s32.totalorder %s15, 0
    %p83 = por %p81, %p82
    %p84 = scmp.ne.s32.totalorder %s72, %s73
    %p85 = scmp.eq.s32.totalorder %s16, 1
    %p86 = por %p84, %p85
    %p88 = scmp.ne.s32.totalorder %s73, %s87
    %p89 = scmp.eq.s32.totalorder %s16, 0
    %p90 = por %p88, %p89
    %s92 = sadd.s32 %s91, 1
    %p95 = scmp.eq.s32.totalorder %s10, 1
    %p96 = scmp.ne.s32.totalorder %s91, %s93
    %p97 = scmp.eq.s32.totalorder %s10, 0
    %p98 = por %p96, %p97
    %p99 = scmp.ne.s32.totalorder %s91, %s93
    %p100 = scmp.eq.s32.totalorder %s15, 1
    %p101 = por %p99, %p100
    %p102 = scmp.ne.s32.totalorder %s93, %s94
    %p103 = scmp.eq.s32.totalorder %s15, 0
    %p104 = por %p102, %p103
    %p105 = scmp.ne.s32.totalorder %s93, %s94
    %p106 = scmp.eq.s32.totalorder %s16, 1
    %p107 = por %p105, %p106
    %p109 = scmp.ne.s32.totalorder %s94, %s108
    %p110 = scmp.eq.s32.totalorder %s16, 0
    %p111 = por %p109, %p110
    %s112 = ssub.s32 %s10, %s17
    %p113 = scmp.eq.s32.totalorder %s112, 0
    %s115 = sadd.s32 %s114, 1
    %s116 = scalar_select %p113, %s114, %s115
    %p119 = pneg %p113
    %p120 = scmp.eq.s32.totalorder %s10, 1
    %p121 = por %p119, %p120
    %p122 = scmp.ne.s32.totalorder %s114, %s117
    %p123 = scmp.eq.s32.totalorder %s10, 0
    %p124 = por %p122, %p123
    %p125 = scmp.ne.s32.totalorder %s114, %s117
    %p126 = scmp.eq.s32.totalorder %s15, 1
    %p127 = por %p125, %p126
    %p128 = scmp.ne.s32.totalorder %s117, %s118
    %p129 = scmp.eq.s32.totalorder %s15, 0
    %p130 = por %p128, %p129
    %p131 = scmp.ne.s32.totalorder %s117, %s118
    %p132 = scmp.eq.s32.totalorder %s16, 1
    %p133 = por %p131, %p132
    %p135 = scmp.ne.s32.totalorder %s118, %s134
    %p136 = scmp.eq.s32.totalorder %s16, 0
    %p137 = por %p135, %p136
    %p138 = scmp.le.s32.totalorder 1, %s10
    %p139 = scmp.lt.s32.totalorder %s10, 3
    %p140 = pnand %p138, %p139
    %p141 = pneg %p140
    // Predicated region
    $region9: #{tpu_custom_call.1} parent=5 // pred_check
      _
    $region10: #{tpu_custom_call.1} parent=5 // pred_check_branch
      %143 = sbr.rel (%p140) target = $region12
    $region11: #{tpu_custom_call.1} parent=5 // pred_region
      %s144 = ssub.s32 %s10, 1
      // Predicated region
      $region13: #{tpu_custom_call.1} parent=11 // pred_check
        %p145 = pneg %p83
      $region14: #{tpu_custom_call.1} parent=11 // pred_check_branch
        %147 = sbr.rel (%p145) target = $region16
      $region15: #{tpu_custom_call.1} parent=11 // pred_region
        _
      $region16: #{tpu_custom_call.1} parent=11 // pred_fallthru
        _
      // Predicated region
      $region17: #{tpu_custom_call.1} parent=11 // pred_check
        %p148 = pneg %p104
      $region18: #{tpu_custom_call.1} parent=11 // pred_check_branch
        %150 = sbr.rel (%p148) target = $region20
      $region19: #{tpu_custom_call.1} parent=11 // pred_region
        _
      $region20: #{tpu_custom_call.1} parent=11 // pred_fallthru
        _
    $region12: #{tpu_custom_call.1} parent=5 // pred_fallthru
      _
    %p151 = scmp.lt.s32.totalorder %s10, 2
    // Predicated region
    $region21: #{tpu_custom_call.1} parent=5 // pred_check
      %p152 = pneg %p151
    $region22: #{tpu_custom_call.1} parent=5 // pred_check_branch
      %154 = sbr.rel (%p152) target = $region24
    $region23: #{tpu_custom_call.1} parent=5 // pred_region
      // Predicated region
      $region25: #{tpu_custom_call.1} parent=23 // pred_check
        %p155 = pneg %p30
      $region26: #{tpu_custom_call.1} parent=23 // pred_check_branch
        %157 = sbr.rel (%p155) target = $region28
      $region27: #{tpu_custom_call.1} parent=23 // pred_region
        %s158 = smul.u32 8, %s10
        %p159 = scmp.lt.s32.totalorder %s158, 15
        %s160 = scalar_select %p159, %s158, 15
        %s161 = smul.addr %s160, 8
        %s162 = scalar_lea.vmem %s0, %s161
        %s163 = smul.u32 8, %s10
      $region28: #{tpu_custom_call.1} parent=23 // pred_fallthru
        _
      // Predicated region
      $region29: #{tpu_custom_call.1} parent=23 // pred_check
        %p164 = pneg %p56
      $region30: #{tpu_custom_call.1} parent=23 // pred_check_branch
        %166 = sbr.rel (%p164) target = $region32
      $region31: #{tpu_custom_call.1} parent=23 // pred_region
        %s167 = smul.u32 8, %s10
        %p168 = scmp.lt.s32.totalorder %s167, 15
        %s169 = scalar_select %p168, %s167, 15
        %s170 = smul.addr %s169, 8
        %s171 = scalar_lea.vmem %s1, %s170
        %s172 = smul.u32 8, %s10
      $region32: #{tpu_custom_call.1} parent=23 // pred_fallthru
        _
    $region24: #{tpu_custom_call.1} parent=5 // pred_fallthru
      _
    %p173 = scmp.le.s32.totalorder 1, %s10
    %p174 = scmp.lt.s32.totalorder %s10, 3
    %p175 = pnand %p173, %p174
    %p176 = pneg %p175
    // Predicated region
    $region33: #{tpu_custom_call.1} parent=5 // pred_check
      _
    $region34: #{tpu_custom_call.1} parent=5 // pred_check_branch
      %178 = sbr.rel (%p175) target = $region36
    $region35: #{tpu_custom_call.1} parent=5 // pred_region
      %s179 = ssub.s32 %s10, 1
      %s180 = smul.u32 8, %s15
      %p181 = scmp.lt.s32.totalorder %s180, 15
      %s182 = scalar_select %p181, %s180, 15
      %s183 = smul.addr %s182, 8
      %s184 = scalar_lea.vmem %s0, %s183
      %p185 = pneg %p36
      %p186 = pneg %p33
      %s187 = smul.u32 8, %s15
      %p188 = scmp.lt.s32.totalorder %s187, 15
      %s189 = scalar_select %p188, %s187, 15
      %s190 = smul.addr %s189, 8
      %s191 = scalar_lea.vmem %s1, %s190
      %p192 = pneg %p62
      %p193 = pneg %p59
      %p194 = pneg %p83
      %p195 = pneg %p80
      %p196 = pneg %p104
      %p197 = pneg %p101
      %p198 = pneg %p130
      %p199 = pneg %p127
      %s200 = smul.u32 8, %s15
      %p201 = scmp.lt.s32.totalorder %s200, 15
      %s202 = scalar_select %p201, %s200, 15
      %s203 = smul.addr %s202, 8
      %s204 = scalar_lea.vmem %s4, %s203
      %s205 = smul.u32 8, %s15
      %p206 = scmp.lt.s32.totalorder %s205, 15
      %s207 = scalar_select %p206, %s205, 15
      %s208 = smul.addr %s207, 8
      %s209 = scalar_lea.vmem %s0, %s208
      %s210 = smul.u32 8, %s15
      %s211 = smul.u32 8, %s15
      %p212 = scmp.lt.s32.totalorder %s211, 15
      %s213 = scalar_select %p212, %s211, 15
      %s214 = smul.addr %s213, 8
      %s215 = scalar_lea.vmem %s1, %s214
      %s216 = smul.u32 8, %s15
      %s217 = smul.u32 8, %s15
      %p218 = scmp.lt.s32.totalorder %s217, 15
      %s219 = scalar_select %p218, %s217, 15
      %s220 = smul.addr %s219, 8
      %s221 = scalar_lea.vmem %s4, %s220
      %s222 = smul.u32 8, %s15
      %v223 = vld [vmem:[%s209] sm:$0xff]
      %v224 = vld [vmem:[%s209 + $0x8] sm:$0xff]
      %v225 = vld [vmem:[%s209 + $0x10] sm:$0xff]
      %v226 = vld [vmem:[%s209 + $0x18] sm:$0xff]
      %v227 = vld [vmem:[%s209 + $0x20] sm:$0xff]
      %v228 = vld [vmem:[%s209 + $0x28] sm:$0xff]
      %v229 = vld [vmem:[%s209 + $0x30] sm:$0xff]
      %v230 = vld [vmem:[%s209 + $0x38] sm:$0xff]
      %v231 = vld [vmem:[%s215] sm:$0xff]
      %v232 = vld [vmem:[%s215 + $0x8] sm:$0xff]
      %v233 = vld [vmem:[%s215 + $0x10] sm:$0xff]
      %v234 = vld [vmem:[%s215 + $0x18] sm:$0xff]
      %v235 = vld [vmem:[%s215 + $0x20] sm:$0xff]
      %v236 = vld [vmem:[%s215 + $0x28] sm:$0xff]
      %v237 = vld [vmem:[%s215 + $0x30] sm:$0xff]
      %v238 = vld [vmem:[%s215 + $0x38] sm:$0xff]
      %v239 = vld [vmem:[%s2] sm:$0xff]
      %v240 = vld [vmem:[%s2 + $0x18] sm:$0xff]
      %v241 = vld [vmem:[%s2 + $0x30] sm:$0xff]
      %v242 = vld [vmem:[%s2 + $0x48] sm:$0xff]
      %v243 = vld [vmem:[%s3] sm:$0x1]
      %v245 = vlaneseq
      %v246 = vshrl.u32 %v245, 7
      %v247 = vsub.s32 0, %v246
      %v248 = vrot.slane %v243, %v247
      %vm250 = vcmask 261120
      %v252 = vsel %vm250, %v223, 0
      %v255 = vsel %vm250, %v224, 0
      %v258 = vsel %vm250, %v225, 0
      %v261 = vsel %vm250, %v226, 0
      %v264 = vsel %vm250, %v227, 0
      %v267 = vsel %vm250, %v228, 0
      %v270 = vsel %vm250, %v229, 0
      %v273 = vsel %vm250, %v230, 0
      %275 = vmatprep.subr.mxu0 0.0
      %276 = vmatpush1.msra.mxu0 %v239
      %277 = vmatprep.subr.mxu0 0.0
      %278 = vmatpush1.msra.mxu0 %v240
      %279 = vmatprep.subr.mxu0 0.0
      %280 = vmatpush1.msra.mxu0 %v241
      %281 = vmatprep.subr.mxu0 0.0
      %282 = vmatpush1.msra.mxu0 %v242
      %283 = vmatprep.subr.mxu0 0.0
      %284 = vmatpush1.msra.mxu0 0.0
      %285 = vmatprep.subr.mxu0 0.0
      %286 = vmatpush1.msra.mxu0 0.0
      %287 = vmatprep.subr.mxu0 0.0
      %288 = vmatpush1.msra.mxu0 0.0
      %289 = vmatprep.subr.mxu0 0.0
      %290 = vmatpush1.msra.mxu0 0.0
      %291 = vmatprep.subr.mxu0 0.0
      %292 = vmatpush1.msra.mxu0 0.0
      %293 = vmatprep.subr.mxu0 0.0
      %294 = vmatpush1.msra.mxu0 0.0
      %295 = vmatprep.subr.mxu0 0.0
      %296 = vmatpush1.msra.mxu0 0.0
      %297 = vmatprep.subr.mxu0 0.0
      %298 = vmatpush1.msra.mxu0 0.0
      %299 = vmatprep.subr.mxu0 0.0
      %300 = vmatpush1.msra.mxu0 0.0
      %301 = vmatprep.subr.mxu0 0.0
      %302 = vmatpush1.msra.mxu0 0.0
      %303 = vmatprep.subr.mxu0 0.0
      %304 = vmatpush1.msra.mxu0 0.0
      %305 = vmatprep.subr.mxu0 0.0
      %306 = vmatpush1.msra.mxu0 0.0
      %307 = vmatprep.subr.mxu0 0.0
      %308 = vmatpush1.msra.mxu0 0.0
      %309 = vmatprep.subr.mxu0 0.0
      %310 = vmatpush1.msra.mxu0 0.0
      %311 = vmatprep.subr.mxu0 0.0
      %312 = vmatpush1.msra.mxu0 0.0
      %313 = vmatprep.subr.mxu0 0.0
      %314 = vmatpush1.msra.mxu0 0.0
      %315 = vmatprep.subr.mxu0 0.0
      %316 = vmatpush1.msra.mxu0 0.0
      %317 = vmatprep.subr.mxu0 0.0
      %318 = vmatpush1.msra.mxu0 0.0
      %319 = vmatprep.subr.mxu0 0.0
      %320 = vmatpush1.msra.mxu0 0.0
      %321 = vmatprep.subr.mxu0 0.0
      %322 = vmatpush1.msra.mxu0 0.0
      %323 = vmatprep.subr.mxu0 0.0
      %324 = vmatpush1.msra.mxu0 0.0
      %325 = vmatprep.subr.mxu0 0.0
      %326 = vmatpush1.msra.mxu0 0.0
      %327 = vmatprep.subr.mxu0 0.0
      %328 = vmatpush1.msra.mxu0 0.0
      %329 = vmatprep.subr.mxu0 0.0
      %330 = vmatpush1.msra.mxu0 0.0
      %331 = vmatprep.subr.mxu0 0.0
      %332 = vmatpush1.msra.mxu0 0.0
      %333 = vmatprep.subr.mxu0 0.0
      %334 = vmatpush1.msra.mxu0 0.0
      %335 = vmatprep.subr.mxu0 0.0
      %336 = vmatpush1.msra.mxu0 0.0
      %337 = vmatprep.subr.mxu0 0.0
      %338 = vmatpush1.msra.mxu0 0.0
      %339 = vmatprep.mubr.f32.mxu0 0.0
      %340 = vmatmul.mubr.f32.gmra.mrb[0].mxu0 %v252
      %v341 = vpop.f32.mrb[0].mxu0
      %v342 = vadd.f32 %v248, %v341
      %v343 = vpop.f32.mrb[0].mxu0
      %344 = vmatprep.mubr.f32.mxu0 0.0
      %345 = vmatmul.mubr.f32.gmra.mrb[0].mxu0 %v255
      %v346 = vpop.f32.mrb[0].mxu0
      %v347 = vadd.f32 %v248, %v346
      %v348 = vpop.f32.mrb[0].mxu0
      %349 = vmatprep.mubr.f32.mxu0 0.0
      %350 = vmatmul.mubr.f32.gmra.mrb[0].mxu0 %v258
      %v351 = vpop.f32.mrb[0].mxu0
      %v352 = vadd.f32 %v248, %v351
      %v353 = vpop.f32.mrb[0].mxu0
      %354 = vmatprep.mubr.f32.mxu0 0.0
      %355 = vmatmul.mubr.f32.gmra.mrb[0].mxu0 %v261
      %v356 = vpop.f32.mrb[0].mxu0
      %v357 = vadd.f32 %v248, %v356
      %v358 = vpop.f32.mrb[0].mxu0
      %359 = vmatprep.mubr.f32.mxu0 0.0
      %360 = vmatmul.mubr.f32.gmra.mrb[0].mxu0 %v264
      %v361 = vpop.f32.mrb[0].mxu0
      %v362 = vadd.f32 %v248, %v361
      %v363 = vpop.f32.mrb[0].mxu0
      %364 = vmatprep.mubr.f32.mxu0 0.0
      %365 = vmatmul.mubr.f32.gmra.mrb[0].mxu0 %v267
      %v366 = vpop.f32.mrb[0].mxu0
      %v367 = vadd.f32 %v248, %v366
      %v368 = vpop.f32.mrb[0].mxu0
      %369 = vmatprep.mubr.f32.mxu0 0.0
      %370 = vmatmul.mubr.f32.gmra.mrb[0].mxu0 %v270
      %v371 = vpop.f32.mrb[0].mxu0
      %v372 = vadd.f32 %v248, %v371
      %v373 = vpop.f32.mrb[0].mxu0
      %374 = vmatprep.mubr.f32.mxu0 0.0
      %375 = vmatmul.mubr.f32.gmra.mrb[0].mxu0 %v273
      %v376 = vpop.f32.mrb[0].mxu0
      %v377 = vadd.f32 %v248, %v376
      %v378 = vpop.f32.mrb[0].mxu0
      %379 = vdwg.mxu0
      %381 = vrot.lane.b32.xlu0 %v342, 96
      %v382 = vpop.permute.xlu0 %381
      %vm383 = vcmask 64512
      %v384 = vsel %vm383, %v342, 0
      %v386 = vsel %vm383, %v382, 0
      %388 = vmatprep.subr.mxu0 0.0
      %389 = vmatpush1.xpose.msra.mxu0 %v386
      %390 = vmatprep.subr.mxu0 0.0
      %391 = vmatpush1.xpose.msra.mxu0 0.0
      %392 = vmatprep.subr.mxu0 0.0
      %393 = vmatpush1.xpose.msra.mxu0 0.0
      %394 = vmatprep.subr.mxu0 0.0
      %395 = vmatpush1.xpose.msra.mxu0 0.0
      %396 = vmatprep.subr.mxu0 0.0
      %397 = vmatpush1.xpose.msra.mxu0 0.0
      %398 = vmatprep.subr.mxu0 0.0
      %399 = vmatpush1.xpose.msra.mxu0 0.0
      %400 = vmatprep.subr.mxu0 0.0
      %401 = vmatpush1.xpose.msra.mxu0 0.0
      %402 = vmatprep.subr.mxu0 0.0
      %403 = vmatpush1.xpose.msra.mxu0 0.0
      %404 = vmatprep.subr.mxu0 0.0
      %405 = vmatpush1.xpose.msra.mxu0 0.0
      %406 = vmatprep.subr.mxu0 0.0
      %407 = vmatpush1.xpose.msra.mxu0 0.0
      %408 = vmatprep.subr.mxu0 0.0
      %409 = vmatpush1.xpose.msra.mxu0 0.0
      %410 = vmatprep.subr.mxu0 0.0
      %411 = vmatpush1.xpose.msra.mxu0 0.0
      %412 = vmatprep.subr.mxu0 0.0
      %413 = vmatpush1.xpose.msra.mxu0 0.0
      %414 = vmatprep.subr.mxu0 0.0
      %415 = vmatpush1.xpose.msra.mxu0 0.0
      %416 = vmatprep.subr.mxu0 0.0
      %417 = vmatpush1.xpose.msra.mxu0 0.0
      %418 = vmatprep.subr.mxu0 0.0
      %419 = vmatpush1.xpose.msra.mxu0 0.0
      %420 = vmatprep.subr.mxu0 0.0
      %421 = vmatpush1.xpose.msra.mxu0 0.0
      %422 = vmatprep.subr.mxu0 0.0
      %423 = vmatpush1.xpose.msra.mxu0 0.0
      %424 = vmatprep.subr.mxu0 0.0
      %425 = vmatpush1.xpose.msra.mxu0 0.0
      %426 = vmatprep.subr.mxu0 0.0
      %427 = vmatpush1.xpose.msra.mxu0 0.0
      %428 = vmatprep.subr.mxu0 0.0
      %429 = vmatpush1.xpose.msra.mxu0 0.0
      %430 = vmatprep.subr.mxu0 0.0
      %431 = vmatpush1.xpose.msra.mxu0 0.0
      %432 = vmatprep.subr.mxu0 0.0
      %433 = vmatpush1.xpose.msra.mxu0 0.0
      %434 = vmatprep.subr.mxu0 0.0
      %435 = vmatpush1.xpose.msra.mxu0 0.0
      %436 = vmatprep.subr.mxu0 0.0
      %437 = vmatpush1.xpose.msra.mxu0 0.0
      %438 = vmatprep.subr.mxu0 0.0
      %439 = vmatpush1.xpose.msra.mxu0 0.0
      %440 = vmatprep.subr.mxu0 0.0
      %441 = vmatpush1.xpose.msra.mxu0 0.0
      %442 = vmatprep.subr.mxu0 0.0
      %443 = vmatpush1.xpose.msra.mxu0 0.0
      %444 = vmatprep.subr.mxu0 0.0
      %445 = vmatpush1.xpose.msra.mxu0 0.0
      %446 = vmatprep.subr.mxu0 0.0
      %447 = vmatpush1.xpose.msra.mxu0 0.0
      %448 = vmatprep.subr.mxu0 0.0
      %449 = vmatpush1.xpose.msra.mxu0 0.0
      %450 = vmatprep.subr.mxu0 0.0
      %451 = vmatpush1.xpose.msra.mxu0 0.0
      %452 = vmatprep.mubr.f32.mxu0 0.0
      %453 = vmatmul.mubr.f32.gmra.mrb[0].mxu0 %v384
      %v454 = vpop.f32.mrb[0].mxu0
      %v455 = vadd.f32 0.0, %v454
      %v456 = vpop.f32.mrb[0].mxu0
      %457 = vdwg.mxu0
      %459 = vrot.lane.b32.xlu0 %v347, 96
      %v460 = vpop.permute.xlu0 %459
      %v461 = vsel %vm383, %v347, 0
      %v463 = vsel %vm383, %v460, 0
      %465 = vmatprep.subr.mxu0 0.0
      %466 = vmatpush1.xpose.msra.mxu0 %v463
      %467 = vmatprep.subr.mxu0 0.0
      %468 = vmatpush1.xpose.msra.mxu0 0.0
      %469 = vmatprep.subr.mxu0 0.0
      %470 = vmatpush1.xpose.msra.mxu0 0.0
      %471 = vmatprep.subr.mxu0 0.0
      %472 = vmatpush1.xpose.msra.mxu0 0.0
      %473 = vmatprep.subr.mxu0 0.0
      %474 = vmatpush1.xpose.msra.mxu0 0.0
      %475 = vmatprep.subr.mxu0 0.0
      %476 = vmatpush1.xpose.msra.mxu0 0.0
      %477 = vmatprep.subr.mxu0 0.0
      %478 = vmatpush1.xpose.msra.mxu0 0.0
      %479 = vmatprep.subr.mxu0 0.0
      %480 = vmatpush1.xpose.msra.mxu0 0.0
      %481 = vmatprep.subr.mxu0 0.0
      %482 = vmatpush1.xpose.msra.mxu0 0.0
      %483 = vmatprep.subr.mxu0 0.0
      %484 = vmatpush1.xpose.msra.mxu0 0.0
      %485 = vmatprep.subr.mxu0 0.0
      %486 = vmatpush1.xpose.msra.mxu0 0.0
      %487 = vmatprep.subr.mxu0 0.0
      %488 = vmatpush1.xpose.msra.mxu0 0.0
      %489 = vmatprep.subr.mxu0 0.0
      %490 = vmatpush1.xpose.msra.mxu0 0.0
      %491 = vmatprep.subr.mxu0 0.0
      %492 = vmatpush1.xpose.msra.mxu0 0.0
      %493 = vmatprep.subr.mxu0 0.0
      %494 = vmatpush1.xpose.msra.mxu0 0.0
      %495 = vmatprep.subr.mxu0 0.0
      %496 = vmatpush1.xpose.msra.mxu0 0.0
      %497 = vmatprep.subr.mxu0 0.0
      %498 = vmatpush1.xpose.msra.mxu0 0.0
      %499 = vmatprep.subr.mxu0 0.0
      %500 = vmatpush1.xpose.msra.mxu0 0.0
      %501 = vmatprep.subr.mxu0 0.0
      %502 = vmatpush1.xpose.msra.mxu0 0.0
      %503 = vmatprep.subr.mxu0 0.0
      %504 = vmatpush1.xpose.msra.mxu0 0.0
      %505 = vmatprep.subr.mxu0 0.0
      %506 = vmatpush1.xpose.msra.mxu0 0.0
      %507 = vmatprep.subr.mxu0 0.0
      %508 = vmatpush1.xpose.msra.mxu0 0.0
      %509 = vmatprep.subr.mxu0 0.0
      %510 = vmatpush1.xpose.msra.mxu0 0.0
      %511 = vmatprep.subr.mxu0 0.0
      %512 = vmatpush1.xpose.msra.mxu0 0.0
      %513 = vmatprep.subr.mxu0 0.0
      %514 = vmatpush1.xpose.msra.mxu0 0.0
      %515 = vmatprep.subr.mxu0 0.0
      %516 = vmatpush1.xpose.msra.mxu0 0.0
      %517 = vmatprep.subr.mxu0 0.0
      %518 = vmatpush1.xpose.msra.mxu0 0.0
      %519 = vmatprep.subr.mxu0 0.0
      %520 = vmatpush1.xpose.msra.mxu0 0.0
      %521 = vmatprep.subr.mxu0 0.0
      %522 = vmatpush1.xpose.msra.mxu0 0.0
      %523 = vmatprep.subr.mxu0 0.0
      %524 = vmatpush1.xpose.msra.mxu0 0.0
      %525 = vmatprep.subr.mxu0 0.0
      %526 = vmatpush1.xpose.msra.mxu0 0.0
      %527 = vmatprep.subr.mxu0 0.0
      %528 = vmatpush1.xpose.msra.mxu0 0.0
      %529 = vmatprep.mubr.f32.mxu0 0.0
      %530 = vmatmul.mubr.f32.gmra.mrb[0].mxu0 %v461
      %v531 = vpop.f32.mrb[0].mxu0
      %v532 = vadd.f32 0.0, %v531
      %v533 = vpop.f32.mrb[0].mxu0
      %534 = vdwg.mxu0
      %536 = vrot.lane.b32.xlu0 %v352, 96
      %v537 = vpop.permute.xlu0 %536
      %v538 = vsel %vm383, %v352, 0
      %v540 = vsel %vm383, %v537, 0
      %542 = vmatprep.subr.mxu0 0.0
      %543 = vmatpush1.xpose.msra.mxu0 %v540
      %544 = vmatprep.subr.mxu0 0.0
      %545 = vmatpush1.xpose.msra.mxu0 0.0
      %546 = vmatprep.subr.mxu0 0.0
      %547 = vmatpush1.xpose.msra.mxu0 0.0
      %548 = vmatprep.subr.mxu0 0.0
      %549 = vmatpush1.xpose.msra.mxu0 0.0
      %550 = vmatprep.subr.mxu0 0.0
      %551 = vmatpush1.xpose.msra.mxu0 0.0
      %552 = vmatprep.subr.mxu0 0.0
      %553 = vmatpush1.xpose.msra.mxu0 0.0
      %554 = vmatprep.subr.mxu0 0.0
      %555 = vmatpush1.xpose.msra.mxu0 0.0
      %556 = vmatprep.subr.mxu0 0.0
      %557 = vmatpush1.xpose.msra.mxu0 0.0
      %558 = vmatprep.subr.mxu0 0.0
      %559 = vmatpush1.xpose.msra.mxu0 0.0
      %560 = vmatprep.subr.mxu0 0.0
      %561 = vmatpush1.xpose.msra.mxu0 0.0
      %562 = vmatprep.subr.mxu0 0.0
      %563 = vmatpush1.xpose.msra.mxu0 0.0
      %564 = vmatprep.subr.mxu0 0.0
      %565 = vmatpush1.xpose.msra.mxu0 0.0
      %566 = vmatprep.subr.mxu0 0.0
      %567 = vmatpush1.xpose.msra.mxu0 0.0
      %568 = vmatprep.subr.mxu0 0.0
      %569 = vmatpush1.xpose.msra.mxu0 0.0
      %570 = vmatprep.subr.mxu0 0.0
      %571 = vmatpush1.xpose.msra.mxu0 0.0
      %572 = vmatprep.subr.mxu0 0.0
      %573 = vmatpush1.xpose.msra.mxu0 0.0
      %574 = vmatprep.subr.mxu0 0.0
      %575 = vmatpush1.xpose.msra.mxu0 0.0
      %576 = vmatprep.subr.mxu0 0.0
      %577 = vmatpush1.xpose.msra.mxu0 0.0
      %578 = vmatprep.subr.mxu0 0.0
      %579 = vmatpush1.xpose.msra.mxu0 0.0
      %580 = vmatprep.subr.mxu0 0.0
      %581 = vmatpush1.xpose.msra.mxu0 0.0
      %582 = vmatprep.subr.mxu0 0.0
      %583 = vmatpush1.xpose.msra.mxu0 0.0
      %584 = vmatprep.subr.mxu0 0.0
      %585 = vmatpush1.xpose.msra.mxu0 0.0
      %586 = vmatprep.subr.mxu0 0.0
      %587 = vmatpush1.xpose.msra.mxu0 0.0
      %588 = vmatprep.subr.mxu0 0.0
      %589 = vmatpush1.xpose.msra.mxu0 0.0
      %590 = vmatprep.subr.mxu0 0.0
      %591 = vmatpush1.xpose.msra.mxu0 0.0
      %592 = vmatprep.subr.mxu0 0.0
      %593 = vmatpush1.xpose.msra.mxu0 0.0
      %594 = vmatprep.subr.mxu0 0.0
      %595 = vmatpush1.xpose.msra.mxu0 0.0
      %596 = vmatprep.subr.mxu0 0.0
      %597 = vmatpush1.xpose.msra.mxu0 0.0
      %598 = vmatprep.subr.mxu0 0.0
      %599 = vmatpush1.xpose.msra.mxu0 0.0
      %600 = vmatprep.subr.mxu0 0.0
      %601 = vmatpush1.xpose.msra.mxu0 0.0
      %602 = vmatprep.subr.mxu0 0.0
      %603 = vmatpush1.xpose.msra.mxu0 0.0
      %604 = vmatprep.subr.mxu0 0.0
      %605 = vmatpush1.xpose.msra.mxu0 0.0
      %606 = vmatprep.mubr.f32.mxu0 0.0
      %607 = vmatmul.mubr.f32.gmra.mrb[0].mxu0 %v538
      %v608 = vpop.f32.mrb[0].mxu0
      %v609 = vadd.f32 0.0, %v608
      %v610 = vpop.f32.mrb[0].mxu0
      %611 = vdwg.mxu0
      %613 = vrot.lane.b32.xlu0 %v357, 96
      %v614 = vpop.permute.xlu0 %613
      %v615 = vsel %vm383, %v357, 0
      %v617 = vsel %vm383, %v614, 0
      %619 = vmatprep.subr.mxu0 0.0
      %620 = vmatpush1.xpose.msra.mxu0 %v617
      %621 = vmatprep.subr.mxu0 0.0
      %622 = vmatpush1.xpose.msra.mxu0 0.0
      %623 = vmatprep.subr.mxu0 0.0
      %624 = vmatpush1.xpose.msra.mxu0 0.0
      %625 = vmatprep.subr.mxu0 0.0
      %626 = vmatpush1.xpose.msra.mxu0 0.0
      %627 = vmatprep.subr.mxu0 0.0
      %628 = vmatpush1.xpose.msra.mxu0 0.0
      %629 = vmatprep.subr.mxu0 0.0
      %630 = vmatpush1.xpose.msra.mxu0 0.0
      %631 = vmatprep.subr.mxu0 0.0
      %632 = vmatpush1.xpose.msra.mxu0 0.0
      %633 = vmatprep.subr.mxu0 0.0
      %634 = vmatpush1.xpose.msra.mxu0 0.0
      %635 = vmatprep.subr.mxu0 0.0
      %636 = vmatpush1.xpose.msra.mxu0 0.0
      %637 = vmatprep.subr.mxu0 0.0
      %638 = vmatpush1.xpose.msra.mxu0 0.0
      %639 = vmatprep.subr.mxu0 0.0
      %640 = vmatpush1.xpose.msra.mxu0 0.0
      %641 = vmatprep.subr.mxu0 0.0
      %642 = vmatpush1.xpose.msra.mxu0 0.0
      %643 = vmatprep.subr.mxu0 0.0
      %644 = vmatpush1.xpose.msra.mxu0 0.0
      %645 = vmatprep.subr.mxu0 0.0
      %646 = vmatpush1.xpose.msra.mxu0 0.0
      %647 = vmatprep.subr.mxu0 0.0
      %648 = vmatpush1.xpose.msra.mxu0 0.0
      %649 = vmatprep.subr.mxu0 0.0
      %650 = vmatpush1.xpose.msra.mxu0 0.0
      %651 = vmatprep.subr.mxu0 0.0
      %652 = vmatpush1.xpose.msra.mxu0 0.0
      %653 = vmatprep.subr.mxu0 0.0
      %654 = vmatpush1.xpose.msra.mxu0 0.0
      %655 = vmatprep.subr.mxu0 0.0
      %656 = vmatpush1.xpose.msra.mxu0 0.0
      %657 = vmatprep.subr.mxu0 0.0
      %658 = vmatpush1.xpose.msra.mxu0 0.0
      %659 = vmatprep.subr.mxu0 0.0
      %660 = vmatpush1.xpose.msra.mxu0 0.0
      %661 = vmatprep.subr.mxu0 0.0
      %662 = vmatpush1.xpose.msra.mxu0 0.0
      %663 = vmatprep.subr.mxu0 0.0
      %664 = vmatpush1.xpose.msra.mxu0 0.0
      %665 = vmatprep.subr.mxu0 0.0
      %666 = vmatpush1.xpose.msra.mxu0 0.0
      %667 = vmatprep.subr.mxu0 0.0
      %668 = vmatpush1.xpose.msra.mxu0 0.0
      %669 = vmatprep.subr.mxu0 0.0
      %670 = vmatpush1.xpose.msra.mxu0 0.0
      %671 = vmatprep.subr.mxu0 0.0
      %672 = vmatpush1.xpose.msra.mxu0 0.0
      %673 = vmatprep.subr.mxu0 0.0
      %674 = vmatpush1.xpose.msra.mxu0 0.0
      %675 = vmatprep.subr.mxu0 0.0
      %676 = vmatpush1.xpose.msra.mxu0 0.0
      %677 = vmatprep.subr.mxu0 0.0
      %678 = vmatpush1.xpose.msra.mxu0 0.0
      %679 = vmatprep.subr.mxu0 0.0
      %680 = vmatpush1.xpose.msra.mxu0 0.0
      %681 = vmatprep.subr.mxu0 0.0
      %682 = vmatpush1.xpose.msra.mxu0 0.0
      %683 = vmatprep.mubr.f32.mxu0 0.0
      %684 = vmatmul.mubr.f32.gmra.mrb[0].mxu0 %v615
      %v685 = vpop.f32.mrb[0].mxu0
      %v686 = vadd.f32 0.0, %v685
      %v687 = vpop.f32.mrb[0].mxu0
      %688 = vdwg.mxu0
      %690 = vrot.lane.b32.xlu0 %v362, 96
      %v691 = vpop.permute.xlu0 %690
      %v692 = vsel %vm383, %v362, 0
      %v694 = vsel %vm383, %v691, 0
      %696 = vmatprep.subr.mxu0 0.0
      %697 = vmatpush1.xpose.msra.mxu0 %v694
      %698 = vmatprep.subr.mxu0 0.0
      %699 = vmatpush1.xpose.msra.mxu0 0.0
      %700 = vmatprep.subr.mxu0 0.0
      %701 = vmatpush1.xpose.msra.mxu0 0.0
      %702 = vmatprep.subr.mxu0 0.0
      %703 = vmatpush1.xpose.msra.mxu0 0.0
      %704 = vmatprep.subr.mxu0 0.0
      %705 = vmatpush1.xpose.msra.mxu0 0.0
      %706 = vmatprep.subr.mxu0 0.0
      %707 = vmatpush1.xpose.msra.mxu0 0.0
      %708 = vmatprep.subr.mxu0 0.0
      %709 = vmatpush1.xpose.msra.mxu0 0.0
      %710 = vmatprep.subr.mxu0 0.0
      %711 = vmatpush1.xpose.msra.mxu0 0.0
      %712 = vmatprep.subr.mxu0 0.0
      %713 = vmatpush1.xpose.msra.mxu0 0.0
      %714 = vmatprep.subr.mxu0 0.0
      %715 = vmatpush1.xpose.msra.mxu0 0.0
      %716 = vmatprep.subr.mxu0 0.0
      %717 = vmatpush1.xpose.msra.mxu0 0.0
      %718 = vmatprep.subr.mxu0 0.0
      %719 = vmatpush1.xpose.msra.mxu0 0.0
      %720 = vmatprep.subr.mxu0 0.0
      %721 = vmatpush1.xpose.msra.mxu0 0.0
      %722 = vmatprep.subr.mxu0 0.0
      %723 = vmatpush1.xpose.msra.mxu0 0.0
      %724 = vmatprep.subr.mxu0 0.0
      %725 = vmatpush1.xpose.msra.mxu0 0.0
      %726 = vmatprep.subr.mxu0 0.0
      %727 = vmatpush1.xpose.msra.mxu0 0.0
      %728 = vmatprep.subr.mxu0 0.0
      %729 = vmatpush1.xpose.msra.mxu0 0.0
      %730 = vmatprep.subr.mxu0 0.0
      %731 = vmatpush1.xpose.msra.mxu0 0.0
      %732 = vmatprep.subr.mxu0 0.0
      %733 = vmatpush1.xpose.msra.mxu0 0.0
      %734 = vmatprep.subr.mxu0 0.0
      %735 = vmatpush1.xpose.msra.mxu0 0.0
      %736 = vmatprep.subr.mxu0 0.0
      %737 = vmatpush1.xpose.msra.mxu0 0.0
      %738 = vmatprep.subr.mxu0 0.0
      %739 = vmatpush1.xpose.msra.mxu0 0.0
      %740 = vmatprep.subr.mxu0 0.0
      %741 = vmatpush1.xpose.msra.mxu0 0.0
      %742 = vmatprep.subr.mxu0 0.0
      %743 = vmatpush1.xpose.msra.mxu0 0.0
      %744 = vmatprep.subr.mxu0 0.0
      %745 = vmatpush1.xpose.msra.mxu0 0.0
      %746 = vmatprep.subr.mxu0 0.0
      %747 = vmatpush1.xpose.msra.mxu0 0.0
      %748 = vmatprep.subr.mxu0 0.0
      %749 = vmatpush1.xpose.msra.mxu0 0.0
      %750 = vmatprep.subr.mxu0 0.0
      %751 = vmatpush1.xpose.msra.mxu0 0.0
      %752 = vmatprep.subr.mxu0 0.0
      %753 = vmatpush1.xpose.msra.mxu0 0.0
      %754 = vmatprep.subr.mxu0 0.0
      %755 = vmatpush1.xpose.msra.mxu0 0.0
      %756 = vmatprep.subr.mxu0 0.0
      %757 = vmatpush1.xpose.msra.mxu0 0.0
      %758 = vmatprep.subr.mxu0 0.0
      %759 = vmatpush1.xpose.msra.mxu0 0.0
      %760 = vmatprep.mubr.f32.mxu0 0.0
      %761 = vmatmul.mubr.f32.gmra.mrb[0].mxu0 %v692
      %v762 = vpop.f32.mrb[0].mxu0
      %v763 = vadd.f32 0.0, %v762
      %v764 = vpop.f32.mrb[0].mxu0
      %765 = vdwg.mxu0
      %767 = vrot.lane.b32.xlu0 %v367, 96
      %v768 = vpop.permute.xlu0 %767
      %v769 = vsel %vm383, %v367, 0
      %v771 = vsel %vm383, %v768, 0
      %773 = vmatprep.subr.mxu0 0.0
      %774 = vmatpush1.xpose.msra.mxu0 %v771
      %775 = vmatprep.subr.mxu0 0.0
      %776 = vmatpush1.xpose.msra.mxu0 0.0
      %777 = vmatprep.subr.mxu0 0.0
      %778 = vmatpush1.xpose.msra.mxu0 0.0
      %779 = vmatprep.subr.mxu0 0.0
      %780 = vmatpush1.xpose.msra.mxu0 0.0
      %781 = vmatprep.subr.mxu0 0.0
      %782 = vmatpush1.xpose.msra.mxu0 0.0
      %783 = vmatprep.subr.mxu0 0.0
      %784 = vmatpush1.xpose.msra.mxu0 0.0
      %785 = vmatprep.subr.mxu0 0.0
      %786 = vmatpush1.xpose.msra.mxu0 0.0
      %787 = vmatprep.subr.mxu0 0.0
      %788 = vmatpush1.xpose.msra.mxu0 0.0
      %789 = vmatprep.subr.mxu0 0.0
      %790 = vmatpush1.xpose.msra.mxu0 0.0
      %791 = vmatprep.subr.mxu0 0.0
      %792 = vmatpush1.xpose.msra.mxu0 0.0
      %793 = vmatprep.subr.mxu0 0.0
      %794 = vmatpush1.xpose.msra.mxu0 0.0
      %795 = vmatprep.subr.mxu0 0.0
      %796 = vmatpush1.xpose.msra.mxu0 0.0
      %797 = vmatprep.subr.mxu0 0.0
      %798 = vmatpush1.xpose.msra.mxu0 0.0
      %799 = vmatprep.subr.mxu0 0.0
      %800 = vmatpush1.xpose.msra.mxu0 0.0
      %801 = vmatprep.subr.mxu0 0.0
      %802 = vmatpush1.xpose.msra.mxu0 0.0
      %803 = vmatprep.subr.mxu0 0.0
      %804 = vmatpush1.xpose.msra.mxu0 0.0
      %805 = vmatprep.subr.mxu0 0.0
      %806 = vmatpush1.xpose.msra.mxu0 0.0
      %807 = vmatprep.subr.mxu0 0.0
      %808 = vmatpush1.xpose.msra.mxu0 0.0
      %809 = vmatprep.subr.mxu0 0.0
      %810 = vmatpush1.xpose.msra.mxu0 0.0
      %811 = vmatprep.subr.mxu0 0.0
      %812 = vmatpush1.xpose.msra.mxu0 0.0
      %813 = vmatprep.subr.mxu0 0.0
      %814 = vmatpush1.xpose.msra.mxu0 0.0
      %815 = vmatprep.subr.mxu0 0.0
      %816 = vmatpush1.xpose.msra.mxu0 0.0
      %817 = vmatprep.subr.mxu0 0.0
      %818 = vmatpush1.xpose.msra.mxu0 0.0
      %819 = vmatprep.subr.mxu0 0.0
      %820 = vmatpush1.xpose.msra.mxu0 0.0
      %821 = vmatprep.subr.mxu0 0.0
      %822 = vmatpush1.xpose.msra.mxu0 0.0
      %823 = vmatprep.subr.mxu0 0.0
      %824 = vmatpush1.xpose.msra.mxu0 0.0
      %825 = vmatprep.subr.mxu0 0.0
      %826 = vmatpush1.xpose.msra.mxu0 0.0
      %827 = vmatprep.subr.mxu0 0.0
      %828 = vmatpush1.xpose.msra.mxu0 0.0
      %829 = vmatprep.subr.mxu0 0.0
      %830 = vmatpush1.xpose.msra.mxu0 0.0
      %831 = vmatprep.subr.mxu0 0.0
      %832 = vmatpush1.xpose.msra.mxu0 0.0
      %833 = vmatprep.subr.mxu0 0.0
      %834 = vmatpush1.xpose.msra.mxu0 0.0
      %835 = vmatprep.subr.mxu0 0.0
      %836 = vmatpush1.xpose.msra.mxu0 0.0
      %837 = vmatprep.mubr.f32.mxu0 0.0
      %838 = vmatmul.mubr.f32.gmra.mrb[0].mxu0 %v769
      %v839 = vpop.f32.mrb[0].mxu0
      %v840 = vadd.f32 0.0, %v839
      %v841 = vpop.f32.mrb[0].mxu0
      %842 = vdwg.mxu0
      %844 = vrot.lane.b32.xlu0 %v372, 96
      %v845 = vpop.permute.xlu0 %844
      %v846 = vsel %vm383, %v372, 0
      %v848 = vsel %vm383, %v845, 0
      %850 = vmatprep.subr.mxu0 0.0
      %851 = vmatpush1.xpose.msra.mxu0 %v848
      %852 = vmatprep.subr.mxu0 0.0
      %853 = vmatpush1.xpose.msra.mxu0 0.0
      %854 = vmatprep.subr.mxu0 0.0
      %855 = vmatpush1.xpose.msra.mxu0 0.0
      %856 = vmatprep.subr.mxu0 0.0
      %857 = vmatpush1.xpose.msra.mxu0 0.0
      %858 = vmatprep.subr.mxu0 0.0
      %859 = vmatpush1.xpose.msra.mxu0 0.0
      %860 = vmatprep.subr.mxu0 0.0
      %861 = vmatpush1.xpose.msra.mxu0 0.0
      %862 = vmatprep.subr.mxu0 0.0
      %863 = vmatpush1.xpose.msra.mxu0 0.0
      %864 = vmatprep.subr.mxu0 0.0
      %865 = vmatpush1.xpose.msra.mxu0 0.0
      %866 = vmatprep.subr.mxu0 0.0
      %867 = vmatpush1.xpose.msra.mxu0 0.0
      %868 = vmatprep.subr.mxu0 0.0
      %869 = vmatpush1.xpose.msra.mxu0 0.0
      %870 = vmatprep.subr.mxu0 0.0
      %871 = vmatpush1.xpose.msra.mxu0 0.0
      %872 = vmatprep.subr.mxu0 0.0
      %873 = vmatpush1.xpose.msra.mxu0 0.0
      %874 = vmatprep.subr.mxu0 0.0
      %875 = vmatpush1.xpose.msra.mxu0 0.0
      %876 = vmatprep.subr.mxu0 0.0
      %877 = vmatpush1.xpose.msra.mxu0 0.0
      %878 = vmatprep.subr.mxu0 0.0
      %879 = vmatpush1.xpose.msra.mxu0 0.0
      %880 = vmatprep.subr.mxu0 0.0
      %881 = vmatpush1.xpose.msra.mxu0 0.0
      %882 = vmatprep.subr.mxu0 0.0
      %883 = vmatpush1.xpose.msra.mxu0 0.0
      %884 = vmatprep.subr.mxu0 0.0
      %885 = vmatpush1.xpose.msra.mxu0 0.0
      %886 = vmatprep.subr.mxu0 0.0
      %887 = vmatpush1.xpose.msra.mxu0 0.0
      %888 = vmatprep.subr.mxu0 0.0
      %889 = vmatpush1.xpose.msra.mxu0 0.0
      %890 = vmatprep.subr.mxu0 0.0
      %891 = vmatpush1.xpose.msra.mxu0 0.0
      %892 = vmatprep.subr.mxu0 0.0
      %893 = vmatpush1.xpose.msra.mxu0 0.0
      %894 = vmatprep.subr.mxu0 0.0
      %895 = vmatpush1.xpose.msra.mxu0 0.0
      %896 = vmatprep.subr.mxu0 0.0
      %897 = vmatpush1.xpose.msra.mxu0 0.0
      %898 = vmatprep.subr.mxu0 0.0
      %899 = vmatpush1.xpose.msra.mxu0 0.0
      %900 = vmatprep.subr.mxu0 0.0
      %901 = vmatpush1.xpose.msra.mxu0 0.0
      %902 = vmatprep.subr.mxu0 0.0
      %903 = vmatpush1.xpose.msra.mxu0 0.0
      %904 = vmatprep.subr.mxu0 0.0
      %905 = vmatpush1.xpose.msra.mxu0 0.0
      %906 = vmatprep.subr.mxu0 0.0
      %907 = vmatpush1.xpose.msra.mxu0 0.0
      %908 = vmatprep.subr.mxu0 0.0
      %909 = vmatpush1.xpose.msra.mxu0 0.0
      %910 = vmatprep.subr.mxu0 0.0
      %911 = vmatpush1.xpose.msra.mxu0 0.0
      %912 = vmatprep.subr.mxu0 0.0
      %913 = vmatpush1.xpose.msra.mxu0 0.0
      %914 = vmatprep.mubr.f32.mxu0 0.0
      %915 = vmatmul.mubr.f32.gmra.mrb[0].mxu0 %v846
      %v916 = vpop.f32.mrb[0].mxu0
      %v917 = vadd.f32 0.0, %v916
      %v918 = vpop.f32.mrb[0].mxu0
      %919 = vdwg.mxu0
      %921 = vrot.lane.b32.xlu0 %v377, 96
      %v922 = vpop.permute.xlu0 %921
      %v923 = vsel %vm383, %v377, 0
      %v925 = vsel %vm383, %v922, 0
      %927 = vmatprep.subr.mxu0 0.0
      %928 = vmatpush1.xpose.msra.mxu0 %v925
      %929 = vmatprep.subr.mxu0 0.0
      %930 = vmatpush1.xpose.msra.mxu0 0.0
      %931 = vmatprep.subr.mxu0 0.0
      %932 = vmatpush1.xpose.msra.mxu0 0.0
      %933 = vmatprep.subr.mxu0 0.0
      %934 = vmatpush1.xpose.msra.mxu0 0.0
      %935 = vmatprep.subr.mxu0 0.0
      %936 = vmatpush1.xpose.msra.mxu0 0.0
      %937 = vmatprep.subr.mxu0 0.0
      %938 = vmatpush1.xpose.msra.mxu0 0.0
      %939 = vmatprep.subr.mxu0 0.0
      %940 = vmatpush1.xpose.msra.mxu0 0.0
      %941 = vmatprep.subr.mxu0 0.0
      %942 = vmatpush1.xpose.msra.mxu0 0.0
      %943 = vmatprep.subr.mxu0 0.0
      %944 = vmatpush1.xpose.msra.mxu0 0.0
      %945 = vmatprep.subr.mxu0 0.0
      %946 = vmatpush1.xpose.msra.mxu0 0.0
      %947 = vmatprep.subr.mxu0 0.0
      %948 = vmatpush1.xpose.msra.mxu0 0.0
      %949 = vmatprep.subr.mxu0 0.0
      %950 = vmatpush1.xpose.msra.mxu0 0.0
      %951 = vmatprep.subr.mxu0 0.0
      %952 = vmatpush1.xpose.msra.mxu0 0.0
      %953 = vmatprep.subr.mxu0 0.0
      %954 = vmatpush1.xpose.msra.mxu0 0.0
      %955 = vmatprep.subr.mxu0 0.0
      %956 = vmatpush1.xpose.msra.mxu0 0.0
      %957 = vmatprep.subr.mxu0 0.0
      %958 = vmatpush1.xpose.msra.mxu0 0.0
      %959 = vmatprep.subr.mxu0 0.0
      %960 = vmatpush1.xpose.msra.mxu0 0.0
      %961 = vmatprep.subr.mxu0 0.0
      %962 = vmatpush1.xpose.msra.mxu0 0.0
      %963 = vmatprep.subr.mxu0 0.0
      %964 = vmatpush1.xpose.msra.mxu0 0.0
      %965 = vmatprep.subr.mxu0 0.0
      %966 = vmatpush1.xpose.msra.mxu0 0.0
      %967 = vmatprep.subr.mxu0 0.0
      %968 = vmatpush1.xpose.msra.mxu0 0.0
      %969 = vmatprep.subr.mxu0 0.0
      %970 = vmatpush1.xpose.msra.mxu0 0.0
      %971 = vmatprep.subr.mxu0 0.0
      %972 = vmatpush1.xpose.msra.mxu0 0.0
      %973 = vmatprep.subr.mxu0 0.0
      %974 = vmatpush1.xpose.msra.mxu0 0.0
      %975 = vmatprep.subr.mxu0 0.0
      %976 = vmatpush1.xpose.msra.mxu0 0.0
      %977 = vmatprep.subr.mxu0 0.0
      %978 = vmatpush1.xpose.msra.mxu0 0.0
      %979 = vmatprep.subr.mxu0 0.0
      %980 = vmatpush1.xpose.msra.mxu0 0.0
      %981 = vmatprep.subr.mxu0 0.0
      %982 = vmatpush1.xpose.msra.mxu0 0.0
      %983 = vmatprep.subr.mxu0 0.0
      %984 = vmatpush1.xpose.msra.mxu0 0.0
      %985 = vmatprep.subr.mxu0 0.0
      %986 = vmatpush1.xpose.msra.mxu0 0.0
      %987 = vmatprep.subr.mxu0 0.0
      %988 = vmatpush1.xpose.msra.mxu0 0.0
      %989 = vmatprep.subr.mxu0 0.0
      %990 = vmatpush1.xpose.msra.mxu0 0.0
      %991 = vmatprep.mubr.f32.mxu0 0.0
      %992 = vmatmul.mubr.f32.gmra.mrb[0].mxu0 %v923
      %v993 = vpop.f32.mrb[0].mxu0
      %v994 = vadd.f32 0.0, %v993
      %v995 = vpop.f32.mrb[0].mxu0
      %996 = vdwg.mxu0
      %v997 = vsel %vm383, %v455, -inf
      %998 = vmax.xlane.f32.xlu0 %v997
      %v999 = vpop.xlane.xlu0 %998
      %v1000 = vsel %vm383, %v532, -inf
      %1001 = vmax.xlane.f32.xlu0 %v1000
      %v1002 = vpop.xlane.xlu0 %1001
      %v1003 = vsel %vm383, %v609, -inf
      %1004 = vmax.xlane.f32.xlu0 %v1003
      %v1005 = vpop.xlane.xlu0 %1004
      %v1006 = vsel %vm383, %v686, -inf
      %1007 = vmax.xlane.f32.xlu0 %v1006
      %v1008 = vpop.xlane.xlu0 %1007
      %v1009 = vsel %vm383, %v763, -inf
      %1010 = vmax.xlane.f32.xlu0 %v1009
      %v1011 = vpop.xlane.xlu0 %1010
      %v1012 = vsel %vm383, %v840, -inf
      %1013 = vmax.xlane.f32.xlu0 %v1012
      %v1014 = vpop.xlane.xlu0 %1013
      %v1015 = vsel %vm383, %v917, -inf
      %1016 = vmax.xlane.f32.xlu0 %v1015
      %v1017 = vpop.xlane.xlu0 %1016
      %v1018 = vsel %vm383, %v994, -inf
      %1019 = vmax.xlane.f32.xlu0 %v1018
      %v1020 = vpop.xlane.xlu0 %1019
      %v1021 = vsub.f32 %v455, %v999
      %v1022 = vsub.f32 %v532, %v1002
      %v1023 = vsub.f32 %v609, %v1005
      %v1024 = vsub.f32 %v686, %v1008
      %v1025 = vsub.f32 %v763, %v1011
      %v1026 = vsub.f32 %v840, %v1014
      %v1027 = vsub.f32 %v917, %v1017
      %v1028 = vsub.f32 %v994, %v1020
      %v1029 = vmul.f32 %v1021, 1.442695
      %v1030 = vpow.pop %v1029
      %v1031 = vmul.f32 %v1022, 1.442695
      %v1032 = vpow.pop %v1031
      %v1033 = vmul.f32 %v1023, 1.442695
      %v1034 = vpow.pop %v1033
      %v1035 = vmul.f32 %v1024, 1.442695
      %v1036 = vpow.pop %v1035
      %v1037 = vmul.f32 %v1025, 1.442695
      %v1038 = vpow.pop %v1037
      %v1039 = vmul.f32 %v1026, 1.442695
      %v1040 = vpow.pop %v1039
      %v1041 = vmul.f32 %v1027, 1.442695
      %v1042 = vpow.pop %v1041
      %v1043 = vmul.f32 %v1028, 1.442695
      %v1044 = vpow.pop %v1043
      %v1045 = vsel %vm383, %v1030, 0.0
      %1046 = vadd.xlane.f32.xlu0 %v1045
      %v1047 = vpop.xlane.xlu0 %1046
      %v1048 = vsel %vm383, %v1032, 0.0
      %1049 = vadd.xlane.f32.xlu0 %v1048
      %v1050 = vpop.xlane.xlu0 %1049
      %v1051 = vsel %vm383, %v1034, 0.0
      %1052 = vadd.xlane.f32.xlu0 %v1051
      %v1053 = vpop.xlane.xlu0 %1052
      %v1054 = vsel %vm383, %v1036, 0.0
      %1055 = vadd.xlane.f32.xlu0 %v1054
      %v1056 = vpop.xlane.xlu0 %1055
      %v1057 = vsel %vm383, %v1038, 0.0
      %1058 = vadd.xlane.f32.xlu0 %v1057
      %v1059 = vpop.xlane.xlu0 %1058
      %v1060 = vsel %vm383, %v1040, 0.0
      %1061 = vadd.xlane.f32.xlu0 %v1060
      %v1062 = vpop.xlane.xlu0 %1061
      %v1063 = vsel %vm383, %v1042, 0.0
      %1064 = vadd.xlane.f32.xlu0 %v1063
      %v1065 = vpop.xlane.xlu0 %1064
      %v1066 = vsel %vm383, %v1044, 0.0
      %1067 = vadd.xlane.f32.xlu0 %v1066
      %v1068 = vpop.xlane.xlu0 %1067
      %v1069 = vrcp.pop %v1047
      %v1070 = vmul.f32 %v1030, %v1069
      %v1071 = vrcp.pop %v1050
      %v1072 = vmul.f32 %v1032, %v1071
      %v1073 = vrcp.pop %v1053
      %v1074 = vmul.f32 %v1034, %v1073
      %v1075 = vrcp.pop %v1056
      %v1076 = vmul.f32 %v1036, %v1075
      %v1077 = vrcp.pop %v1059
      %v1078 = vmul.f32 %v1038, %v1077
      %v1079 = vrcp.pop %v1062
      %v1080 = vmul.f32 %v1040, %v1079
      %v1081 = vrcp.pop %v1065
      %v1082 = vmul.f32 %v1042, %v1081
      %v1083 = vrcp.pop %v1068
      %v1084 = vmul.f32 %v1044, %v1083
      %1085 = vrot.lane.b32.xlu0 %v342, 64
      %v1086 = vpop.permute.xlu0 %1085
      %v1089 = vsel %vm383, %v1070, 0
      %1091 = vmatprep.subr.mxu0 0.0
      %1092 = vmatpush1.msra.mxu0 %v1086
      %1093 = vmatprep.subr.mxu0 0.0
      %1094 = vmatpush1.msra.mxu0 0.0
      %1095 = vmatprep.subr.mxu0 0.0
      %1096 = vmatpush1.msra.mxu0 0.0
      %1097 = vmatprep.subr.mxu0 0.0
      %1098 = vmatpush1.msra.mxu0 0.0
      %1099 = vmatprep.subr.mxu0 0.0
      %1100 = vmatpush1.msra.mxu0 0.0
      %1101 = vmatprep.subr.mxu0 0.0
      %1102 = vmatpush1.msra.mxu0 0.0
      %1103 = vmatprep.subr.mxu0 0.0
      %1104 = vmatpush1.msra.mxu0 0.0
      %1105 = vmatprep.subr.mxu0 0.0
      %1106 = vmatpush1.msra.mxu0 0.0
      %1107 = vmatprep.subr.mxu0 0.0
      %1108 = vmatpush1.msra.mxu0 0.0
      %1109 = vmatprep.subr.mxu0 0.0
      %1110 = vmatpush1.msra.mxu0 0.0
      %1111 = vmatprep.subr.mxu0 0.0
      %1112 = vmatpush1.msra.mxu0 0.0
      %1113 = vmatprep.subr.mxu0 0.0
      %1114 = vmatpush1.msra.mxu0 0.0
      %1115 = vmatprep.subr.mxu0 0.0
      %1116 = vmatpush1.msra.mxu0 0.0
      %1117 = vmatprep.subr.mxu0 0.0
      %1118 = vmatpush1.msra.mxu0 0.0
      %1119 = vmatprep.subr.mxu0 0.0
      %1120 = vmatpush1.msra.mxu0 0.0
      %1121 = vmatprep.subr.mxu0 0.0
      %1122 = vmatpush1.msra.mxu0 0.0
      %1123 = vmatprep.subr.mxu0 0.0
      %1124 = vmatpush1.msra.mxu0 0.0
      %1125 = vmatprep.subr.mxu0 0.0
      %1126 = vmatpush1.msra.mxu0 0.0
      %1127 = vmatprep.subr.mxu0 0.0
      %1128 = vmatpush1.msra.mxu0 0.0
      %1129 = vmatprep.subr.mxu0 0.0
      %1130 = vmatpush1.msra.mxu0 0.0
      %1131 = vmatprep.subr.mxu0 0.0
      %1132 = vmatpush1.msra.mxu0 0.0
      %1133 = vmatprep.subr.mxu0 0.0
      %1134 = vmatpush1.msra.mxu0 0.0
      %1135 = vmatprep.subr.mxu0 0.0
      %1136 = vmatpush1.msra.mxu0 0.0
      %1137 = vmatprep.subr.mxu0 0.0
      %1138 = vmatpush1.msra.mxu0 0.0
      %1139 = vmatprep.subr.mxu0 0.0
      %1140 = vmatpush1.msra.mxu0 0.0
      %1141 = vmatprep.subr.mxu0 0.0
      %1142 = vmatpush1.msra.mxu0 0.0
      %1143 = vmatprep.subr.mxu0 0.0
      %1144 = vmatpush1.msra.mxu0 0.0
      %1145 = vmatprep.subr.mxu0 0.0
      %1146 = vmatpush1.msra.mxu0 0.0
      %1147 = vmatprep.subr.mxu0 0.0
      %1148 = vmatpush1.msra.mxu0 0.0
      %1149 = vmatprep.subr.mxu0 0.0
      %1150 = vmatpush1.msra.mxu0 0.0
      %1151 = vmatprep.subr.mxu0 0.0
      %1152 = vmatpush1.msra.mxu0 0.0
      %1153 = vmatprep.subr.mxu0 0.0
      %1154 = vmatpush1.msra.mxu0 0.0
      %1155 = vmatprep.mubr.f32.mxu0 0.0
      %1156 = vmatmul.mubr.f32.gmra.mrb[0].mxu0 %v1089
      %v1157 = vpop.f32.mrb[0].mxu0
      %v1158 = vadd.f32 0.0, %v1157
      %v1159 = vpop.f32.mrb[0].mxu0
      %1160 = vdwg.mxu0
      %1161 = vrot.lane.b32.xlu0 %v347, 64
      %v1162 = vpop.permute.xlu0 %1161
      %v1165 = vsel %vm383, %v1072, 0
      %1167 = vmatprep.subr.mxu0 0.0
      %1168 = vmatpush1.msra.mxu0 %v1162
      %1169 = vmatprep.subr.mxu0 0.0
      %1170 = vmatpush1.msra.mxu0 0.0
      %1171 = vmatprep.subr.mxu0 0.0
      %1172 = vmatpush1.msra.mxu0 0.0
      %1173 = vmatprep.subr.mxu0 0.0
      %1174 = vmatpush1.msra.mxu0 0.0
      %1175 = vmatprep.subr.mxu0 0.0
      %1176 = vmatpush1.msra.mxu0 0.0
      %1177 = vmatprep.subr.mxu0 0.0
      %1178 = vmatpush1.msra.mxu0 0.0
      %1179 = vmatprep.subr.mxu0 0.0
      %1180 = vmatpush1.msra.mxu0 0.0
      %1181 = vmatprep.subr.mxu0 0.0
      %1182 = vmatpush1.msra.mxu0 0.0
      %1183 = vmatprep.subr.mxu0 0.0
      %1184 = vmatpush1.msra.mxu0 0.0
      %1185 = vmatprep.subr.mxu0 0.0
      %1186 = vmatpush1.msra.mxu0 0.0
      %1187 = vmatprep.subr.mxu0 0.0
      %1188 = vmatpush1.msra.mxu0 0.0
      %1189 = vmatprep.subr.mxu0 0.0
      %1190 = vmatpush1.msra.mxu0 0.0
      %1191 = vmatprep.subr.mxu0 0.0
      %1192 = vmatpush1.msra.mxu0 0.0
      %1193 = vmatprep.subr.mxu0 0.0
      %1194 = vmatpush1.msra.mxu0 0.0
      %1195 = vmatprep.subr.mxu0 0.0
      %1196 = vmatpush1.msra.mxu0 0.0
      %1197 = vmatprep.subr.mxu0 0.0
      %1198 = vmatpush1.msra.mxu0 0.0
      %1199 = vmatprep.subr.mxu0 0.0
      %1200 = vmatpush1.msra.mxu0 0.0
      %1201 = vmatprep.subr.mxu0 0.0
      %1202 = vmatpush1.msra.mxu0 0.0
      %1203 = vmatprep.subr.mxu0 0.0
      %1204 = vmatpush1.msra.mxu0 0.0
      %1205 = vmatprep.subr.mxu0 0.0
      %1206 = vmatpush1.msra.mxu0 0.0
      %1207 = vmatprep.subr.mxu0 0.0
      %1208 = vmatpush1.msra.mxu0 0.0
      %1209 = vmatprep.subr.mxu0 0.0
      %1210 = vmatpush1.msra.mxu0 0.0
      %1211 = vmatprep.subr.mxu0 0.0
      %1212 = vmatpush1.msra.mxu0 0.0
      %1213 = vmatprep.subr.mxu0 0.0
      %1214 = vmatpush1.msra.mxu0 0.0
      %1215 = vmatprep.subr.mxu0 0.0
      %1216 = vmatpush1.msra.mxu0 0.0
      %1217 = vmatprep.subr.mxu0 0.0
      %1218 = vmatpush1.msra.mxu0 0.0
      %1219 = vmatprep.subr.mxu0 0.0
      %1220 = vmatpush1.msra.mxu0 0.0
      %1221 = vmatprep.subr.mxu0 0.0
      %1222 = vmatpush1.msra.mxu0 0.0
      %1223 = vmatprep.subr.mxu0 0.0
      %1224 = vmatpush1.msra.mxu0 0.0
      %1225 = vmatprep.subr.mxu0 0.0
      %1226 = vmatpush1.msra.mxu0 0.0
      %1227 = vmatprep.subr.mxu0 0.0
      %1228 = vmatpush1.msra.mxu0 0.0
      %1229 = vmatprep.subr.mxu0 0.0
      %1230 = vmatpush1.msra.mxu0 0.0
      %1231 = vmatprep.mubr.f32.mxu0 0.0
      %1232 = vmatmul.mubr.f32.gmra.mrb[0].mxu0 %v1165
      %v1233 = vpop.f32.mrb[0].mxu0
      %v1234 = vadd.f32 0.0, %v1233
      %v1235 = vpop.f32.mrb[0].mxu0
      %1236 = vdwg.mxu0
      %1237 = vrot.lane.b32.xlu0 %v352, 64
      %v1238 = vpop.permute.xlu0 %1237
      %v1241 = vsel %vm383, %v1074, 0
      %1243 = vmatprep.subr.mxu0 0.0
      %1244 = vmatpush1.msra.mxu0 %v1238
      %1245 = vmatprep.subr.mxu0 0.0
      %1246 = vmatpush1.msra.mxu0 0.0
      %1247 = vmatprep.subr.mxu0 0.0
      %1248 = vmatpush1.msra.mxu0 0.0
      %1249 = vmatprep.subr.mxu0 0.0
      %1250 = vmatpush1.msra.mxu0 0.0
      %1251 = vmatprep.subr.mxu0 0.0
      %1252 = vmatpush1.msra.mxu0 0.0
      %1253 = vmatprep.subr.mxu0 0.0
      %1254 = vmatpush1.msra.mxu0 0.0
      %1255 = vmatprep.subr.mxu0 0.0
      %1256 = vmatpush1.msra.mxu0 0.0
      %1257 = vmatprep.subr.mxu0 0.0
      %1258 = vmatpush1.msra.mxu0 0.0
      %1259 = vmatprep.subr.mxu0 0.0
      %1260 = vmatpush1.msra.mxu0 0.0
      %1261 = vmatprep.subr.mxu0 0.0
      %1262 = vmatpush1.msra.mxu0 0.0
      %1263 = vmatprep.subr.mxu0 0.0
      %1264 = vmatpush1.msra.mxu0 0.0
      %1265 = vmatprep.subr.mxu0 0.0
      %1266 = vmatpush1.msra.mxu0 0.0
      %1267 = vmatprep.subr.mxu0 0.0
      %1268 = vmatpush1.msra.mxu0 0.0
      %1269 = vmatprep.subr.mxu0 0.0
      %1270 = vmatpush1.msra.mxu0 0.0
      %1271 = vmatprep.subr.mxu0 0.0
      %1272 = vmatpush1.msra.mxu0 0.0
      %1273 = vmatprep.subr.mxu0 0.0
      %1274 = vmatpush1.msra.mxu0 0.0
      %1275 = vmatprep.subr.mxu0 0.0
      %1276 = vmatpush1.msra.mxu0 0.0
      %1277 = vmatprep.subr.mxu0 0.0
      %1278 = vmatpush1.msra.mxu0 0.0
      %1279 = vmatprep.subr.mxu0 0.0
      %1280 = vmatpush1.msra.mxu0 0.0
      %1281 = vmatprep.subr.mxu0 0.0
      %1282 = vmatpush1.msra.mxu0 0.0
      %1283 = vmatprep.subr.mxu0 0.0
      %1284 = vmatpush1.msra.mxu0 0.0
      %1285 = vmatprep.subr.mxu0 0.0
      %1286 = vmatpush1.msra.mxu0 0.0
      %1287 = vmatprep.subr.mxu0 0.0
      %1288 = vmatpush1.msra.mxu0 0.0
      %1289 = vmatprep.subr.mxu0 0.0
      %1290 = vmatpush1.msra.mxu0 0.0
      %1291 = vmatprep.subr.mxu0 0.0
      %1292 = vmatpush1.msra.mxu0 0.0
      %1293 = vmatprep.subr.mxu0 0.0
      %1294 = vmatpush1.msra.mxu0 0.0
      %1295 = vmatprep.subr.mxu0 0.0
      %1296 = vmatpush1.msra.mxu0 0.0
      %1297 = vmatprep.subr.mxu0 0.0
      %1298 = vmatpush1.msra.mxu0 0.0
      %1299 = vmatprep.subr.mxu0 0.0
      %1300 = vmatpush1.msra.mxu0 0.0
      %1301 = vmatprep.subr.mxu0 0.0
      %1302 = vmatpush1.msra.mxu0 0.0
      %1303 = vmatprep.subr.mxu0 0.0
      %1304 = vmatpush1.msra.mxu0 0.0
      %1305 = vmatprep.subr.mxu0 0.0
      %1306 = vmatpush1.msra.mxu0 0.0
      %1307 = vmatprep.mubr.f32.mxu0 0.0
      %1308 = vmatmul.mubr.f32.gmra.mrb[0].mxu0 %v1241
      %v1309 = vpop.f32.mrb[0].mxu0
      %v1310 = vadd.f32 0.0, %v1309
      %v1311 = vpop.f32.mrb[0].mxu0
      %1312 = vdwg.mxu0
      %1313 = vrot.lane.b32.xlu0 %v357, 64
      %v1314 = vpop.permute.xlu0 %1313
      %v1317 = vsel %vm383, %v1076, 0
      %1319 = vmatprep.subr.mxu0 0.0
      %1320 = vmatpush1.msra.mxu0 %v1314
      %1321 = vmatprep.subr.mxu0 0.0
      %1322 = vmatpush1.msra.mxu0 0.0
      %1323 = vmatprep.subr.mxu0 0.0
      %1324 = vmatpush1.msra.mxu0 0.0
      %1325 = vmatprep.subr.mxu0 0.0
      %1326 = vmatpush1.msra.mxu0 0.0
      %1327 = vmatprep.subr.mxu0 0.0
      %1328 = vmatpush1.msra.mxu0 0.0
      %1329 = vmatprep.subr.mxu0 0.0
      %1330 = vmatpush1.msra.mxu0 0.0
      %1331 = vmatprep.subr.mxu0 0.0
      %1332 = vmatpush1.msra.mxu0 0.0
      %1333 = vmatprep.subr.mxu0 0.0
      %1334 = vmatpush1.msra.mxu0 0.0
      %1335 = vmatprep.subr.mxu0 0.0
      %1336 = vmatpush1.msra.mxu0 0.0
      %1337 = vmatprep.subr.mxu0 0.0
      %1338 = vmatpush1.msra.mxu0 0.0
      %1339 = vmatprep.subr.mxu0 0.0
      %1340 = vmatpush1.msra.mxu0 0.0
      %1341 = vmatprep.subr.mxu0 0.0
      %1342 = vmatpush1.msra.mxu0 0.0
      %1343 = vmatprep.subr.mxu0 0.0
      %1344 = vmatpush1.msra.mxu0 0.0
      %1345 = vmatprep.subr.mxu0 0.0
      %1346 = vmatpush1.msra.mxu0 0.0
      %1347 = vmatprep.subr.mxu0 0.0
      %1348 = vmatpush1.msra.mxu0 0.0
      %1349 = vmatprep.subr.mxu0 0.0
      %1350 = vmatpush1.msra.mxu0 0.0
      %1351 = vmatprep.subr.mxu0 0.0
      %1352 = vmatpush1.msra.mxu0 0.0
      %1353 = vmatprep.subr.mxu0 0.0
      %1354 = vmatpush1.msra.mxu0 0.0
      %1355 = vmatprep.subr.mxu0 0.0
      %1356 = vmatpush1.msra.mxu0 0.0
      %1357 = vmatprep.subr.mxu0 0.0
      %1358 = vmatpush1.msra.mxu0 0.0
      %1359 = vmatprep.subr.mxu0 0.0
      %1360 = vmatpush1.msra.mxu0 0.0
      %1361 = vmatprep.subr.mxu0 0.0
      %1362 = vmatpush1.msra.mxu0 0.0
      %1363 = vmatprep.subr.mxu0 0.0
      %1364 = vmatpush1.msra.mxu0 0.0
      %1365 = vmatprep.subr.mxu0 0.0
      %1366 = vmatpush1.msra.mxu0 0.0
      %1367 = vmatprep.subr.mxu0 0.0
      %1368 = vmatpush1.msra.mxu0 0.0
      %1369 = vmatprep.subr.mxu0 0.0
      %1370 = vmatpush1.msra.mxu0 0.0
      %1371 = vmatprep.subr.mxu0 0.0
      %1372 = vmatpush1.msra.mxu0 0.0
      %1373 = vmatprep.subr.mxu0 0.0
      %1374 = vmatpush1.msra.mxu0 0.0
      %1375 = vmatprep.subr.mxu0 0.0
      %1376 = vmatpush1.msra.mxu0 0.0
      %1377 = vmatprep.subr.mxu0 0.0
      %1378 = vmatpush1.msra.mxu0 0.0
      %1379 = vmatprep.subr.mxu0 0.0
      %1380 = vmatpush1.msra.mxu0 0.0
      %1381 = vmatprep.subr.mxu0 0.0
      %1382 = vmatpush1.msra.mxu0 0.0
      %1383 = vmatprep.mubr.f32.mxu0 0.0
      %1384 = vmatmul.mubr.f32.gmra.mrb[0].mxu0 %v1317
      %v1385 = vpop.f32.mrb[0].mxu0
      %v1386 = vadd.f32 0.0, %v1385
      %v1387 = vpop.f32.mrb[0].mxu0
      %1388 = vdwg.mxu0
      %1389 = vrot.lane.b32.xlu0 %v362, 64
      %v1390 = vpop.permute.xlu0 %1389
      %v1393 = vsel %vm383, %v1078, 0
      %1395 = vmatprep.subr.mxu0 0.0
      %1396 = vmatpush1.msra.mxu0 %v1390
      %1397 = vmatprep.subr.mxu0 0.0
      %1398 = vmatpush1.msra.mxu0 0.0
      %1399 = vmatprep.subr.mxu0 0.0
      %1400 = vmatpush1.msra.mxu0 0.0
      %1401 = vmatprep.subr.mxu0 0.0
      %1402 = vmatpush1.msra.mxu0 0.0
      %1403 = vmatprep.subr.mxu0 0.0
      %1404 = vmatpush1.msra.mxu0 0.0
      %1405 = vmatprep.subr.mxu0 0.0
      %1406 = vmatpush1.msra.mxu0 0.0
      %1407 = vmatprep.subr.mxu0 0.0
      %1408 = vmatpush1.msra.mxu0 0.0
      %1409 = vmatprep.subr.mxu0 0.0
      %1410 = vmatpush1.msra.mxu0 0.0
      %1411 = vmatprep.subr.mxu0 0.0
      %1412 = vmatpush1.msra.mxu0 0.0
      %1413 = vmatprep.subr.mxu0 0.0
      %1414 = vmatpush1.msra.mxu0 0.0
      %1415 = vmatprep.subr.mxu0 0.0
      %1416 = vmatpush1.msra.mxu0 0.0
      %1417 = vmatprep.subr.mxu0 0.0
      %1418 = vmatpush1.msra.mxu0 0.0
      %1419 = vmatprep.subr.mxu0 0.0
      %1420 = vmatpush1.msra.mxu0 0.0
      %1421 = vmatprep.subr.mxu0 0.0
      %1422 = vmatpush1.msra.mxu0 0.0
      %1423 = vmatprep.subr.mxu0 0.0
      %1424 = vmatpush1.msra.mxu0 0.0
      %1425 = vmatprep.subr.mxu0 0.0
      %1426 = vmatpush1.msra.mxu0 0.0
      %1427 = vmatprep.subr.mxu0 0.0
      %1428 = vmatpush1.msra.mxu0 0.0
      %1429 = vmatprep.subr.mxu0 0.0
      %1430 = vmatpush1.msra.mxu0 0.0
      %1431 = vmatprep.subr.mxu0 0.0
      %1432 = vmatpush1.msra.mxu0 0.0
      %1433 = vmatprep.subr.mxu0 0.0
      %1434 = vmatpush1.msra.mxu0 0.0
      %1435 = vmatprep.subr.mxu0 0.0
      %1436 = vmatpush1.msra.mxu0 0.0
      %1437 = vmatprep.subr.mxu0 0.0
      %1438 = vmatpush1.msra.mxu0 0.0
      %1439 = vmatprep.subr.mxu0 0.0
      %1440 = vmatpush1.msra.mxu0 0.0
      %1441 = vmatprep.subr.mxu0 0.0
      %1442 = vmatpush1.msra.mxu0 0.0
      %1443 = vmatprep.subr.mxu0 0.0
      %1444 = vmatpush1.msra.mxu0 0.0
      %1445 = vmatprep.subr.mxu0 0.0
      %1446 = vmatpush1.msra.mxu0 0.0
      %1447 = vmatprep.subr.mxu0 0.0
      %1448 = vmatpush1.msra.mxu0 0.0
      %1449 = vmatprep.subr.mxu0 0.0
      %1450 = vmatpush1.msra.mxu0 0.0
      %1451 = vmatprep.subr.mxu0 0.0
      %1452 = vmatpush1.msra.mxu0 0.0
      %1453 = vmatprep.subr.mxu0 0.0
      %1454 = vmatpush1.msra.mxu0 0.0
      %1455 = vmatprep.subr.mxu0 0.0
      %1456 = vmatpush1.msra.mxu0 0.0
      %1457 = vmatprep.subr.mxu0 0.0
      %1458 = vmatpush1.msra.mxu0 0.0
      %1459 = vmatprep.mubr.f32.mxu0 0.0
      %1460 = vmatmul.mubr.f32.gmra.mrb[0].mxu0 %v1393
      %v1461 = vpop.f32.mrb[0].mxu0
      %v1462 = vadd.f32 0.0, %v1461
      %v1463 = vpop.f32.mrb[0].mxu0
      %1464 = vdwg.mxu0
      %1465 = vrot.lane.b32.xlu0 %v367, 64
      %v1466 = vpop.permute.xlu0 %1465
      %v1469 = vsel %vm383, %v1080, 0
      %1471 = vmatprep.subr.mxu0 0.0
      %1472 = vmatpush1.msra.mxu0 %v1466
      %1473 = vmatprep.subr.mxu0 0.0
      %1474 = vmatpush1.msra.mxu0 0.0
      %1475 = vmatprep.subr.mxu0 0.0
      %1476 = vmatpush1.msra.mxu0 0.0
      %1477 = vmatprep.subr.mxu0 0.0
      %1478 = vmatpush1.msra.mxu0 0.0
      %1479 = vmatprep.subr.mxu0 0.0
      %1480 = vmatpush1.msra.mxu0 0.0
      %1481 = vmatprep.subr.mxu0 0.0
      %1482 = vmatpush1.msra.mxu0 0.0
      %1483 = vmatprep.subr.mxu0 0.0
      %1484 = vmatpush1.msra.mxu0 0.0
      %1485 = vmatprep.subr.mxu0 0.0
      %1486 = vmatpush1.msra.mxu0 0.0
      %1487 = vmatprep.subr.mxu0 0.0
      %1488 = vmatpush1.msra.mxu0 0.0
      %1489 = vmatprep.subr.mxu0 0.0
      %1490 = vmatpush1.msra.mxu0 0.0
      %1491 = vmatprep.subr.mxu0 0.0
      %1492 = vmatpush1.msra.mxu0 0.0
      %1493 = vmatprep.subr.mxu0 0.0
      %1494 = vmatpush1.msra.mxu0 0.0
      %1495 = vmatprep.subr.mxu0 0.0
      %1496 = vmatpush1.msra.mxu0 0.0
      %1497 = vmatprep.subr.mxu0 0.0
      %1498 = vmatpush1.msra.mxu0 0.0
      %1499 = vmatprep.subr.mxu0 0.0
      %1500 = vmatpush1.msra.mxu0 0.0
      %1501 = vmatprep.subr.mxu0 0.0
      %1502 = vmatpush1.msra.mxu0 0.0
      %1503 = vmatprep.subr.mxu0 0.0
      %1504 = vmatpush1.msra.mxu0 0.0
      %1505 = vmatprep.subr.mxu0 0.0
      %1506 = vmatpush1.msra.mxu0 0.0
      %1507 = vmatprep.subr.mxu0 0.0
      %1508 = vmatpush1.msra.mxu0 0.0
      %1509 = vmatprep.subr.mxu0 0.0
      %1510 = vmatpush1.msra.mxu0 0.0
      %1511 = vmatprep.subr.mxu0 0.0
      %1512 = vmatpush1.msra.mxu0 0.0
      %1513 = vmatprep.subr.mxu0 0.0
      %1514 = vmatpush1.msra.mxu0 0.0
      %1515 = vmatprep.subr.mxu0 0.0
      %1516 = vmatpush1.msra.mxu0 0.0
      %1517 = vmatprep.subr.mxu0 0.0
      %1518 = vmatpush1.msra.mxu0 0.0
      %1519 = vmatprep.subr.mxu0 0.0
      %1520 = vmatpush1.msra.mxu0 0.0
      %1521 = vmatprep.subr.mxu0 0.0
      %1522 = vmatpush1.msra.mxu0 0.0
      %1523 = vmatprep.subr.mxu0 0.0
      %1524 = vmatpush1.msra.mxu0 0.0
      %1525 = vmatprep.subr.mxu0 0.0
      %1526 = vmatpush1.msra.mxu0 0.0
      %1527 = vmatprep.subr.mxu0 0.0
      %1528 = vmatpush1.msra.mxu0 0.0
      %1529 = vmatprep.subr.mxu0 0.0
      %1530 = vmatpush1.msra.mxu0 0.0
      %1531 = vmatprep.subr.mxu0 0.0
      %1532 = vmatpush1.msra.mxu0 0.0
      %1533 = vmatprep.subr.mxu0 0.0
      %1534 = vmatpush1.msra.mxu0 0.0
      %1535 = vmatprep.mubr.f32.mxu0 0.0
      %1536 = vmatmul.mubr.f32.gmra.mrb[0].mxu0 %v1469
      %v1537 = vpop.f32.mrb[0].mxu0
      %v1538 = vadd.f32 0.0, %v1537
      %v1539 = vpop.f32.mrb[0].mxu0
      %1540 = vdwg.mxu0
      %1541 = vrot.lane.b32.xlu0 %v372, 64
      %v1542 = vpop.permute.xlu0 %1541
      %v1545 = vsel %vm383, %v1082, 0
      %1547 = vmatprep.subr.mxu0 0.0
      %1548 = vmatpush1.msra.mxu0 %v1542
      %1549 = vmatprep.subr.mxu0 0.0
      %1550 = vmatpush1.msra.mxu0 0.0
      %1551 = vmatprep.subr.mxu0 0.0
      %1552 = vmatpush1.msra.mxu0 0.0
      %1553 = vmatprep.subr.mxu0 0.0
      %1554 = vmatpush1.msra.mxu0 0.0
      %1555 = vmatprep.subr.mxu0 0.0
      %1556 = vmatpush1.msra.mxu0 0.0
      %1557 = vmatprep.subr.mxu0 0.0
      %1558 = vmatpush1.msra.mxu0 0.0
      %1559 = vmatprep.subr.mxu0 0.0
      %1560 = vmatpush1.msra.mxu0 0.0
      %1561 = vmatprep.subr.mxu0 0.0
      %1562 = vmatpush1.msra.mxu0 0.0
      %1563 = vmatprep.subr.mxu0 0.0
      %1564 = vmatpush1.msra.mxu0 0.0
      %1565 = vmatprep.subr.mxu0 0.0
      %1566 = vmatpush1.msra.mxu0 0.0
      %1567 = vmatprep.subr.mxu0 0.0
      %1568 = vmatpush1.msra.mxu0 0.0
      %1569 = vmatprep.subr.mxu0 0.0
      %1570 = vmatpush1.msra.mxu0 0.0
      %1571 = vmatprep.subr.mxu0 0.0
      %1572 = vmatpush1.msra.mxu0 0.0
      %1573 = vmatprep.subr.mxu0 0.0
      %1574 = vmatpush1.msra.mxu0 0.0
      %1575 = vmatprep.subr.mxu0 0.0
      %1576 = vmatpush1.msra.mxu0 0.0
      %1577 = vmatprep.subr.mxu0 0.0
      %1578 = vmatpush1.msra.mxu0 0.0
      %1579 = vmatprep.subr.mxu0 0.0
      %1580 = vmatpush1.msra.mxu0 0.0
      %1581 = vmatprep.subr.mxu0 0.0
      %1582 = vmatpush1.msra.mxu0 0.0
      %1583 = vmatprep.subr.mxu0 0.0
      %1584 = vmatpush1.msra.mxu0 0.0
      %1585 = vmatprep.subr.mxu0 0.0
      %1586 = vmatpush1.msra.mxu0 0.0
      %1587 = vmatprep.subr.mxu0 0.0
      %1588 = vmatpush1.msra.mxu0 0.0
      %1589 = vmatprep.subr.mxu0 0.0
      %1590 = vmatpush1.msra.mxu0 0.0
      %1591 = vmatprep.subr.mxu0 0.0
      %1592 = vmatpush1.msra.mxu0 0.0
      %1593 = vmatprep.subr.mxu0 0.0
      %1594 = vmatpush1.msra.mxu0 0.0
      %1595 = vmatprep.subr.mxu0 0.0
      %1596 = vmatpush1.msra.mxu0 0.0
      %1597 = vmatprep.subr.mxu0 0.0
      %1598 = vmatpush1.msra.mxu0 0.0
      %1599 = vmatprep.subr.mxu0 0.0
      %1600 = vmatpush1.msra.mxu0 0.0
      %1601 = vmatprep.subr.mxu0 0.0
      %1602 = vmatpush1.msra.mxu0 0.0
      %1603 = vmatprep.subr.mxu0 0.0
      %1604 = vmatpush1.msra.mxu0 0.0
      %1605 = vmatprep.subr.mxu0 0.0
      %1606 = vmatpush1.msra.mxu0 0.0
      %1607 = vmatprep.subr.mxu0 0.0
      %1608 = vmatpush1.msra.mxu0 0.0
      %1609 = vmatprep.subr.mxu0 0.0
      %1610 = vmatpush1.msra.mxu0 0.0
      %1611 = vmatprep.mubr.f32.mxu0 0.0
      %1612 = vmatmul.mubr.f32.gmra.mrb[0].mxu0 %v1545
      %v1613 = vpop.f32.mrb[0].mxu0
      %v1614 = vadd.f32 0.0, %v1613
      %v1615 = vpop.f32.mrb[0].mxu0
      %1616 = vdwg.mxu0
      %1617 = vrot.lane.b32.xlu0 %v377, 64
      %v1618 = vpop.permute.xlu0 %1617
      %v1621 = vsel %vm383, %v1084, 0
      %1623 = vmatprep.subr.mxu0 0.0
      %1624 = vmatpush1.msra.mxu0 %v1618
      %1625 = vmatprep.subr.mxu0 0.0
      %1626 = vmatpush1.msra.mxu0 0.0
      %1627 = vmatprep.subr.mxu0 0.0
      %1628 = vmatpush1.msra.mxu0 0.0
      %1629 = vmatprep.subr.mxu0 0.0
      %1630 = vmatpush1.msra.mxu0 0.0
      %1631 = vmatprep.subr.mxu0 0.0
      %1632 = vmatpush1.msra.mxu0 0.0
      %1633 = vmatprep.subr.mxu0 0.0
      %1634 = vmatpush1.msra.mxu0 0.0
      %1635 = vmatprep.subr.mxu0 0.0
      %1636 = vmatpush1.msra.mxu0 0.0
      %1637 = vmatprep.subr.mxu0 0.0
      %1638 = vmatpush1.msra.mxu0 0.0
      %1639 = vmatprep.subr.mxu0 0.0
      %1640 = vmatpush1.msra.mxu0 0.0
      %1641 = vmatprep.subr.mxu0 0.0
      %1642 = vmatpush1.msra.mxu0 0.0
      %1643 = vmatprep.subr.mxu0 0.0
      %1644 = vmatpush1.msra.mxu0 0.0
      %1645 = vmatprep.subr.mxu0 0.0
      %1646 = vmatpush1.msra.mxu0 0.0
      %1647 = vmatprep.subr.mxu0 0.0
      %1648 = vmatpush1.msra.mxu0 0.0
      %1649 = vmatprep.subr.mxu0 0.0
      %1650 = vmatpush1.msra.mxu0 0.0
      %1651 = vmatprep.subr.mxu0 0.0
      %1652 = vmatpush1.msra.mxu0 0.0
      %1653 = vmatprep.subr.mxu0 0.0
      %1654 = vmatpush1.msra.mxu0 0.0
      %1655 = vmatprep.subr.mxu0 0.0
      %1656 = vmatpush1.msra.mxu0 0.0
      %1657 = vmatprep.subr.mxu0 0.0
      %1658 = vmatpush1.msra.mxu0 0.0
      %1659 = vmatprep.subr.mxu0 0.0
      %1660 = vmatpush1.msra.mxu0 0.0
      %1661 = vmatprep.subr.mxu0 0.0
      %1662 = vmatpush1.msra.mxu0 0.0
      %1663 = vmatprep.subr.mxu0 0.0
      %1664 = vmatpush1.msra.mxu0 0.0
      %1665 = vmatprep.subr.mxu0 0.0
      %1666 = vmatpush1.msra.mxu0 0.0
      %1667 = vmatprep.subr.mxu0 0.0
      %1668 = vmatpush1.msra.mxu0 0.0
      %1669 = vmatprep.subr.mxu0 0.0
      %1670 = vmatpush1.msra.mxu0 0.0
      %1671 = vmatprep.subr.mxu0 0.0
      %1672 = vmatpush1.msra.mxu0 0.0
      %1673 = vmatprep.subr.mxu0 0.0
      %1674 = vmatpush1.msra.mxu0 0.0
      %1675 = vmatprep.subr.mxu0 0.0
      %1676 = vmatpush1.msra.mxu0 0.0
      %1677 = vmatprep.subr.mxu0 0.0
      %1678 = vmatpush1.msra.mxu0 0.0
      %1679 = vmatprep.subr.mxu0 0.0
      %1680 = vmatpush1.msra.mxu0 0.0
      %1681 = vmatprep.subr.mxu0 0.0
      %1682 = vmatpush1.msra.mxu0 0.0
      %1683 = vmatprep.subr.mxu0 0.0
      %1684 = vmatpush1.msra.mxu0 0.0
      %1685 = vmatprep.subr.mxu0 0.0
      %1686 = vmatpush1.msra.mxu0 0.0
      %1687 = vmatprep.mubr.f32.mxu0 0.0
      %1688 = vmatmul.mubr.f32.gmra.mrb[0].mxu0 %v1621
      %v1689 = vpop.f32.mrb[0].mxu0
      %v1690 = vadd.f32 0.0, %v1689
      %v1691 = vpop.f32.mrb[0].mxu0
      %1692 = vdwg.mxu0
      %1693 = vrot.lane.b32.xlu0 %v342, 120
      %v1694 = vpop.permute.xlu0 %1693
      %1695 = vrot.lane.b32.xlu0 %v342, 88
      %v1696 = vpop.permute.xlu0 %1695
      %v1697 = vsel %vm383, %v1694, 0
      %v1699 = vsel %vm383, %v1696, 0
      %1701 = vmatprep.subr.mxu0 0.0
      %1702 = vmatpush1.xpose.msra.mxu0 %v1699
      %1703 = vmatprep.subr.mxu0 0.0
      %1704 = vmatpush1.xpose.msra.mxu0 0.0
      %1705 = vmatprep.subr.mxu0 0.0
      %1706 = vmatpush1.xpose.msra.mxu0 0.0
      %1707 = vmatprep.subr.mxu0 0.0
      %1708 = vmatpush1.xpose.msra.mxu0 0.0
      %1709 = vmatprep.subr.mxu0 0.0
      %1710 = vmatpush1.xpose.msra.mxu0 0.0
      %1711 = vmatprep.subr.mxu0 0.0
      %1712 = vmatpush1.xpose.msra.mxu0 0.0
      %1713 = vmatprep.subr.mxu0 0.0
      %1714 = vmatpush1.xpose.msra.mxu0 0.0
      %1715 = vmatprep.subr.mxu0 0.0
      %1716 = vmatpush1.xpose.msra.mxu0 0.0
      %1717 = vmatprep.subr.mxu0 0.0
      %1718 = vmatpush1.xpose.msra.mxu0 0.0
      %1719 = vmatprep.subr.mxu0 0.0
      %1720 = vmatpush1.xpose.msra.mxu0 0.0
      %1721 = vmatprep.subr.mxu0 0.0
      %1722 = vmatpush1.xpose.msra.mxu0 0.0
      %1723 = vmatprep.subr.mxu0 0.0
      %1724 = vmatpush1.xpose.msra.mxu0 0.0
      %1725 = vmatprep.subr.mxu0 0.0
      %1726 = vmatpush1.xpose.msra.mxu0 0.0
      %1727 = vmatprep.subr.mxu0 0.0
      %1728 = vmatpush1.xpose.msra.mxu0 0.0
      %1729 = vmatprep.subr.mxu0 0.0
      %1730 = vmatpush1.xpose.msra.mxu0 0.0
      %1731 = vmatprep.subr.mxu0 0.0
      %1732 = vmatpush1.xpose.msra.mxu0 0.0
      %1733 = vmatprep.subr.mxu0 0.0
      %1734 = vmatpush1.xpose.msra.mxu0 0.0
      %1735 = vmatprep.subr.mxu0 0.0
      %1736 = vmatpush1.xpose.msra.mxu0 0.0
      %1737 = vmatprep.subr.mxu0 0.0
      %1738 = vmatpush1.xpose.msra.mxu0 0.0
      %1739 = vmatprep.subr.mxu0 0.0
      %1740 = vmatpush1.xpose.msra.mxu0 0.0
      %1741 = vmatprep.subr.mxu0 0.0
      %1742 = vmatpush1.xpose.msra.mxu0 0.0
      %1743 = vmatprep.subr.mxu0 0.0
      %1744 = vmatpush1.xpose.msra.mxu0 0.0
      %1745 = vmatprep.subr.mxu0 0.0
      %1746 = vmatpush1.xpose.msra.mxu0 0.0
      %1747 = vmatprep.subr.mxu0 0.0
      %1748 = vmatpush1.xpose.msra.mxu0 0.0
      %1749 = vmatprep.subr.mxu0 0.0
      %1750 = vmatpush1.xpose.msra.mxu0 0.0
      %1751 = vmatprep.subr.mxu0 0.0
      %1752 = vmatpush1.xpose.msra.mxu0 0.0
      %1753 = vmatprep.subr.mxu0 0.0
      %1754 = vmatpush1.xpose.msra.mxu0 0.0
      %1755 = vmatprep.subr.mxu0 0.0
      %1756 = vmatpush1.xpose.msra.mxu0 0.0
      %1757 = vmatprep.subr.mxu0 0.0
      %1758 = vmatpush1.xpose.msra.mxu0 0.0
      %1759 = vmatprep.subr.mxu0 0.0
      %1760 = vmatpush1.xpose.msra.mxu0 0.0
      %1761 = vmatprep.subr.mxu0 0.0
      %1762 = vmatpush1.xpose.msra.mxu0 0.0
      %1763 = vmatprep.subr.mxu0 0.0
      %1764 = vmatpush1.xpose.msra.mxu0 0.0
      %1765 = vmatprep.mubr.f32.mxu0 0.0
      %1766 = vmatmul.mubr.f32.gmra.mrb[0].mxu0 %v1697
      %v1767 = vpop.f32.mrb[0].mxu0
      %v1768 = vadd.f32 0.0, %v1767
      %v1769 = vpop.f32.mrb[0].mxu0
      %1770 = vdwg.mxu0
      %1771 = vrot.lane.b32.xlu0 %v347, 120
      %v1772 = vpop.permute.xlu0 %1771
      %1773 = vrot.lane.b32.xlu0 %v347, 88
      %v1774 = vpop.permute.xlu0 %1773
      %v1775 = vsel %vm383, %v1772, 0
      %v1777 = vsel %vm383, %v1774, 0
      %1779 = vmatprep.subr.mxu0 0.0
      %1780 = vmatpush1.xpose.msra.mxu0 %v1777
      %1781 = vmatprep.subr.mxu0 0.0
      %1782 = vmatpush1.xpose.msra.mxu0 0.0
      %1783 = vmatprep.subr.mxu0 0.0
      %1784 = vmatpush1.xpose.msra.mxu0 0.0
      %1785 = vmatprep.subr.mxu0 0.0
      %1786 = vmatpush1.xpose.msra.mxu0 0.0
      %1787 = vmatprep.subr.mxu0 0.0
      %1788 = vmatpush1.xpose.msra.mxu0 0.0
      %1789 = vmatprep.subr.mxu0 0.0
      %1790 = vmatpush1.xpose.msra.mxu0 0.0
      %1791 = vmatprep.subr.mxu0 0.0
      %1792 = vmatpush1.xpose.msra.mxu0 0.0
      %1793 = vmatprep.subr.mxu0 0.0
      %1794 = vmatpush1.xpose.msra.mxu0 0.0
      %1795 = vmatprep.subr.mxu0 0.0
      %1796 = vmatpush1.xpose.msra.mxu0 0.0
      %1797 = vmatprep.subr.mxu0 0.0
      %1798 = vmatpush1.xpose.msra.mxu0 0.0
      %1799 = vmatprep.subr.mxu0 0.0
      %1800 = vmatpush1.xpose.msra.mxu0 0.0
      %1801 = vmatprep.subr.mxu0 0.0
      %1802 = vmatpush1.xpose.msra.mxu0 0.0
      %1803 = vmatprep.subr.mxu0 0.0
      %1804 = vmatpush1.xpose.msra.mxu0 0.0
      %1805 = vmatprep.subr.mxu0 0.0
      %1806 = vmatpush1.xpose.msra.mxu0 0.0
      %1807 = vmatprep.subr.mxu0 0.0
      %1808 = vmatpush1.xpose.msra.mxu0 0.0
      %1809 = vmatprep.subr.mxu0 0.0
      %1810 = vmatpush1.xpose.msra.mxu0 0.0
      %1811 = vmatprep.subr.mxu0 0.0
      %1812 = vmatpush1.xpose.msra.mxu0 0.0
      %1813 = vmatprep.subr.mxu0 0.0
      %1814 = vmatpush1.xpose.msra.mxu0 0.0
      %1815 = vmatprep.subr.mxu0 0.0
      %1816 = vmatpush1.xpose.msra.mxu0 0.0
      %1817 = vmatprep.subr.mxu0 0.0
      %1818 = vmatpush1.xpose.msra.mxu0 0.0
      %1819 = vmatprep.subr.mxu0 0.0
      %1820 = vmatpush1.xpose.msra.mxu0 0.0
      %1821 = vmatprep.subr.mxu0 0.0
      %1822 = vmatpush1.xpose.msra.mxu0 0.0
      %1823 = vmatprep.subr.mxu0 0.0
      %1824 = vmatpush1.xpose.msra.mxu0 0.0
      %1825 = vmatprep.subr.mxu0 0.0
      %1826 = vmatpush1.xpose.msra.mxu0 0.0
      %1827 = vmatprep.subr.mxu0 0.0
      %1828 = vmatpush1.xpose.msra.mxu0 0.0
      %1829 = vmatprep.subr.mxu0 0.0
      %1830 = vmatpush1.xpose.msra.mxu0 0.0
      %1831 = vmatprep.subr.mxu0 0.0
      %1832 = vmatpush1.xpose.msra.mxu0 0.0
      %1833 = vmatprep.subr.mxu0 0.0
      %1834 = vmatpush1.xpose.msra.mxu0 0.0
      %1835 = vmatprep.subr.mxu0 0.0
      %1836 = vmatpush1.xpose.msra.mxu0 0.0
      %1837 = vmatprep.subr.mxu0 0.0
      %1838 = vmatpush1.xpose.msra.mxu0 0.0
      %1839 = vmatprep.subr.mxu0 0.0
      %1840 = vmatpush1.xpose.msra.mxu0 0.0
      %1841 = vmatprep.subr.mxu0 0.0
      %1842 = vmatpush1.xpose.msra.mxu0 0.0
      %1843 = vmatprep.mubr.f32.mxu0 0.0
      %1844 = vmatmul.mubr.f32.gmra.mrb[0].mxu0 %v1775
      %v1845 = vpop.f32.mrb[0].mxu0
      %v1846 = vadd.f32 0.0, %v1845
      %v1847 = vpop.f32.mrb[0].mxu0
      %1848 = vdwg.mxu0
      %1849 = vrot.lane.b32.xlu0 %v352, 120
      %v1850 = vpop.permute.xlu0 %1849
      %1851 = vrot.lane.b32.xlu0 %v352, 88
      %v1852 = vpop.permute.xlu0 %1851
      %v1853 = vsel %vm383, %v1850, 0
      %v1855 = vsel %vm383, %v1852, 0
      %1857 = vmatprep.subr.mxu0 0.0
      %1858 = vmatpush1.xpose.msra.mxu0 %v1855
      %1859 = vmatprep.subr.mxu0 0.0
      %1860 = vmatpush1.xpose.msra.mxu0 0.0
      %1861 = vmatprep.subr.mxu0 0.0
      %1862 = vmatpush1.xpose.msra.mxu0 0.0
      %1863 = vmatprep.subr.mxu0 0.0
      %1864 = vmatpush1.xpose.msra.mxu0 0.0
      %1865 = vmatprep.subr.mxu0 0.0
      %1866 = vmatpush1.xpose.msra.mxu0 0.0
      %1867 = vmatprep.subr.mxu0 0.0
      %1868 = vmatpush1.xpose.msra.mxu0 0.0
      %1869 = vmatprep.subr.mxu0 0.0
      %1870 = vmatpush1.xpose.msra.mxu0 0.0
      %1871 = vmatprep.subr.mxu0 0.0
      %1872 = vmatpush1.xpose.msra.mxu0 0.0
      %1873 = vmatprep.subr.mxu0 0.0
      %1874 = vmatpush1.xpose.msra.mxu0 0.0
      %1875 = vmatprep.subr.mxu0 0.0
      %1876 = vmatpush1.xpose.msra.mxu0 0.0
      %1877 = vmatprep.subr.mxu0 0.0
      %1878 = vmatpush1.xpose.msra.mxu0 0.0
      %1879 = vmatprep.subr.mxu0 0.0
      %1880 = vmatpush1.xpose.msra.mxu0 0.0
      %1881 = vmatprep.subr.mxu0 0.0
      %1882 = vmatpush1.xpose.msra.mxu0 0.0
      %1883 = vmatprep.subr.mxu0 0.0
      %1884 = vmatpush1.xpose.msra.mxu0 0.0
      %1885 = vmatprep.subr.mxu0 0.0
      %1886 = vmatpush1.xpose.msra.mxu0 0.0
      %1887 = vmatprep.subr.mxu0 0.0
      %1888 = vmatpush1.xpose.msra.mxu0 0.0
      %1889 = vmatprep.subr.mxu0 0.0
      %1890 = vmatpush1.xpose.msra.mxu0 0.0
      %1891 = vmatprep.subr.mxu0 0.0
      %1892 = vmatpush1.xpose.msra.mxu0 0.0
      %1893 = vmatprep.subr.mxu0 0.0
      %1894 = vmatpush1.xpose.msra.mxu0 0.0
      %1895 = vmatprep.subr.mxu0 0.0
      %1896 = vmatpush1.xpose.msra.mxu0 0.0
      %1897 = vmatprep.subr.mxu0 0.0
      %1898 = vmatpush1.xpose.msra.mxu0 0.0
      %1899 = vmatprep.subr.mxu0 0.0
      %1900 = vmatpush1.xpose.msra.mxu0 0.0
      %1901 = vmatprep.subr.mxu0 0.0
      %1902 = vmatpush1.xpose.msra.mxu0 0.0
      %1903 = vmatprep.subr.mxu0 0.0
      %1904 = vmatpush1.xpose.msra.mxu0 0.0
      %1905 = vmatprep.subr.mxu0 0.0
      %1906 = vmatpush1.xpose.msra.mxu0 0.0
      %1907 = vmatprep.subr.mxu0 0.0
      %1908 = vmatpush1.xpose.msra.mxu0 0.0
      %1909 = vmatprep.subr.mxu0 0.0
      %1910 = vmatpush1.xpose.msra.mxu0 0.0
      %1911 = vmatprep.subr.mxu0 0.0
      %1912 = vmatpush1.xpose.msra.mxu0 0.0
      %1913 = vmatprep.subr.mxu0 0.0
      %1914 = vmatpush1.xpose.msra.mxu0 0.0
      %1915 = vmatprep.subr.mxu0 0.0
      %1916 = vmatpush1.xpose.msra.mxu0 0.0
      %1917 = vmatprep.subr.mxu0 0.0
      %1918 = vmatpush1.xpose.msra.mxu0 0.0
      %1919 = vmatprep.subr.mxu0 0.0
      %1920 = vmatpush1.xpose.msra.mxu0 0.0
      %1921 = vmatprep.mubr.f32.mxu0 0.0
      %1922 = vmatmul.mubr.f32.gmra.mrb[0].mxu0 %v1853
      %v1923 = vpop.f32.mrb[0].mxu0
      %v1924 = vadd.f32 0.0, %v1923
      %v1925 = vpop.f32.mrb[0].mxu0
      %1926 = vdwg.mxu0
      %1927 = vrot.lane.b32.xlu0 %v357, 120
      %v1928 = vpop.permute.xlu0 %1927
      %1929 = vrot.lane.b32.xlu0 %v357, 88
      %v1930 = vpop.permute.xlu0 %1929
      %v1931 = vsel %vm383, %v1928, 0
      %v1933 = vsel %vm383, %v1930, 0
      %1935 = vmatprep.subr.mxu0 0.0
      %1936 = vmatpush1.xpose.msra.mxu0 %v1933
      %1937 = vmatprep.subr.mxu0 0.0
      %1938 = vmatpush1.xpose.msra.mxu0 0.0
      %1939 = vmatprep.subr.mxu0 0.0
      %1940 = vmatpush1.xpose.msra.mxu0 0.0
      %1941 = vmatprep.subr.mxu0 0.0
      %1942 = vmatpush1.xpose.msra.mxu0 0.0
      %1943 = vmatprep.subr.mxu0 0.0
      %1944 = vmatpush1.xpose.msra.mxu0 0.0
      %1945 = vmatprep.subr.mxu0 0.0
      %1946 = vmatpush1.xpose.msra.mxu0 0.0
      %1947 = vmatprep.subr.mxu0 0.0
      %1948 = vmatpush1.xpose.msra.mxu0 0.0
      %1949 = vmatprep.subr.mxu0 0.0
      %1950 = vmatpush1.xpose.msra.mxu0 0.0
      %1951 = vmatprep.subr.mxu0 0.0
      %1952 = vmatpush1.xpose.msra.mxu0 0.0
      %1953 = vmatprep.subr.mxu0 0.0
      %1954 = vmatpush1.xpose.msra.mxu0 0.0
      %1955 = vmatprep.subr.mxu0 0.0
      %1956 = vmatpush1.xpose.msra.mxu0 0.0
      %1957 = vmatprep.subr.mxu0 0.0
      %1958 = vmatpush1.xpose.msra.mxu0 0.0
      %1959 = vmatprep.subr.mxu0 0.0
      %1960 = vmatpush1.xpose.msra.mxu0 0.0
      %1961 = vmatprep.subr.mxu0 0.0
      %1962 = vmatpush1.xpose.msra.mxu0 0.0
      %1963 = vmatprep.subr.mxu0 0.0
      %1964 = vmatpush1.xpose.msra.mxu0 0.0
      %1965 = vmatprep.subr.mxu0 0.0
      %1966 = vmatpush1.xpose.msra.mxu0 0.0
      %1967 = vmatprep.subr.mxu0 0.0
      %1968 = vmatpush1.xpose.msra.mxu0 0.0
      %1969 = vmatprep.subr.mxu0 0.0
      %1970 = vmatpush1.xpose.msra.mxu0 0.0
      %1971 = vmatprep.subr.mxu0 0.0
      %1972 = vmatpush1.xpose.msra.mxu0 0.0
      %1973 = vmatprep.subr.mxu0 0.0
      %1974 = vmatpush1.xpose.msra.mxu0 0.0
      %1975 = vmatprep.subr.mxu0 0.0
      %1976 = vmatpush1.xpose.msra.mxu0 0.0
      %1977 = vmatprep.subr.mxu0 0.0
      %1978 = vmatpush1.xpose.msra.mxu0 0.0
      %1979 = vmatprep.subr.mxu0 0.0
      %1980 = vmatpush1.xpose.msra.mxu0 0.0
      %1981 = vmatprep.subr.mxu0 0.0
      %1982 = vmatpush1.xpose.msra.mxu0 0.0
      %1983 = vmatprep.subr.mxu0 0.0
      %1984 = vmatpush1.xpose.msra.mxu0 0.0
      %1985 = vmatprep.subr.mxu0 0.0
      %1986 = vmatpush1.xpose.msra.mxu0 0.0
      %1987 = vmatprep.subr.mxu0 0.0
      %1988 = vmatpush1.xpose.msra.mxu0 0.0
      %1989 = vmatprep.subr.mxu0 0.0
      %1990 = vmatpush1.xpose.msra.mxu0 0.0
      %1991 = vmatprep.subr.mxu0 0.0
      %1992 = vmatpush1.xpose.msra.mxu0 0.0
      %1993 = vmatprep.subr.mxu0 0.0
      %1994 = vmatpush1.xpose.msra.mxu0 0.0
      %1995 = vmatprep.subr.mxu0 0.0
      %1996 = vmatpush1.xpose.msra.mxu0 0.0
      %1997 = vmatprep.subr.mxu0 0.0
      %1998 = vmatpush1.xpose.msra.mxu0 0.0
      %1999 = vmatprep.mubr.f32.mxu0 0.0
      %2000 = vmatmul.mubr.f32.gmra.mrb[0].mxu0 %v1931
      %v2001 = vpop.f32.mrb[0].mxu0
      %v2002 = vadd.f32 0.0, %v2001
      %v2003 = vpop.f32.mrb[0].mxu0
      %2004 = vdwg.mxu0
      %2005 = vrot.lane.b32.xlu0 %v362, 120
      %v2006 = vpop.permute.xlu0 %2005
      %2007 = vrot.lane.b32.xlu0 %v362, 88
      %v2008 = vpop.permute.xlu0 %2007
      %v2009 = vsel %vm383, %v2006, 0
      %v2011 = vsel %vm383, %v2008, 0
      %2013 = vmatprep.subr.mxu0 0.0
      %2014 = vmatpush1.xpose.msra.mxu0 %v2011
      %2015 = vmatprep.subr.mxu0 0.0
      %2016 = vmatpush1.xpose.msra.mxu0 0.0
      %2017 = vmatprep.subr.mxu0 0.0
      %2018 = vmatpush1.xpose.msra.mxu0 0.0
      %2019 = vmatprep.subr.mxu0 0.0
      %2020 = vmatpush1.xpose.msra.mxu0 0.0
      %2021 = vmatprep.subr.mxu0 0.0
      %2022 = vmatpush1.xpose.msra.mxu0 0.0
      %2023 = vmatprep.subr.mxu0 0.0
      %2024 = vmatpush1.xpose.msra.mxu0 0.0
      %2025 = vmatprep.subr.mxu0 0.0
      %2026 = vmatpush1.xpose.msra.mxu0 0.0
      %2027 = vmatprep.subr.mxu0 0.0
      %2028 = vmatpush1.xpose.msra.mxu0 0.0
      %2029 = vmatprep.subr.mxu0 0.0
      %2030 = vmatpush1.xpose.msra.mxu0 0.0
      %2031 = vmatprep.subr.mxu0 0.0
      %2032 = vmatpush1.xpose.msra.mxu0 0.0
      %2033 = vmatprep.subr.mxu0 0.0
      %2034 = vmatpush1.xpose.msra.mxu0 0.0
      %2035 = vmatprep.subr.mxu0 0.0
      %2036 = vmatpush1.xpose.msra.mxu0 0.0
      %2037 = vmatprep.subr.mxu0 0.0
      %2038 = vmatpush1.xpose.msra.mxu0 0.0
      %2039 = vmatprep.subr.mxu0 0.0
      %2040 = vmatpush1.xpose.msra.mxu0 0.0
      %2041 = vmatprep.subr.mxu0 0.0
      %2042 = vmatpush1.xpose.msra.mxu0 0.0
      %2043 = vmatprep.subr.mxu0 0.0
      %2044 = vmatpush1.xpose.msra.mxu0 0.0
      %2045 = vmatprep.subr.mxu0 0.0
      %2046 = vmatpush1.xpose.msra.mxu0 0.0
      %2047 = vmatprep.subr.mxu0 0.0
      %2048 = vmatpush1.xpose.msra.mxu0 0.0
      %2049 = vmatprep.subr.mxu0 0.0
      %2050 = vmatpush1.xpose.msra.mxu0 0.0
      %2051 = vmatprep.subr.mxu0 0.0
      %2052 = vmatpush1.xpose.msra.mxu0 0.0
      %2053 = vmatprep.subr.mxu0 0.0
      %2054 = vmatpush1.xpose.msra.mxu0 0.0
      %2055 = vmatprep.subr.mxu0 0.0
      %2056 = vmatpush1.xpose.msra.mxu0 0.0
      %2057 = vmatprep.subr.mxu0 0.0
      %2058 = vmatpush1.xpose.msra.mxu0 0.0
      %2059 = vmatprep.subr.mxu0 0.0
      %2060 = vmatpush1.xpose.msra.mxu0 0.0
      %2061 = vmatprep.subr.mxu0 0.0
      %2062 = vmatpush1.xpose.msra.mxu0 0.0
      %2063 = vmatprep.subr.mxu0 0.0
      %2064 = vmatpush1.xpose.msra.mxu0 0.0
      %2065 = vmatprep.subr.mxu0 0.0
      %2066 = vmatpush1.xpose.msra.mxu0 0.0
      %2067 = vmatprep.subr.mxu0 0.0
      %2068 = vmatpush1.xpose.msra.mxu0 0.0
      %2069 = vmatprep.subr.mxu0 0.0
      %2070 = vmatpush1.xpose.msra.mxu0 0.0
      %2071 = vmatprep.subr.mxu0 0.0
      %2072 = vmatpush1.xpose.msra.mxu0 0.0
      %2073 = vmatprep.subr.mxu0 0.0
      %2074 = vmatpush1.xpose.msra.mxu0 0.0
      %2075 = vmatprep.subr.mxu0 0.0
      %2076 = vmatpush1.xpose.msra.mxu0 0.0
      %2077 = vmatprep.mubr.f32.mxu0 0.0
      %2078 = vmatmul.mubr.f32.gmra.mrb[0].mxu0 %v2009
      %v2079 = vpop.f32.mrb[0].mxu0
      %v2080 = vadd.f32 0.0, %v2079
      %v2081 = vpop.f32.mrb[0].mxu0
      %2082 = vdwg.mxu0
      %2083 = vrot.lane.b32.xlu0 %v367, 120
      %v2084 = vpop.permute.xlu0 %2083
      %2085 = vrot.lane.b32.xlu0 %v367, 88
      %v2086 = vpop.permute.xlu0 %2085
      %v2087 = vsel %vm383, %v2084, 0
      %v2089 = vsel %vm383, %v2086, 0
      %2091 = vmatprep.subr.mxu0 0.0
      %2092 = vmatpush1.xpose.msra.mxu0 %v2089
      %2093 = vmatprep.subr.mxu0 0.0
      %2094 = vmatpush1.xpose.msra.mxu0 0.0
      %2095 = vmatprep.subr.mxu0 0.0
      %2096 = vmatpush1.xpose.msra.mxu0 0.0
      %2097 = vmatprep.subr.mxu0 0.0
      %2098 = vmatpush1.xpose.msra.mxu0 0.0
      %2099 = vmatprep.subr.mxu0 0.0
      %2100 = vmatpush1.xpose.msra.mxu0 0.0
      %2101 = vmatprep.subr.mxu0 0.0
      %2102 = vmatpush1.xpose.msra.mxu0 0.0
      %2103 = vmatprep.subr.mxu0 0.0
      %2104 = vmatpush1.xpose.msra.mxu0 0.0
      %2105 = vmatprep.subr.mxu0 0.0
      %2106 = vmatpush1.xpose.msra.mxu0 0.0
      %2107 = vmatprep.subr.mxu0 0.0
      %2108 = vmatpush1.xpose.msra.mxu0 0.0
      %2109 = vmatprep.subr.mxu0 0.0
      %2110 = vmatpush1.xpose.msra.mxu0 0.0
      %2111 = vmatprep.subr.mxu0 0.0
      %2112 = vmatpush1.xpose.msra.mxu0 0.0
      %2113 = vmatprep.subr.mxu0 0.0
      %2114 = vmatpush1.xpose.msra.mxu0 0.0
      %2115 = vmatprep.subr.mxu0 0.0
      %2116 = vmatpush1.xpose.msra.mxu0 0.0
      %2117 = vmatprep.subr.mxu0 0.0
      %2118 = vmatpush1.xpose.msra.mxu0 0.0
      %2119 = vmatprep.subr.mxu0 0.0
      %2120 = vmatpush1.xpose.msra.mxu0 0.0
      %2121 = vmatprep.subr.mxu0 0.0
      %2122 = vmatpush1.xpose.msra.mxu0 0.0
      %2123 = vmatprep.subr.mxu0 0.0
      %2124 = vmatpush1.xpose.msra.mxu0 0.0
      %2125 = vmatprep.subr.mxu0 0.0
      %2126 = vmatpush1.xpose.msra.mxu0 0.0
      %2127 = vmatprep.subr.mxu0 0.0
      %2128 = vmatpush1.xpose.msra.mxu0 0.0
      %2129 = vmatprep.subr.mxu0 0.0
      %2130 = vmatpush1.xpose.msra.mxu0 0.0
      %2131 = vmatprep.subr.mxu0 0.0
      %2132 = vmatpush1.xpose.msra.mxu0 0.0
      %2133 = vmatprep.subr.mxu0 0.0
      %2134 = vmatpush1.xpose.msra.mxu0 0.0
      %2135 = vmatprep.subr.mxu0 0.0
      %2136 = vmatpush1.xpose.msra.mxu0 0.0
      %2137 = vmatprep.subr.mxu0 0.0
      %2138 = vmatpush1.xpose.msra.mxu0 0.0
      %2139 = vmatprep.subr.mxu0 0.0
      %2140 = vmatpush1.xpose.msra.mxu0 0.0
      %2141 = vmatprep.subr.mxu0 0.0
      %2142 = vmatpush1.xpose.msra.mxu0 0.0
      %2143 = vmatprep.subr.mxu0 0.0
      %2144 = vmatpush1.xpose.msra.mxu0 0.0
      %2145 = vmatprep.subr.mxu0 0.0
      %2146 = vmatpush1.xpose.msra.mxu0 0.0
      %2147 = vmatprep.subr.mxu0 0.0
      %2148 = vmatpush1.xpose.msra.mxu0 0.0
      %2149 = vmatprep.subr.mxu0 0.0
      %2150 = vmatpush1.xpose.msra.mxu0 0.0
      %2151 = vmatprep.subr.mxu0 0.0
      %2152 = vmatpush1.xpose.msra.mxu0 0.0
      %2153 = vmatprep.subr.mxu0 0.0
      %2154 = vmatpush1.xpose.msra.mxu0 0.0
      %2155 = vmatprep.mubr.f32.mxu0 0.0
      %2156 = vmatmul.mubr.f32.gmra.mrb[0].mxu0 %v2087
      %v2157 = vpop.f32.mrb[0].mxu0
      %v2158 = vadd.f32 0.0, %v2157
      %v2159 = vpop.f32.mrb[0].mxu0
      %2160 = vdwg.mxu0
      %2161 = vrot.lane.b32.xlu0 %v372, 120
      %v2162 = vpop.permute.xlu0 %2161
      %2163 = vrot.lane.b32.xlu0 %v372, 88
      %v2164 = vpop.permute.xlu0 %2163
      %v2165 = vsel %vm383, %v2162, 0
      %v2167 = vsel %vm383, %v2164, 0
      %2169 = vmatprep.subr.mxu0 0.0
      %2170 = vmatpush1.xpose.msra.mxu0 %v2167
      %2171 = vmatprep.subr.mxu0 0.0
      %2172 = vmatpush1.xpose.msra.mxu0 0.0
      %2173 = vmatprep.subr.mxu0 0.0
      %2174 = vmatpush1.xpose.msra.mxu0 0.0
      %2175 = vmatprep.subr.mxu0 0.0
      %2176 = vmatpush1.xpose.msra.mxu0 0.0
      %2177 = vmatprep.subr.mxu0 0.0
      %2178 = vmatpush1.xpose.msra.mxu0 0.0
      %2179 = vmatprep.subr.mxu0 0.0
      %2180 = vmatpush1.xpose.msra.mxu0 0.0
      %2181 = vmatprep.subr.mxu0 0.0
      %2182 = vmatpush1.xpose.msra.mxu0 0.0
      %2183 = vmatprep.subr.mxu0 0.0
      %2184 = vmatpush1.xpose.msra.mxu0 0.0
      %2185 = vmatprep.subr.mxu0 0.0
      %2186 = vmatpush1.xpose.msra.mxu0 0.0
      %2187 = vmatprep.subr.mxu0 0.0
      %2188 = vmatpush1.xpose.msra.mxu0 0.0
      %2189 = vmatprep.subr.mxu0 0.0
      %2190 = vmatpush1.xpose.msra.mxu0 0.0
      %2191 = vmatprep.subr.mxu0 0.0
      %2192 = vmatpush1.xpose.msra.mxu0 0.0
      %2193 = vmatprep.subr.mxu0 0.0
      %2194 = vmatpush1.xpose.msra.mxu0 0.0
      %2195 = vmatprep.subr.mxu0 0.0
      %2196 = vmatpush1.xpose.msra.mxu0 0.0
      %2197 = vmatprep.subr.mxu0 0.0
      %2198 = vmatpush1.xpose.msra.mxu0 0.0
      %2199 = vmatprep.subr.mxu0 0.0
      %2200 = vmatpush1.xpose.msra.mxu0 0.0
      %2201 = vmatprep.subr.mxu0 0.0
      %2202 = vmatpush1.xpose.msra.mxu0 0.0
      %2203 = vmatprep.subr.mxu0 0.0
      %2204 = vmatpush1.xpose.msra.mxu0 0.0
      %2205 = vmatprep.subr.mxu0 0.0
      %2206 = vmatpush1.xpose.msra.mxu0 0.0
      %2207 = vmatprep.subr.mxu0 0.0
      %2208 = vmatpush1.xpose.msra.mxu0 0.0
      %2209 = vmatprep.subr.mxu0 0.0
      %2210 = vmatpush1.xpose.msra.mxu0 0.0
      %2211 = vmatprep.subr.mxu0 0.0
      %2212 = vmatpush1.xpose.msra.mxu0 0.0
      %2213 = vmatprep.subr.mxu0 0.0
      %2214 = vmatpush1.xpose.msra.mxu0 0.0
      %2215 = vmatprep.subr.mxu0 0.0
      %2216 = vmatpush1.xpose.msra.mxu0 0.0
      %2217 = vmatprep.subr.mxu0 0.0
      %2218 = vmatpush1.xpose.msra.mxu0 0.0
      %2219 = vmatprep.subr.mxu0 0.0
      %2220 = vmatpush1.xpose.msra.mxu0 0.0
      %2221 = vmatprep.subr.mxu0 0.0
      %2222 = vmatpush1.xpose.msra.mxu0 0.0
      %2223 = vmatprep.subr.mxu0 0.0
      %2224 = vmatpush1.xpose.msra.mxu0 0.0
      %2225 = vmatprep.subr.mxu0 0.0
      %2226 = vmatpush1.xpose.msra.mxu0 0.0
      %2227 = vmatprep.subr.mxu0 0.0
      %2228 = vmatpush1.xpose.msra.mxu0 0.0
      %2229 = vmatprep.subr.mxu0 0.0
      %2230 = vmatpush1.xpose.msra.mxu0 0.0
      %2231 = vmatprep.subr.mxu0 0.0
      %2232 = vmatpush1.xpose.msra.mxu0 0.0
      %2233 = vmatprep.mubr.f32.mxu0 0.0
      %2234 = vmatmul.mubr.f32.gmra.mrb[0].mxu0 %v2165
      %v2235 = vpop.f32.mrb[0].mxu0
      %v2236 = vadd.f32 0.0, %v2235
      %v2237 = vpop.f32.mrb[0].mxu0
      %2238 = vdwg.mxu0
      %2239 = vrot.lane.b32.xlu0 %v377, 120
      %v2240 = vpop.permute.xlu0 %2239
      %2241 = vrot.lane.b32.xlu0 %v377, 88
      %v2242 = vpop.permute.xlu0 %2241
      %v2243 = vsel %vm383, %v2240, 0
      %v2245 = vsel %vm383, %v2242, 0
      %2247 = vmatprep.subr.mxu0 0.0
      %2248 = vmatpush1.xpose.msra.mxu0 %v2245
      %2249 = vmatprep.subr.mxu0 0.0
      %2250 = vmatpush1.xpose.msra.mxu0 0.0
      %2251 = vmatprep.subr.mxu0 0.0
      %2252 = vmatpush1.xpose.msra.mxu0 0.0
      %2253 = vmatprep.subr.mxu0 0.0
      %2254 = vmatpush1.xpose.msra.mxu0 0.0
      %2255 = vmatprep.subr.mxu0 0.0
      %2256 = vmatpush1.xpose.msra.mxu0 0.0
      %2257 = vmatprep.subr.mxu0 0.0
      %2258 = vmatpush1.xpose.msra.mxu0 0.0
      %2259 = vmatprep.subr.mxu0 0.0
      %2260 = vmatpush1.xpose.msra.mxu0 0.0
      %2261 = vmatprep.subr.mxu0 0.0
      %2262 = vmatpush1.xpose.msra.mxu0 0.0
      %2263 = vmatprep.subr.mxu0 0.0
      %2264 = vmatpush1.xpose.msra.mxu0 0.0
      %2265 = vmatprep.subr.mxu0 0.0
      %2266 = vmatpush1.xpose.msra.mxu0 0.0
      %2267 = vmatprep.subr.mxu0 0.0
      %2268 = vmatpush1.xpose.msra.mxu0 0.0
      %2269 = vmatprep.subr.mxu0 0.0
      %2270 = vmatpush1.xpose.msra.mxu0 0.0
      %2271 = vmatprep.subr.mxu0 0.0
      %2272 = vmatpush1.xpose.msra.mxu0 0.0
      %2273 = vmatprep.subr.mxu0 0.0
      %2274 = vmatpush1.xpose.msra.mxu0 0.0
      %2275 = vmatprep.subr.mxu0 0.0
      %2276 = vmatpush1.xpose.msra.mxu0 0.0
      %2277 = vmatprep.subr.mxu0 0.0
      %2278 = vmatpush1.xpose.msra.mxu0 0.0
      %2279 = vmatprep.subr.mxu0 0.0
      %2280 = vmatpush1.xpose.msra.mxu0 0.0
      %2281 = vmatprep.subr.mxu0 0.0
      %2282 = vmatpush1.xpose.msra.mxu0 0.0
      %2283 = vmatprep.subr.mxu0 0.0
      %2284 = vmatpush1.xpose.msra.mxu0 0.0
      %2285 = vmatprep.subr.mxu0 0.0
      %2286 = vmatpush1.xpose.msra.mxu0 0.0
      %2287 = vmatprep.subr.mxu0 0.0
      %2288 = vmatpush1.xpose.msra.mxu0 0.0
      %2289 = vmatprep.subr.mxu0 0.0
      %2290 = vmatpush1.xpose.msra.mxu0 0.0
      %2291 = vmatprep.subr.mxu0 0.0
      %2292 = vmatpush1.xpose.msra.mxu0 0.0
      %2293 = vmatprep.subr.mxu0 0.0
      %2294 = vmatpush1.xpose.msra.mxu0 0.0
      %2295 = vmatprep.subr.mxu0 0.0
      %2296 = vmatpush1.xpose.msra.mxu0 0.0
      %2297 = vmatprep.subr.mxu0 0.0
      %2298 = vmatpush1.xpose.msra.mxu0 0.0
      %2299 = vmatprep.subr.mxu0 0.0
      %2300 = vmatpush1.xpose.msra.mxu0 0.0
      %2301 = vmatprep.subr.mxu0 0.0
      %2302 = vmatpush1.xpose.msra.mxu0 0.0
      %2303 = vmatprep.subr.mxu0 0.0
      %2304 = vmatpush1.xpose.msra.mxu0 0.0
      %2305 = vmatprep.subr.mxu0 0.0
      %2306 = vmatpush1.xpose.msra.mxu0 0.0
      %2307 = vmatprep.subr.mxu0 0.0
      %2308 = vmatpush1.xpose.msra.mxu0 0.0
      %2309 = vmatprep.subr.mxu0 0.0
      %2310 = vmatpush1.xpose.msra.mxu0 0.0
      %2311 = vmatprep.mubr.f32.mxu0 0.0
      %2312 = vmatmul.mubr.f32.gmra.mrb[0].mxu0 %v2243
      %v2313 = vpop.f32.mrb[0].mxu0
      %v2314 = vadd.f32 0.0, %v2313
      %v2315 = vpop.f32.mrb[0].mxu0
      %2316 = vdwg.mxu0
      %v2317 = vsel %vm383, %v1768, -inf
      %2318 = vmax.xlane.f32.xlu0 %v2317
      %v2319 = vpop.xlane.xlu0 %2318
      %v2320 = vsel %vm383, %v1846, -inf
      %2321 = vmax.xlane.f32.xlu0 %v2320
      %v2322 = vpop.xlane.xlu0 %2321
      %v2323 = vsel %vm383, %v1924, -inf
      %2324 = vmax.xlane.f32.xlu0 %v2323
      %v2325 = vpop.xlane.xlu0 %2324
      %v2326 = vsel %vm383, %v2002, -inf
      %2327 = vmax.xlane.f32.xlu0 %v2326
      %v2328 = vpop.xlane.xlu0 %2327
      %v2329 = vsel %vm383, %v2080, -inf
      %2330 = vmax.xlane.f32.xlu0 %v2329
      %v2331 = vpop.xlane.xlu0 %2330
      %v2332 = vsel %vm383, %v2158, -inf
      %2333 = vmax.xlane.f32.xlu0 %v2332
      %v2334 = vpop.xlane.xlu0 %2333
      %v2335 = vsel %vm383, %v2236, -inf
      %2336 = vmax.xlane.f32.xlu0 %v2335
      %v2337 = vpop.xlane.xlu0 %2336
      %v2338 = vsel %vm383, %v2314, -inf
      %2339 = vmax.xlane.f32.xlu0 %v2338
      %v2340 = vpop.xlane.xlu0 %2339
      %v2341 = vsub.f32 %v1768, %v2319
      %v2342 = vsub.f32 %v1846, %v2322
      %v2343 = vsub.f32 %v1924, %v2325
      %v2344 = vsub.f32 %v2002, %v2328
      %v2345 = vsub.f32 %v2080, %v2331
      %v2346 = vsub.f32 %v2158, %v2334
      %v2347 = vsub.f32 %v2236, %v2337
      %v2348 = vsub.f32 %v2314, %v2340
      %v2349 = vmul.f32 %v2341, 1.442695
      %v2350 = vpow.pop %v2349
      %v2351 = vmul.f32 %v2342, 1.442695
      %v2352 = vpow.pop %v2351
      %v2353 = vmul.f32 %v2343, 1.442695
      %v2354 = vpow.pop %v2353
      %v2355 = vmul.f32 %v2344, 1.442695
      %v2356 = vpow.pop %v2355
      %v2357 = vmul.f32 %v2345, 1.442695
      %v2358 = vpow.pop %v2357
      %v2359 = vmul.f32 %v2346, 1.442695
      %v2360 = vpow.pop %v2359
      %v2361 = vmul.f32 %v2347, 1.442695
      %v2362 = vpow.pop %v2361
      %v2363 = vmul.f32 %v2348, 1.442695
      %v2364 = vpow.pop %v2363
      %v2365 = vsel %vm383, %v2350, 0.0
      %2366 = vadd.xlane.f32.xlu0 %v2365
      %v2367 = vpop.xlane.xlu0 %2366
      %v2368 = vsel %vm383, %v2352, 0.0
      %2369 = vadd.xlane.f32.xlu0 %v2368
      %v2370 = vpop.xlane.xlu0 %2369
      %v2371 = vsel %vm383, %v2354, 0.0
      %2372 = vadd.xlane.f32.xlu0 %v2371
      %v2373 = vpop.xlane.xlu0 %2372
      %v2374 = vsel %vm383, %v2356, 0.0
      %2375 = vadd.xlane.f32.xlu0 %v2374
      %v2376 = vpop.xlane.xlu0 %2375
      %v2377 = vsel %vm383, %v2358, 0.0
      %2378 = vadd.xlane.f32.xlu0 %v2377
      %v2379 = vpop.xlane.xlu0 %2378
      %v2380 = vsel %vm383, %v2360, 0.0
      %2381 = vadd.xlane.f32.xlu0 %v2380
      %v2382 = vpop.xlane.xlu0 %2381
      %v2383 = vsel %vm383, %v2362, 0.0
      %2384 = vadd.xlane.f32.xlu0 %v2383
      %v2385 = vpop.xlane.xlu0 %2384
      %v2386 = vsel %vm383, %v2364, 0.0
      %2387 = vadd.xlane.f32.xlu0 %v2386
      %v2388 = vpop.xlane.xlu0 %2387
      %v2389 = vrcp.pop %v2367
      %v2390 = vmul.f32 %v2350, %v2389
      %v2391 = vrcp.pop %v2370
      %v2392 = vmul.f32 %v2352, %v2391
      %v2393 = vrcp.pop %v2373
      %v2394 = vmul.f32 %v2354, %v2393
      %v2395 = vrcp.pop %v2376
      %v2396 = vmul.f32 %v2356, %v2395
      %v2397 = vrcp.pop %v2379
      %v2398 = vmul.f32 %v2358, %v2397
      %v2399 = vrcp.pop %v2382
      %v2400 = vmul.f32 %v2360, %v2399
      %v2401 = vrcp.pop %v2385
      %v2402 = vmul.f32 %v2362, %v2401
      %v2403 = vrcp.pop %v2388
      %v2404 = vmul.f32 %v2364, %v2403
      %2405 = vrot.lane.b32.xlu0 %v342, 56
      %v2406 = vpop.permute.xlu0 %2405
      %v2409 = vsel %vm383, %v2390, 0
      %2411 = vmatprep.subr.mxu0 0.0
      %2412 = vmatpush1.msra.mxu0 %v2406
      %2413 = vmatprep.subr.mxu0 0.0
      %2414 = vmatpush1.msra.mxu0 0.0
      %2415 = vmatprep.subr.mxu0 0.0
      %2416 = vmatpush1.msra.mxu0 0.0
      %2417 = vmatprep.subr.mxu0 0.0
      %2418 = vmatpush1.msra.mxu0 0.0
      %2419 = vmatprep.subr.mxu0 0.0
      %2420 = vmatpush1.msra.mxu0 0.0
      %2421 = vmatprep.subr.mxu0 0.0
      %2422 = vmatpush1.msra.mxu0 0.0
      %2423 = vmatprep.subr.mxu0 0.0
      %2424 = vmatpush1.msra.mxu0 0.0
      %2425 = vmatprep.subr.mxu0 0.0
      %2426 = vmatpush1.msra.mxu0 0.0
      %2427 = vmatprep.subr.mxu0 0.0
      %2428 = vmatpush1.msra.mxu0 0.0
      %2429 = vmatprep.subr.mxu0 0.0
      %2430 = vmatpush1.msra.mxu0 0.0
      %2431 = vmatprep.subr.mxu0 0.0
      %2432 = vmatpush1.msra.mxu0 0.0
      %2433 = vmatprep.subr.mxu0 0.0
      %2434 = vmatpush1.msra.mxu0 0.0
      %2435 = vmatprep.subr.mxu0 0.0
      %2436 = vmatpush1.msra.mxu0 0.0
      %2437 = vmatprep.subr.mxu0 0.0
      %2438 = vmatpush1.msra.mxu0 0.0
      %2439 = vmatprep.subr.mxu0 0.0
      %2440 = vmatpush1.msra.mxu0 0.0
      %2441 = vmatprep.subr.mxu0 0.0
      %2442 = vmatpush1.msra.mxu0 0.0
      %2443 = vmatprep.subr.mxu0 0.0
      %2444 = vmatpush1.msra.mxu0 0.0
      %2445 = vmatprep.subr.mxu0 0.0
      %2446 = vmatpush1.msra.mxu0 0.0
      %2447 = vmatprep.subr.mxu0 0.0
      %2448 = vmatpush1.msra.mxu0 0.0
      %2449 = vmatprep.subr.mxu0 0.0
      %2450 = vmatpush1.msra.mxu0 0.0
      %2451 = vmatprep.subr.mxu0 0.0
      %2452 = vmatpush1.msra.mxu0 0.0
      %2453 = vmatprep.subr.mxu0 0.0
      %2454 = vmatpush1.msra.mxu0 0.0
      %2455 = vmatprep.subr.mxu0 0.0
      %2456 = vmatpush1.msra.mxu0 0.0
      %2457 = vmatprep.subr.mxu0 0.0
      %2458 = vmatpush1.msra.mxu0 0.0
      %2459 = vmatprep.subr.mxu0 0.0
      %2460 = vmatpush1.msra.mxu0 0.0
      %2461 = vmatprep.subr.mxu0 0.0
      %2462 = vmatpush1.msra.mxu0 0.0
      %2463 = vmatprep.subr.mxu0 0.0
      %2464 = vmatpush1.msra.mxu0 0.0
      %2465 = vmatprep.subr.mxu0 0.0
      %2466 = vmatpush1.msra.mxu0 0.0
      %2467 = vmatprep.subr.mxu0 0.0
      %2468 = vmatpush1.msra.mxu0 0.0
      %2469 = vmatprep.subr.mxu0 0.0
      %2470 = vmatpush1.msra.mxu0 0.0
      %2471 = vmatprep.subr.mxu0 0.0
      %2472 = vmatpush1.msra.mxu0 0.0
      %2473 = vmatprep.subr.mxu0 0.0
      %2474 = vmatpush1.msra.mxu0 0.0
      %2475 = vmatprep.mubr.f32.mxu0 0.0
      %2476 = vmatmul.mubr.f32.gmra.mrb[0].mxu0 %v2409
      %v2477 = vpop.f32.mrb[0].mxu0
      %v2478 = vadd.f32 0.0, %v2477
      %v2479 = vpop.f32.mrb[0].mxu0
      %2480 = vdwg.mxu0
      %2481 = vrot.lane.b32.xlu0 %v347, 56
      %v2482 = vpop.permute.xlu0 %2481
      %v2485 = vsel %vm383, %v2392, 0
      %2487 = vmatprep.subr.mxu0 0.0
      %2488 = vmatpush1.msra.mxu0 %v2482
      %2489 = vmatprep.subr.mxu0 0.0
      %2490 = vmatpush1.msra.mxu0 0.0
      %2491 = vmatprep.subr.mxu0 0.0
      %2492 = vmatpush1.msra.mxu0 0.0
      %2493 = vmatprep.subr.mxu0 0.0
      %2494 = vmatpush1.msra.mxu0 0.0
      %2495 = vmatprep.subr.mxu0 0.0
      %2496 = vmatpush1.msra.mxu0 0.0
      %2497 = vmatprep.subr.mxu0 0.0
      %2498 = vmatpush1.msra.mxu0 0.0
      %2499 = vmatprep.subr.mxu0 0.0
      %2500 = vmatpush1.msra.mxu0 0.0
      %2501 = vmatprep.subr.mxu0 0.0
      %2502 = vmatpush1.msra.mxu0 0.0
      %2503 = vmatprep.subr.mxu0 0.0
      %2504 = vmatpush1.msra.mxu0 0.0
      %2505 = vmatprep.subr.mxu0 0.0
      %2506 = vmatpush1.msra.mxu0 0.0
      %2507 = vmatprep.subr.mxu0 0.0
      %2508 = vmatpush1.msra.mxu0 0.0
      %2509 = vmatprep.subr.mxu0 0.0
      %2510 = vmatpush1.msra.mxu0 0.0
      %2511 = vmatprep.subr.mxu0 0.0
      %2512 = vmatpush1.msra.mxu0 0.0
      %2513 = vmatprep.subr.mxu0 0.0
      %2514 = vmatpush1.msra.mxu0 0.0
      %2515 = vmatprep.subr.mxu0 0.0
      %2516 = vmatpush1.msra.mxu0 0.0
      %2517 = vmatprep.subr.mxu0 0.0
      %2518 = vmatpush1.msra.mxu0 0.0
      %2519 = vmatprep.subr.mxu0 0.0
      %2520 = vmatpush1.msra.mxu0 0.0
      %2521 = vmatprep.subr.mxu0 0.0
      %2522 = vmatpush1.msra.mxu0 0.0
      %2523 = vmatprep.subr.mxu0 0.0
      %2524 = vmatpush1.msra.mxu0 0.0
      %2525 = vmatprep.subr.mxu0 0.0
      %2526 = vmatpush1.msra.mxu0 0.0
      %2527 = vmatprep.subr.mxu0 0.0
      %2528 = vmatpush1.msra.mxu0 0.0
      %2529 = vmatprep.subr.mxu0 0.0
      %2530 = vmatpush1.msra.mxu0 0.0
      %2531 = vmatprep.subr.mxu0 0.0
      %2532 = vmatpush1.msra.mxu0 0.0
      %2533 = vmatprep.subr.mxu0 0.0
      %2534 = vmatpush1.msra.mxu0 0.0
      %2535 = vmatprep.subr.mxu0 0.0
      %2536 = vmatpush1.msra.mxu0 0.0
      %2537 = vmatprep.subr.mxu0 0.0
      %2538 = vmatpush1.msra.mxu0 0.0
      %2539 = vmatprep.subr.mxu0 0.0
      %2540 = vmatpush1.msra.mxu0 0.0
      %2541 = vmatprep.subr.mxu0 0.0
      %2542 = vmatpush1.msra.mxu0 0.0
      %2543 = vmatprep.subr.mxu0 0.0
      %2544 = vmatpush1.msra.mxu0 0.0
      %2545 = vmatprep.subr.mxu0 0.0
      %2546 = vmatpush1.msra.mxu0 0.0
      %2547 = vmatprep.subr.mxu0 0.0
      %2548 = vmatpush1.msra.mxu0 0.0
      %2549 = vmatprep.subr.mxu0 0.0
      %2550 = vmatpush1.msra.mxu0 0.0
      %2551 = vmatprep.mubr.f32.mxu0 0.0
      %2552 = vmatmul.mubr.f32.gmra.mrb[0].mxu0 %v2485
      %v2553 = vpop.f32.mrb[0].mxu0
      %v2554 = vadd.f32 0.0, %v2553
      %v2555 = vpop.f32.mrb[0].mxu0
      %2556 = vdwg.mxu0
      %2557 = vrot.lane.b32.xlu0 %v352, 56
      %v2558 = vpop.permute.xlu0 %2557
      %v2561 = vsel %vm383, %v2394, 0
      %2563 = vmatprep.subr.mxu0 0.0
      %2564 = vmatpush1.msra.mxu0 %v2558
      %2565 = vmatprep.subr.mxu0 0.0
      %2566 = vmatpush1.msra.mxu0 0.0
      %2567 = vmatprep.subr.mxu0 0.0
      %2568 = vmatpush1.msra.mxu0 0.0
      %2569 = vmatprep.subr.mxu0 0.0
      %2570 = vmatpush1.msra.mxu0 0.0
      %2571 = vmatprep.subr.mxu0 0.0
      %2572 = vmatpush1.msra.mxu0 0.0
      %2573 = vmatprep.subr.mxu0 0.0
      %2574 = vmatpush1.msra.mxu0 0.0
      %2575 = vmatprep.subr.mxu0 0.0
      %2576 = vmatpush1.msra.mxu0 0.0
      %2577 = vmatprep.subr.mxu0 0.0
      %2578 = vmatpush1.msra.mxu0 0.0
      %2579 = vmatprep.subr.mxu0 0.0
      %2580 = vmatpush1.msra.mxu0 0.0
      %2581 = vmatprep.subr.mxu0 0.0
      %2582 = vmatpush1.msra.mxu0 0.0
      %2583 = vmatprep.subr.mxu0 0.0
      %2584 = vmatpush1.msra.mxu0 0.0
      %2585 = vmatprep.subr.mxu0 0.0
      %2586 = vmatpush1.msra.mxu0 0.0
      %2587 = vmatprep.subr.mxu0 0.0
      %2588 = vmatpush1.msra.mxu0 0.0
      %2589 = vmatprep.subr.mxu0 0.0
      %2590 = vmatpush1.msra.mxu0 0.0
      %2591 = vmatprep.subr.mxu0 0.0
      %2592 = vmatpush1.msra.mxu0 0.0
      %2593 = vmatprep.subr.mxu0 0.0
      %2594 = vmatpush1.msra.mxu0 0.0
      %2595 = vmatprep.subr.mxu0 0.0
      %2596 = vmatpush1.msra.mxu0 0.0
      %2597 = vmatprep.subr.mxu0 0.0
      %2598 = vmatpush1.msra.mxu0 0.0
      %2599 = vmatprep.subr.mxu0 0.0
      %2600 = vmatpush1.msra.mxu0 0.0
      %2601 = vmatprep.subr.mxu0 0.0
      %2602 = vmatpush1.msra.mxu0 0.0
      %2603 = vmatprep.subr.mxu0 0.0
      %2604 = vmatpush1.msra.mxu0 0.0
      %2605 = vmatprep.subr.mxu0 0.0
      %2606 = vmatpush1.msra.mxu0 0.0
      %2607 = vmatprep.subr.mxu0 0.0
      %2608 = vmatpush1.msra.mxu0 0.0
      %2609 = vmatprep.subr.mxu0 0.0
      %2610 = vmatpush1.msra.mxu0 0.0
      %2611 = vmatprep.subr.mxu0 0.0
      %2612 = vmatpush1.msra.mxu0 0.0
      %2613 = vmatprep.subr.mxu0 0.0
      %2614 = vmatpush1.msra.mxu0 0.0
      %2615 = vmatprep.subr.mxu0 0.0
      %2616 = vmatpush1.msra.mxu0 0.0
      %2617 = vmatprep.subr.mxu0 0.0
      %2618 = vmatpush1.msra.mxu0 0.0
      %2619 = vmatprep.subr.mxu0 0.0
      %2620 = vmatpush1.msra.mxu0 0.0
      %2621 = vmatprep.subr.mxu0 0.0
      %2622 = vmatpush1.msra.mxu0 0.0
      %2623 = vmatprep.subr.mxu0 0.0
      %2624 = vmatpush1.msra.mxu0 0.0
      %2625 = vmatprep.subr.mxu0 0.0
      %2626 = vmatpush1.msra.mxu0 0.0
      %2627 = vmatprep.mubr.f32.mxu0 0.0
      %2628 = vmatmul.mubr.f32.gmra.mrb[0].mxu0 %v2561
      %v2629 = vpop.f32.mrb[0].mxu0
      %v2630 = vadd.f32 0.0, %v2629
      %v2631 = vpop.f32.mrb[0].mxu0
      %2632 = vdwg.mxu0
      %2633 = vrot.lane.b32.xlu0 %v357, 56
      %v2634 = vpop.permute.xlu0 %2633
      %v2637 = vsel %vm383, %v2396, 0
      %2639 = vmatprep.subr.mxu0 0.0
      %2640 = vmatpush1.msra.mxu0 %v2634
      %2641 = vmatprep.subr.mxu0 0.0
      %2642 = vmatpush1.msra.mxu0 0.0
      %2643 = vmatprep.subr.mxu0 0.0
      %2644 = vmatpush1.msra.mxu0 0.0
      %2645 = vmatprep.subr.mxu0 0.0
      %2646 = vmatpush1.msra.mxu0 0.0
      %2647 = vmatprep.subr.mxu0 0.0
      %2648 = vmatpush1.msra.mxu0 0.0
      %2649 = vmatprep.subr.mxu0 0.0
      %2650 = vmatpush1.msra.mxu0 0.0
      %2651 = vmatprep.subr.mxu0 0.0
      %2652 = vmatpush1.msra.mxu0 0.0
      %2653 = vmatprep.subr.mxu0 0.0
      %2654 = vmatpush1.msra.mxu0 0.0
      %2655 = vmatprep.subr.mxu0 0.0
      %2656 = vmatpush1.msra.mxu0 0.0
      %2657 = vmatprep.subr.mxu0 0.0
      %2658 = vmatpush1.msra.mxu0 0.0
      %2659 = vmatprep.subr.mxu0 0.0
      %2660 = vmatpush1.msra.mxu0 0.0
      %2661 = vmatprep.subr.mxu0 0.0
      %2662 = vmatpush1.msra.mxu0 0.0
      %2663 = vmatprep.subr.mxu0 0.0
      %2664 = vmatpush1.msra.mxu0 0.0
      %2665 = vmatprep.subr.mxu0 0.0
      %2666 = vmatpush1.msra.mxu0 0.0
      %2667 = vmatprep.subr.mxu0 0.0
      %2668 = vmatpush1.msra.mxu0 0.0
      %2669 = vmatprep.subr.mxu0 0.0
      %2670 = vmatpush1.msra.mxu0 0.0
      %2671 = vmatprep.subr.mxu0 0.0
      %2672 = vmatpush1.msra.mxu0 0.0
      %2673 = vmatprep.subr.mxu0 0.0
      %2674 = vmatpush1.msra.mxu0 0.0
      %2675 = vmatprep.subr.mxu0 0.0
      %2676 = vmatpush1.msra.mxu0 0.0
      %2677 = vmatprep.subr.mxu0 0.0
      %2678 = vmatpush1.msra.mxu0 0.0
      %2679 = vmatprep.subr.mxu0 0.0
      %2680 = vmatpush1.msra.mxu0 0.0
      %2681 = vmatprep.subr.mxu0 0.0
      %2682 = vmatpush1.msra.mxu0 0.0
      %2683 = vmatprep.subr.mxu0 0.0
      %2684 = vmatpush1.msra.mxu0 0.0
      %2685 = vmatprep.subr.mxu0 0.0
      %2686 = vmatpush1.msra.mxu0 0.0
      %2687 = vmatprep.subr.mxu0 0.0
      %2688 = vmatpush1.msra.mxu0 0.0
      %2689 = vmatprep.subr.mxu0 0.0
      %2690 = vmatpush1.msra.mxu0 0.0
      %2691 = vmatprep.subr.mxu0 0.0
      %2692 = vmatpush1.msra.mxu0 0.0
      %2693 = vmatprep.subr.mxu0 0.0
      %2694 = vmatpush1.msra.mxu0 0.0
      %2695 = vmatprep.subr.mxu0 0.0
      %2696 = vmatpush1.msra.mxu0 0.0
      %2697 = vmatprep.subr.mxu0 0.0
      %2698 = vmatpush1.msra.mxu0 0.0
      %2699 = vmatprep.subr.mxu0 0.0
      %2700 = vmatpush1.msra.mxu0 0.0
      %2701 = vmatprep.subr.mxu0 0.0
      %2702 = vmatpush1.msra.mxu0 0.0
      %2703 = vmatprep.mubr.f32.mxu0 0.0
      %2704 = vmatmul.mubr.f32.gmra.mrb[0].mxu0 %v2637
      %v2705 = vpop.f32.mrb[0].mxu0
      %v2706 = vadd.f32 0.0, %v2705
      %v2707 = vpop.f32.mrb[0].mxu0
      %2708 = vdwg.mxu0
      %2709 = vrot.lane.b32.xlu0 %v362, 56
      %v2710 = vpop.permute.xlu0 %2709
      %v2713 = vsel %vm383, %v2398, 0
      %2715 = vmatprep.subr.mxu0 0.0
      %2716 = vmatpush1.msra.mxu0 %v2710
      %2717 = vmatprep.subr.mxu0 0.0
      %2718 = vmatpush1.msra.mxu0 0.0
      %2719 = vmatprep.subr.mxu0 0.0
      %2720 = vmatpush1.msra.mxu0 0.0
      %2721 = vmatprep.subr.mxu0 0.0
      %2722 = vmatpush1.msra.mxu0 0.0
      %2723 = vmatprep.subr.mxu0 0.0
      %2724 = vmatpush1.msra.mxu0 0.0
      %2725 = vmatprep.subr.mxu0 0.0
      %2726 = vmatpush1.msra.mxu0 0.0
      %2727 = vmatprep.subr.mxu0 0.0
      %2728 = vmatpush1.msra.mxu0 0.0
      %2729 = vmatprep.subr.mxu0 0.0
      %2730 = vmatpush1.msra.mxu0 0.0
      %2731 = vmatprep.subr.mxu0 0.0
      %2732 = vmatpush1.msra.mxu0 0.0
      %2733 = vmatprep.subr.mxu0 0.0
      %2734 = vmatpush1.msra.mxu0 0.0
      %2735 = vmatprep.subr.mxu0 0.0
      %2736 = vmatpush1.msra.mxu0 0.0
      %2737 = vmatprep.subr.mxu0 0.0
      %2738 = vmatpush1.msra.mxu0 0.0
      %2739 = vmatprep.subr.mxu0 0.0
      %2740 = vmatpush1.msra.mxu0 0.0
      %2741 = vmatprep.subr.mxu0 0.0
      %2742 = vmatpush1.msra.mxu0 0.0
      %2743 = vmatprep.subr.mxu0 0.0
      %2744 = vmatpush1.msra.mxu0 0.0
      %2745 = vmatprep.subr.mxu0 0.0
      %2746 = vmatpush1.msra.mxu0 0.0
      %2747 = vmatprep.subr.mxu0 0.0
      %2748 = vmatpush1.msra.mxu0 0.0
      %2749 = vmatprep.subr.mxu0 0.0
      %2750 = vmatpush1.msra.mxu0 0.0
      %2751 = vmatprep.subr.mxu0 0.0
      %2752 = vmatpush1.msra.mxu0 0.0
      %2753 = vmatprep.subr.mxu0 0.0
      %2754 = vmatpush1.msra.mxu0 0.0
      %2755 = vmatprep.subr.mxu0 0.0
      %2756 = vmatpush1.msra.mxu0 0.0
      %2757 = vmatprep.subr.mxu0 0.0
      %2758 = vmatpush1.msra.mxu0 0.0
      %2759 = vmatprep.subr.mxu0 0.0
      %2760 = vmatpush1.msra.mxu0 0.0
      %2761 = vmatprep.subr.mxu0 0.0
      %2762 = vmatpush1.msra.mxu0 0.0
      %2763 = vmatprep.subr.mxu0 0.0
      %2764 = vmatpush1.msra.mxu0 0.0
      %2765 = vmatprep.subr.mxu0 0.0
      %2766 = vmatpush1.msra.mxu0 0.0
      %2767 = vmatprep.subr.mxu0 0.0
      %2768 = vmatpush1.msra.mxu0 0.0
      %2769 = vmatprep.subr.mxu0 0.0
      %2770 = vmatpush1.msra.mxu0 0.0
      %2771 = vmatprep.subr.mxu0 0.0
      %2772 = vmatpush1.msra.mxu0 0.0
      %2773 = vmatprep.subr.mxu0 0.0
      %2774 = vmatpush1.msra.mxu0 0.0
      %2775 = vmatprep.subr.mxu0 0.0
      %2776 = vmatpush1.msra.mxu0 0.0
      %2777 = vmatprep.subr.mxu0 0.0
      %2778 = vmatpush1.msra.mxu0 0.0
      %2779 = vmatprep.mubr.f32.mxu0 0.0
      %2780 = vmatmul.mubr.f32.gmra.mrb[0].mxu0 %v2713
      %v2781 = vpop.f32.mrb[0].mxu0
      %v2782 = vadd.f32 0.0, %v2781
      %v2783 = vpop.f32.mrb[0].mxu0
      %2784 = vdwg.mxu0
      %2785 = vrot.lane.b32.xlu0 %v367, 56
      %v2786 = vpop.permute.xlu0 %2785
      %v2789 = vsel %vm383, %v2400, 0
      %2791 = vmatprep.subr.mxu0 0.0
      %2792 = vmatpush1.msra.mxu0 %v2786
      %2793 = vmatprep.subr.mxu0 0.0
      %2794 = vmatpush1.msra.mxu0 0.0
      %2795 = vmatprep.subr.mxu0 0.0
      %2796 = vmatpush1.msra.mxu0 0.0
      %2797 = vmatprep.subr.mxu0 0.0
      %2798 = vmatpush1.msra.mxu0 0.0
      %2799 = vmatprep.subr.mxu0 0.0
      %2800 = vmatpush1.msra.mxu0 0.0
      %2801 = vmatprep.subr.mxu0 0.0
      %2802 = vmatpush1.msra.mxu0 0.0
      %2803 = vmatprep.subr.mxu0 0.0
      %2804 = vmatpush1.msra.mxu0 0.0
      %2805 = vmatprep.subr.mxu0 0.0
      %2806 = vmatpush1.msra.mxu0 0.0
      %2807 = vmatprep.subr.mxu0 0.0
      %2808 = vmatpush1.msra.mxu0 0.0
      %2809 = vmatprep.subr.mxu0 0.0
      %2810 = vmatpush1.msra.mxu0 0.0
      %2811 = vmatprep.subr.mxu0 0.0
      %2812 = vmatpush1.msra.mxu0 0.0
      %2813 = vmatprep.subr.mxu0 0.0
      %2814 = vmatpush1.msra.mxu0 0.0
      %2815 = vmatprep.subr.mxu0 0.0
      %2816 = vmatpush1.msra.mxu0 0.0
      %2817 = vmatprep.subr.mxu0 0.0
      %2818 = vmatpush1.msra.mxu0 0.0
      %2819 = vmatprep.subr.mxu0 0.0
      %2820 = vmatpush1.msra.mxu0 0.0
      %2821 = vmatprep.subr.mxu0 0.0
      %2822 = vmatpush1.msra.mxu0 0.0
      %2823 = vmatprep.subr.mxu0 0.0
      %2824 = vmatpush1.msra.mxu0 0.0
      %2825 = vmatprep.subr.mxu0 0.0
      %2826 = vmatpush1.msra.mxu0 0.0
      %2827 = vmatprep.subr.mxu0 0.0
      %2828 = vmatpush1.msra.mxu0 0.0
      %2829 = vmatprep.subr.mxu0 0.0
      %2830 = vmatpush1.msra.mxu0 0.0
      %2831 = vmatprep.subr.mxu0 0.0
      %2832 = vmatpush1.msra.mxu0 0.0
      %2833 = vmatprep.subr.mxu0 0.0
      %2834 = vmatpush1.msra.mxu0 0.0
      %2835 = vmatprep.subr.mxu0 0.0
      %2836 = vmatpush1.msra.mxu0 0.0
      %2837 = vmatprep.subr.mxu0 0.0
      %2838 = vmatpush1.msra.mxu0 0.0
      %2839 = vmatprep.subr.mxu0 0.0
      %2840 = vmatpush1.msra.mxu0 0.0
      %2841 = vmatprep.subr.mxu0 0.0
      %2842 = vmatpush1.msra.mxu0 0.0
      %2843 = vmatprep.subr.mxu0 0.0
      %2844 = vmatpush1.msra.mxu0 0.0
      %2845 = vmatprep.subr.mxu0 0.0
      %2846 = vmatpush1.msra.mxu0 0.0
      %2847 = vmatprep.subr.mxu0 0.0
      %2848 = vmatpush1.msra.mxu0 0.0
      %2849 = vmatprep.subr.mxu0 0.0
      %2850 = vmatpush1.msra.mxu0 0.0
      %2851 = vmatprep.subr.mxu0 0.0
      %2852 = vmatpush1.msra.mxu0 0.0
      %2853 = vmatprep.subr.mxu0 0.0
      %2854 = vmatpush1.msra.mxu0 0.0
      %2855 = vmatprep.mubr.f32.mxu0 0.0
      %2856 = vmatmul.mubr.f32.gmra.mrb[0].mxu0 %v2789
      %v2857 = vpop.f32.mrb[0].mxu0
      %v2858 = vadd.f32 0.0, %v2857
      %v2859 = vpop.f32.mrb[0].mxu0
      %2860 = vdwg.mxu0
      %2861 = vrot.lane.b32.xlu0 %v372, 56
      %v2862 = vpop.permute.xlu0 %2861
      %v2865 = vsel %vm383, %v2402, 0
      %2867 = vmatprep.subr.mxu0 0.0
      %2868 = vmatpush1.msra.mxu0 %v2862
      %2869 = vmatprep.subr.mxu0 0.0
      %2870 = vmatpush1.msra.mxu0 0.0
      %2871 = vmatprep.subr.mxu0 0.0
      %2872 = vmatpush1.msra.mxu0 0.0
      %2873 = vmatprep.subr.mxu0 0.0
      %2874 = vmatpush1.msra.mxu0 0.0
      %2875 = vmatprep.subr.mxu0 0.0
      %2876 = vmatpush1.msra.mxu0 0.0
      %2877 = vmatprep.subr.mxu0 0.0
      %2878 = vmatpush1.msra.mxu0 0.0
      %2879 = vmatprep.subr.mxu0 0.0
      %2880 = vmatpush1.msra.mxu0 0.0
      %2881 = vmatprep.subr.mxu0 0.0
      %2882 = vmatpush1.msra.mxu0 0.0
      %2883 = vmatprep.subr.mxu0 0.0
      %2884 = vmatpush1.msra.mxu0 0.0
      %2885 = vmatprep.subr.mxu0 0.0
      %2886 = vmatpush1.msra.mxu0 0.0
      %2887 = vmatprep.subr.mxu0 0.0
      %2888 = vmatpush1.msra.mxu0 0.0
      %2889 = vmatprep.subr.mxu0 0.0
      %2890 = vmatpush1.msra.mxu0 0.0
      %2891 = vmatprep.subr.mxu0 0.0
      %2892 = vmatpush1.msra.mxu0 0.0
      %2893 = vmatprep.subr.mxu0 0.0
      %2894 = vmatpush1.msra.mxu0 0.0
      %2895 = vmatprep.subr.mxu0 0.0
      %2896 = vmatpush1.msra.mxu0 0.0
      %2897 = vmatprep.subr.mxu0 0.0
      %2898 = vmatpush1.msra.mxu0 0.0
      %2899 = vmatprep.subr.mxu0 0.0
      %2900 = vmatpush1.msra.mxu0 0.0
      %2901 = vmatprep.subr.mxu0 0.0
      %2902 = vmatpush1.msra.mxu0 0.0
      %2903 = vmatprep.subr.mxu0 0.0
      %2904 = vmatpush1.msra.mxu0 0.0
      %2905 = vmatprep.subr.mxu0 0.0
      %2906 = vmatpush1.msra.mxu0 0.0
      %2907 = vmatprep.subr.mxu0 0.0
      %2908 = vmatpush1.msra.mxu0 0.0
      %2909 = vmatprep.subr.mxu0 0.0
      %2910 = vmatpush1.msra.mxu0 0.0
      %2911 = vmatprep.subr.mxu0 0.0
      %2912 = vmatpush1.msra.mxu0 0.0
      %2913 = vmatprep.subr.mxu0 0.0
      %2914 = vmatpush1.msra.mxu0 0.0
      %2915 = vmatprep.subr.mxu0 0.0
      %2916 = vmatpush1.msra.mxu0 0.0
      %2917 = vmatprep.subr.mxu0 0.0
      %2918 = vmatpush1.msra.mxu0 0.0
      %2919 = vmatprep.subr.mxu0 0.0
      %2920 = vmatpush1.msra.mxu0 0.0
      %2921 = vmatprep.subr.mxu0 0.0
      %2922 = vmatpush1.msra.mxu0 0.0
      %2923 = vmatprep.subr.mxu0 0.0
      %2924 = vmatpush1.msra.mxu0 0.0
      %2925 = vmatprep.subr.mxu0 0.0
      %2926 = vmatpush1.msra.mxu0 0.0
      %2927 = vmatprep.subr.mxu0 0.0
      %2928 = vmatpush1.msra.mxu0 0.0
      %2929 = vmatprep.subr.mxu0 0.0
      %2930 = vmatpush1.msra.mxu0 0.0
      %2931 = vmatprep.mubr.f32.mxu0 0.0
      %2932 = vmatmul.mubr.f32.gmra.mrb[0].mxu0 %v2865
      %v2933 = vpop.f32.mrb[0].mxu0
      %v2934 = vadd.f32 0.0, %v2933
      %v2935 = vpop.f32.mrb[0].mxu0
      %2936 = vdwg.mxu0
      %2937 = vrot.lane.b32.xlu0 %v377, 56
      %v2938 = vpop.permute.xlu0 %2937
      %v2941 = vsel %vm383, %v2404, 0
      %2943 = vmatprep.subr.mxu0 0.0
      %2944 = vmatpush1.msra.mxu0 %v2938
      %2945 = vmatprep.subr.mxu0 0.0
      %2946 = vmatpush1.msra.mxu0 0.0
      %2947 = vmatprep.subr.mxu0 0.0
      %2948 = vmatpush1.msra.mxu0 0.0
      %2949 = vmatprep.subr.mxu0 0.0
      %2950 = vmatpush1.msra.mxu0 0.0
      %2951 = vmatprep.subr.mxu0 0.0
      %2952 = vmatpush1.msra.mxu0 0.0
      %2953 = vmatprep.subr.mxu0 0.0
      %2954 = vmatpush1.msra.mxu0 0.0
      %2955 = vmatprep.subr.mxu0 0.0
      %2956 = vmatpush1.msra.mxu0 0.0
      %2957 = vmatprep.subr.mxu0 0.0
      %2958 = vmatpush1.msra.mxu0 0.0
      %2959 = vmatprep.subr.mxu0 0.0
      %2960 = vmatpush1.msra.mxu0 0.0
      %2961 = vmatprep.subr.mxu0 0.0
      %2962 = vmatpush1.msra.mxu0 0.0
      %2963 = vmatprep.subr.mxu0 0.0
      %2964 = vmatpush1.msra.mxu0 0.0
      %2965 = vmatprep.subr.mxu0 0.0
      %2966 = vmatpush1.msra.mxu0 0.0
      %2967 = vmatprep.subr.mxu0 0.0
      %2968 = vmatpush1.msra.mxu0 0.0
      %2969 = vmatprep.subr.mxu0 0.0
      %2970 = vmatpush1.msra.mxu0 0.0
      %2971 = vmatprep.subr.mxu0 0.0
      %2972 = vmatpush1.msra.mxu0 0.0
      %2973 = vmatprep.subr.mxu0 0.0
      %2974 = vmatpush1.msra.mxu0 0.0
      %2975 = vmatprep.subr.mxu0 0.0
      %2976 = vmatpush1.msra.mxu0 0.0
      %2977 = vmatprep.subr.mxu0 0.0
      %2978 = vmatpush1.msra.mxu0 0.0
      %2979 = vmatprep.subr.mxu0 0.0
      %2980 = vmatpush1.msra.mxu0 0.0
      %2981 = vmatprep.subr.mxu0 0.0
      %2982 = vmatpush1.msra.mxu0 0.0
      %2983 = vmatprep.subr.mxu0 0.0
      %2984 = vmatpush1.msra.mxu0 0.0
      %2985 = vmatprep.subr.mxu0 0.0
      %2986 = vmatpush1.msra.mxu0 0.0
      %2987 = vmatprep.subr.mxu0 0.0
      %2988 = vmatpush1.msra.mxu0 0.0
      %2989 = vmatprep.subr.mxu0 0.0
      %2990 = vmatpush1.msra.mxu0 0.0
      %2991 = vmatprep.subr.mxu0 0.0
      %2992 = vmatpush1.msra.mxu0 0.0
      %2993 = vmatprep.subr.mxu0 0.0
      %2994 = vmatpush1.msra.mxu0 0.0
      %2995 = vmatprep.subr.mxu0 0.0
      %2996 = vmatpush1.msra.mxu0 0.0
      %2997 = vmatprep.subr.mxu0 0.0
      %2998 = vmatpush1.msra.mxu0 0.0
      %2999 = vmatprep.subr.mxu0 0.0
      %3000 = vmatpush1.msra.mxu0 0.0
      %3001 = vmatprep.subr.mxu0 0.0
      %3002 = vmatpush1.msra.mxu0 0.0
      %3003 = vmatprep.subr.mxu0 0.0
      %3004 = vmatpush1.msra.mxu0 0.0
      %3005 = vmatprep.subr.mxu0 0.0
      %3006 = vmatpush1.msra.mxu0 0.0
      %3007 = vmatprep.mubr.f32.mxu0 0.0
      %3008 = vmatmul.mubr.f32.gmra.mrb[0].mxu0 %v2941
      %v3009 = vpop.f32.mrb[0].mxu0
      %v3010 = vadd.f32 0.0, %v3009
      %v3011 = vpop.f32.mrb[0].mxu0
      %3012 = vdwg.mxu0
      %3013 = vrot.lane.b32.xlu0 %v342, 112
      %v3014 = vpop.permute.xlu0 %3013
      %3015 = vrot.lane.b32.xlu0 %v342, 80
      %v3016 = vpop.permute.xlu0 %3015
      %v3017 = vsel %vm383, %v3014, 0
      %v3019 = vsel %vm383, %v3016, 0
      %3021 = vmatprep.subr.mxu0 0.0
      %3022 = vmatpush1.xpose.msra.mxu0 %v3019
      %3023 = vmatprep.subr.mxu0 0.0
      %3024 = vmatpush1.xpose.msra.mxu0 0.0
      %3025 = vmatprep.subr.mxu0 0.0
      %3026 = vmatpush1.xpose.msra.mxu0 0.0
      %3027 = vmatprep.subr.mxu0 0.0
      %3028 = vmatpush1.xpose.msra.mxu0 0.0
      %3029 = vmatprep.subr.mxu0 0.0
      %3030 = vmatpush1.xpose.msra.mxu0 0.0
      %3031 = vmatprep.subr.mxu0 0.0
      %3032 = vmatpush1.xpose.msra.mxu0 0.0
      %3033 = vmatprep.subr.mxu0 0.0
      %3034 = vmatpush1.xpose.msra.mxu0 0.0
      %3035 = vmatprep.subr.mxu0 0.0
      %3036 = vmatpush1.xpose.msra.mxu0 0.0
      %3037 = vmatprep.subr.mxu0 0.0
      %3038 = vmatpush1.xpose.msra.mxu0 0.0
      %3039 = vmatprep.subr.mxu0 0.0
      %3040 = vmatpush1.xpose.msra.mxu0 0.0
      %3041 = vmatprep.subr.mxu0 0.0
      %3042 = vmatpush1.xpose.msra.mxu0 0.0
      %3043 = vmatprep.subr.mxu0 0.0
      %3044 = vmatpush1.xpose.msra.mxu0 0.0
      %3045 = vmatprep.subr.mxu0 0.0
      %3046 = vmatpush1.xpose.msra.mxu0 0.0
      %3047 = vmatprep.subr.mxu0 0.0
      %3048 = vmatpush1.xpose.msra.mxu0 0.0
      %3049 = vmatprep.subr.mxu0 0.0
      %3050 = vmatpush1.xpose.msra.mxu0 0.0
      %3051 = vmatprep.subr.mxu0 0.0
      %3052 = vmatpush1.xpose.msra.mxu0 0.0
      %3053 = vmatprep.subr.mxu0 0.0
      %3054 = vmatpush1.xpose.msra.mxu0 0.0
      %3055 = vmatprep.subr.mxu0 0.0
      %3056 = vmatpush1.xpose.msra.mxu0 0.0
      %3057 = vmatprep.subr.mxu0 0.0
      %3058 = vmatpush1.xpose.msra.mxu0 0.0
      %3059 = vmatprep.subr.mxu0 0.0
      %3060 = vmatpush1.xpose.msra.mxu0 0.0
      %3061 = vmatprep.subr.mxu0 0.0
      %3062 = vmatpush1.xpose.msra.mxu0 0.0
      %3063 = vmatprep.subr.mxu0 0.0
      %3064 = vmatpush1.xpose.msra.mxu0 0.0
      %3065 = vmatprep.subr.mxu0 0.0
      %3066 = vmatpush1.xpose.msra.mxu0 0.0
      %3067 = vmatprep.subr.mxu0 0.0
      %3068 = vmatpush1.xpose.msra.mxu0 0.0
      %3069 = vmatprep.subr.mxu0 0.0
      %3070 = vmatpush1.xpose.msra.mxu0 0.0
      %3071 = vmatprep.subr.mxu0 0.0
      %3072 = vmatpush1.xpose.msra.mxu0 0.0
      %3073 = vmatprep.subr.mxu0 0.0
      %3074 = vmatpush1.xpose.msra.mxu0 0.0
      %3075 = vmatprep.subr.mxu0 0.0
      %3076 = vmatpush1.xpose.msra.mxu0 0.0
      %3077 = vmatprep.subr.mxu0 0.0
      %3078 = vmatpush1.xpose.msra.mxu0 0.0
      %3079 = vmatprep.subr.mxu0 0.0
      %3080 = vmatpush1.xpose.msra.mxu0 0.0
      %3081 = vmatprep.subr.mxu0 0.0
      %3082 = vmatpush1.xpose.msra.mxu0 0.0
      %3083 = vmatprep.subr.mxu0 0.0
      %3084 = vmatpush1.xpose.msra.mxu0 0.0
      %3085 = vmatprep.mubr.f32.mxu0 0.0
      %3086 = vmatmul.mubr.f32.gmra.mrb[0].mxu0 %v3017
      %v3087 = vpop.f32.mrb[0].mxu0
      %v3088 = vadd.f32 0.0, %v3087
      %v3089 = vpop.f32.mrb[0].mxu0
      %3090 = vdwg.mxu0
      %3091 = vrot.lane.b32.xlu0 %v347, 112
      %v3092 = vpop.permute.xlu0 %3091
      %3093 = vrot.lane.b32.xlu0 %v347, 80
      %v3094 = vpop.permute.xlu0 %3093
      %v3095 = vsel %vm383, %v3092, 0
      %v3097 = vsel %vm383, %v3094, 0
      %3099 = vmatprep.subr.mxu0 0.0
      %3100 = vmatpush1.xpose.msra.mxu0 %v3097
      %3101 = vmatprep.subr.mxu0 0.0
      %3102 = vmatpush1.xpose.msra.mxu0 0.0
      %3103 = vmatprep.subr.mxu0 0.0
      %3104 = vmatpush1.xpose.msra.mxu0 0.0
      %3105 = vmatprep.subr.mxu0 0.0
      %3106 = vmatpush1.xpose.msra.mxu0 0.0
      %3107 = vmatprep.subr.mxu0 0.0
      %3108 = vmatpush1.xpose.msra.mxu0 0.0
      %3109 = vmatprep.subr.mxu0 0.0
      %3110 = vmatpush1.xpose.msra.mxu0 0.0
      %3111 = vmatprep.subr.mxu0 0.0
      %3112 = vmatpush1.xpose.msra.mxu0 0.0
      %3113 = vmatprep.subr.mxu0 0.0
      %3114 = vmatpush1.xpose.msra.mxu0 0.0
      %3115 = vmatprep.subr.mxu0 0.0
      %3116 = vmatpush1.xpose.msra.mxu0 0.0
      %3117 = vmatprep.subr.mxu0 0.0
      %3118 = vmatpush1.xpose.msra.mxu0 0.0
      %3119 = vmatprep.subr.mxu0 0.0
      %3120 = vmatpush1.xpose.msra.mxu0 0.0
      %3121 = vmatprep.subr.mxu0 0.0
      %3122 = vmatpush1.xpose.msra.mxu0 0.0
      %3123 = vmatprep.subr.mxu0 0.0
      %3124 = vmatpush1.xpose.msra.mxu0 0.0
      %3125 = vmatprep.subr.mxu0 0.0
      %3126 = vmatpush1.xpose.msra.mxu0 0.0
      %3127 = vmatprep.subr.mxu0 0.0
      %3128 = vmatpush1.xpose.msra.mxu0 0.0
      %3129 = vmatprep.subr.mxu0 0.0
      %3130 = vmatpush1.xpose.msra.mxu0 0.0
      %3131 = vmatprep.subr.mxu0 0.0
      %3132 = vmatpush1.xpose.msra.mxu0 0.0
      %3133 = vmatprep.subr.mxu0 0.0
      %3134 = vmatpush1.xpose.msra.mxu0 0.0
      %3135 = vmatprep.subr.mxu0 0.0
      %3136 = vmatpush1.xpose.msra.mxu0 0.0
      %3137 = vmatprep.subr.mxu0 0.0
      %3138 = vmatpush1.xpose.msra.mxu0 0.0
      %3139 = vmatprep.subr.mxu0 0.0
      %3140 = vmatpush1.xpose.msra.mxu0 0.0
      %3141 = vmatprep.subr.mxu0 0.0
      %3142 = vmatpush1.xpose.msra.mxu0 0.0
      %3143 = vmatprep.subr.mxu0 0.0
      %3144 = vmatpush1.xpose.msra.mxu0 0.0
      %3145 = vmatprep.subr.mxu0 0.0
      %3146 = vmatpush1.xpose.msra.mxu0 0.0
      %3147 = vmatprep.subr.mxu0 0.0
      %3148 = vmatpush1.xpose.msra.mxu0 0.0
      %3149 = vmatprep.subr.mxu0 0.0
      %3150 = vmatpush1.xpose.msra.mxu0 0.0
      %3151 = vmatprep.subr.mxu0 0.0
      %3152 = vmatpush1.xpose.msra.mxu0 0.0
      %3153 = vmatprep.subr.mxu0 0.0
      %3154 = vmatpush1.xpose.msra.mxu0 0.0
      %3155 = vmatprep.subr.mxu0 0.0
      %3156 = vmatpush1.xpose.msra.mxu0 0.0
      %3157 = vmatprep.subr.mxu0 0.0
      %3158 = vmatpush1.xpose.msra.mxu0 0.0
      %3159 = vmatprep.subr.mxu0 0.0
      %3160 = vmatpush1.xpose.msra.mxu0 0.0
      %3161 = vmatprep.subr.mxu0 0.0
      %3162 = vmatpush1.xpose.msra.mxu0 0.0
      %3163 = vmatprep.mubr.f32.mxu0 0.0
      %3164 = vmatmul.mubr.f32.gmra.mrb[0].mxu0 %v3095
      %v3165 = vpop.f32.mrb[0].mxu0
      %v3166 = vadd.f32 0.0, %v3165
      %v3167 = vpop.f32.mrb[0].mxu0
      %3168 = vdwg.mxu0
      %3169 = vrot.lane.b32.xlu0 %v352, 112
      %v3170 = vpop.permute.xlu0 %3169
      %3171 = vrot.lane.b32.xlu0 %v352, 80
      %v3172 = vpop.permute.xlu0 %3171
      %v3173 = vsel %vm383, %v3170, 0
      %v3175 = vsel %vm383, %v3172, 0
      %3177 = vmatprep.subr.mxu0 0.0
      %3178 = vmatpush1.xpose.msra.mxu0 %v3175
      %3179 = vmatprep.subr.mxu0 0.0
      %3180 = vmatpush1.xpose.msra.mxu0 0.0
      %3181 = vmatprep.subr.mxu0 0.0
      %3182 = vmatpush1.xpose.msra.mxu0 0.0
      %3183 = vmatprep.subr.mxu0 0.0
      %3184 = vmatpush1.xpose.msra.mxu0 0.0
      %3185 = vmatprep.subr.mxu0 0.0
      %3186 = vmatpush1.xpose.msra.mxu0 0.0
      %3187 = vmatprep.subr.mxu0 0.0
      %3188 = vmatpush1.xpose.msra.mxu0 0.0
      %3189 = vmatprep.subr.mxu0 0.0
      %3190 = vmatpush1.xpose.msra.mxu0 0.0
      %3191 = vmatprep.subr.mxu0 0.0
      %3192 = vmatpush1.xpose.msra.mxu0 0.0
      %3193 = vmatprep.subr.mxu0 0.0
      %3194 = vmatpush1.xpose.msra.mxu0 0.0
      %3195 = vmatprep.subr.mxu0 0.0
      %3196 = vmatpush1.xpose.msra.mxu0 0.0
      %3197 = vmatprep.subr.mxu0 0.0
      %3198 = vmatpush1.xpose.msra.mxu0 0.0
      %3199 = vmatprep.subr.mxu0 0.0
      %3200 = vmatpush1.xpose.msra.mxu0 0.0
      %3201 = vmatprep.subr.mxu0 0.0
      %3202 = vmatpush1.xpose.msra.mxu0 0.0
      %3203 = vmatprep.subr.mxu0 0.0
      %3204 = vmatpush1.xpose.msra.mxu0 0.0
      %3205 = vmatprep.subr.mxu0 0.0
      %3206 = vmatpush1.xpose.msra.mxu0 0.0
      %3207 = vmatprep.subr.mxu0 0.0
      %3208 = vmatpush1.xpose.msra.mxu0 0.0
      %3209 = vmatprep.subr.mxu0 0.0
      %3210 = vmatpush1.xpose.msra.mxu0 0.0
      %3211 = vmatprep.subr.mxu0 0.0
      %3212 = vmatpush1.xpose.msra.mxu0 0.0
      %3213 = vmatprep.subr.mxu0 0.0
      %3214 = vmatpush1.xpose.msra.mxu0 0.0
      %3215 = vmatprep.subr.mxu0 0.0
      %3216 = vmatpush1.xpose.msra.mxu0 0.0
      %3217 = vmatprep.subr.mxu0 0.0
      %3218 = vmatpush1.xpose.msra.mxu0 0.0
      %3219 = vmatprep.subr.mxu0 0.0
      %3220 = vmatpush1.xpose.msra.mxu0 0.0
      %3221 = vmatprep.subr.mxu0 0.0
      %3222 = vmatpush1.xpose.msra.mxu0 0.0
      %3223 = vmatprep.subr.mxu0 0.0
      %3224 = vmatpush1.xpose.msra.mxu0 0.0
      %3225 = vmatprep.subr.mxu0 0.0
      %3226 = vmatpush1.xpose.msra.mxu0 0.0
      %3227 = vmatprep.subr.mxu0 0.0
      %3228 = vmatpush1.xpose.msra.mxu0 0.0
      %3229 = vmatprep.subr.mxu0 0.0
      %3230 = vmatpush1.xpose.msra.mxu0 0.0
      %3231 = vmatprep.subr.mxu0 0.0
      %3232 = vmatpush1.xpose.msra.mxu0 0.0
      %3233 = vmatprep.subr.mxu0 0.0
      %3234 = vmatpush1.xpose.msra.mxu0 0.0
      %3235 = vmatprep.subr.mxu0 0.0
      %3236 = vmatpush1.xpose.msra.mxu0 0.0
      %3237 = vmatprep.subr.mxu0 0.0
      %3238 = vmatpush1.xpose.msra.mxu0 0.0
      %3239 = vmatprep.subr.mxu0 0.0
      %3240 = vmatpush1.xpose.msra.mxu0 0.0
      %3241 = vmatprep.mubr.f32.mxu0 0.0
      %3242 = vmatmul.mubr.f32.gmra.mrb[0].mxu0 %v3173
      %v3243 = vpop.f32.mrb[0].mxu0
      %v3244 = vadd.f32 0.0, %v3243
      %v3245 = vpop.f32.mrb[0].mxu0
      %3246 = vdwg.mxu0
      %3247 = vrot.lane.b32.xlu0 %v357, 112
      %v3248 = vpop.permute.xlu0 %3247
      %3249 = vrot.lane.b32.xlu0 %v357, 80
      %v3250 = vpop.permute.xlu0 %3249
      %v3251 = vsel %vm383, %v3248, 0
      %v3253 = vsel %vm383, %v3250, 0
      %3255 = vmatprep.subr.mxu0 0.0
      %3256 = vmatpush1.xpose.msra.mxu0 %v3253
      %3257 = vmatprep.subr.mxu0 0.0
      %3258 = vmatpush1.xpose.msra.mxu0 0.0
      %3259 = vmatprep.subr.mxu0 0.0
      %3260 = vmatpush1.xpose.msra.mxu0 0.0
      %3261 = vmatprep.subr.mxu0 0.0
      %3262 = vmatpush1.xpose.msra.mxu0 0.0
      %3263 = vmatprep.subr.mxu0 0.0
      %3264 = vmatpush1.xpose.msra.mxu0 0.0
      %3265 = vmatprep.subr.mxu0 0.0
      %3266 = vmatpush1.xpose.msra.mxu0 0.0
      %3267 = vmatprep.subr.mxu0 0.0
      %3268 = vmatpush1.xpose.msra.mxu0 0.0
      %3269 = vmatprep.subr.mxu0 0.0
      %3270 = vmatpush1.xpose.msra.mxu0 0.0
      %3271 = vmatprep.subr.mxu0 0.0
      %3272 = vmatpush1.xpose.msra.mxu0 0.0
      %3273 = vmatprep.subr.mxu0 0.0
      %3274 = vmatpush1.xpose.msra.mxu0 0.0
      %3275 = vmatprep.subr.mxu0 0.0
      %3276 = vmatpush1.xpose.msra.mxu0 0.0
      %3277 = vmatprep.subr.mxu0 0.0
      %3278 = vmatpush1.xpose.msra.mxu0 0.0
      %3279 = vmatprep.subr.mxu0 0.0
      %3280 = vmatpush1.xpose.msra.mxu0 0.0
      %3281 = vmatprep.subr.mxu0 0.0
      %3282 = vmatpush1.xpose.msra.mxu0 0.0
      %3283 = vmatprep.subr.mxu0 0.0
      %3284 = vmatpush1.xpose.msra.mxu0 0.0
      %3285 = vmatprep.subr.mxu0 0.0
      %3286 = vmatpush1.xpose.msra.mxu0 0.0
      %3287 = vmatprep.subr.mxu0 0.0
      %3288 = vmatpush1.xpose.msra.mxu0 0.0
      %3289 = vmatprep.subr.mxu0 0.0
      %3290 = vmatpush1.xpose.msra.mxu0 0.0
      %3291 = vmatprep.subr.mxu0 0.0
      %3292 = vmatpush1.xpose.msra.mxu0 0.0
      %3293 = vmatprep.subr.mxu0 0.0
      %3294 = vmatpush1.xpose.msra.mxu0 0.0
      %3295 = vmatprep.subr.mxu0 0.0
      %3296 = vmatpush1.xpose.msra.mxu0 0.0
      %3297 = vmatprep.subr.mxu0 0.0
      %3298 = vmatpush1.xpose.msra.mxu0 0.0
      %3299 = vmatprep.subr.mxu0 0.0
      %3300 = vmatpush1.xpose.msra.mxu0 0.0
      %3301 = vmatprep.subr.mxu0 0.0
      %3302 = vmatpush1.xpose.msra.mxu0 0.0
      %3303 = vmatprep.subr.mxu0 0.0
      %3304 = vmatpush1.xpose.msra.mxu0 0.0
      %3305 = vmatprep.subr.mxu0 0.0
      %3306 = vmatpush1.xpose.msra.mxu0 0.0
      %3307 = vmatprep.subr.mxu0 0.0
      %3308 = vmatpush1.xpose.msra.mxu0 0.0
      %3309 = vmatprep.subr.mxu0 0.0
      %3310 = vmatpush1.xpose.msra.mxu0 0.0
      %3311 = vmatprep.subr.mxu0 0.0
      %3312 = vmatpush1.xpose.msra.mxu0 0.0
      %3313 = vmatprep.subr.mxu0 0.0
      %3314 = vmatpush1.xpose.msra.mxu0 0.0
      %3315 = vmatprep.subr.mxu0 0.0
      %3316 = vmatpush1.xpose.msra.mxu0 0.0
      %3317 = vmatprep.subr.mxu0 0.0
      %3318 = vmatpush1.xpose.msra.mxu0 0.0
      %3319 = vmatprep.mubr.f32.mxu0 0.0
      %3320 = vmatmul.mubr.f32.gmra.mrb[0].mxu0 %v3251
      %v3321 = vpop.f32.mrb[0].mxu0
      %v3322 = vadd.f32 0.0, %v3321
      %v3323 = vpop.f32.mrb[0].mxu0
      %3324 = vdwg.mxu0
      %3325 = vrot.lane.b32.xlu0 %v362, 112
      %v3326 = vpop.permute.xlu0 %3325
      %3327 = vrot.lane.b32.xlu0 %v362, 80
      %v3328 = vpop.permute.xlu0 %3327
      %v3329 = vsel %vm383, %v3326, 0
      %v3331 = vsel %vm383, %v3328, 0
      %3333 = vmatprep.subr.mxu0 0.0
      %3334 = vmatpush1.xpose.msra.mxu0 %v3331
      %3335 = vmatprep.subr.mxu0 0.0
      %3336 = vmatpush1.xpose.msra.mxu0 0.0
      %3337 = vmatprep.subr.mxu0 0.0
      %3338 = vmatpush1.xpose.msra.mxu0 0.0
      %3339 = vmatprep.subr.mxu0 0.0
      %3340 = vmatpush1.xpose.msra.mxu0 0.0
      %3341 = vmatprep.subr.mxu0 0.0
      %3342 = vmatpush1.xpose.msra.mxu0 0.0
      %3343 = vmatprep.subr.mxu0 0.0
      %3344 = vmatpush1.xpose.msra.mxu0 0.0
      %3345 = vmatprep.subr.mxu0 0.0
      %3346 = vmatpush1.xpose.msra.mxu0 0.0
      %3347 = vmatprep.subr.mxu0 0.0
      %3348 = vmatpush1.xpose.msra.mxu0 0.0
      %3349 = vmatprep.subr.mxu0 0.0
      %3350 = vmatpush1.xpose.msra.mxu0 0.0
      %3351 = vmatprep.subr.mxu0 0.0
      %3352 = vmatpush1.xpose.msra.mxu0 0.0
      %3353 = vmatprep.subr.mxu0 0.0
      %3354 = vmatpush1.xpose.msra.mxu0 0.0
      %3355 = vmatprep.subr.mxu0 0.0
      %3356 = vmatpush1.xpose.msra.mxu0 0.0
      %3357 = vmatprep.subr.mxu0 0.0
      %3358 = vmatpush1.xpose.msra.mxu0 0.0
      %3359 = vmatprep.subr.mxu0 0.0
      %3360 = vmatpush1.xpose.msra.mxu0 0.0
      %3361 = vmatprep.subr.mxu0 0.0
      %3362 = vmatpush1.xpose.msra.mxu0 0.0
      %3363 = vmatprep.subr.mxu0 0.0
      %3364 = vmatpush1.xpose.msra.mxu0 0.0
      %3365 = vmatprep.subr.mxu0 0.0
      %3366 = vmatpush1.xpose.msra.mxu0 0.0
      %3367 = vmatprep.subr.mxu0 0.0
      %3368 = vmatpush1.xpose.msra.mxu0 0.0
      %3369 = vmatprep.subr.mxu0 0.0
      %3370 = vmatpush1.xpose.msra.mxu0 0.0
      %3371 = vmatprep.subr.mxu0 0.0
      %3372 = vmatpush1.xpose.msra.mxu0 0.0
      %3373 = vmatprep.subr.mxu0 0.0
      %3374 = vmatpush1.xpose.msra.mxu0 0.0
      %3375 = vmatprep.subr.mxu0 0.0
      %3376 = vmatpush1.xpose.msra.mxu0 0.0
      %3377 = vmatprep.subr.mxu0 0.0
      %3378 = vmatpush1.xpose.msra.mxu0 0.0
      %3379 = vmatprep.subr.mxu0 0.0
      %3380 = vmatpush1.xpose.msra.mxu0 0.0
      %3381 = vmatprep.subr.mxu0 0.0
      %3382 = vmatpush1.xpose.msra.mxu0 0.0
      %3383 = vmatprep.subr.mxu0 0.0
      %3384 = vmatpush1.xpose.msra.mxu0 0.0
      %3385 = vmatprep.subr.mxu0 0.0
      %3386 = vmatpush1.xpose.msra.mxu0 0.0
      %3387 = vmatprep.subr.mxu0 0.0
      %3388 = vmatpush1.xpose.msra.mxu0 0.0
      %3389 = vmatprep.subr.mxu0 0.0
      %3390 = vmatpush1.xpose.msra.mxu0 0.0
      %3391 = vmatprep.subr.mxu0 0.0
      %3392 = vmatpush1.xpose.msra.mxu0 0.0
      %3393 = vmatprep.subr.mxu0 0.0
      %3394 = vmatpush1.xpose.msra.mxu0 0.0
      %3395 = vmatprep.subr.mxu0 0.0
      %3396 = vmatpush1.xpose.msra.mxu0 0.0
      %3397 = vmatprep.mubr.f32.mxu0 0.0
      %3398 = vmatmul.mubr.f32.gmra.mrb[0].mxu0 %v3329
      %v3399 = vpop.f32.mrb[0].mxu0
      %v3400 = vadd.f32 0.0, %v3399
      %v3401 = vpop.f32.mrb[0].mxu0
      %3402 = vdwg.mxu0
      %3403 = vrot.lane.b32.xlu0 %v367, 112
      %v3404 = vpop.permute.xlu0 %3403
      %3405 = vrot.lane.b32.xlu0 %v367, 80
      %v3406 = vpop.permute.xlu0 %3405
      %v3407 = vsel %vm383, %v3404, 0
      %v3409 = vsel %vm383, %v3406, 0
      %3411 = vmatprep.subr.mxu0 0.0
      %3412 = vmatpush1.xpose.msra.mxu0 %v3409
      %3413 = vmatprep.subr.mxu0 0.0
      %3414 = vmatpush1.xpose.msra.mxu0 0.0
      %3415 = vmatprep.subr.mxu0 0.0
      %3416 = vmatpush1.xpose.msra.mxu0 0.0
      %3417 = vmatprep.subr.mxu0 0.0
      %3418 = vmatpush1.xpose.msra.mxu0 0.0
      %3419 = vmatprep.subr.mxu0 0.0
      %3420 = vmatpush1.xpose.msra.mxu0 0.0
      %3421 = vmatprep.subr.mxu0 0.0
      %3422 = vmatpush1.xpose.msra.mxu0 0.0
      %3423 = vmatprep.subr.mxu0 0.0
      %3424 = vmatpush1.xpose.msra.mxu0 0.0
      %3425 = vmatprep.subr.mxu0 0.0
      %3426 = vmatpush1.xpose.msra.mxu0 0.0
      %3427 = vmatprep.subr.mxu0 0.0
      %3428 = vmatpush1.xpose.msra.mxu0 0.0
      %3429 = vmatprep.subr.mxu0 0.0
      %3430 = vmatpush1.xpose.msra.mxu0 0.0
      %3431 = vmatprep.subr.mxu0 0.0
      %3432 = vmatpush1.xpose.msra.mxu0 0.0
      %3433 = vmatprep.subr.mxu0 0.0
      %3434 = vmatpush1.xpose.msra.mxu0 0.0
      %3435 = vmatprep.subr.mxu0 0.0
      %3436 = vmatpush1.xpose.msra.mxu0 0.0
      %3437 = vmatprep.subr.mxu0 0.0
      %3438 = vmatpush1.xpose.msra.mxu0 0.0
      %3439 = vmatprep.subr.mxu0 0.0
      %3440 = vmatpush1.xpose.msra.mxu0 0.0
      %3441 = vmatprep.subr.mxu0 0.0
      %3442 = vmatpush1.xpose.msra.mxu0 0.0
      %3443 = vmatprep.subr.mxu0 0.0
      %3444 = vmatpush1.xpose.msra.mxu0 0.0
      %3445 = vmatprep.subr.mxu0 0.0
      %3446 = vmatpush1.xpose.msra.mxu0 0.0
      %3447 = vmatprep.subr.mxu0 0.0
      %3448 = vmatpush1.xpose.msra.mxu0 0.0
      %3449 = vmatprep.subr.mxu0 0.0
      %3450 = vmatpush1.xpose.msra.mxu0 0.0
      %3451 = vmatprep.subr.mxu0 0.0
      %3452 = vmatpush1.xpose.msra.mxu0 0.0
      %3453 = vmatprep.subr.mxu0 0.0
      %3454 = vmatpush1.xpose.msra.mxu0 0.0
      %3455 = vmatprep.subr.mxu0 0.0
      %3456 = vmatpush1.xpose.msra.mxu0 0.0
      %3457 = vmatprep.subr.mxu0 0.0
      %3458 = vmatpush1.xpose.msra.mxu0 0.0
      %3459 = vmatprep.subr.mxu0 0.0
      %3460 = vmatpush1.xpose.msra.mxu0 0.0
      %3461 = vmatprep.subr.mxu0 0.0
      %3462 = vmatpush1.xpose.msra.mxu0 0.0
      %3463 = vmatprep.subr.mxu0 0.0
      %3464 = vmatpush1.xpose.msra.mxu0 0.0
      %3465 = vmatprep.subr.mxu0 0.0
      %3466 = vmatpush1.xpose.msra.mxu0 0.0
      %3467 = vmatprep.subr.mxu0 0.0
      %3468 = vmatpush1.xpose.msra.mxu0 0.0
      %3469 = vmatprep.subr.mxu0 0.0
      %3470 = vmatpush1.xpose.msra.mxu0 0.0
      %3471 = vmatprep.subr.mxu0 0.0
      %3472 = vmatpush1.xpose.msra.mxu0 0.0
      %3473 = vmatprep.subr.mxu0 0.0
      %3474 = vmatpush1.xpose.msra.mxu0 0.0
      %3475 = vmatprep.mubr.f32.mxu0 0.0
      %3476 = vmatmul.mubr.f32.gmra.mrb[0].mxu0 %v3407
      %v3477 = vpop.f32.mrb[0].mxu0
      %v3478 = vadd.f32 0.0, %v3477
      %v3479 = vpop.f32.mrb[0].mxu0
      %3480 = vdwg.mxu0
      %3481 = vrot.lane.b32.xlu0 %v372, 112
      %v3482 = vpop.permute.xlu0 %3481
      %3483 = vrot.lane.b32.xlu0 %v372, 80
      %v3484 = vpop.permute.xlu0 %3483
      %v3485 = vsel %vm383, %v3482, 0
      %v3487 = vsel %vm383, %v3484, 0
      %3489 = vmatprep.subr.mxu0 0.0
      %3490 = vmatpush1.xpose.msra.mxu0 %v3487
      %3491 = vmatprep.subr.mxu0 0.0
      %3492 = vmatpush1.xpose.msra.mxu0 0.0
      %3493 = vmatprep.subr.mxu0 0.0
      %3494 = vmatpush1.xpose.msra.mxu0 0.0
      %3495 = vmatprep.subr.mxu0 0.0
      %3496 = vmatpush1.xpose.msra.mxu0 0.0
      %3497 = vmatprep.subr.mxu0 0.0
      %3498 = vmatpush1.xpose.msra.mxu0 0.0
      %3499 = vmatprep.subr.mxu0 0.0
      %3500 = vmatpush1.xpose.msra.mxu0 0.0
      %3501 = vmatprep.subr.mxu0 0.0
      %3502 = vmatpush1.xpose.msra.mxu0 0.0
      %3503 = vmatprep.subr.mxu0 0.0
      %3504 = vmatpush1.xpose.msra.mxu0 0.0
      %3505 = vmatprep.subr.mxu0 0.0
      %3506 = vmatpush1.xpose.msra.mxu0 0.0
      %3507 = vmatprep.subr.mxu0 0.0
      %3508 = vmatpush1.xpose.msra.mxu0 0.0
      %3509 = vmatprep.subr.mxu0 0.0
      %3510 = vmatpush1.xpose.msra.mxu0 0.0
      %3511 = vmatprep.subr.mxu0 0.0
      %3512 = vmatpush1.xpose.msra.mxu0 0.0
      %3513 = vmatprep.subr.mxu0 0.0
      %3514 = vmatpush1.xpose.msra.mxu0 0.0
      %3515 = vmatprep.subr.mxu0 0.0
      %3516 = vmatpush1.xpose.msra.mxu0 0.0
      %3517 = vmatprep.subr.mxu0 0.0
      %3518 = vmatpush1.xpose.msra.mxu0 0.0
      %3519 = vmatprep.subr.mxu0 0.0
      %3520 = vmatpush1.xpose.msra.mxu0 0.0
      %3521 = vmatprep.subr.mxu0 0.0
      %3522 = vmatpush1.xpose.msra.mxu0 0.0
      %3523 = vmatprep.subr.mxu0 0.0
      %3524 = vmatpush1.xpose.msra.mxu0 0.0
      %3525 = vmatprep.subr.mxu0 0.0
      %3526 = vmatpush1.xpose.msra.mxu0 0.0
      %3527 = vmatprep.subr.mxu0 0.0
      %3528 = vmatpush1.xpose.msra.mxu0 0.0
      %3529 = vmatprep.subr.mxu0 0.0
      %3530 = vmatpush1.xpose.msra.mxu0 0.0
      %3531 = vmatprep.subr.mxu0 0.0
      %3532 = vmatpush1.xpose.msra.mxu0 0.0
      %3533 = vmatprep.subr.mxu0 0.0
      %3534 = vmatpush1.xpose.msra.mxu0 0.0
      %3535 = vmatprep.subr.mxu0 0.0
      %3536 = vmatpush1.xpose.msra.mxu0 0.0
      %3537 = vmatprep.subr.mxu0 0.0
      %3538 = vmatpush1.xpose.msra.mxu0 0.0
      %3539 = vmatprep.subr.mxu0 0.0
      %3540 = vmatpush1.xpose.msra.mxu0 0.0
      %3541 = vmatprep.subr.mxu0 0.0
      %3542 = vmatpush1.xpose.msra.mxu0 0.0
      %3543 = vmatprep.subr.mxu0 0.0
      %3544 = vmatpush1.xpose.msra.mxu0 0.0
      %3545 = vmatprep.subr.mxu0 0.0
      %3546 = vmatpush1.xpose.msra.mxu0 0.0
      %3547 = vmatprep.subr.mxu0 0.0
      %3548 = vmatpush1.xpose.msra.mxu0 0.0
      %3549 = vmatprep.subr.mxu0 0.0
      %3550 = vmatpush1.xpose.msra.mxu0 0.0
      %3551 = vmatprep.subr.mxu0 0.0
      %3552 = vmatpush1.xpose.msra.mxu0 0.0
      %3553 = vmatprep.mubr.f32.mxu0 0.0
      %3554 = vmatmul.mubr.f32.gmra.mrb[0].mxu0 %v3485
      %v3555 = vpop.f32.mrb[0].mxu0
      %v3556 = vadd.f32 0.0, %v3555
      %v3557 = vpop.f32.mrb[0].mxu0
      %3558 = vdwg.mxu0
      %3559 = vrot.lane.b32.xlu0 %v377, 112
      %v3560 = vpop.permute.xlu0 %3559
      %3561 = vrot.lane.b32.xlu0 %v377, 80
      %v3562 = vpop.permute.xlu0 %3561
      %v3563 = vsel %vm383, %v3560, 0
      %v3565 = vsel %vm383, %v3562, 0
      %3567 = vmatprep.subr.mxu0 0.0
      %3568 = vmatpush1.xpose.msra.mxu0 %v3565
      %3569 = vmatprep.subr.mxu0 0.0
      %3570 = vmatpush1.xpose.msra.mxu0 0.0
      %3571 = vmatprep.subr.mxu0 0.0
      %3572 = vmatpush1.xpose.msra.mxu0 0.0
      %3573 = vmatprep.subr.mxu0 0.0
      %3574 = vmatpush1.xpose.msra.mxu0 0.0
      %3575 = vmatprep.subr.mxu0 0.0
      %3576 = vmatpush1.xpose.msra.mxu0 0.0
      %3577 = vmatprep.subr.mxu0 0.0
      %3578 = vmatpush1.xpose.msra.mxu0 0.0
      %3579 = vmatprep.subr.mxu0 0.0
      %3580 = vmatpush1.xpose.msra.mxu0 0.0
      %3581 = vmatprep.subr.mxu0 0.0
      %3582 = vmatpush1.xpose.msra.mxu0 0.0
      %3583 = vmatprep.subr.mxu0 0.0
      %3584 = vmatpush1.xpose.msra.mxu0 0.0
      %3585 = vmatprep.subr.mxu0 0.0
      %3586 = vmatpush1.xpose.msra.mxu0 0.0
      %3587 = vmatprep.subr.mxu0 0.0
      %3588 = vmatpush1.xpose.msra.mxu0 0.0
      %3589 = vmatprep.subr.mxu0 0.0
      %3590 = vmatpush1.xpose.msra.mxu0 0.0
      %3591 = vmatprep.subr.mxu0 0.0
      %3592 = vmatpush1.xpose.msra.mxu0 0.0
      %3593 = vmatprep.subr.mxu0 0.0
      %3594 = vmatpush1.xpose.msra.mxu0 0.0
      %3595 = vmatprep.subr.mxu0 0.0
      %3596 = vmatpush1.xpose.msra.mxu0 0.0
      %3597 = vmatprep.subr.mxu0 0.0
      %3598 = vmatpush1.xpose.msra.mxu0 0.0
      %3599 = vmatprep.subr.mxu0 0.0
      %3600 = vmatpush1.xpose.msra.mxu0 0.0
      %3601 = vmatprep.subr.mxu0 0.0
      %3602 = vmatpush1.xpose.msra.mxu0 0.0
      %3603 = vmatprep.subr.mxu0 0.0
      %3604 = vmatpush1.xpose.msra.mxu0 0.0
      %3605 = vmatprep.subr.mxu0 0.0
      %3606 = vmatpush1.xpose.msra.mxu0 0.0
      %3607 = vmatprep.subr.mxu0 0.0
      %3608 = vmatpush1.xpose.msra.mxu0 0.0
      %3609 = vmatprep.subr.mxu0 0.0
      %3610 = vmatpush1.xpose.msra.mxu0 0.0
      %3611 = vmatprep.subr.mxu0 0.0
      %3612 = vmatpush1.xpose.msra.mxu0 0.0
      %3613 = vmatprep.subr.mxu0 0.0
      %3614 = vmatpush1.xpose.msra.mxu0 0.0
      %3615 = vmatprep.subr.mxu0 0.0
      %3616 = vmatpush1.xpose.msra.mxu0 0.0
      %3617 = vmatprep.subr.mxu0 0.0
      %3618 = vmatpush1.xpose.msra.mxu0 0.0
      %3619 = vmatprep.subr.mxu0 0.0
      %3620 = vmatpush1.xpose.msra.mxu0 0.0
      %3621 = vmatprep.subr.mxu0 0.0
      %3622 = vmatpush1.xpose.msra.mxu0 0.0
      %3623 = vmatprep.subr.mxu0 0.0
      %3624 = vmatpush1.xpose.msra.mxu0 0.0
      %3625 = vmatprep.subr.mxu0 0.0
      %3626 = vmatpush1.xpose.msra.mxu0 0.0
      %3627 = vmatprep.subr.mxu0 0.0
      %3628 = vmatpush1.xpose.msra.mxu0 0.0
      %3629 = vmatprep.subr.mxu0 0.0
      %3630 = vmatpush1.xpose.msra.mxu0 0.0
      %3631 = vmatprep.mubr.f32.mxu0 0.0
      %3632 = vmatmul.mubr.f32.gmra.mrb[0].mxu0 %v3563
      %v3633 = vpop.f32.mrb[0].mxu0
      %v3634 = vadd.f32 0.0, %v3633
      %v3635 = vpop.f32.mrb[0].mxu0
      %3636 = vdwg.mxu0
      %v3637 = vsel %vm383, %v3088, -inf
      %3638 = vmax.xlane.f32.xlu0 %v3637
      %v3639 = vpop.xlane.xlu0 %3638
      %v3640 = vsel %vm383, %v3166, -inf
      %3641 = vmax.xlane.f32.xlu0 %v3640
      %v3642 = vpop.xlane.xlu0 %3641
      %v3643 = vsel %vm383, %v3244, -inf
      %3644 = vmax.xlane.f32.xlu0 %v3643
      %v3645 = vpop.xlane.xlu0 %3644
      %v3646 = vsel %vm383, %v3322, -inf
      %3647 = vmax.xlane.f32.xlu0 %v3646
      %v3648 = vpop.xlane.xlu0 %3647
      %v3649 = vsel %vm383, %v3400, -inf
      %3650 = vmax.xlane.f32.xlu0 %v3649
      %v3651 = vpop.xlane.xlu0 %3650
      %v3652 = vsel %vm383, %v3478, -inf
      %3653 = vmax.xlane.f32.xlu0 %v3652
      %v3654 = vpop.xlane.xlu0 %3653
      %v3655 = vsel %vm383, %v3556, -inf
      %3656 = vmax.xlane.f32.xlu0 %v3655
      %v3657 = vpop.xlane.xlu0 %3656
      %v3658 = vsel %vm383, %v3634, -inf
      %3659 = vmax.xlane.f32.xlu0 %v3658
      %v3660 = vpop.xlane.xlu0 %3659
      %v3661 = vsub.f32 %v3088, %v3639
      %v3662 = vsub.f32 %v3166, %v3642
      %v3663 = vsub.f32 %v3244, %v3645
      %v3664 = vsub.f32 %v3322, %v3648
      %v3665 = vsub.f32 %v3400, %v3651
      %v3666 = vsub.f32 %v3478, %v3654
      %v3667 = vsub.f32 %v3556, %v3657
      %v3668 = vsub.f32 %v3634, %v3660
      %v3669 = vmul.f32 %v3661, 1.442695
      %v3670 = vpow.pop %v3669
      %v3671 = vmul.f32 %v3662, 1.442695
      %v3672 = vpow.pop %v3671
      %v3673 = vmul.f32 %v3663, 1.442695
      %v3674 = vpow.pop %v3673
      %v3675 = vmul.f32 %v3664, 1.442695
      %v3676 = vpow.pop %v3675
      %v3677 = vmul.f32 %v3665, 1.442695
      %v3678 = vpow.pop %v3677
      %v3679 = vmul.f32 %v3666, 1.442695
      %v3680 = vpow.pop %v3679
      %v3681 = vmul.f32 %v3667, 1.442695
      %v3682 = vpow.pop %v3681
      %v3683 = vmul.f32 %v3668, 1.442695
      %v3684 = vpow.pop %v3683
      %v3685 = vsel %vm383, %v3670, 0.0
      %3686 = vadd.xlane.f32.xlu0 %v3685
      %v3687 = vpop.xlane.xlu0 %3686
      %v3688 = vsel %vm383, %v3672, 0.0
      %3689 = vadd.xlane.f32.xlu0 %v3688
      %v3690 = vpop.xlane.xlu0 %3689
      %v3691 = vsel %vm383, %v3674, 0.0
      %3692 = vadd.xlane.f32.xlu0 %v3691
      %v3693 = vpop.xlane.xlu0 %3692
      %v3694 = vsel %vm383, %v3676, 0.0
      %3695 = vadd.xlane.f32.xlu0 %v3694
      %v3696 = vpop.xlane.xlu0 %3695
      %v3697 = vsel %vm383, %v3678, 0.0
      %3698 = vadd.xlane.f32.xlu0 %v3697
      %v3699 = vpop.xlane.xlu0 %3698
      %v3700 = vsel %vm383, %v3680, 0.0
      %3701 = vadd.xlane.f32.xlu0 %v3700
      %v3702 = vpop.xlane.xlu0 %3701
      %v3703 = vsel %vm383, %v3682, 0.0
      %3704 = vadd.xlane.f32.xlu0 %v3703
      %v3705 = vpop.xlane.xlu0 %3704
      %v3706 = vsel %vm383, %v3684, 0.0
      %3707 = vadd.xlane.f32.xlu0 %v3706
      %v3708 = vpop.xlane.xlu0 %3707
      %v3709 = vrcp.pop %v3687
      %v3710 = vmul.f32 %v3670, %v3709
      %v3711 = vrcp.pop %v3690
      %v3712 = vmul.f32 %v3672, %v3711
      %v3713 = vrcp.pop %v3693
      %v3714 = vmul.f32 %v3674, %v3713
      %v3715 = vrcp.pop %v3696
      %v3716 = vmul.f32 %v3676, %v3715
      %v3717 = vrcp.pop %v3699
      %v3718 = vmul.f32 %v3678, %v3717
      %v3719 = vrcp.pop %v3702
      %v3720 = vmul.f32 %v3680, %v3719
      %v3721 = vrcp.pop %v3705
      %v3722 = vmul.f32 %v3682, %v3721
      %v3723 = vrcp.pop %v3708
      %v3724 = vmul.f32 %v3684, %v3723
      %3725 = vrot.lane.b32.xlu0 %v342, 48
      %v3726 = vpop.permute.xlu0 %3725
      %v3729 = vsel %vm383, %v3710, 0
      %3731 = vmatprep.subr.mxu0 0.0
      %3732 = vmatpush1.msra.mxu0 %v3726
      %3733 = vmatprep.subr.mxu0 0.0
      %3734 = vmatpush1.msra.mxu0 0.0
      %3735 = vmatprep.subr.mxu0 0.0
      %3736 = vmatpush1.msra.mxu0 0.0
      %3737 = vmatprep.subr.mxu0 0.0
      %3738 = vmatpush1.msra.mxu0 0.0
      %3739 = vmatprep.subr.mxu0 0.0
      %3740 = vmatpush1.msra.mxu0 0.0
      %3741 = vmatprep.subr.mxu0 0.0
      %3742 = vmatpush1.msra.mxu0 0.0
      %3743 = vmatprep.subr.mxu0 0.0
      %3744 = vmatpush1.msra.mxu0 0.0
      %3745 = vmatprep.subr.mxu0 0.0
      %3746 = vmatpush1.msra.mxu0 0.0
      %3747 = vmatprep.subr.mxu0 0.0
      %3748 = vmatpush1.msra.mxu0 0.0
      %3749 = vmatprep.subr.mxu0 0.0
      %3750 = vmatpush1.msra.mxu0 0.0
      %3751 = vmatprep.subr.mxu0 0.0
      %3752 = vmatpush1.msra.mxu0 0.0
      %3753 = vmatprep.subr.mxu0 0.0
      %3754 = vmatpush1.msra.mxu0 0.0
      %3755 = vmatprep.subr.mxu0 0.0
      %3756 = vmatpush1.msra.mxu0 0.0
      %3757 = vmatprep.subr.mxu0 0.0
      %3758 = vmatpush1.msra.mxu0 0.0
      %3759 = vmatprep.subr.mxu0 0.0
      %3760 = vmatpush1.msra.mxu0 0.0
      %3761 = vmatprep.subr.mxu0 0.0
      %3762 = vmatpush1.msra.mxu0 0.0
      %3763 = vmatprep.subr.mxu0 0.0
      %3764 = vmatpush1.msra.mxu0 0.0
      %3765 = vmatprep.subr.mxu0 0.0
      %3766 = vmatpush1.msra.mxu0 0.0
      %3767 = vmatprep.subr.mxu0 0.0
      %3768 = vmatpush1.msra.mxu0 0.0
      %3769 = vmatprep.subr.mxu0 0.0
      %3770 = vmatpush1.msra.mxu0 0.0
      %3771 = vmatprep.subr.mxu0 0.0
      %3772 = vmatpush1.msra.mxu0 0.0
      %3773 = vmatprep.subr.mxu0 0.0
      %3774 = vmatpush1.msra.mxu0 0.0
      %3775 = vmatprep.subr.mxu0 0.0
      %3776 = vmatpush1.msra.mxu0 0.0
      %3777 = vmatprep.subr.mxu0 0.0
      %3778 = vmatpush1.msra.mxu0 0.0
      %3779 = vmatprep.subr.mxu0 0.0
      %3780 = vmatpush1.msra.mxu0 0.0
      %3781 = vmatprep.subr.mxu0 0.0
      %3782 = vmatpush1.msra.mxu0 0.0
      %3783 = vmatprep.subr.mxu0 0.0
      %3784 = vmatpush1.msra.mxu0 0.0
      %3785 = vmatprep.subr.mxu0 0.0
      %3786 = vmatpush1.msra.mxu0 0.0
      %3787 = vmatprep.subr.mxu0 0.0
      %3788 = vmatpush1.msra.mxu0 0.0
      %3789 = vmatprep.subr.mxu0 0.0
      %3790 = vmatpush1.msra.mxu0 0.0
      %3791 = vmatprep.subr.mxu0 0.0
      %3792 = vmatpush1.msra.mxu0 0.0
      %3793 = vmatprep.subr.mxu0 0.0
      %3794 = vmatpush1.msra.mxu0 0.0
      %3795 = vmatprep.mubr.f32.mxu0 0.0
      %3796 = vmatmul.mubr.f32.gmra.mrb[0].mxu0 %v3729
      %v3797 = vpop.f32.mrb[0].mxu0
      %v3798 = vadd.f32 0.0, %v3797
      %v3799 = vpop.f32.mrb[0].mxu0
      %3800 = vdwg.mxu0
      %3801 = vrot.lane.b32.xlu0 %v347, 48
      %v3802 = vpop.permute.xlu0 %3801
      %v3805 = vsel %vm383, %v3712, 0
      %3807 = vmatprep.subr.mxu0 0.0
      %3808 = vmatpush1.msra.mxu0 %v3802
      %3809 = vmatprep.subr.mxu0 0.0
      %3810 = vmatpush1.msra.mxu0 0.0
      %3811 = vmatprep.subr.mxu0 0.0
      %3812 = vmatpush1.msra.mxu0 0.0
      %3813 = vmatprep.subr.mxu0 0.0
      %3814 = vmatpush1.msra.mxu0 0.0
      %3815 = vmatprep.subr.mxu0 0.0
      %3816 = vmatpush1.msra.mxu0 0.0
      %3817 = vmatprep.subr.mxu0 0.0
      %3818 = vmatpush1.msra.mxu0 0.0
      %3819 = vmatprep.subr.mxu0 0.0
      %3820 = vmatpush1.msra.mxu0 0.0
      %3821 = vmatprep.subr.mxu0 0.0
      %3822 = vmatpush1.msra.mxu0 0.0
      %3823 = vmatprep.subr.mxu0 0.0
      %3824 = vmatpush1.msra.mxu0 0.0
      %3825 = vmatprep.subr.mxu0 0.0
      %3826 = vmatpush1.msra.mxu0 0.0
      %3827 = vmatprep.subr.mxu0 0.0
      %3828 = vmatpush1.msra.mxu0 0.0
      %3829 = vmatprep.subr.mxu0 0.0
      %3830 = vmatpush1.msra.mxu0 0.0
      %3831 = vmatprep.subr.mxu0 0.0
      %3832 = vmatpush1.msra.mxu0 0.0
      %3833 = vmatprep.subr.mxu0 0.0
      %3834 = vmatpush1.msra.mxu0 0.0
      %3835 = vmatprep.subr.mxu0 0.0
      %3836 = vmatpush1.msra.mxu0 0.0
      %3837 = vmatprep.subr.mxu0 0.0
      %3838 = vmatpush1.msra.mxu0 0.0
      %3839 = vmatprep.subr.mxu0 0.0
      %3840 = vmatpush1.msra.mxu0 0.0
      %3841 = vmatprep.subr.mxu0 0.0
      %3842 = vmatpush1.msra.mxu0 0.0
      %3843 = vmatprep.subr.mxu0 0.0
      %3844 = vmatpush1.msra.mxu0 0.0
      %3845 = vmatprep.subr.mxu0 0.0
      %3846 = vmatpush1.msra.mxu0 0.0
      %3847 = vmatprep.subr.mxu0 0.0
      %3848 = vmatpush1.msra.mxu0 0.0
      %3849 = vmatprep.subr.mxu0 0.0
      %3850 = vmatpush1.msra.mxu0 0.0
      %3851 = vmatprep.subr.mxu0 0.0
      %3852 = vmatpush1.msra.mxu0 0.0
      %3853 = vmatprep.subr.mxu0 0.0
      %3854 = vmatpush1.msra.mxu0 0.0
      %3855 = vmatprep.subr.mxu0 0.0
      %3856 = vmatpush1.msra.mxu0 0.0
      %3857 = vmatprep.subr.mxu0 0.0
      %3858 = vmatpush1.msra.mxu0 0.0
      %3859 = vmatprep.subr.mxu0 0.0
      %3860 = vmatpush1.msra.mxu0 0.0
      %3861 = vmatprep.subr.mxu0 0.0
      %3862 = vmatpush1.msra.mxu0 0.0
      %3863 = vmatprep.subr.mxu0 0.0
      %3864 = vmatpush1.msra.mxu0 0.0
      %3865 = vmatprep.subr.mxu0 0.0
      %3866 = vmatpush1.msra.mxu0 0.0
      %3867 = vmatprep.subr.mxu0 0.0
      %3868 = vmatpush1.msra.mxu0 0.0
      %3869 = vmatprep.subr.mxu0 0.0
      %3870 = vmatpush1.msra.mxu0 0.0
      %3871 = vmatprep.mubr.f32.mxu0 0.0
      %3872 = vmatmul.mubr.f32.gmra.mrb[0].mxu0 %v3805
      %v3873 = vpop.f32.mrb[0].mxu0
      %v3874 = vadd.f32 0.0, %v3873
      %v3875 = vpop.f32.mrb[0].mxu0
      %3876 = vdwg.mxu0
      %3877 = vrot.lane.b32.xlu0 %v352, 48
      %v3878 = vpop.permute.xlu0 %3877
      %v3881 = vsel %vm383, %v3714, 0
      %3883 = vmatprep.subr.mxu0 0.0
      %3884 = vmatpush1.msra.mxu0 %v3878
      %3885 = vmatprep.subr.mxu0 0.0
      %3886 = vmatpush1.msra.mxu0 0.0
      %3887 = vmatprep.subr.mxu0 0.0
      %3888 = vmatpush1.msra.mxu0 0.0
      %3889 = vmatprep.subr.mxu0 0.0
      %3890 = vmatpush1.msra.mxu0 0.0
      %3891 = vmatprep.subr.mxu0 0.0
      %3892 = vmatpush1.msra.mxu0 0.0
      %3893 = vmatprep.subr.mxu0 0.0
      %3894 = vmatpush1.msra.mxu0 0.0
      %3895 = vmatprep.subr.mxu0 0.0
      %3896 = vmatpush1.msra.mxu0 0.0
      %3897 = vmatprep.subr.mxu0 0.0
      %3898 = vmatpush1.msra.mxu0 0.0
      %3899 = vmatprep.subr.mxu0 0.0
      %3900 = vmatpush1.msra.mxu0 0.0
      %3901 = vmatprep.subr.mxu0 0.0
      %3902 = vmatpush1.msra.mxu0 0.0
      %3903 = vmatprep.subr.mxu0 0.0
      %3904 = vmatpush1.msra.mxu0 0.0
      %3905 = vmatprep.subr.mxu0 0.0
      %3906 = vmatpush1.msra.mxu0 0.0
      %3907 = vmatprep.subr.mxu0 0.0
      %3908 = vmatpush1.msra.mxu0 0.0
      %3909 = vmatprep.subr.mxu0 0.0
      %3910 = vmatpush1.msra.mxu0 0.0
      %3911 = vmatprep.subr.mxu0 0.0
      %3912 = vmatpush1.msra.mxu0 0.0
      %3913 = vmatprep.subr.mxu0 0.0
      %3914 = vmatpush1.msra.mxu0 0.0
      %3915 = vmatprep.subr.mxu0 0.0
      %3916 = vmatpush1.msra.mxu0 0.0
      %3917 = vmatprep.subr.mxu0 0.0
      %3918 = vmatpush1.msra.mxu0 0.0
      %3919 = vmatprep.subr.mxu0 0.0
      %3920 = vmatpush1.msra.mxu0 0.0
      %3921 = vmatprep.subr.mxu0 0.0
      %3922 = vmatpush1.msra.mxu0 0.0
      %3923 = vmatprep.subr.mxu0 0.0
      %3924 = vmatpush1.msra.mxu0 0.0
      %3925 = vmatprep.subr.mxu0 0.0
      %3926 = vmatpush1.msra.mxu0 0.0
      %3927 = vmatprep.subr.mxu0 0.0
      %3928 = vmatpush1.msra.mxu0 0.0
      %3929 = vmatprep.subr.mxu0 0.0
      %3930 = vmatpush1.msra.mxu0 0.0
      %3931 = vmatprep.subr.mxu0 0.0
      %3932 = vmatpush1.msra.mxu0 0.0
      %3933 = vmatprep.subr.mxu0 0.0
      %3934 = vmatpush1.msra.mxu0 0.0
      %3935 = vmatprep.subr.mxu0 0.0
      %3936 = vmatpush1.msra.mxu0 0.0
      %3937 = vmatprep.subr.mxu0 0.0
      %3938 = vmatpush1.msra.mxu0 0.0
      %3939 = vmatprep.subr.mxu0 0.0
      %3940 = vmatpush1.msra.mxu0 0.0
      %3941 = vmatprep.subr.mxu0 0.0
      %3942 = vmatpush1.msra.mxu0 0.0
      %3943 = vmatprep.subr.mxu0 0.0
      %3944 = vmatpush1.msra.mxu0 0.0
      %3945 = vmatprep.subr.mxu0 0.0
      %3946 = vmatpush1.msra.mxu0 0.0
      %3947 = vmatprep.mubr.f32.mxu0 0.0
      %3948 = vmatmul.mubr.f32.gmra.mrb[0].mxu0 %v3881
      %v3949 = vpop.f32.mrb[0].mxu0
      %v3950 = vadd.f32 0.0, %v3949
      %v3951 = vpop.f32.mrb[0].mxu0
      %3952 = vdwg.mxu0
      %3953 = vrot.lane.b32.xlu0 %v357, 48
      %v3954 = vpop.permute.xlu0 %3953
      %v3957 = vsel %vm383, %v3716, 0
      %3959 = vmatprep.subr.mxu0 0.0
      %3960 = vmatpush1.msra.mxu0 %v3954
      %3961 = vmatprep.subr.mxu0 0.0
      %3962 = vmatpush1.msra.mxu0 0.0
      %3963 = vmatprep.subr.mxu0 0.0
      %3964 = vmatpush1.msra.mxu0 0.0
      %3965 = vmatprep.subr.mxu0 0.0
      %3966 = vmatpush1.msra.mxu0 0.0
      %3967 = vmatprep.subr.mxu0 0.0
      %3968 = vmatpush1.msra.mxu0 0.0
      %3969 = vmatprep.subr.mxu0 0.0
      %3970 = vmatpush1.msra.mxu0 0.0
      %3971 = vmatprep.subr.mxu0 0.0
      %3972 = vmatpush1.msra.mxu0 0.0
      %3973 = vmatprep.subr.mxu0 0.0
      %3974 = vmatpush1.msra.mxu0 0.0
      %3975 = vmatprep.subr.mxu0 0.0
      %3976 = vmatpush1.msra.mxu0 0.0
      %3977 = vmatprep.subr.mxu0 0.0
      %3978 = vmatpush1.msra.mxu0 0.0
      %3979 = vmatprep.subr.mxu0 0.0
      %3980 = vmatpush1.msra.mxu0 0.0
      %3981 = vmatprep.subr.mxu0 0.0
      %3982 = vmatpush1.msra.mxu0 0.0
      %3983 = vmatprep.subr.mxu0 0.0
      %3984 = vmatpush1.msra.mxu0 0.0
      %3985 = vmatprep.subr.mxu0 0.0
      %3986 = vmatpush1.msra.mxu0 0.0
      %3987 = vmatprep.subr.mxu0 0.0
      %3988 = vmatpush1.msra.mxu0 0.0
      %3989 = vmatprep.subr.mxu0 0.0
      %3990 = vmatpush1.msra.mxu0 0.0
      %3991 = vmatprep.subr.mxu0 0.0
      %3992 = vmatpush1.msra.mxu0 0.0
      %3993 = vmatprep.subr.mxu0 0.0
      %3994 = vmatpush1.msra.mxu0 0.0
      %3995 = vmatprep.subr.mxu0 0.0
      %3996 = vmatpush1.msra.mxu0 0.0
      %3997 = vmatprep.subr.mxu0 0.0
      %3998 = vmatpush1.msra.mxu0 0.0
      %3999 = vmatprep.subr.mxu0 0.0
      %4000 = vmatpush1.msra.mxu0 0.0
      %4001 = vmatprep.subr.mxu0 0.0
      %4002 = vmatpush1.msra.mxu0 0.0
      %4003 = vmatprep.subr.mxu0 0.0
      %4004 = vmatpush1.msra.mxu0 0.0
      %4005 = vmatprep.subr.mxu0 0.0
      %4006 = vmatpush1.msra.mxu0 0.0
      %4007 = vmatprep.subr.mxu0 0.0
      %4008 = vmatpush1.msra.mxu0 0.0
      %4009 = vmatprep.subr.mxu0 0.0
      %4010 = vmatpush1.msra.mxu0 0.0
      %4011 = vmatprep.subr.mxu0 0.0
      %4012 = vmatpush1.msra.mxu0 0.0
      %4013 = vmatprep.subr.mxu0 0.0
      %4014 = vmatpush1.msra.mxu0 0.0
      %4015 = vmatprep.subr.mxu0 0.0
      %4016 = vmatpush1.msra.mxu0 0.0
      %4017 = vmatprep.subr.mxu0 0.0
      %4018 = vmatpush1.msra.mxu0 0.0
      %4019 = vmatprep.subr.mxu0 0.0
      %4020 = vmatpush1.msra.mxu0 0.0
      %4021 = vmatprep.subr.mxu0 0.0
      %4022 = vmatpush1.msra.mxu0 0.0
      %4023 = vmatprep.mubr.f32.mxu0 0.0
      %4024 = vmatmul.mubr.f32.gmra.mrb[0].mxu0 %v3957
      %v4025 = vpop.f32.mrb[0].mxu0
      %v4026 = vadd.f32 0.0, %v4025
      %v4027 = vpop.f32.mrb[0].mxu0
      %4028 = vdwg.mxu0
      %4029 = vrot.lane.b32.xlu0 %v362, 48
      %v4030 = vpop.permute.xlu0 %4029
      %v4033 = vsel %vm383, %v3718, 0
      %4035 = vmatprep.subr.mxu0 0.0
      %4036 = vmatpush1.msra.mxu0 %v4030
      %4037 = vmatprep.subr.mxu0 0.0
      %4038 = vmatpush1.msra.mxu0 0.0
      %4039 = vmatprep.subr.mxu0 0.0
      %4040 = vmatpush1.msra.mxu0 0.0
      %4041 = vmatprep.subr.mxu0 0.0
      %4042 = vmatpush1.msra.mxu0 0.0
      %4043 = vmatprep.subr.mxu0 0.0
      %4044 = vmatpush1.msra.mxu0 0.0
      %4045 = vmatprep.subr.mxu0 0.0
      %4046 = vmatpush1.msra.mxu0 0.0
      %4047 = vmatprep.subr.mxu0 0.0
      %4048 = vmatpush1.msra.mxu0 0.0
      %4049 = vmatprep.subr.mxu0 0.0
      %4050 = vmatpush1.msra.mxu0 0.0
      %4051 = vmatprep.subr.mxu0 0.0
      %4052 = vmatpush1.msra.mxu0 0.0
      %4053 = vmatprep.subr.mxu0 0.0
      %4054 = vmatpush1.msra.mxu0 0.0
      %4055 = vmatprep.subr.mxu0 0.0
      %4056 = vmatpush1.msra.mxu0 0.0
      %4057 = vmatprep.subr.mxu0 0.0
      %4058 = vmatpush1.msra.mxu0 0.0
      %4059 = vmatprep.subr.mxu0 0.0
      %4060 = vmatpush1.msra.mxu0 0.0
      %4061 = vmatprep.subr.mxu0 0.0
      %4062 = vmatpush1.msra.mxu0 0.0
      %4063 = vmatprep.subr.mxu0 0.0
      %4064 = vmatpush1.msra.mxu0 0.0
      %4065 = vmatprep.subr.mxu0 0.0
      %4066 = vmatpush1.msra.mxu0 0.0
      %4067 = vmatprep.subr.mxu0 0.0
      %4068 = vmatpush1.msra.mxu0 0.0
      %4069 = vmatprep.subr.mxu0 0.0
      %4070 = vmatpush1.msra.mxu0 0.0
      %4071 = vmatprep.subr.mxu0 0.0
      %4072 = vmatpush1.msra.mxu0 0.0
      %4073 = vmatprep.subr.mxu0 0.0
      %4074 = vmatpush1.msra.mxu0 0.0
      %4075 = vmatprep.subr.mxu0 0.0
      %4076 = vmatpush1.msra.mxu0 0.0
      %4077 = vmatprep.subr.mxu0 0.0
      %4078 = vmatpush1.msra.mxu0 0.0
      %4079 = vmatprep.subr.mxu0 0.0
      %4080 = vmatpush1.msra.mxu0 0.0
      %4081 = vmatprep.subr.mxu0 0.0
      %4082 = vmatpush1.msra.mxu0 0.0
      %4083 = vmatprep.subr.mxu0 0.0
      %4084 = vmatpush1.msra.mxu0 0.0
      %4085 = vmatprep.subr.mxu0 0.0
      %4086 = vmatpush1.msra.mxu0 0.0
      %4087 = vmatprep.subr.mxu0 0.0
      %4088 = vmatpush1.msra.mxu0 0.0
      %4089 = vmatprep.subr.mxu0 0.0
      %4090 = vmatpush1.msra.mxu0 0.0
      %4091 = vmatprep.subr.mxu0 0.0
      %4092 = vmatpush1.msra.mxu0 0.0
      %4093 = vmatprep.subr.mxu0 0.0
      %4094 = vmatpush1.msra.mxu0 0.0
      %4095 = vmatprep.subr.mxu0 0.0
      %4096 = vmatpush1.msra.mxu0 0.0
      %4097 = vmatprep.subr.mxu0 0.0
      %4098 = vmatpush1.msra.mxu0 0.0
      %4099 = vmatprep.mubr.f32.mxu0 0.0
      %4100 = vmatmul.mubr.f32.gmra.mrb[0].mxu0 %v4033
      %v4101 = vpop.f32.mrb[0].mxu0
      %v4102 = vadd.f32 0.0, %v4101
      %v4103 = vpop.f32.mrb[0].mxu0
      %4104 = vdwg.mxu0
      %4105 = vrot.lane.b32.xlu0 %v367, 48
      %v4106 = vpop.permute.xlu0 %4105
      %v4109 = vsel %vm383, %v3720, 0
      %4111 = vmatprep.subr.mxu0 0.0
      %4112 = vmatpush1.msra.mxu0 %v4106
      %4113 = vmatprep.subr.mxu0 0.0
      %4114 = vmatpush1.msra.mxu0 0.0
      %4115 = vmatprep.subr.mxu0 0.0
      %4116 = vmatpush1.msra.mxu0 0.0
      %4117 = vmatprep.subr.mxu0 0.0
      %4118 = vmatpush1.msra.mxu0 0.0
      %4119 = vmatprep.subr.mxu0 0.0
      %4120 = vmatpush1.msra.mxu0 0.0
      %4121 = vmatprep.subr.mxu0 0.0
      %4122 = vmatpush1.msra.mxu0 0.0
      %4123 = vmatprep.subr.mxu0 0.0
      %4124 = vmatpush1.msra.mxu0 0.0
      %4125 = vmatprep.subr.mxu0 0.0
      %4126 = vmatpush1.msra.mxu0 0.0
      %4127 = vmatprep.subr.mxu0 0.0
      %4128 = vmatpush1.msra.mxu0 0.0
      %4129 = vmatprep.subr.mxu0 0.0
      %4130 = vmatpush1.msra.mxu0 0.0
      %4131 = vmatprep.subr.mxu0 0.0
      %4132 = vmatpush1.msra.mxu0 0.0
      %4133 = vmatprep.subr.mxu0 0.0
      %4134 = vmatpush1.msra.mxu0 0.0
      %4135 = vmatprep.subr.mxu0 0.0
      %4136 = vmatpush1.msra.mxu0 0.0
      %4137 = vmatprep.subr.mxu0 0.0
      %4138 = vmatpush1.msra.mxu0 0.0
      %4139 = vmatprep.subr.mxu0 0.0
      %4140 = vmatpush1.msra.mxu0 0.0
      %4141 = vmatprep.subr.mxu0 0.0
      %4142 = vmatpush1.msra.mxu0 0.0
      %4143 = vmatprep.subr.mxu0 0.0
      %4144 = vmatpush1.msra.mxu0 0.0
      %4145 = vmatprep.subr.mxu0 0.0
      %4146 = vmatpush1.msra.mxu0 0.0
      %4147 = vmatprep.subr.mxu0 0.0
      %4148 = vmatpush1.msra.mxu0 0.0
      %4149 = vmatprep.subr.mxu0 0.0
      %4150 = vmatpush1.msra.mxu0 0.0
      %4151 = vmatprep.subr.mxu0 0.0
      %4152 = vmatpush1.msra.mxu0 0.0
      %4153 = vmatprep.subr.mxu0 0.0
      %4154 = vmatpush1.msra.mxu0 0.0
      %4155 = vmatprep.subr.mxu0 0.0
      %4156 = vmatpush1.msra.mxu0 0.0
      %4157 = vmatprep.subr.mxu0 0.0
      %4158 = vmatpush1.msra.mxu0 0.0
      %4159 = vmatprep.subr.mxu0 0.0
      %4160 = vmatpush1.msra.mxu0 0.0
      %4161 = vmatprep.subr.mxu0 0.0
      %4162 = vmatpush1.msra.mxu0 0.0
      %4163 = vmatprep.subr.mxu0 0.0
      %4164 = vmatpush1.msra.mxu0 0.0
      %4165 = vmatprep.subr.mxu0 0.0
      %4166 = vmatpush1.msra.mxu0 0.0
      %4167 = vmatprep.subr.mxu0 0.0
      %4168 = vmatpush1.msra.mxu0 0.0
      %4169 = vmatprep.subr.mxu0 0.0
      %4170 = vmatpush1.msra.mxu0 0.0
      %4171 = vmatprep.subr.mxu0 0.0
      %4172 = vmatpush1.msra.mxu0 0.0
      %4173 = vmatprep.subr.mxu0 0.0
      %4174 = vmatpush1.msra.mxu0 0.0
      %4175 = vmatprep.mubr.f32.mxu0 0.0
      %4176 = vmatmul.mubr.f32.gmra.mrb[0].mxu0 %v4109
      %v4177 = vpop.f32.mrb[0].mxu0
      %v4178 = vadd.f32 0.0, %v4177
      %v4179 = vpop.f32.mrb[0].mxu0
      %4180 = vdwg.mxu0
      %4181 = vrot.lane.b32.xlu0 %v372, 48
      %v4182 = vpop.permute.xlu0 %4181
      %v4185 = vsel %vm383, %v3722, 0
      %4187 = vmatprep.subr.mxu0 0.0
      %4188 = vmatpush1.msra.mxu0 %v4182
      %4189 = vmatprep.subr.mxu0 0.0
      %4190 = vmatpush1.msra.mxu0 0.0
      %4191 = vmatprep.subr.mxu0 0.0
      %4192 = vmatpush1.msra.mxu0 0.0
      %4193 = vmatprep.subr.mxu0 0.0
      %4194 = vmatpush1.msra.mxu0 0.0
      %4195 = vmatprep.subr.mxu0 0.0
      %4196 = vmatpush1.msra.mxu0 0.0
      %4197 = vmatprep.subr.mxu0 0.0
      %4198 = vmatpush1.msra.mxu0 0.0
      %4199 = vmatprep.subr.mxu0 0.0
      %4200 = vmatpush1.msra.mxu0 0.0
      %4201 = vmatprep.subr.mxu0 0.0
      %4202 = vmatpush1.msra.mxu0 0.0
      %4203 = vmatprep.subr.mxu0 0.0
      %4204 = vmatpush1.msra.mxu0 0.0
      %4205 = vmatprep.subr.mxu0 0.0
      %4206 = vmatpush1.msra.mxu0 0.0
      %4207 = vmatprep.subr.mxu0 0.0
      %4208 = vmatpush1.msra.mxu0 0.0
      %4209 = vmatprep.subr.mxu0 0.0
      %4210 = vmatpush1.msra.mxu0 0.0
      %4211 = vmatprep.subr.mxu0 0.0
      %4212 = vmatpush1.msra.mxu0 0.0
      %4213 = vmatprep.subr.mxu0 0.0
      %4214 = vmatpush1.msra.mxu0 0.0
      %4215 = vmatprep.subr.mxu0 0.0
      %4216 = vmatpush1.msra.mxu0 0.0
      %4217 = vmatprep.subr.mxu0 0.0
      %4218 = vmatpush1.msra.mxu0 0.0
      %4219 = vmatprep.subr.mxu0 0.0
      %4220 = vmatpush1.msra.mxu0 0.0
      %4221 = vmatprep.subr.mxu0 0.0
      %4222 = vmatpush1.msra.mxu0 0.0
      %4223 = vmatprep.subr.mxu0 0.0
      %4224 = vmatpush1.msra.mxu0 0.0
      %4225 = vmatprep.subr.mxu0 0.0
      %4226 = vmatpush1.msra.mxu0 0.0
      %4227 = vmatprep.subr.mxu0 0.0
      %4228 = vmatpush1.msra.mxu0 0.0
      %4229 = vmatprep.subr.mxu0 0.0
      %4230 = vmatpush1.msra.mxu0 0.0
      %4231 = vmatprep.subr.mxu0 0.0
      %4232 = vmatpush1.msra.mxu0 0.0
      %4233 = vmatprep.subr.mxu0 0.0
      %4234 = vmatpush1.msra.mxu0 0.0
      %4235 = vmatprep.subr.mxu0 0.0
      %4236 = vmatpush1.msra.mxu0 0.0
      %4237 = vmatprep.subr.mxu0 0.0
      %4238 = vmatpush1.msra.mxu0 0.0
      %4239 = vmatprep.subr.mxu0 0.0
      %4240 = vmatpush1.msra.mxu0 0.0
      %4241 = vmatprep.subr.mxu0 0.0
      %4242 = vmatpush1.msra.mxu0 0.0
      %4243 = vmatprep.subr.mxu0 0.0
      %4244 = vmatpush1.msra.mxu0 0.0
      %4245 = vmatprep.subr.mxu0 0.0
      %4246 = vmatpush1.msra.mxu0 0.0
      %4247 = vmatprep.subr.mxu0 0.0
      %4248 = vmatpush1.msra.mxu0 0.0
      %4249 = vmatprep.subr.mxu0 0.0
      %4250 = vmatpush1.msra.mxu0 0.0
      %4251 = vmatprep.mubr.f32.mxu0 0.0
      %4252 = vmatmul.mubr.f32.gmra.mrb[0].mxu0 %v4185
      %v4253 = vpop.f32.mrb[0].mxu0
      %v4254 = vadd.f32 0.0, %v4253
      %v4255 = vpop.f32.mrb[0].mxu0
      %4256 = vdwg.mxu0
      %4257 = vrot.lane.b32.xlu0 %v377, 48
      %v4258 = vpop.permute.xlu0 %4257
      %v4261 = vsel %vm383, %v3724, 0
      %4263 = vmatprep.subr.mxu0 0.0
      %4264 = vmatpush1.msra.mxu0 %v4258
      %4265 = vmatprep.subr.mxu0 0.0
      %4266 = vmatpush1.msra.mxu0 0.0
      %4267 = vmatprep.subr.mxu0 0.0
      %4268 = vmatpush1.msra.mxu0 0.0
      %4269 = vmatprep.subr.mxu0 0.0
      %4270 = vmatpush1.msra.mxu0 0.0
      %4271 = vmatprep.subr.mxu0 0.0
      %4272 = vmatpush1.msra.mxu0 0.0
      %4273 = vmatprep.subr.mxu0 0.0
      %4274 = vmatpush1.msra.mxu0 0.0
      %4275 = vmatprep.subr.mxu0 0.0
      %4276 = vmatpush1.msra.mxu0 0.0
      %4277 = vmatprep.subr.mxu0 0.0
      %4278 = vmatpush1.msra.mxu0 0.0
      %4279 = vmatprep.subr.mxu0 0.0
      %4280 = vmatpush1.msra.mxu0 0.0
      %4281 = vmatprep.subr.mxu0 0.0
      %4282 = vmatpush1.msra.mxu0 0.0
      %4283 = vmatprep.subr.mxu0 0.0
      %4284 = vmatpush1.msra.mxu0 0.0
      %4285 = vmatprep.subr.mxu0 0.0
      %4286 = vmatpush1.msra.mxu0 0.0
      %4287 = vmatprep.subr.mxu0 0.0
      %4288 = vmatpush1.msra.mxu0 0.0
      %4289 = vmatprep.subr.mxu0 0.0
      %4290 = vmatpush1.msra.mxu0 0.0
      %4291 = vmatprep.subr.mxu0 0.0
      %4292 = vmatpush1.msra.mxu0 0.0
      %4293 = vmatprep.subr.mxu0 0.0
      %4294 = vmatpush1.msra.mxu0 0.0
      %4295 = vmatprep.subr.mxu0 0.0
      %4296 = vmatpush1.msra.mxu0 0.0
      %4297 = vmatprep.subr.mxu0 0.0
      %4298 = vmatpush1.msra.mxu0 0.0
      %4299 = vmatprep.subr.mxu0 0.0
      %4300 = vmatpush1.msra.mxu0 0.0
      %4301 = vmatprep.subr.mxu0 0.0
      %4302 = vmatpush1.msra.mxu0 0.0
      %4303 = vmatprep.subr.mxu0 0.0
      %4304 = vmatpush1.msra.mxu0 0.0
      %4305 = vmatprep.subr.mxu0 0.0
      %4306 = vmatpush1.msra.mxu0 0.0
      %4307 = vmatprep.subr.mxu0 0.0
      %4308 = vmatpush1.msra.mxu0 0.0
      %4309 = vmatprep.subr.mxu0 0.0
      %4310 = vmatpush1.msra.mxu0 0.0
      %4311 = vmatprep.subr.mxu0 0.0
      %4312 = vmatpush1.msra.mxu0 0.0
      %4313 = vmatprep.subr.mxu0 0.0
      %4314 = vmatpush1.msra.mxu0 0.0
      %4315 = vmatprep.subr.mxu0 0.0
      %4316 = vmatpush1.msra.mxu0 0.0
      %4317 = vmatprep.subr.mxu0 0.0
      %4318 = vmatpush1.msra.mxu0 0.0
      %4319 = vmatprep.subr.mxu0 0.0
      %4320 = vmatpush1.msra.mxu0 0.0
      %4321 = vmatprep.subr.mxu0 0.0
      %4322 = vmatpush1.msra.mxu0 0.0
      %4323 = vmatprep.subr.mxu0 0.0
      %4324 = vmatpush1.msra.mxu0 0.0
      %4325 = vmatprep.subr.mxu0 0.0
      %4326 = vmatpush1.msra.mxu0 0.0
      %4327 = vmatprep.mubr.f32.mxu0 0.0
      %4328 = vmatmul.mubr.f32.gmra.mrb[0].mxu0 %v4261
      %v4329 = vpop.f32.mrb[0].mxu0
      %v4330 = vadd.f32 0.0, %v4329
      %v4331 = vpop.f32.mrb[0].mxu0
      %4332 = vdwg.mxu0
      %4333 = vrot.lane.b32.xlu0 %v342, 104
      %v4334 = vpop.permute.xlu0 %4333
      %4335 = vrot.lane.b32.xlu0 %v342, 72
      %v4336 = vpop.permute.xlu0 %4335
      %v4337 = vsel %vm383, %v4334, 0
      %v4339 = vsel %vm383, %v4336, 0
      %4341 = vmatprep.subr.mxu0 0.0
      %4342 = vmatpush1.xpose.msra.mxu0 %v4339
      %4343 = vmatprep.subr.mxu0 0.0
      %4344 = vmatpush1.xpose.msra.mxu0 0.0
      %4345 = vmatprep.subr.mxu0 0.0
      %4346 = vmatpush1.xpose.msra.mxu0 0.0
      %4347 = vmatprep.subr.mxu0 0.0
      %4348 = vmatpush1.xpose.msra.mxu0 0.0
      %4349 = vmatprep.subr.mxu0 0.0
      %4350 = vmatpush1.xpose.msra.mxu0 0.0
      %4351 = vmatprep.subr.mxu0 0.0
      %4352 = vmatpush1.xpose.msra.mxu0 0.0
      %4353 = vmatprep.subr.mxu0 0.0
      %4354 = vmatpush1.xpose.msra.mxu0 0.0
      %4355 = vmatprep.subr.mxu0 0.0
      %4356 = vmatpush1.xpose.msra.mxu0 0.0
      %4357 = vmatprep.subr.mxu0 0.0
      %4358 = vmatpush1.xpose.msra.mxu0 0.0
      %4359 = vmatprep.subr.mxu0 0.0
      %4360 = vmatpush1.xpose.msra.mxu0 0.0
      %4361 = vmatprep.subr.mxu0 0.0
      %4362 = vmatpush1.xpose.msra.mxu0 0.0
      %4363 = vmatprep.subr.mxu0 0.0
      %4364 = vmatpush1.xpose.msra.mxu0 0.0
      %4365 = vmatprep.subr.mxu0 0.0
      %4366 = vmatpush1.xpose.msra.mxu0 0.0
      %4367 = vmatprep.subr.mxu0 0.0
      %4368 = vmatpush1.xpose.msra.mxu0 0.0
      %4369 = vmatprep.subr.mxu0 0.0
      %4370 = vmatpush1.xpose.msra.mxu0 0.0
      %4371 = vmatprep.subr.mxu0 0.0
      %4372 = vmatpush1.xpose.msra.mxu0 0.0
      %4373 = vmatprep.subr.mxu0 0.0
      %4374 = vmatpush1.xpose.msra.mxu0 0.0
      %4375 = vmatprep.subr.mxu0 0.0
      %4376 = vmatpush1.xpose.msra.mxu0 0.0
      %4377 = vmatprep.subr.mxu0 0.0
      %4378 = vmatpush1.xpose.msra.mxu0 0.0
      %4379 = vmatprep.subr.mxu0 0.0
      %4380 = vmatpush1.xpose.msra.mxu0 0.0
      %4381 = vmatprep.subr.mxu0 0.0
      %4382 = vmatpush1.xpose.msra.mxu0 0.0
      %4383 = vmatprep.subr.mxu0 0.0
      %4384 = vmatpush1.xpose.msra.mxu0 0.0
      %4385 = vmatprep.subr.mxu0 0.0
      %4386 = vmatpush1.xpose.msra.mxu0 0.0
      %4387 = vmatprep.subr.mxu0 0.0
      %4388 = vmatpush1.xpose.msra.mxu0 0.0
      %4389 = vmatprep.subr.mxu0 0.0
      %4390 = vmatpush1.xpose.msra.mxu0 0.0
      %4391 = vmatprep.subr.mxu0 0.0
      %4392 = vmatpush1.xpose.msra.mxu0 0.0
      %4393 = vmatprep.subr.mxu0 0.0
      %4394 = vmatpush1.xpose.msra.mxu0 0.0
      %4395 = vmatprep.subr.mxu0 0.0
      %4396 = vmatpush1.xpose.msra.mxu0 0.0
      %4397 = vmatprep.subr.mxu0 0.0
      %4398 = vmatpush1.xpose.msra.mxu0 0.0
      %4399 = vmatprep.subr.mxu0 0.0
      %4400 = vmatpush1.xpose.msra.mxu0 0.0
      %4401 = vmatprep.subr.mxu0 0.0
      %4402 = vmatpush1.xpose.msra.mxu0 0.0
      %4403 = vmatprep.subr.mxu0 0.0
      %4404 = vmatpush1.xpose.msra.mxu0 0.0
      %4405 = vmatprep.mubr.f32.mxu0 0.0
      %4406 = vmatmul.mubr.f32.gmra.mrb[0].mxu0 %v4337
      %v4407 = vpop.f32.mrb[0].mxu0
      %v4408 = vadd.f32 0.0, %v4407
      %v4409 = vpop.f32.mrb[0].mxu0
      %4410 = vdwg.mxu0
      %4411 = vrot.lane.b32.xlu0 %v347, 104
      %v4412 = vpop.permute.xlu0 %4411
      %4413 = vrot.lane.b32.xlu0 %v347, 72
      %v4414 = vpop.permute.xlu0 %4413
      %v4415 = vsel %vm383, %v4412, 0
      %v4417 = vsel %vm383, %v4414, 0
      %4419 = vmatprep.subr.mxu0 0.0
      %4420 = vmatpush1.xpose.msra.mxu0 %v4417
      %4421 = vmatprep.subr.mxu0 0.0
      %4422 = vmatpush1.xpose.msra.mxu0 0.0
      %4423 = vmatprep.subr.mxu0 0.0
      %4424 = vmatpush1.xpose.msra.mxu0 0.0
      %4425 = vmatprep.subr.mxu0 0.0
      %4426 = vmatpush1.xpose.msra.mxu0 0.0
      %4427 = vmatprep.subr.mxu0 0.0
      %4428 = vmatpush1.xpose.msra.mxu0 0.0
      %4429 = vmatprep.subr.mxu0 0.0
      %4430 = vmatpush1.xpose.msra.mxu0 0.0
      %4431 = vmatprep.subr.mxu0 0.0
      %4432 = vmatpush1.xpose.msra.mxu0 0.0
      %4433 = vmatprep.subr.mxu0 0.0
      %4434 = vmatpush1.xpose.msra.mxu0 0.0
      %4435 = vmatprep.subr.mxu0 0.0
      %4436 = vmatpush1.xpose.msra.mxu0 0.0
      %4437 = vmatprep.subr.mxu0 0.0
      %4438 = vmatpush1.xpose.msra.mxu0 0.0
      %4439 = vmatprep.subr.mxu0 0.0
      %4440 = vmatpush1.xpose.msra.mxu0 0.0
      %4441 = vmatprep.subr.mxu0 0.0
      %4442 = vmatpush1.xpose.msra.mxu0 0.0
      %4443 = vmatprep.subr.mxu0 0.0
      %4444 = vmatpush1.xpose.msra.mxu0 0.0
      %4445 = vmatprep.subr.mxu0 0.0
      %4446 = vmatpush1.xpose.msra.mxu0 0.0
      %4447 = vmatprep.subr.mxu0 0.0
      %4448 = vmatpush1.xpose.msra.mxu0 0.0
      %4449 = vmatprep.subr.mxu0 0.0
      %4450 = vmatpush1.xpose.msra.mxu0 0.0
      %4451 = vmatprep.subr.mxu0 0.0
      %4452 = vmatpush1.xpose.msra.mxu0 0.0
      %4453 = vmatprep.subr.mxu0 0.0
      %4454 = vmatpush1.xpose.msra.mxu0 0.0
      %4455 = vmatprep.subr.mxu0 0.0
      %4456 = vmatpush1.xpose.msra.mxu0 0.0
      %4457 = vmatprep.subr.mxu0 0.0
      %4458 = vmatpush1.xpose.msra.mxu0 0.0
      %4459 = vmatprep.subr.mxu0 0.0
      %4460 = vmatpush1.xpose.msra.mxu0 0.0
      %4461 = vmatprep.subr.mxu0 0.0
      %4462 = vmatpush1.xpose.msra.mxu0 0.0
      %4463 = vmatprep.subr.mxu0 0.0
      %4464 = vmatpush1.xpose.msra.mxu0 0.0
      %4465 = vmatprep.subr.mxu0 0.0
      %4466 = vmatpush1.xpose.msra.mxu0 0.0
      %4467 = vmatprep.subr.mxu0 0.0
      %4468 = vmatpush1.xpose.msra.mxu0 0.0
      %4469 = vmatprep.subr.mxu0 0.0
      %4470 = vmatpush1.xpose.msra.mxu0 0.0
      %4471 = vmatprep.subr.mxu0 0.0
      %4472 = vmatpush1.xpose.msra.mxu0 0.0
      %4473 = vmatprep.subr.mxu0 0.0
      %4474 = vmatpush1.xpose.msra.mxu0 0.0
      %4475 = vmatprep.subr.mxu0 0.0
      %4476 = vmatpush1.xpose.msra.mxu0 0.0
      %4477 = vmatprep.subr.mxu0 0.0
      %4478 = vmatpush1.xpose.msra.mxu0 0.0
      %4479 = vmatprep.subr.mxu0 0.0
      %4480 = vmatpush1.xpose.msra.mxu0 0.0
      %4481 = vmatprep.subr.mxu0 0.0
      %4482 = vmatpush1.xpose.msra.mxu0 0.0
      %4483 = vmatprep.mubr.f32.mxu0 0.0
      %4484 = vmatmul.mubr.f32.gmra.mrb[0].mxu0 %v4415
      %v4485 = vpop.f32.mrb[0].mxu0
      %v4486 = vadd.f32 0.0, %v4485
      %v4487 = vpop.f32.mrb[0].mxu0
      %4488 = vdwg.mxu0
      %4489 = vrot.lane.b32.xlu0 %v352, 104
      %v4490 = vpop.permute.xlu0 %4489
      %4491 = vrot.lane.b32.xlu0 %v352, 72
      %v4492 = vpop.permute.xlu0 %4491
      %v4493 = vsel %vm383, %v4490, 0
      %v4495 = vsel %vm383, %v4492, 0
      %4497 = vmatprep.subr.mxu0 0.0
      %4498 = vmatpush1.xpose.msra.mxu0 %v4495
      %4499 = vmatprep.subr.mxu0 0.0
      %4500 = vmatpush1.xpose.msra.mxu0 0.0
      %4501 = vmatprep.subr.mxu0 0.0
      %4502 = vmatpush1.xpose.msra.mxu0 0.0
      %4503 = vmatprep.subr.mxu0 0.0
      %4504 = vmatpush1.xpose.msra.mxu0 0.0
      %4505 = vmatprep.subr.mxu0 0.0
      %4506 = vmatpush1.xpose.msra.mxu0 0.0
      %4507 = vmatprep.subr.mxu0 0.0
      %4508 = vmatpush1.xpose.msra.mxu0 0.0
      %4509 = vmatprep.subr.mxu0 0.0
      %4510 = vmatpush1.xpose.msra.mxu0 0.0
      %4511 = vmatprep.subr.mxu0 0.0
      %4512 = vmatpush1.xpose.msra.mxu0 0.0
      %4513 = vmatprep.subr.mxu0 0.0
      %4514 = vmatpush1.xpose.msra.mxu0 0.0
      %4515 = vmatprep.subr.mxu0 0.0
      %4516 = vmatpush1.xpose.msra.mxu0 0.0
      %4517 = vmatprep.subr.mxu0 0.0
      %4518 = vmatpush1.xpose.msra.mxu0 0.0
      %4519 = vmatprep.subr.mxu0 0.0
      %4520 = vmatpush1.xpose.msra.mxu0 0.0
      %4521 = vmatprep.subr.mxu0 0.0
      %4522 = vmatpush1.xpose.msra.mxu0 0.0
      %4523 = vmatprep.subr.mxu0 0.0
      %4524 = vmatpush1.xpose.msra.mxu0 0.0
      %4525 = vmatprep.subr.mxu0 0.0
      %4526 = vmatpush1.xpose.msra.mxu0 0.0
      %4527 = vmatprep.subr.mxu0 0.0
      %4528 = vmatpush1.xpose.msra.mxu0 0.0
      %4529 = vmatprep.subr.mxu0 0.0
      %4530 = vmatpush1.xpose.msra.mxu0 0.0
      %4531 = vmatprep.subr.mxu0 0.0
      %4532 = vmatpush1.xpose.msra.mxu0 0.0
      %4533 = vmatprep.subr.mxu0 0.0
      %4534 = vmatpush1.xpose.msra.mxu0 0.0
      %4535 = vmatprep.subr.mxu0 0.0
      %4536 = vmatpush1.xpose.msra.mxu0 0.0
      %4537 = vmatprep.subr.mxu0 0.0
      %4538 = vmatpush1.xpose.msra.mxu0 0.0
      %4539 = vmatprep.subr.mxu0 0.0
      %4540 = vmatpush1.xpose.msra.mxu0 0.0
      %4541 = vmatprep.subr.mxu0 0.0
      %4542 = vmatpush1.xpose.msra.mxu0 0.0
      %4543 = vmatprep.subr.mxu0 0.0
      %4544 = vmatpush1.xpose.msra.mxu0 0.0
      %4545 = vmatprep.subr.mxu0 0.0
      %4546 = vmatpush1.xpose.msra.mxu0 0.0
      %4547 = vmatprep.subr.mxu0 0.0
      %4548 = vmatpush1.xpose.msra.mxu0 0.0
      %4549 = vmatprep.subr.mxu0 0.0
      %4550 = vmatpush1.xpose.msra.mxu0 0.0
      %4551 = vmatprep.subr.mxu0 0.0
      %4552 = vmatpush1.xpose.msra.mxu0 0.0
      %4553 = vmatprep.subr.mxu0 0.0
      %4554 = vmatpush1.xpose.msra.mxu0 0.0
      %4555 = vmatprep.subr.mxu0 0.0
      %4556 = vmatpush1.xpose.msra.mxu0 0.0
      %4557 = vmatprep.subr.mxu0 0.0
      %4558 = vmatpush1.xpose.msra.mxu0 0.0
      %4559 = vmatprep.subr.mxu0 0.0
      %4560 = vmatpush1.xpose.msra.mxu0 0.0
      %4561 = vmatprep.mubr.f32.mxu0 0.0
      %4562 = vmatmul.mubr.f32.gmra.mrb[0].mxu0 %v4493
      %v4563 = vpop.f32.mrb[0].mxu0
      %v4564 = vadd.f32 0.0, %v4563
      %v4565 = vpop.f32.mrb[0].mxu0
      %4566 = vdwg.mxu0
      %4567 = vrot.lane.b32.xlu0 %v357, 104
      %v4568 = vpop.permute.xlu0 %4567
      %4569 = vrot.lane.b32.xlu0 %v357, 72
      %v4570 = vpop.permute.xlu0 %4569
      %v4571 = vsel %vm383, %v4568, 0
      %v4573 = vsel %vm383, %v4570, 0
      %4575 = vmatprep.subr.mxu0 0.0
      %4576 = vmatpush1.xpose.msra.mxu0 %v4573
      %4577 = vmatprep.subr.mxu0 0.0
      %4578 = vmatpush1.xpose.msra.mxu0 0.0
      %4579 = vmatprep.subr.mxu0 0.0
      %4580 = vmatpush1.xpose.msra.mxu0 0.0
      %4581 = vmatprep.subr.mxu0 0.0
      %4582 = vmatpush1.xpose.msra.mxu0 0.0
      %4583 = vmatprep.subr.mxu0 0.0
      %4584 = vmatpush1.xpose.msra.mxu0 0.0
      %4585 = vmatprep.subr.mxu0 0.0
      %4586 = vmatpush1.xpose.msra.mxu0 0.0
      %4587 = vmatprep.subr.mxu0 0.0
      %4588 = vmatpush1.xpose.msra.mxu0 0.0
      %4589 = vmatprep.subr.mxu0 0.0
      %4590 = vmatpush1.xpose.msra.mxu0 0.0
      %4591 = vmatprep.subr.mxu0 0.0
      %4592 = vmatpush1.xpose.msra.mxu0 0.0
      %4593 = vmatprep.subr.mxu0 0.0
      %4594 = vmatpush1.xpose.msra.mxu0 0.0
      %4595 = vmatprep.subr.mxu0 0.0
      %4596 = vmatpush1.xpose.msra.mxu0 0.0
      %4597 = vmatprep.subr.mxu0 0.0
      %4598 = vmatpush1.xpose.msra.mxu0 0.0
      %4599 = vmatprep.subr.mxu0 0.0
      %4600 = vmatpush1.xpose.msra.mxu0 0.0
      %4601 = vmatprep.subr.mxu0 0.0
      %4602 = vmatpush1.xpose.msra.mxu0 0.0
      %4603 = vmatprep.subr.mxu0 0.0
      %4604 = vmatpush1.xpose.msra.mxu0 0.0
      %4605 = vmatprep.subr.mxu0 0.0
      %4606 = vmatpush1.xpose.msra.mxu0 0.0
      %4607 = vmatprep.subr.mxu0 0.0
      %4608 = vmatpush1.xpose.msra.mxu0 0.0
      %4609 = vmatprep.subr.mxu0 0.0
      %4610 = vmatpush1.xpose.msra.mxu0 0.0
      %4611 = vmatprep.subr.mxu0 0.0
      %4612 = vmatpush1.xpose.msra.mxu0 0.0
      %4613 = vmatprep.subr.mxu0 0.0
      %4614 = vmatpush1.xpose.msra.mxu0 0.0
      %4615 = vmatprep.subr.mxu0 0.0
      %4616 = vmatpush1.xpose.msra.mxu0 0.0
      %4617 = vmatprep.subr.mxu0 0.0
      %4618 = vmatpush1.xpose.msra.mxu0 0.0
      %4619 = vmatprep.subr.mxu0 0.0
      %4620 = vmatpush1.xpose.msra.mxu0 0.0
      %4621 = vmatprep.subr.mxu0 0.0
      %4622 = vmatpush1.xpose.msra.mxu0 0.0
      %4623 = vmatprep.subr.mxu0 0.0
      %4624 = vmatpush1.xpose.msra.mxu0 0.0
      %4625 = vmatprep.subr.mxu0 0.0
      %4626 = vmatpush1.xpose.msra.mxu0 0.0
      %4627 = vmatprep.subr.mxu0 0.0
      %4628 = vmatpush1.xpose.msra.mxu0 0.0
      %4629 = vmatprep.subr.mxu0 0.0
      %4630 = vmatpush1.xpose.msra.mxu0 0.0
      %4631 = vmatprep.subr.mxu0 0.0
      %4632 = vmatpush1.xpose.msra.mxu0 0.0
      %4633 = vmatprep.subr.mxu0 0.0
      %4634 = vmatpush1.xpose.msra.mxu0 0.0
      %4635 = vmatprep.subr.mxu0 0.0
      %4636 = vmatpush1.xpose.msra.mxu0 0.0
      %4637 = vmatprep.subr.mxu0 0.0
      %4638 = vmatpush1.xpose.msra.mxu0 0.0
      %4639 = vmatprep.mubr.f32.mxu0 0.0
      %4640 = vmatmul.mubr.f32.gmra.mrb[0].mxu0 %v4571
      %v4641 = vpop.f32.mrb[0].mxu0
      %v4642 = vadd.f32 0.0, %v4641
      %v4643 = vpop.f32.mrb[0].mxu0
      %4644 = vdwg.mxu0
      %4645 = vrot.lane.b32.xlu0 %v362, 104
      %v4646 = vpop.permute.xlu0 %4645
      %4647 = vrot.lane.b32.xlu0 %v362, 72
      %v4648 = vpop.permute.xlu0 %4647
      %v4649 = vsel %vm383, %v4646, 0
      %v4651 = vsel %vm383, %v4648, 0
      %4653 = vmatprep.subr.mxu0 0.0
      %4654 = vmatpush1.xpose.msra.mxu0 %v4651
      %4655 = vmatprep.subr.mxu0 0.0
      %4656 = vmatpush1.xpose.msra.mxu0 0.0
      %4657 = vmatprep.subr.mxu0 0.0
      %4658 = vmatpush1.xpose.msra.mxu0 0.0
      %4659 = vmatprep.subr.mxu0 0.0
      %4660 = vmatpush1.xpose.msra.mxu0 0.0
      %4661 = vmatprep.subr.mxu0 0.0
      %4662 = vmatpush1.xpose.msra.mxu0 0.0
      %4663 = vmatprep.subr.mxu0 0.0
      %4664 = vmatpush1.xpose.msra.mxu0 0.0
      %4665 = vmatprep.subr.mxu0 0.0
      %4666 = vmatpush1.xpose.msra.mxu0 0.0
      %4667 = vmatprep.subr.mxu0 0.0
      %4668 = vmatpush1.xpose.msra.mxu0 0.0
      %4669 = vmatprep.subr.mxu0 0.0
      %4670 = vmatpush1.xpose.msra.mxu0 0.0
      %4671 = vmatprep.subr.mxu0 0.0
      %4672 = vmatpush1.xpose.msra.mxu0 0.0
      %4673 = vmatprep.subr.mxu0 0.0
      %4674 = vmatpush1.xpose.msra.mxu0 0.0
      %4675 = vmatprep.subr.mxu0 0.0
      %4676 = vmatpush1.xpose.msra.mxu0 0.0
      %4677 = vmatprep.subr.mxu0 0.0
      %4678 = vmatpush1.xpose.msra.mxu0 0.0
      %4679 = vmatprep.subr.mxu0 0.0
      %4680 = vmatpush1.xpose.msra.mxu0 0.0
      %4681 = vmatprep.subr.mxu0 0.0
      %4682 = vmatpush1.xpose.msra.mxu0 0.0
      %4683 = vmatprep.subr.mxu0 0.0
      %4684 = vmatpush1.xpose.msra.mxu0 0.0
      %4685 = vmatprep.subr.mxu0 0.0
      %4686 = vmatpush1.xpose.msra.mxu0 0.0
      %4687 = vmatprep.subr.mxu0 0.0
      %4688 = vmatpush1.xpose.msra.mxu0 0.0
      %4689 = vmatprep.subr.mxu0 0.0
      %4690 = vmatpush1.xpose.msra.mxu0 0.0
      %4691 = vmatprep.subr.mxu0 0.0
      %4692 = vmatpush1.xpose.msra.mxu0 0.0
      %4693 = vmatprep.subr.mxu0 0.0
      %4694 = vmatpush1.xpose.msra.mxu0 0.0
      %4695 = vmatprep.subr.mxu0 0.0
      %4696 = vmatpush1.xpose.msra.mxu0 0.0
      %4697 = vmatprep.subr.mxu0 0.0
      %4698 = vmatpush1.xpose.msra.mxu0 0.0
      %4699 = vmatprep.subr.mxu0 0.0
      %4700 = vmatpush1.xpose.msra.mxu0 0.0
      %4701 = vmatprep.subr.mxu0 0.0
      %4702 = vmatpush1.xpose.msra.mxu0 0.0
      %4703 = vmatprep.subr.mxu0 0.0
      %4704 = vmatpush1.xpose.msra.mxu0 0.0
      %4705 = vmatprep.subr.mxu0 0.0
      %4706 = vmatpush1.xpose.msra.mxu0 0.0
      %4707 = vmatprep.subr.mxu0 0.0
      %4708 = vmatpush1.xpose.msra.mxu0 0.0
      %4709 = vmatprep.subr.mxu0 0.0
      %4710 = vmatpush1.xpose.msra.mxu0 0.0
      %4711 = vmatprep.subr.mxu0 0.0
      %4712 = vmatpush1.xpose.msra.mxu0 0.0
      %4713 = vmatprep.subr.mxu0 0.0
      %4714 = vmatpush1.xpose.msra.mxu0 0.0
      %4715 = vmatprep.subr.mxu0 0.0
      %4716 = vmatpush1.xpose.msra.mxu0 0.0
      %4717 = vmatprep.mubr.f32.mxu0 0.0
      %4718 = vmatmul.mubr.f32.gmra.mrb[0].mxu0 %v4649
      %v4719 = vpop.f32.mrb[0].mxu0
      %v4720 = vadd.f32 0.0, %v4719
      %v4721 = vpop.f32.mrb[0].mxu0
      %4722 = vdwg.mxu0
      %4723 = vrot.lane.b32.xlu0 %v367, 104
      %v4724 = vpop.permute.xlu0 %4723
      %4725 = vrot.lane.b32.xlu0 %v367, 72
      %v4726 = vpop.permute.xlu0 %4725
      %v4727 = vsel %vm383, %v4724, 0
      %v4729 = vsel %vm383, %v4726, 0
      %4731 = vmatprep.subr.mxu0 0.0
      %4732 = vmatpush1.xpose.msra.mxu0 %v4729
      %4733 = vmatprep.subr.mxu0 0.0
      %4734 = vmatpush1.xpose.msra.mxu0 0.0
      %4735 = vmatprep.subr.mxu0 0.0
      %4736 = vmatpush1.xpose.msra.mxu0 0.0
      %4737 = vmatprep.subr.mxu0 0.0
      %4738 = vmatpush1.xpose.msra.mxu0 0.0
      %4739 = vmatprep.subr.mxu0 0.0
      %4740 = vmatpush1.xpose.msra.mxu0 0.0
      %4741 = vmatprep.subr.mxu0 0.0
      %4742 = vmatpush1.xpose.msra.mxu0 0.0
      %4743 = vmatprep.subr.mxu0 0.0
      %4744 = vmatpush1.xpose.msra.mxu0 0.0
      %4745 = vmatprep.subr.mxu0 0.0
      %4746 = vmatpush1.xpose.msra.mxu0 0.0
      %4747 = vmatprep.subr.mxu0 0.0
      %4748 = vmatpush1.xpose.msra.mxu0 0.0
      %4749 = vmatprep.subr.mxu0 0.0
      %4750 = vmatpush1.xpose.msra.mxu0 0.0
      %4751 = vmatprep.subr.mxu0 0.0
      %4752 = vmatpush1.xpose.msra.mxu0 0.0
      %4753 = vmatprep.subr.mxu0 0.0
      %4754 = vmatpush1.xpose.msra.mxu0 0.0
      %4755 = vmatprep.subr.mxu0 0.0
      %4756 = vmatpush1.xpose.msra.mxu0 0.0
      %4757 = vmatprep.subr.mxu0 0.0
      %4758 = vmatpush1.xpose.msra.mxu0 0.0
      %4759 = vmatprep.subr.mxu0 0.0
      %4760 = vmatpush1.xpose.msra.mxu0 0.0
      %4761 = vmatprep.subr.mxu0 0.0
      %4762 = vmatpush1.xpose.msra.mxu0 0.0
      %4763 = vmatprep.subr.mxu0 0.0
      %4764 = vmatpush1.xpose.msra.mxu0 0.0
      %4765 = vmatprep.subr.mxu0 0.0
      %4766 = vmatpush1.xpose.msra.mxu0 0.0
      %4767 = vmatprep.subr.mxu0 0.0
      %4768 = vmatpush1.xpose.msra.mxu0 0.0
      %4769 = vmatprep.subr.mxu0 0.0
      %4770 = vmatpush1.xpose.msra.mxu0 0.0
      %4771 = vmatprep.subr.mxu0 0.0
      %4772 = vmatpush1.xpose.msra.mxu0 0.0
      %4773 = vmatprep.subr.mxu0 0.0
      %4774 = vmatpush1.xpose.msra.mxu0 0.0
      %4775 = vmatprep.subr.mxu0 0.0
      %4776 = vmatpush1.xpose.msra.mxu0 0.0
      %4777 = vmatprep.subr.mxu0 0.0
      %4778 = vmatpush1.xpose.msra.mxu0 0.0
      %4779 = vmatprep.subr.mxu0 0.0
      %4780 = vmatpush1.xpose.msra.mxu0 0.0
      %4781 = vmatprep.subr.mxu0 0.0
      %4782 = vmatpush1.xpose.msra.mxu0 0.0
      %4783 = vmatprep.subr.mxu0 0.0
      %4784 = vmatpush1.xpose.msra.mxu0 0.0
      %4785 = vmatprep.subr.mxu0 0.0
      %4786 = vmatpush1.xpose.msra.mxu0 0.0
      %4787 = vmatprep.subr.mxu0 0.0
      %4788 = vmatpush1.xpose.msra.mxu0 0.0
      %4789 = vmatprep.subr.mxu0 0.0
      %4790 = vmatpush1.xpose.msra.mxu0 0.0
      %4791 = vmatprep.subr.mxu0 0.0
      %4792 = vmatpush1.xpose.msra.mxu0 0.0
      %4793 = vmatprep.subr.mxu0 0.0
      %4794 = vmatpush1.xpose.msra.mxu0 0.0
      %4795 = vmatprep.mubr.f32.mxu0 0.0
      %4796 = vmatmul.mubr.f32.gmra.mrb[0].mxu0 %v4727
      %v4797 = vpop.f32.mrb[0].mxu0
      %v4798 = vadd.f32 0.0, %v4797
      %v4799 = vpop.f32.mrb[0].mxu0
      %4800 = vdwg.mxu0
      %4801 = vrot.lane.b32.xlu0 %v372, 104
      %v4802 = vpop.permute.xlu0 %4801
      %4803 = vrot.lane.b32.xlu0 %v372, 72
      %v4804 = vpop.permute.xlu0 %4803
      %v4805 = vsel %vm383, %v4802, 0
      %v4807 = vsel %vm383, %v4804, 0
      %4809 = vmatprep.subr.mxu0 0.0
      %4810 = vmatpush1.xpose.msra.mxu0 %v4807
      %4811 = vmatprep.subr.mxu0 0.0
      %4812 = vmatpush1.xpose.msra.mxu0 0.0
      %4813 = vmatprep.subr.mxu0 0.0
      %4814 = vmatpush1.xpose.msra.mxu0 0.0
      %4815 = vmatprep.subr.mxu0 0.0
      %4816 = vmatpush1.xpose.msra.mxu0 0.0
      %4817 = vmatprep.subr.mxu0 0.0
      %4818 = vmatpush1.xpose.msra.mxu0 0.0
      %4819 = vmatprep.subr.mxu0 0.0
      %4820 = vmatpush1.xpose.msra.mxu0 0.0
      %4821 = vmatprep.subr.mxu0 0.0
      %4822 = vmatpush1.xpose.msra.mxu0 0.0
      %4823 = vmatprep.subr.mxu0 0.0
      %4824 = vmatpush1.xpose.msra.mxu0 0.0
      %4825 = vmatprep.subr.mxu0 0.0
      %4826 = vmatpush1.xpose.msra.mxu0 0.0
      %4827 = vmatprep.subr.mxu0 0.0
      %4828 = vmatpush1.xpose.msra.mxu0 0.0
      %4829 = vmatprep.subr.mxu0 0.0
      %4830 = vmatpush1.xpose.msra.mxu0 0.0
      %4831 = vmatprep.subr.mxu0 0.0
      %4832 = vmatpush1.xpose.msra.mxu0 0.0
      %4833 = vmatprep.subr.mxu0 0.0
      %4834 = vmatpush1.xpose.msra.mxu0 0.0
      %4835 = vmatprep.subr.mxu0 0.0
      %4836 = vmatpush1.xpose.msra.mxu0 0.0
      %4837 = vmatprep.subr.mxu0 0.0
      %4838 = vmatpush1.xpose.msra.mxu0 0.0
      %4839 = vmatprep.subr.mxu0 0.0
      %4840 = vmatpush1.xpose.msra.mxu0 0.0
      %4841 = vmatprep.subr.mxu0 0.0
      %4842 = vmatpush1.xpose.msra.mxu0 0.0
      %4843 = vmatprep.subr.mxu0 0.0
      %4844 = vmatpush1.xpose.msra.mxu0 0.0
      %4845 = vmatprep.subr.mxu0 0.0
      %4846 = vmatpush1.xpose.msra.mxu0 0.0
      %4847 = vmatprep.subr.mxu0 0.0
      %4848 = vmatpush1.xpose.msra.mxu0 0.0
      %4849 = vmatprep.subr.mxu0 0.0
      %4850 = vmatpush1.xpose.msra.mxu0 0.0
      %4851 = vmatprep.subr.mxu0 0.0
      %4852 = vmatpush1.xpose.msra.mxu0 0.0
      %4853 = vmatprep.subr.mxu0 0.0
      %4854 = vmatpush1.xpose.msra.mxu0 0.0
      %4855 = vmatprep.subr.mxu0 0.0
      %4856 = vmatpush1.xpose.msra.mxu0 0.0
      %4857 = vmatprep.subr.mxu0 0.0
      %4858 = vmatpush1.xpose.msra.mxu0 0.0
      %4859 = vmatprep.subr.mxu0 0.0
      %4860 = vmatpush1.xpose.msra.mxu0 0.0
      %4861 = vmatprep.subr.mxu0 0.0
      %4862 = vmatpush1.xpose.msra.mxu0 0.0
      %4863 = vmatprep.subr.mxu0 0.0
      %4864 = vmatpush1.xpose.msra.mxu0 0.0
      %4865 = vmatprep.subr.mxu0 0.0
      %4866 = vmatpush1.xpose.msra.mxu0 0.0
      %4867 = vmatprep.subr.mxu0 0.0
      %4868 = vmatpush1.xpose.msra.mxu0 0.0
      %4869 = vmatprep.subr.mxu0 0.0
      %4870 = vmatpush1.xpose.msra.mxu0 0.0
      %4871 = vmatprep.subr.mxu0 0.0
      %4872 = vmatpush1.xpose.msra.mxu0 0.0
      %4873 = vmatprep.mubr.f32.mxu0 0.0
      %4874 = vmatmul.mubr.f32.gmra.mrb[0].mxu0 %v4805
      %v4875 = vpop.f32.mrb[0].mxu0
      %v4876 = vadd.f32 0.0, %v4875
      %v4877 = vpop.f32.mrb[0].mxu0
      %4878 = vdwg.mxu0
      %4879 = vrot.lane.b32.xlu0 %v377, 104
      %v4880 = vpop.permute.xlu0 %4879
      %4881 = vrot.lane.b32.xlu0 %v377, 72
      %v4882 = vpop.permute.xlu0 %4881
      %v4883 = vsel %vm383, %v4880, 0
      %v4885 = vsel %vm383, %v4882, 0
      %4887 = vmatprep.subr.mxu0 0.0
      %4888 = vmatpush1.xpose.msra.mxu0 %v4885
      %4889 = vmatprep.subr.mxu0 0.0
      %4890 = vmatpush1.xpose.msra.mxu0 0.0
      %4891 = vmatprep.subr.mxu0 0.0
      %4892 = vmatpush1.xpose.msra.mxu0 0.0
      %4893 = vmatprep.subr.mxu0 0.0
      %4894 = vmatpush1.xpose.msra.mxu0 0.0
      %4895 = vmatprep.subr.mxu0 0.0
      %4896 = vmatpush1.xpose.msra.mxu0 0.0
      %4897 = vmatprep.subr.mxu0 0.0
      %4898 = vmatpush1.xpose.msra.mxu0 0.0
      %4899 = vmatprep.subr.mxu0 0.0
      %4900 = vmatpush1.xpose.msra.mxu0 0.0
      %4901 = vmatprep.subr.mxu0 0.0
      %4902 = vmatpush1.xpose.msra.mxu0 0.0
      %4903 = vmatprep.subr.mxu0 0.0
      %4904 = vmatpush1.xpose.msra.mxu0 0.0
      %4905 = vmatprep.subr.mxu0 0.0
      %4906 = vmatpush1.xpose.msra.mxu0 0.0
      %4907 = vmatprep.subr.mxu0 0.0
      %4908 = vmatpush1.xpose.msra.mxu0 0.0
      %4909 = vmatprep.subr.mxu0 0.0
      %4910 = vmatpush1.xpose.msra.mxu0 0.0
      %4911 = vmatprep.subr.mxu0 0.0
      %4912 = vmatpush1.xpose.msra.mxu0 0.0
      %4913 = vmatprep.subr.mxu0 0.0
      %4914 = vmatpush1.xpose.msra.mxu0 0.0
      %4915 = vmatprep.subr.mxu0 0.0
      %4916 = vmatpush1.xpose.msra.mxu0 0.0
      %4917 = vmatprep.subr.mxu0 0.0
      %4918 = vmatpush1.xpose.msra.mxu0 0.0
      %4919 = vmatprep.subr.mxu0 0.0
      %4920 = vmatpush1.xpose.msra.mxu0 0.0
      %4921 = vmatprep.subr.mxu0 0.0
      %4922 = vmatpush1.xpose.msra.mxu0 0.0
      %4923 = vmatprep.subr.mxu0 0.0
      %4924 = vmatpush1.xpose.msra.mxu0 0.0
      %4925 = vmatprep.subr.mxu0 0.0
      %4926 = vmatpush1.xpose.msra.mxu0 0.0
      %4927 = vmatprep.subr.mxu0 0.0
      %4928 = vmatpush1.xpose.msra.mxu0 0.0
      %4929 = vmatprep.subr.mxu0 0.0
      %4930 = vmatpush1.xpose.msra.mxu0 0.0
      %4931 = vmatprep.subr.mxu0 0.0
      %4932 = vmatpush1.xpose.msra.mxu0 0.0
      %4933 = vmatprep.subr.mxu0 0.0
      %4934 = vmatpush1.xpose.msra.mxu0 0.0
      %4935 = vmatprep.subr.mxu0 0.0
      %4936 = vmatpush1.xpose.msra.mxu0 0.0
      %4937 = vmatprep.subr.mxu0 0.0
      %4938 = vmatpush1.xpose.msra.mxu0 0.0
      %4939 = vmatprep.subr.mxu0 0.0
      %4940 = vmatpush1.xpose.msra.mxu0 0.0
      %4941 = vmatprep.subr.mxu0 0.0
      %4942 = vmatpush1.xpose.msra.mxu0 0.0
      %4943 = vmatprep.subr.mxu0 0.0
      %4944 = vmatpush1.xpose.msra.mxu0 0.0
      %4945 = vmatprep.subr.mxu0 0.0
      %4946 = vmatpush1.xpose.msra.mxu0 0.0
      %4947 = vmatprep.subr.mxu0 0.0
      %4948 = vmatpush1.xpose.msra.mxu0 0.0
      %4949 = vmatprep.subr.mxu0 0.0
      %4950 = vmatpush1.xpose.msra.mxu0 0.0
      %4951 = vmatprep.mubr.f32.mxu0 0.0
      %4952 = vmatmul.mubr.f32.gmra.mrb[0].mxu0 %v4883
      %v4953 = vpop.f32.mrb[0].mxu0
      %v4954 = vadd.f32 0.0, %v4953
      %v4955 = vpop.f32.mrb[0].mxu0
      %4956 = vdwg.mxu0
      %v4957 = vsel %vm383, %v4408, -inf
      %4958 = vmax.xlane.f32.xlu0 %v4957
      %v4959 = vpop.xlane.xlu0 %4958
      %v4960 = vsel %vm383, %v4486, -inf
      %4961 = vmax.xlane.f32.xlu0 %v4960
      %v4962 = vpop.xlane.xlu0 %4961
      %v4963 = vsel %vm383, %v4564, -inf
      %4964 = vmax.xlane.f32.xlu0 %v4963
      %v4965 = vpop.xlane.xlu0 %4964
      %v4966 = vsel %vm383, %v4642, -inf
      %4967 = vmax.xlane.f32.xlu0 %v4966
      %v4968 = vpop.xlane.xlu0 %4967
      %v4969 = vsel %vm383, %v4720, -inf
      %4970 = vmax.xlane.f32.xlu0 %v4969
      %v4971 = vpop.xlane.xlu0 %4970
      %v4972 = vsel %vm383, %v4798, -inf
      %4973 = vmax.xlane.f32.xlu0 %v4972
      %v4974 = vpop.xlane.xlu0 %4973
      %v4975 = vsel %vm383, %v4876, -inf
      %4976 = vmax.xlane.f32.xlu0 %v4975
      %v4977 = vpop.xlane.xlu0 %4976
      %v4978 = vsel %vm383, %v4954, -inf
      %4979 = vmax.xlane.f32.xlu0 %v4978
      %v4980 = vpop.xlane.xlu0 %4979
      %v4981 = vsub.f32 %v4408, %v4959
      %v4982 = vsub.f32 %v4486, %v4962
      %v4983 = vsub.f32 %v4564, %v4965
      %v4984 = vsub.f32 %v4642, %v4968
      %v4985 = vsub.f32 %v4720, %v4971
      %v4986 = vsub.f32 %v4798, %v4974
      %v4987 = vsub.f32 %v4876, %v4977
      %v4988 = vsub.f32 %v4954, %v4980
      %v4989 = vmul.f32 %v4981, 1.442695
      %v4990 = vpow.pop %v4989
      %v4991 = vmul.f32 %v4982, 1.442695
      %v4992 = vpow.pop %v4991
      %v4993 = vmul.f32 %v4983, 1.442695
      %v4994 = vpow.pop %v4993
      %v4995 = vmul.f32 %v4984, 1.442695
      %v4996 = vpow.pop %v4995
      %v4997 = vmul.f32 %v4985, 1.442695
      %v4998 = vpow.pop %v4997
      %v4999 = vmul.f32 %v4986, 1.442695
      %v5000 = vpow.pop %v4999
      %v5001 = vmul.f32 %v4987, 1.442695
      %v5002 = vpow.pop %v5001
      %v5003 = vmul.f32 %v4988, 1.442695
      %v5004 = vpow.pop %v5003
      %v5005 = vsel %vm383, %v4990, 0.0
      %5006 = vadd.xlane.f32.xlu0 %v5005
      %v5007 = vpop.xlane.xlu0 %5006
      %v5008 = vsel %vm383, %v4992, 0.0
      %5009 = vadd.xlane.f32.xlu0 %v5008
      %v5010 = vpop.xlane.xlu0 %5009
      %v5011 = vsel %vm383, %v4994, 0.0
      %5012 = vadd.xlane.f32.xlu0 %v5011
      %v5013 = vpop.xlane.xlu0 %5012
      %v5014 = vsel %vm383, %v4996, 0.0
      %5015 = vadd.xlane.f32.xlu0 %v5014
      %v5016 = vpop.xlane.xlu0 %5015
      %v5017 = vsel %vm383, %v4998, 0.0
      %5018 = vadd.xlane.f32.xlu0 %v5017
      %v5019 = vpop.xlane.xlu0 %5018
      %v5020 = vsel %vm383, %v5000, 0.0
      %5021 = vadd.xlane.f32.xlu0 %v5020
      %v5022 = vpop.xlane.xlu0 %5021
      %v5023 = vsel %vm383, %v5002, 0.0
      %5024 = vadd.xlane.f32.xlu0 %v5023
      %v5025 = vpop.xlane.xlu0 %5024
      %v5026 = vsel %vm383, %v5004, 0.0
      %5027 = vadd.xlane.f32.xlu0 %v5026
      %v5028 = vpop.xlane.xlu0 %5027
      %v5029 = vrcp.pop %v5007
      %v5030 = vmul.f32 %v4990, %v5029
      %v5031 = vrcp.pop %v5010
      %v5032 = vmul.f32 %v4992, %v5031
      %v5033 = vrcp.pop %v5013
      %v5034 = vmul.f32 %v4994, %v5033
      %v5035 = vrcp.pop %v5016
      %v5036 = vmul.f32 %v4996, %v5035
      %v5037 = vrcp.pop %v5019
      %v5038 = vmul.f32 %v4998, %v5037
      %v5039 = vrcp.pop %v5022
      %v5040 = vmul.f32 %v5000, %v5039
      %v5041 = vrcp.pop %v5025
      %v5042 = vmul.f32 %v5002, %v5041
      %v5043 = vrcp.pop %v5028
      %v5044 = vmul.f32 %v5004, %v5043
      %5045 = vrot.lane.b32.xlu0 %v342, 40
      %v5046 = vpop.permute.xlu0 %5045
      %v5049 = vsel %vm383, %v5030, 0
      %5051 = vmatprep.subr.mxu0 0.0
      %5052 = vmatpush1.msra.mxu0 %v5046
      %5053 = vmatprep.subr.mxu0 0.0
      %5054 = vmatpush1.msra.mxu0 0.0
      %5055 = vmatprep.subr.mxu0 0.0
      %5056 = vmatpush1.msra.mxu0 0.0
      %5057 = vmatprep.subr.mxu0 0.0
      %5058 = vmatpush1.msra.mxu0 0.0
      %5059 = vmatprep.subr.mxu0 0.0
      %5060 = vmatpush1.msra.mxu0 0.0
      %5061 = vmatprep.subr.mxu0 0.0
      %5062 = vmatpush1.msra.mxu0 0.0
      %5063 = vmatprep.subr.mxu0 0.0
      %5064 = vmatpush1.msra.mxu0 0.0
      %5065 = vmatprep.subr.mxu0 0.0
      %5066 = vmatpush1.msra.mxu0 0.0
      %5067 = vmatprep.subr.mxu0 0.0
      %5068 = vmatpush1.msra.mxu0 0.0
      %5069 = vmatprep.subr.mxu0 0.0
      %5070 = vmatpush1.msra.mxu0 0.0
      %5071 = vmatprep.subr.mxu0 0.0
      %5072 = vmatpush1.msra.mxu0 0.0
      %5073 = vmatprep.subr.mxu0 0.0
      %5074 = vmatpush1.msra.mxu0 0.0
      %5075 = vmatprep.subr.mxu0 0.0
      %5076 = vmatpush1.msra.mxu0 0.0
      %5077 = vmatprep.subr.mxu0 0.0
      %5078 = vmatpush1.msra.mxu0 0.0
      %5079 = vmatprep.subr.mxu0 0.0
      %5080 = vmatpush1.msra.mxu0 0.0
      %5081 = vmatprep.subr.mxu0 0.0
      %5082 = vmatpush1.msra.mxu0 0.0
      %5083 = vmatprep.subr.mxu0 0.0
      %5084 = vmatpush1.msra.mxu0 0.0
      %5085 = vmatprep.subr.mxu0 0.0
      %5086 = vmatpush1.msra.mxu0 0.0
      %5087 = vmatprep.subr.mxu0 0.0
      %5088 = vmatpush1.msra.mxu0 0.0
      %5089 = vmatprep.subr.mxu0 0.0
      %5090 = vmatpush1.msra.mxu0 0.0
      %5091 = vmatprep.subr.mxu0 0.0
      %5092 = vmatpush1.msra.mxu0 0.0
      %5093 = vmatprep.subr.mxu0 0.0
      %5094 = vmatpush1.msra.mxu0 0.0
      %5095 = vmatprep.subr.mxu0 0.0
      %5096 = vmatpush1.msra.mxu0 0.0
      %5097 = vmatprep.subr.mxu0 0.0
      %5098 = vmatpush1.msra.mxu0 0.0
      %5099 = vmatprep.subr.mxu0 0.0
      %5100 = vmatpush1.msra.mxu0 0.0
      %5101 = vmatprep.subr.mxu0 0.0
      %5102 = vmatpush1.msra.mxu0 0.0
      %5103 = vmatprep.subr.mxu0 0.0
      %5104 = vmatpush1.msra.mxu0 0.0
      %5105 = vmatprep.subr.mxu0 0.0
      %5106 = vmatpush1.msra.mxu0 0.0
      %5107 = vmatprep.subr.mxu0 0.0
      %5108 = vmatpush1.msra.mxu0 0.0
      %5109 = vmatprep.subr.mxu0 0.0
      %5110 = vmatpush1.msra.mxu0 0.0
      %5111 = vmatprep.subr.mxu0 0.0
      %5112 = vmatpush1.msra.mxu0 0.0
      %5113 = vmatprep.subr.mxu0 0.0
      %5114 = vmatpush1.msra.mxu0 0.0
      %5115 = vmatprep.mubr.f32.mxu0 0.0
      %5116 = vmatmul.mubr.f32.gmra.mrb[0].mxu0 %v5049
      %v5117 = vpop.f32.mrb[0].mxu0
      %v5118 = vadd.f32 0.0, %v5117
      %v5119 = vpop.f32.mrb[0].mxu0
      %5120 = vdwg.mxu0
      %5121 = vrot.lane.b32.xlu0 %v347, 40
      %v5122 = vpop.permute.xlu0 %5121
      %v5125 = vsel %vm383, %v5032, 0
      %5127 = vmatprep.subr.mxu0 0.0
      %5128 = vmatpush1.msra.mxu0 %v5122
      %5129 = vmatprep.subr.mxu0 0.0
      %5130 = vmatpush1.msra.mxu0 0.0
      %5131 = vmatprep.subr.mxu0 0.0
      %5132 = vmatpush1.msra.mxu0 0.0
      %5133 = vmatprep.subr.mxu0 0.0
      %5134 = vmatpush1.msra.mxu0 0.0
      %5135 = vmatprep.subr.mxu0 0.0
      %5136 = vmatpush1.msra.mxu0 0.0
      %5137 = vmatprep.subr.mxu0 0.0
      %5138 = vmatpush1.msra.mxu0 0.0
      %5139 = vmatprep.subr.mxu0 0.0
      %5140 = vmatpush1.msra.mxu0 0.0
      %5141 = vmatprep.subr.mxu0 0.0
      %5142 = vmatpush1.msra.mxu0 0.0
      %5143 = vmatprep.subr.mxu0 0.0
      %5144 = vmatpush1.msra.mxu0 0.0
      %5145 = vmatprep.subr.mxu0 0.0
      %5146 = vmatpush1.msra.mxu0 0.0
      %5147 = vmatprep.subr.mxu0 0.0
      %5148 = vmatpush1.msra.mxu0 0.0
      %5149 = vmatprep.subr.mxu0 0.0
      %5150 = vmatpush1.msra.mxu0 0.0
      %5151 = vmatprep.subr.mxu0 0.0
      %5152 = vmatpush1.msra.mxu0 0.0
      %5153 = vmatprep.subr.mxu0 0.0
      %5154 = vmatpush1.msra.mxu0 0.0
      %5155 = vmatprep.subr.mxu0 0.0
      %5156 = vmatpush1.msra.mxu0 0.0
      %5157 = vmatprep.subr.mxu0 0.0
      %5158 = vmatpush1.msra.mxu0 0.0
      %5159 = vmatprep.subr.mxu0 0.0
      %5160 = vmatpush1.msra.mxu0 0.0
      %5161 = vmatprep.subr.mxu0 0.0
      %5162 = vmatpush1.msra.mxu0 0.0
      %5163 = vmatprep.subr.mxu0 0.0
      %5164 = vmatpush1.msra.mxu0 0.0
      %5165 = vmatprep.subr.mxu0 0.0
      %5166 = vmatpush1.msra.mxu0 0.0
      %5167 = vmatprep.subr.mxu0 0.0
      %5168 = vmatpush1.msra.mxu0 0.0
      %5169 = vmatprep.subr.mxu0 0.0
      %5170 = vmatpush1.msra.mxu0 0.0
      %5171 = vmatprep.subr.mxu0 0.0
      %5172 = vmatpush1.msra.mxu0 0.0
      %5173 = vmatprep.subr.mxu0 0.0
      %5174 = vmatpush1.msra.mxu0 0.0
      %5175 = vmatprep.subr.mxu0 0.0
      %5176 = vmatpush1.msra.mxu0 0.0
      %5177 = vmatprep.subr.mxu0 0.0
      %5178 = vmatpush1.msra.mxu0 0.0
      %5179 = vmatprep.subr.mxu0 0.0
      %5180 = vmatpush1.msra.mxu0 0.0
      %5181 = vmatprep.subr.mxu0 0.0
      %5182 = vmatpush1.msra.mxu0 0.0
      %5183 = vmatprep.subr.mxu0 0.0
      %5184 = vmatpush1.msra.mxu0 0.0
      %5185 = vmatprep.subr.mxu0 0.0
      %5186 = vmatpush1.msra.mxu0 0.0
      %5187 = vmatprep.subr.mxu0 0.0
      %5188 = vmatpush1.msra.mxu0 0.0
      %5189 = vmatprep.subr.mxu0 0.0
      %5190 = vmatpush1.msra.mxu0 0.0
      %5191 = vmatprep.mubr.f32.mxu0 0.0
      %5192 = vmatmul.mubr.f32.gmra.mrb[0].mxu0 %v5125
      %v5193 = vpop.f32.mrb[0].mxu0
      %v5194 = vadd.f32 0.0, %v5193
      %v5195 = vpop.f32.mrb[0].mxu0
      %5196 = vdwg.mxu0
      %5197 = vrot.lane.b32.xlu0 %v352, 40
      %v5198 = vpop.permute.xlu0 %5197
      %v5201 = vsel %vm383, %v5034, 0
      %5203 = vmatprep.subr.mxu0 0.0
      %5204 = vmatpush1.msra.mxu0 %v5198
      %5205 = vmatprep.subr.mxu0 0.0
      %5206 = vmatpush1.msra.mxu0 0.0
      %5207 = vmatprep.subr.mxu0 0.0
      %5208 = vmatpush1.msra.mxu0 0.0
      %5209 = vmatprep.subr.mxu0 0.0
      %5210 = vmatpush1.msra.mxu0 0.0
      %5211 = vmatprep.subr.mxu0 0.0
      %5212 = vmatpush1.msra.mxu0 0.0
      %5213 = vmatprep.subr.mxu0 0.0
      %5214 = vmatpush1.msra.mxu0 0.0
      %5215 = vmatprep.subr.mxu0 0.0
      %5216 = vmatpush1.msra.mxu0 0.0
      %5217 = vmatprep.subr.mxu0 0.0
      %5218 = vmatpush1.msra.mxu0 0.0
      %5219 = vmatprep.subr.mxu0 0.0
      %5220 = vmatpush1.msra.mxu0 0.0
      %5221 = vmatprep.subr.mxu0 0.0
      %5222 = vmatpush1.msra.mxu0 0.0
      %5223 = vmatprep.subr.mxu0 0.0
      %5224 = vmatpush1.msra.mxu0 0.0
      %5225 = vmatprep.subr.mxu0 0.0
      %5226 = vmatpush1.msra.mxu0 0.0
      %5227 = vmatprep.subr.mxu0 0.0
      %5228 = vmatpush1.msra.mxu0 0.0
      %5229 = vmatprep.subr.mxu0 0.0
      %5230 = vmatpush1.msra.mxu0 0.0
      %5231 = vmatprep.subr.mxu0 0.0
      %5232 = vmatpush1.msra.mxu0 0.0
      %5233 = vmatprep.subr.mxu0 0.0
      %5234 = vmatpush1.msra.mxu0 0.0
      %5235 = vmatprep.subr.mxu0 0.0
      %5236 = vmatpush1.msra.mxu0 0.0
      %5237 = vmatprep.subr.mxu0 0.0
      %5238 = vmatpush1.msra.mxu0 0.0
      %5239 = vmatprep.subr.mxu0 0.0
      %5240 = vmatpush1.msra.mxu0 0.0
      %5241 = vmatprep.subr.mxu0 0.0
      %5242 = vmatpush1.msra.mxu0 0.0
      %5243 = vmatprep.subr.mxu0 0.0
      %5244 = vmatpush1.msra.mxu0 0.0
      %5245 = vmatprep.subr.mxu0 0.0
      %5246 = vmatpush1.msra.mxu0 0.0
      %5247 = vmatprep.subr.mxu0 0.0
      %5248 = vmatpush1.msra.mxu0 0.0
      %5249 = vmatprep.subr.mxu0 0.0
      %5250 = vmatpush1.msra.mxu0 0.0
      %5251 = vmatprep.subr.mxu0 0.0
      %5252 = vmatpush1.msra.mxu0 0.0
      %5253 = vmatprep.subr.mxu0 0.0
      %5254 = vmatpush1.msra.mxu0 0.0
      %5255 = vmatprep.subr.mxu0 0.0
      %5256 = vmatpush1.msra.mxu0 0.0
      %5257 = vmatprep.subr.mxu0 0.0
      %5258 = vmatpush1.msra.mxu0 0.0
      %5259 = vmatprep.subr.mxu0 0.0
      %5260 = vmatpush1.msra.mxu0 0.0
      %5261 = vmatprep.subr.mxu0 0.0
      %5262 = vmatpush1.msra.mxu0 0.0
      %5263 = vmatprep.subr.mxu0 0.0
      %5264 = vmatpush1.msra.mxu0 0.0
      %5265 = vmatprep.subr.mxu0 0.0
      %5266 = vmatpush1.msra.mxu0 0.0
      %5267 = vmatprep.mubr.f32.mxu0 0.0
      %5268 = vmatmul.mubr.f32.gmra.mrb[0].mxu0 %v5201
      %v5269 = vpop.f32.mrb[0].mxu0
      %v5270 = vadd.f32 0.0, %v5269
      %v5271 = vpop.f32.mrb[0].mxu0
      %5272 = vdwg.mxu0
      %5273 = vrot.lane.b32.xlu0 %v357, 40
      %v5274 = vpop.permute.xlu0 %5273
      %v5277 = vsel %vm383, %v5036, 0
      %5279 = vmatprep.subr.mxu0 0.0
      %5280 = vmatpush1.msra.mxu0 %v5274
      %5281 = vmatprep.subr.mxu0 0.0
      %5282 = vmatpush1.msra.mxu0 0.0
      %5283 = vmatprep.subr.mxu0 0.0
      %5284 = vmatpush1.msra.mxu0 0.0
      %5285 = vmatprep.subr.mxu0 0.0
      %5286 = vmatpush1.msra.mxu0 0.0
      %5287 = vmatprep.subr.mxu0 0.0
      %5288 = vmatpush1.msra.mxu0 0.0
      %5289 = vmatprep.subr.mxu0 0.0
      %5290 = vmatpush1.msra.mxu0 0.0
      %5291 = vmatprep.subr.mxu0 0.0
      %5292 = vmatpush1.msra.mxu0 0.0
      %5293 = vmatprep.subr.mxu0 0.0
      %5294 = vmatpush1.msra.mxu0 0.0
      %5295 = vmatprep.subr.mxu0 0.0
      %5296 = vmatpush1.msra.mxu0 0.0
      %5297 = vmatprep.subr.mxu0 0.0
      %5298 = vmatpush1.msra.mxu0 0.0
      %5299 = vmatprep.subr.mxu0 0.0
      %5300 = vmatpush1.msra.mxu0 0.0
      %5301 = vmatprep.subr.mxu0 0.0
      %5302 = vmatpush1.msra.mxu0 0.0
      %5303 = vmatprep.subr.mxu0 0.0
      %5304 = vmatpush1.msra.mxu0 0.0
      %5305 = vmatprep.subr.mxu0 0.0
      %5306 = vmatpush1.msra.mxu0 0.0
      %5307 = vmatprep.subr.mxu0 0.0
      %5308 = vmatpush1.msra.mxu0 0.0
      %5309 = vmatprep.subr.mxu0 0.0
      %5310 = vmatpush1.msra.mxu0 0.0
      %5311 = vmatprep.subr.mxu0 0.0
      %5312 = vmatpush1.msra.mxu0 0.0
      %5313 = vmatprep.subr.mxu0 0.0
      %5314 = vmatpush1.msra.mxu0 0.0
      %5315 = vmatprep.subr.mxu0 0.0
      %5316 = vmatpush1.msra.mxu0 0.0
      %5317 = vmatprep.subr.mxu0 0.0
      %5318 = vmatpush1.msra.mxu0 0.0
      %5319 = vmatprep.subr.mxu0 0.0
      %5320 = vmatpush1.msra.mxu0 0.0
      %5321 = vmatprep.subr.mxu0 0.0
      %5322 = vmatpush1.msra.mxu0 0.0
      %5323 = vmatprep.subr.mxu0 0.0
      %5324 = vmatpush1.msra.mxu0 0.0
      %5325 = vmatprep.subr.mxu0 0.0
      %5326 = vmatpush1.msra.mxu0 0.0
      %5327 = vmatprep.subr.mxu0 0.0
      %5328 = vmatpush1.msra.mxu0 0.0
      %5329 = vmatprep.subr.mxu0 0.0
      %5330 = vmatpush1.msra.mxu0 0.0
      %5331 = vmatprep.subr.mxu0 0.0
      %5332 = vmatpush1.msra.mxu0 0.0
      %5333 = vmatprep.subr.mxu0 0.0
      %5334 = vmatpush1.msra.mxu0 0.0
      %5335 = vmatprep.subr.mxu0 0.0
      %5336 = vmatpush1.msra.mxu0 0.0
      %5337 = vmatprep.subr.mxu0 0.0
      %5338 = vmatpush1.msra.mxu0 0.0
      %5339 = vmatprep.subr.mxu0 0.0
      %5340 = vmatpush1.msra.mxu0 0.0
      %5341 = vmatprep.subr.mxu0 0.0
      %5342 = vmatpush1.msra.mxu0 0.0
      %5343 = vmatprep.mubr.f32.mxu0 0.0
      %5344 = vmatmul.mubr.f32.gmra.mrb[0].mxu0 %v5277
      %v5345 = vpop.f32.mrb[0].mxu0
      %v5346 = vadd.f32 0.0, %v5345
      %v5347 = vpop.f32.mrb[0].mxu0
      %5348 = vdwg.mxu0
      %5349 = vrot.lane.b32.xlu0 %v362, 40
      %v5350 = vpop.permute.xlu0 %5349
      %v5353 = vsel %vm383, %v5038, 0
      %5355 = vmatprep.subr.mxu0 0.0
      %5356 = vmatpush1.msra.mxu0 %v5350
      %5357 = vmatprep.subr.mxu0 0.0
      %5358 = vmatpush1.msra.mxu0 0.0
      %5359 = vmatprep.subr.mxu0 0.0
      %5360 = vmatpush1.msra.mxu0 0.0
      %5361 = vmatprep.subr.mxu0 0.0
      %5362 = vmatpush1.msra.mxu0 0.0
      %5363 = vmatprep.subr.mxu0 0.0
      %5364 = vmatpush1.msra.mxu0 0.0
      %5365 = vmatprep.subr.mxu0 0.0
      %5366 = vmatpush1.msra.mxu0 0.0
      %5367 = vmatprep.subr.mxu0 0.0
      %5368 = vmatpush1.msra.mxu0 0.0
      %5369 = vmatprep.subr.mxu0 0.0
      %5370 = vmatpush1.msra.mxu0 0.0
      %5371 = vmatprep.subr.mxu0 0.0
      %5372 = vmatpush1.msra.mxu0 0.0
      %5373 = vmatprep.subr.mxu0 0.0
      %5374 = vmatpush1.msra.mxu0 0.0
      %5375 = vmatprep.subr.mxu0 0.0
      %5376 = vmatpush1.msra.mxu0 0.0
      %5377 = vmatprep.subr.mxu0 0.0
      %5378 = vmatpush1.msra.mxu0 0.0
      %5379 = vmatprep.subr.mxu0 0.0
      %5380 = vmatpush1.msra.mxu0 0.0
      %5381 = vmatprep.subr.mxu0 0.0
      %5382 = vmatpush1.msra.mxu0 0.0
      %5383 = vmatprep.subr.mxu0 0.0
      %5384 = vmatpush1.msra.mxu0 0.0
      %5385 = vmatprep.subr.mxu0 0.0
      %5386 = vmatpush1.msra.mxu0 0.0
      %5387 = vmatprep.subr.mxu0 0.0
      %5388 = vmatpush1.msra.mxu0 0.0
      %5389 = vmatprep.subr.mxu0 0.0
      %5390 = vmatpush1.msra.mxu0 0.0
      %5391 = vmatprep.subr.mxu0 0.0
      %5392 = vmatpush1.msra.mxu0 0.0
      %5393 = vmatprep.subr.mxu0 0.0
      %5394 = vmatpush1.msra.mxu0 0.0
      %5395 = vmatprep.subr.mxu0 0.0
      %5396 = vmatpush1.msra.mxu0 0.0
      %5397 = vmatprep.subr.mxu0 0.0
      %5398 = vmatpush1.msra.mxu0 0.0
      %5399 = vmatprep.subr.mxu0 0.0
      %5400 = vmatpush1.msra.mxu0 0.0
      %5401 = vmatprep.subr.mxu0 0.0
      %5402 = vmatpush1.msra.mxu0 0.0
      %5403 = vmatprep.subr.mxu0 0.0
      %5404 = vmatpush1.msra.mxu0 0.0
      %5405 = vmatprep.subr.mxu0 0.0
      %5406 = vmatpush1.msra.mxu0 0.0
      %5407 = vmatprep.subr.mxu0 0.0
      %5408 = vmatpush1.msra.mxu0 0.0
      %5409 = vmatprep.subr.mxu0 0.0
      %5410 = vmatpush1.msra.mxu0 0.0
      %5411 = vmatprep.subr.mxu0 0.0
      %5412 = vmatpush1.msra.mxu0 0.0
      %5413 = vmatprep.subr.mxu0 0.0
      %5414 = vmatpush1.msra.mxu0 0.0
      %5415 = vmatprep.subr.mxu0 0.0
      %5416 = vmatpush1.msra.mxu0 0.0
      %5417 = vmatprep.subr.mxu0 0.0
      %5418 = vmatpush1.msra.mxu0 0.0
      %5419 = vmatprep.mubr.f32.mxu0 0.0
      %5420 = vmatmul.mubr.f32.gmra.mrb[0].mxu0 %v5353
      %v5421 = vpop.f32.mrb[0].mxu0
      %v5422 = vadd.f32 0.0, %v5421
      %v5423 = vpop.f32.mrb[0].mxu0
      %5424 = vdwg.mxu0
      %5425 = vrot.lane.b32.xlu0 %v367, 40
      %v5426 = vpop.permute.xlu0 %5425
      %v5429 = vsel %vm383, %v5040, 0
      %5431 = vmatprep.subr.mxu0 0.0
      %5432 = vmatpush1.msra.mxu0 %v5426
      %5433 = vmatprep.subr.mxu0 0.0
      %5434 = vmatpush1.msra.mxu0 0.0
      %5435 = vmatprep.subr.mxu0 0.0
      %5436 = vmatpush1.msra.mxu0 0.0
      %5437 = vmatprep.subr.mxu0 0.0
      %5438 = vmatpush1.msra.mxu0 0.0
      %5439 = vmatprep.subr.mxu0 0.0
      %5440 = vmatpush1.msra.mxu0 0.0
      %5441 = vmatprep.subr.mxu0 0.0
      %5442 = vmatpush1.msra.mxu0 0.0
      %5443 = vmatprep.subr.mxu0 0.0
      %5444 = vmatpush1.msra.mxu0 0.0
      %5445 = vmatprep.subr.mxu0 0.0
      %5446 = vmatpush1.msra.mxu0 0.0
      %5447 = vmatprep.subr.mxu0 0.0
      %5448 = vmatpush1.msra.mxu0 0.0
      %5449 = vmatprep.subr.mxu0 0.0
      %5450 = vmatpush1.msra.mxu0 0.0
      %5451 = vmatprep.subr.mxu0 0.0
      %5452 = vmatpush1.msra.mxu0 0.0
      %5453 = vmatprep.subr.mxu0 0.0
      %5454 = vmatpush1.msra.mxu0 0.0
      %5455 = vmatprep.subr.mxu0 0.0
      %5456 = vmatpush1.msra.mxu0 0.0
      %5457 = vmatprep.subr.mxu0 0.0
      %5458 = vmatpush1.msra.mxu0 0.0
      %5459 = vmatprep.subr.mxu0 0.0
      %5460 = vmatpush1.msra.mxu0 0.0
      %5461 = vmatprep.subr.mxu0 0.0
      %5462 = vmatpush1.msra.mxu0 0.0
      %5463 = vmatprep.subr.mxu0 0.0
      %5464 = vmatpush1.msra.mxu0 0.0
      %5465 = vmatprep.subr.mxu0 0.0
      %5466 = vmatpush1.msra.mxu0 0.0
      %5467 = vmatprep.subr.mxu0 0.0
      %5468 = vmatpush1.msra.mxu0 0.0
      %5469 = vmatprep.subr.mxu0 0.0
      %5470 = vmatpush1.msra.mxu0 0.0
      %5471 = vmatprep.subr.mxu0 0.0
      %5472 = vmatpush1.msra.mxu0 0.0
      %5473 = vmatprep.subr.mxu0 0.0
      %5474 = vmatpush1.msra.mxu0 0.0
      %5475 = vmatprep.subr.mxu0 0.0
      %5476 = vmatpush1.msra.mxu0 0.0
      %5477 = vmatprep.subr.mxu0 0.0
      %5478 = vmatpush1.msra.mxu0 0.0
      %5479 = vmatprep.subr.mxu0 0.0
      %5480 = vmatpush1.msra.mxu0 0.0
      %5481 = vmatprep.subr.mxu0 0.0
      %5482 = vmatpush1.msra.mxu0 0.0
      %5483 = vmatprep.subr.mxu0 0.0
      %5484 = vmatpush1.msra.mxu0 0.0
      %5485 = vmatprep.subr.mxu0 0.0
      %5486 = vmatpush1.msra.mxu0 0.0
      %5487 = vmatprep.subr.mxu0 0.0
      %5488 = vmatpush1.msra.mxu0 0.0
      %5489 = vmatprep.subr.mxu0 0.0
      %5490 = vmatpush1.msra.mxu0 0.0
      %5491 = vmatprep.subr.mxu0 0.0
      %5492 = vmatpush1.msra.mxu0 0.0
      %5493 = vmatprep.subr.mxu0 0.0
      %5494 = vmatpush1.msra.mxu0 0.0
      %5495 = vmatprep.mubr.f32.mxu0 0.0
      %5496 = vmatmul.mubr.f32.gmra.mrb[0].mxu0 %v5429
      %v5497 = vpop.f32.mrb[0].mxu0
      %v5498 = vadd.f32 0.0, %v5497
      %v5499 = vpop.f32.mrb[0].mxu0
      %5500 = vdwg.mxu0
      %5501 = vrot.lane.b32.xlu0 %v372, 40
      %v5502 = vpop.permute.xlu0 %5501
      %v5505 = vsel %vm383, %v5042, 0
      %5507 = vmatprep.subr.mxu0 0.0
      %5508 = vmatpush1.msra.mxu0 %v5502
      %5509 = vmatprep.subr.mxu0 0.0
      %5510 = vmatpush1.msra.mxu0 0.0
      %5511 = vmatprep.subr.mxu0 0.0
      %5512 = vmatpush1.msra.mxu0 0.0
      %5513 = vmatprep.subr.mxu0 0.0
      %5514 = vmatpush1.msra.mxu0 0.0
      %5515 = vmatprep.subr.mxu0 0.0
      %5516 = vmatpush1.msra.mxu0 0.0
      %5517 = vmatprep.subr.mxu0 0.0
      %5518 = vmatpush1.msra.mxu0 0.0
      %5519 = vmatprep.subr.mxu0 0.0
      %5520 = vmatpush1.msra.mxu0 0.0
      %5521 = vmatprep.subr.mxu0 0.0
      %5522 = vmatpush1.msra.mxu0 0.0
      %5523 = vmatprep.subr.mxu0 0.0
      %5524 = vmatpush1.msra.mxu0 0.0
      %5525 = vmatprep.subr.mxu0 0.0
      %5526 = vmatpush1.msra.mxu0 0.0
      %5527 = vmatprep.subr.mxu0 0.0
      %5528 = vmatpush1.msra.mxu0 0.0
      %5529 = vmatprep.subr.mxu0 0.0
      %5530 = vmatpush1.msra.mxu0 0.0
      %5531 = vmatprep.subr.mxu0 0.0
      %5532 = vmatpush1.msra.mxu0 0.0
      %5533 = vmatprep.subr.mxu0 0.0
      %5534 = vmatpush1.msra.mxu0 0.0
      %5535 = vmatprep.subr.mxu0 0.0
      %5536 = vmatpush1.msra.mxu0 0.0
      %5537 = vmatprep.subr.mxu0 0.0
      %5538 = vmatpush1.msra.mxu0 0.0
      %5539 = vmatprep.subr.mxu0 0.0
      %5540 = vmatpush1.msra.mxu0 0.0
      %5541 = vmatprep.subr.mxu0 0.0
      %5542 = vmatpush1.msra.mxu0 0.0
      %5543 = vmatprep.subr.mxu0 0.0
      %5544 = vmatpush1.msra.mxu0 0.0
      %5545 = vmatprep.subr.mxu0 0.0
      %5546 = vmatpush1.msra.mxu0 0.0
      %5547 = vmatprep.subr.mxu0 0.0
      %5548 = vmatpush1.msra.mxu0 0.0
      %5549 = vmatprep.subr.mxu0 0.0
      %5550 = vmatpush1.msra.mxu0 0.0
      %5551 = vmatprep.subr.mxu0 0.0
      %5552 = vmatpush1.msra.mxu0 0.0
      %5553 = vmatprep.subr.mxu0 0.0
      %5554 = vmatpush1.msra.mxu0 0.0
      %5555 = vmatprep.subr.mxu0 0.0
      %5556 = vmatpush1.msra.mxu0 0.0
      %5557 = vmatprep.subr.mxu0 0.0
      %5558 = vmatpush1.msra.mxu0 0.0
      %5559 = vmatprep.subr.mxu0 0.0
      %5560 = vmatpush1.msra.mxu0 0.0
      %5561 = vmatprep.subr.mxu0 0.0
      %5562 = vmatpush1.msra.mxu0 0.0
      %5563 = vmatprep.subr.mxu0 0.0
      %5564 = vmatpush1.msra.mxu0 0.0
      %5565 = vmatprep.subr.mxu0 0.0
      %5566 = vmatpush1.msra.mxu0 0.0
      %5567 = vmatprep.subr.mxu0 0.0
      %5568 = vmatpush1.msra.mxu0 0.0
      %5569 = vmatprep.subr.mxu0 0.0
      %5570 = vmatpush1.msra.mxu0 0.0
      %5571 = vmatprep.mubr.f32.mxu0 0.0
      %5572 = vmatmul.mubr.f32.gmra.mrb[0].mxu0 %v5505
      %v5573 = vpop.f32.mrb[0].mxu0
      %v5574 = vadd.f32 0.0, %v5573
      %v5575 = vpop.f32.mrb[0].mxu0
      %5576 = vdwg.mxu0
      %5577 = vrot.lane.b32.xlu0 %v377, 40
      %v5578 = vpop.permute.xlu0 %5577
      %v5581 = vsel %vm383, %v5044, 0
      %5583 = vmatprep.subr.mxu0 0.0
      %5584 = vmatpush1.msra.mxu0 %v5578
      %5585 = vmatprep.subr.mxu0 0.0
      %5586 = vmatpush1.msra.mxu0 0.0
      %5587 = vmatprep.subr.mxu0 0.0
      %5588 = vmatpush1.msra.mxu0 0.0
      %5589 = vmatprep.subr.mxu0 0.0
      %5590 = vmatpush1.msra.mxu0 0.0
      %5591 = vmatprep.subr.mxu0 0.0
      %5592 = vmatpush1.msra.mxu0 0.0
      %5593 = vmatprep.subr.mxu0 0.0
      %5594 = vmatpush1.msra.mxu0 0.0
      %5595 = vmatprep.subr.mxu0 0.0
      %5596 = vmatpush1.msra.mxu0 0.0
      %5597 = vmatprep.subr.mxu0 0.0
      %5598 = vmatpush1.msra.mxu0 0.0
      %5599 = vmatprep.subr.mxu0 0.0
      %5600 = vmatpush1.msra.mxu0 0.0
      %5601 = vmatprep.subr.mxu0 0.0
      %5602 = vmatpush1.msra.mxu0 0.0
      %5603 = vmatprep.subr.mxu0 0.0
      %5604 = vmatpush1.msra.mxu0 0.0
      %5605 = vmatprep.subr.mxu0 0.0
      %5606 = vmatpush1.msra.mxu0 0.0
      %5607 = vmatprep.subr.mxu0 0.0
      %5608 = vmatpush1.msra.mxu0 0.0
      %5609 = vmatprep.subr.mxu0 0.0
      %5610 = vmatpush1.msra.mxu0 0.0
      %5611 = vmatprep.subr.mxu0 0.0
      %5612 = vmatpush1.msra.mxu0 0.0
      %5613 = vmatprep.subr.mxu0 0.0
      %5614 = vmatpush1.msra.mxu0 0.0
      %5615 = vmatprep.subr.mxu0 0.0
      %5616 = vmatpush1.msra.mxu0 0.0
      %5617 = vmatprep.subr.mxu0 0.0
      %5618 = vmatpush1.msra.mxu0 0.0
      %5619 = vmatprep.subr.mxu0 0.0
      %5620 = vmatpush1.msra.mxu0 0.0
      %5621 = vmatprep.subr.mxu0 0.0
      %5622 = vmatpush1.msra.mxu0 0.0
      %5623 = vmatprep.subr.mxu0 0.0
      %5624 = vmatpush1.msra.mxu0 0.0
      %5625 = vmatprep.subr.mxu0 0.0
      %5626 = vmatpush1.msra.mxu0 0.0
      %5627 = vmatprep.subr.mxu0 0.0
      %5628 = vmatpush1.msra.mxu0 0.0
      %5629 = vmatprep.subr.mxu0 0.0
      %5630 = vmatpush1.msra.mxu0 0.0
      %5631 = vmatprep.subr.mxu0 0.0
      %5632 = vmatpush1.msra.mxu0 0.0
      %5633 = vmatprep.subr.mxu0 0.0
      %5634 = vmatpush1.msra.mxu0 0.0
      %5635 = vmatprep.subr.mxu0 0.0
      %5636 = vmatpush1.msra.mxu0 0.0
      %5637 = vmatprep.subr.mxu0 0.0
      %5638 = vmatpush1.msra.mxu0 0.0
      %5639 = vmatprep.subr.mxu0 0.0
      %5640 = vmatpush1.msra.mxu0 0.0
      %5641 = vmatprep.subr.mxu0 0.0
      %5642 = vmatpush1.msra.mxu0 0.0
      %5643 = vmatprep.subr.mxu0 0.0
      %5644 = vmatpush1.msra.mxu0 0.0
      %5645 = vmatprep.subr.mxu0 0.0
      %5646 = vmatpush1.msra.mxu0 0.0
      %5647 = vmatprep.mubr.f32.mxu0 0.0
      %5648 = vmatmul.mubr.f32.gmra.mrb[0].mxu0 %v5581
      %v5649 = vpop.f32.mrb[0].mxu0
      %v5650 = vadd.f32 0.0, %v5649
      %v5651 = vpop.f32.mrb[0].mxu0
      %5652 = vdwg.mxu0
      %5661 = vrot.lane.b32.xlu0 %v2478, 8
      %v5662 = vpop.permute.xlu0 %5661
      %5663 = vrot.lane.b32.xlu0 %v2554, 8
      %v5664 = vpop.permute.xlu0 %5663
      %5665 = vrot.lane.b32.xlu0 %v2630, 8
      %v5666 = vpop.permute.xlu0 %5665
      %5667 = vrot.lane.b32.xlu0 %v2706, 8
      %v5668 = vpop.permute.xlu0 %5667
      %5669 = vrot.lane.b32.xlu0 %v2782, 8
      %v5670 = vpop.permute.xlu0 %5669
      %5671 = vrot.lane.b32.xlu0 %v2858, 8
      %v5672 = vpop.permute.xlu0 %5671
      %5673 = vrot.lane.b32.xlu0 %v2934, 8
      %v5674 = vpop.permute.xlu0 %5673
      %5675 = vrot.lane.b32.xlu0 %v3010, 8
      %v5676 = vpop.permute.xlu0 %5675
      %5693 = vrot.lane.b32.xlu0 %v3798, 16
      %v5694 = vpop.permute.xlu0 %5693
      %5695 = vrot.lane.b32.xlu0 %v3874, 16
      %v5696 = vpop.permute.xlu0 %5695
      %5697 = vrot.lane.b32.xlu0 %v3950, 16
      %v5698 = vpop.permute.xlu0 %5697
      %5699 = vrot.lane.b32.xlu0 %v4026, 16
      %v5700 = vpop.permute.xlu0 %5699
      %5701 = vrot.lane.b32.xlu0 %v4102, 16
      %v5702 = vpop.permute.xlu0 %5701
      %5703 = vrot.lane.b32.xlu0 %v4178, 16
      %v5704 = vpop.permute.xlu0 %5703
      %5705 = vrot.lane.b32.xlu0 %v4254, 16
      %v5706 = vpop.permute.xlu0 %5705
      %5707 = vrot.lane.b32.xlu0 %v4330, 16
      %v5708 = vpop.permute.xlu0 %5707
      %5725 = vrot.lane.b32.xlu0 %v5118, 24
      %v5726 = vpop.permute.xlu0 %5725
      %5727 = vrot.lane.b32.xlu0 %v5194, 24
      %v5728 = vpop.permute.xlu0 %5727
      %5729 = vrot.lane.b32.xlu0 %v5270, 24
      %v5730 = vpop.permute.xlu0 %5729
      %5731 = vrot.lane.b32.xlu0 %v5346, 24
      %v5732 = vpop.permute.xlu0 %5731
      %5733 = vrot.lane.b32.xlu0 %v5422, 24
      %v5734 = vpop.permute.xlu0 %5733
      %5735 = vrot.lane.b32.xlu0 %v5498, 24
      %v5736 = vpop.permute.xlu0 %5735
      %5737 = vrot.lane.b32.xlu0 %v5574, 24
      %v5738 = vpop.permute.xlu0 %5737
      %5739 = vrot.lane.b32.xlu0 %v5650, 24
      %v5740 = vpop.permute.xlu0 %5739
      %v5749 = vsel %vm383, %v1158, %v5662
      %v5750 = vsel %vm383, %v1234, %v5664
      %v5751 = vsel %vm383, %v1310, %v5666
      %v5752 = vsel %vm383, %v1386, %v5668
      %v5753 = vsel %vm383, %v1462, %v5670
      %v5754 = vsel %vm383, %v1538, %v5672
      %v5755 = vsel %vm383, %v1614, %v5674
      %v5756 = vsel %vm383, %v1690, %v5676
      %vm5757 = vcmask 130048
      %v5758 = vsel %vm5757, %v5749, %v5694
      %v5759 = vsel %vm5757, %v5750, %v5696
      %v5760 = vsel %vm5757, %v5751, %v5698
      %v5761 = vsel %vm5757, %v5752, %v5700
      %v5762 = vsel %vm5757, %v5753, %v5702
      %v5763 = vsel %vm5757, %v5754, %v5704
      %v5764 = vsel %vm5757, %v5755, %v5706
      %v5765 = vsel %vm5757, %v5756, %v5708
      %vm5766 = vcmask 195584
      %v5767 = vsel %vm5766, %v5758, %v5726
      %v5768 = vsel %vm5766, %v5759, %v5728
      %v5769 = vsel %vm5766, %v5760, %v5730
      %v5770 = vsel %vm5766, %v5761, %v5732
      %v5771 = vsel %vm5766, %v5762, %v5734
      %v5772 = vsel %vm5766, %v5763, %v5736
      %v5773 = vsel %vm5766, %v5764, %v5738
      %v5774 = vsel %vm5766, %v5765, %v5740
      %5779 = vrot.lane.b32.xlu0 %v239, 32
      %v5780 = vpop.permute.xlu0 %5779
      %5781 = vrot.lane.b32.xlu0 %v240, 32
      %v5782 = vpop.permute.xlu0 %5781
      %5783 = vrot.lane.b32.xlu0 %v241, 32
      %v5784 = vpop.permute.xlu0 %5783
      %5785 = vrot.lane.b32.xlu0 %v242, 32
      %v5786 = vpop.permute.xlu0 %5785
      %5791 = vrot.lane.b32.xlu0 %v248, 32
      %v5792 = vpop.permute.xlu0 %5791
      %v5795 = vsel %vm250, %v5767, 0
      %v5798 = vsel %vm250, %v5768, 0
      %v5801 = vsel %vm250, %v5769, 0
      %v5804 = vsel %vm250, %v5770, 0
      %v5807 = vsel %vm250, %v5771, 0
      %v5810 = vsel %vm250, %v5772, 0
      %v5813 = vsel %vm250, %v5773, 0
      %v5816 = vsel %vm250, %v5774, 0
      %5818 = vmatprep.subr.mxu0 0.0
      %5819 = vmatpush1.msra.mxu0 %v5780
      %5820 = vmatprep.subr.mxu0 0.0
      %5821 = vmatpush1.msra.mxu0 %v5782
      %5822 = vmatprep.subr.mxu0 0.0
      %5823 = vmatpush1.msra.mxu0 %v5784
      %5824 = vmatprep.subr.mxu0 0.0
      %5825 = vmatpush1.msra.mxu0 %v5786
      %5826 = vmatprep.subr.mxu0 0.0
      %5827 = vmatpush1.msra.mxu0 0.0
      %5828 = vmatprep.subr.mxu0 0.0
      %5829 = vmatpush1.msra.mxu0 0.0
      %5830 = vmatprep.subr.mxu0 0.0
      %5831 = vmatpush1.msra.mxu0 0.0
      %5832 = vmatprep.subr.mxu0 0.0
      %5833 = vmatpush1.msra.mxu0 0.0
      %5834 = vmatprep.subr.mxu0 0.0
      %5835 = vmatpush1.msra.mxu0 0.0
      %5836 = vmatprep.subr.mxu0 0.0
      %5837 = vmatpush1.msra.mxu0 0.0
      %5838 = vmatprep.subr.mxu0 0.0
      %5839 = vmatpush1.msra.mxu0 0.0
      %5840 = vmatprep.subr.mxu0 0.0
      %5841 = vmatpush1.msra.mxu0 0.0
      %5842 = vmatprep.subr.mxu0 0.0
      %5843 = vmatpush1.msra.mxu0 0.0
      %5844 = vmatprep.subr.mxu0 0.0
      %5845 = vmatpush1.msra.mxu0 0.0
      %5846 = vmatprep.subr.mxu0 0.0
      %5847 = vmatpush1.msra.mxu0 0.0
      %5848 = vmatprep.subr.mxu0 0.0
      %5849 = vmatpush1.msra.mxu0 0.0
      %5850 = vmatprep.subr.mxu0 0.0
      %5851 = vmatpush1.msra.mxu0 0.0
      %5852 = vmatprep.subr.mxu0 0.0
      %5853 = vmatpush1.msra.mxu0 0.0
      %5854 = vmatprep.subr.mxu0 0.0
      %5855 = vmatpush1.msra.mxu0 0.0
      %5856 = vmatprep.subr.mxu0 0.0
      %5857 = vmatpush1.msra.mxu0 0.0
      %5858 = vmatprep.subr.mxu0 0.0
      %5859 = vmatpush1.msra.mxu0 0.0
      %5860 = vmatprep.subr.mxu0 0.0
      %5861 = vmatpush1.msra.mxu0 0.0
      %5862 = vmatprep.subr.mxu0 0.0
      %5863 = vmatpush1.msra.mxu0 0.0
      %5864 = vmatprep.subr.mxu0 0.0
      %5865 = vmatpush1.msra.mxu0 0.0
      %5866 = vmatprep.subr.mxu0 0.0
      %5867 = vmatpush1.msra.mxu0 0.0
      %5868 = vmatprep.subr.mxu0 0.0
      %5869 = vmatpush1.msra.mxu0 0.0
      %5870 = vmatprep.subr.mxu0 0.0
      %5871 = vmatpush1.msra.mxu0 0.0
      %5872 = vmatprep.subr.mxu0 0.0
      %5873 = vmatpush1.msra.mxu0 0.0
      %5874 = vmatprep.subr.mxu0 0.0
      %5875 = vmatpush1.msra.mxu0 0.0
      %5876 = vmatprep.subr.mxu0 0.0
      %5877 = vmatpush1.msra.mxu0 0.0
      %5878 = vmatprep.subr.mxu0 0.0
      %5879 = vmatpush1.msra.mxu0 0.0
      %5880 = vmatprep.subr.mxu0 0.0
      %5881 = vmatpush1.msra.mxu0 0.0
      %5882 = vmatprep.mubr.f32.mxu0 0.0
      %5883 = vmatmul.mubr.f32.gmra.mrb[0].mxu0 %v5795
      %v5884 = vpop.f32.mrb[0].mxu0
      %v5885 = vadd.f32 %v5792, %v5884
      %v5886 = vpop.f32.mrb[0].mxu0
      %5887 = vmatprep.mubr.f32.mxu0 0.0
      %5888 = vmatmul.mubr.f32.gmra.mrb[0].mxu0 %v5798
      %v5889 = vpop.f32.mrb[0].mxu0
      %v5890 = vadd.f32 %v5792, %v5889
      %v5891 = vpop.f32.mrb[0].mxu0
      %5892 = vmatprep.mubr.f32.mxu0 0.0
      %5893 = vmatmul.mubr.f32.gmra.mrb[0].mxu0 %v5801
      %v5894 = vpop.f32.mrb[0].mxu0
      %v5895 = vadd.f32 %v5792, %v5894
      %v5896 = vpop.f32.mrb[0].mxu0
      %5897 = vmatprep.mubr.f32.mxu0 0.0
      %5898 = vmatmul.mubr.f32.gmra.mrb[0].mxu0 %v5804
      %v5899 = vpop.f32.mrb[0].mxu0
      %v5900 = vadd.f32 %v5792, %v5899
      %v5901 = vpop.f32.mrb[0].mxu0
      %5902 = vmatprep.mubr.f32.mxu0 0.0
      %5903 = vmatmul.mubr.f32.gmra.mrb[0].mxu0 %v5807
      %v5904 = vpop.f32.mrb[0].mxu0
      %v5905 = vadd.f32 %v5792, %v5904
      %v5906 = vpop.f32.mrb[0].mxu0
      %5907 = vmatprep.mubr.f32.mxu0 0.0
      %5908 = vmatmul.mubr.f32.gmra.mrb[0].mxu0 %v5810
      %v5909 = vpop.f32.mrb[0].mxu0
      %v5910 = vadd.f32 %v5792, %v5909
      %v5911 = vpop.f32.mrb[0].mxu0
      %5912 = vmatprep.mubr.f32.mxu0 0.0
      %5913 = vmatmul.mubr.f32.gmra.mrb[0].mxu0 %v5813
      %v5914 = vpop.f32.mrb[0].mxu0
      %v5915 = vadd.f32 %v5792, %v5914
      %v5916 = vpop.f32.mrb[0].mxu0
      %5917 = vmatprep.mubr.f32.mxu0 0.0
      %5918 = vmatmul.mubr.f32.gmra.mrb[0].mxu0 %v5816
      %v5919 = vpop.f32.mrb[0].mxu0
      %v5920 = vadd.f32 %v5792, %v5919
      %v5921 = vpop.f32.mrb[0].mxu0
      %5922 = vdwg.mxu0
      %v5923 = vadd.f32 %v223, %v5885
      %v5924 = vadd.f32 %v224, %v5890
      %v5925 = vadd.f32 %v225, %v5895
      %v5926 = vadd.f32 %v226, %v5900
      %v5927 = vadd.f32 %v227, %v5905
      %v5928 = vadd.f32 %v228, %v5910
      %v5929 = vadd.f32 %v229, %v5915
      %v5930 = vadd.f32 %v230, %v5920
      %v5931 = vld [vmem:[%s2 + $0x8] sm:$0xff]
      %v5932 = vld [vmem:[%s2 + $0x20] sm:$0xff]
      %v5933 = vld [vmem:[%s2 + $0x38] sm:$0xff]
      %v5934 = vld [vmem:[%s2 + $0x50] sm:$0xff]
      %v5935 = vld [vmem:[%s3 + $0x1] sm:$0x1]
      %v5937 = vlaneseq
      %v5938 = vshrl.u32 %v5937, 7
      %v5939 = vsub.s32 0, %v5938
      %v5940 = vrot.slane %v5935, %v5939
      %v5943 = vsel %vm250, %v5923, 0
      %v5946 = vsel %vm250, %v5924, 0
      %v5949 = vsel %vm250, %v5925, 0
      %v5952 = vsel %vm250, %v5926, 0
      %v5955 = vsel %vm250, %v5927, 0
      %v5958 = vsel %vm250, %v5928, 0
      %v5961 = vsel %vm250, %v5929, 0
      %v5964 = vsel %vm250, %v5930, 0
      %5966 = vmatprep.subr.mxu0 0.0
      %5967 = vmatpush1.msra.mxu0 %v5931
      %5968 = vmatprep.subr.mxu0 0.0
      %5969 = vmatpush1.msra.mxu0 %v5932
      %5970 = vmatprep.subr.mxu0 0.0
      %5971 = vmatpush1.msra.mxu0 %v5933
      %5972 = vmatprep.subr.mxu0 0.0
      %5973 = vmatpush1.msra.mxu0 %v5934
      %5974 = vmatprep.subr.mxu0 0.0
      %5975 = vmatpush1.msra.mxu0 0.0
      %5976 = vmatprep.subr.mxu0 0.0
      %5977 = vmatpush1.msra.mxu0 0.0
      %5978 = vmatprep.subr.mxu0 0.0
      %5979 = vmatpush1.msra.mxu0 0.0
      %5980 = vmatprep.subr.mxu0 0.0
      %5981 = vmatpush1.msra.mxu0 0.0
      %5982 = vmatprep.subr.mxu0 0.0
      %5983 = vmatpush1.msra.mxu0 0.0
      %5984 = vmatprep.subr.mxu0 0.0
      %5985 = vmatpush1.msra.mxu0 0.0
      %5986 = vmatprep.subr.mxu0 0.0
      %5987 = vmatpush1.msra.mxu0 0.0
      %5988 = vmatprep.subr.mxu0 0.0
      %5989 = vmatpush1.msra.mxu0 0.0
      %5990 = vmatprep.subr.mxu0 0.0
      %5991 = vmatpush1.msra.mxu0 0.0
      %5992 = vmatprep.subr.mxu0 0.0
      %5993 = vmatpush1.msra.mxu0 0.0
      %5994 = vmatprep.subr.mxu0 0.0
      %5995 = vmatpush1.msra.mxu0 0.0
      %5996 = vmatprep.subr.mxu0 0.0
      %5997 = vmatpush1.msra.mxu0 0.0
      %5998 = vmatprep.subr.mxu0 0.0
      %5999 = vmatpush1.msra.mxu0 0.0
      %6000 = vmatprep.subr.mxu0 0.0
      %6001 = vmatpush1.msra.mxu0 0.0
      %6002 = vmatprep.subr.mxu0 0.0
      %6003 = vmatpush1.msra.mxu0 0.0
      %6004 = vmatprep.subr.mxu0 0.0
      %6005 = vmatpush1.msra.mxu0 0.0
      %6006 = vmatprep.subr.mxu0 0.0
      %6007 = vmatpush1.msra.mxu0 0.0
      %6008 = vmatprep.subr.mxu0 0.0
      %6009 = vmatpush1.msra.mxu0 0.0
      %6010 = vmatprep.subr.mxu0 0.0
      %6011 = vmatpush1.msra.mxu0 0.0
      %6012 = vmatprep.subr.mxu0 0.0
      %6013 = vmatpush1.msra.mxu0 0.0
      %6014 = vmatprep.subr.mxu0 0.0
      %6015 = vmatpush1.msra.mxu0 0.0
      %6016 = vmatprep.subr.mxu0 0.0
      %6017 = vmatpush1.msra.mxu0 0.0
      %6018 = vmatprep.subr.mxu0 0.0
      %6019 = vmatpush1.msra.mxu0 0.0
      %6020 = vmatprep.subr.mxu0 0.0
      %6021 = vmatpush1.msra.mxu0 0.0
      %6022 = vmatprep.subr.mxu0 0.0
      %6023 = vmatpush1.msra.mxu0 0.0
      %6024 = vmatprep.subr.mxu0 0.0
      %6025 = vmatpush1.msra.mxu0 0.0
      %6026 = vmatprep.subr.mxu0 0.0
      %6027 = vmatpush1.msra.mxu0 0.0
      %6028 = vmatprep.subr.mxu0 0.0
      %6029 = vmatpush1.msra.mxu0 0.0
      %6030 = vmatprep.mubr.f32.mxu0 0.0
      %6031 = vmatmul.mubr.f32.gmra.mrb[0].mxu0 %v5943
      %v6032 = vpop.f32.mrb[0].mxu0
      %v6033 = vadd.f32 %v5940, %v6032
      %v6034 = vpop.f32.mrb[0].mxu0
      %6035 = vmatprep.mubr.f32.mxu0 0.0
      %6036 = vmatmul.mubr.f32.gmra.mrb[0].mxu0 %v5946
      %v6037 = vpop.f32.mrb[0].mxu0
      %v6038 = vadd.f32 %v5940, %v6037
      %v6039 = vpop.f32.mrb[0].mxu0
      %6040 = vmatprep.mubr.f32.mxu0 0.0
      %6041 = vmatmul.mubr.f32.gmra.mrb[0].mxu0 %v5949
      %v6042 = vpop.f32.mrb[0].mxu0
      %v6043 = vadd.f32 %v5940, %v6042
      %v6044 = vpop.f32.mrb[0].mxu0
      %6045 = vmatprep.mubr.f32.mxu0 0.0
      %6046 = vmatmul.mubr.f32.gmra.mrb[0].mxu0 %v5952
      %v6047 = vpop.f32.mrb[0].mxu0
      %v6048 = vadd.f32 %v5940, %v6047
      %v6049 = vpop.f32.mrb[0].mxu0
      %6050 = vmatprep.mubr.f32.mxu0 0.0
      %6051 = vmatmul.mubr.f32.gmra.mrb[0].mxu0 %v5955
      %v6052 = vpop.f32.mrb[0].mxu0
      %v6053 = vadd.f32 %v5940, %v6052
      %v6054 = vpop.f32.mrb[0].mxu0
      %6055 = vmatprep.mubr.f32.mxu0 0.0
      %6056 = vmatmul.mubr.f32.gmra.mrb[0].mxu0 %v5958
      %v6057 = vpop.f32.mrb[0].mxu0
      %v6058 = vadd.f32 %v5940, %v6057
      %v6059 = vpop.f32.mrb[0].mxu0
      %6060 = vmatprep.mubr.f32.mxu0 0.0
      %6061 = vmatmul.mubr.f32.gmra.mrb[0].mxu0 %v5961
      %v6062 = vpop.f32.mrb[0].mxu0
      %v6063 = vadd.f32 %v5940, %v6062
      %v6064 = vpop.f32.mrb[0].mxu0
      %6065 = vmatprep.mubr.f32.mxu0 0.0
      %6066 = vmatmul.mubr.f32.gmra.mrb[0].mxu0 %v5964
      %v6067 = vpop.f32.mrb[0].mxu0
      %v6068 = vadd.f32 %v5940, %v6067
      %v6069 = vpop.f32.mrb[0].mxu0
      %6070 = vdwg.mxu0
      %6075 = vrot.lane.b32.xlu0 %v5931, 96
      %v6076 = vpop.permute.xlu0 %6075
      %6077 = vrot.lane.b32.xlu0 %v5932, 96
      %v6078 = vpop.permute.xlu0 %6077
      %6079 = vrot.lane.b32.xlu0 %v5933, 96
      %v6080 = vpop.permute.xlu0 %6079
      %6081 = vrot.lane.b32.xlu0 %v5934, 96
      %v6082 = vpop.permute.xlu0 %6081
      %6087 = vrot.lane.b32.xlu0 %v5940, 96
      %v6088 = vpop.permute.xlu0 %6087
      %v6091 = vsel %vm250, %v231, 0
      %v6094 = vsel %vm250, %v232, 0
      %v6097 = vsel %vm250, %v233, 0
      %v6100 = vsel %vm250, %v234, 0
      %v6103 = vsel %vm250, %v235, 0
      %v6106 = vsel %vm250, %v236, 0
      %v6109 = vsel %vm250, %v237, 0
      %v6112 = vsel %vm250, %v238, 0
      %6114 = vmatprep.subr.mxu0 0.0
      %6115 = vmatpush1.msra.mxu0 %v6076
      %6116 = vmatprep.subr.mxu0 0.0
      %6117 = vmatpush1.msra.mxu0 %v6078
      %6118 = vmatprep.subr.mxu0 0.0
      %6119 = vmatpush1.msra.mxu0 %v6080
      %6120 = vmatprep.subr.mxu0 0.0
      %6121 = vmatpush1.msra.mxu0 %v6082
      %6122 = vmatprep.subr.mxu0 0.0
      %6123 = vmatpush1.msra.mxu0 0.0
      %6124 = vmatprep.subr.mxu0 0.0
      %6125 = vmatpush1.msra.mxu0 0.0
      %6126 = vmatprep.subr.mxu0 0.0
      %6127 = vmatpush1.msra.mxu0 0.0
      %6128 = vmatprep.subr.mxu0 0.0
      %6129 = vmatpush1.msra.mxu0 0.0
      %6130 = vmatprep.subr.mxu0 0.0
      %6131 = vmatpush1.msra.mxu0 0.0
      %6132 = vmatprep.subr.mxu0 0.0
      %6133 = vmatpush1.msra.mxu0 0.0
      %6134 = vmatprep.subr.mxu0 0.0
      %6135 = vmatpush1.msra.mxu0 0.0
      %6136 = vmatprep.subr.mxu0 0.0
      %6137 = vmatpush1.msra.mxu0 0.0
      %6138 = vmatprep.subr.mxu0 0.0
      %6139 = vmatpush1.msra.mxu0 0.0
      %6140 = vmatprep.subr.mxu0 0.0
      %6141 = vmatpush1.msra.mxu0 0.0
      %6142 = vmatprep.subr.mxu0 0.0
      %6143 = vmatpush1.msra.mxu0 0.0
      %6144 = vmatprep.subr.mxu0 0.0
      %6145 = vmatpush1.msra.mxu0 0.0
      %6146 = vmatprep.subr.mxu0 0.0
      %6147 = vmatpush1.msra.mxu0 0.0
      %6148 = vmatprep.subr.mxu0 0.0
      %6149 = vmatpush1.msra.mxu0 0.0
      %6150 = vmatprep.subr.mxu0 0.0
      %6151 = vmatpush1.msra.mxu0 0.0
      %6152 = vmatprep.subr.mxu0 0.0
      %6153 = vmatpush1.msra.mxu0 0.0
      %6154 = vmatprep.subr.mxu0 0.0
      %6155 = vmatpush1.msra.mxu0 0.0
      %6156 = vmatprep.subr.mxu0 0.0
      %6157 = vmatpush1.msra.mxu0 0.0
      %6158 = vmatprep.subr.mxu0 0.0
      %6159 = vmatpush1.msra.mxu0 0.0
      %6160 = vmatprep.subr.mxu0 0.0
      %6161 = vmatpush1.msra.mxu0 0.0
      %6162 = vmatprep.subr.mxu0 0.0
      %6163 = vmatpush1.msra.mxu0 0.0
      %6164 = vmatprep.subr.mxu0 0.0
      %6165 = vmatpush1.msra.mxu0 0.0
      %6166 = vmatprep.subr.mxu0 0.0
      %6167 = vmatpush1.msra.mxu0 0.0
      %6168 = vmatprep.subr.mxu0 0.0
      %6169 = vmatpush1.msra.mxu0 0.0
      %6170 = vmatprep.subr.mxu0 0.0
      %6171 = vmatpush1.msra.mxu0 0.0
      %6172 = vmatprep.subr.mxu0 0.0
      %6173 = vmatpush1.msra.mxu0 0.0
      %6174 = vmatprep.subr.mxu0 0.0
      %6175 = vmatpush1.msra.mxu0 0.0
      %6176 = vmatprep.subr.mxu0 0.0
      %6177 = vmatpush1.msra.mxu0 0.0
      %6178 = vmatprep.mubr.f32.mxu0 0.0
      %6179 = vmatmul.mubr.f32.gmra.mrb[0].mxu0 %v6091
      %v6180 = vpop.f32.mrb[0].mxu0
      %v6181 = vadd.f32 %v6088, %v6180
      %v6182 = vpop.f32.mrb[0].mxu0
      %6183 = vmatprep.mubr.f32.mxu0 0.0
      %6184 = vmatmul.mubr.f32.gmra.mrb[0].mxu0 %v6094
      %v6185 = vpop.f32.mrb[0].mxu0
      %v6186 = vadd.f32 %v6088, %v6185
      %v6187 = vpop.f32.mrb[0].mxu0
      %6188 = vmatprep.mubr.f32.mxu0 0.0
      %6189 = vmatmul.mubr.f32.gmra.mrb[0].mxu0 %v6097
      %v6190 = vpop.f32.mrb[0].mxu0
      %v6191 = vadd.f32 %v6088, %v6190
      %v6192 = vpop.f32.mrb[0].mxu0
      %6193 = vmatprep.mubr.f32.mxu0 0.0
      %6194 = vmatmul.mubr.f32.gmra.mrb[0].mxu0 %v6100
      %v6195 = vpop.f32.mrb[0].mxu0
      %v6196 = vadd.f32 %v6088, %v6195
      %v6197 = vpop.f32.mrb[0].mxu0
      %6198 = vmatprep.mubr.f32.mxu0 0.0
      %6199 = vmatmul.mubr.f32.gmra.mrb[0].mxu0 %v6103
      %v6200 = vpop.f32.mrb[0].mxu0
      %v6201 = vadd.f32 %v6088, %v6200
      %v6202 = vpop.f32.mrb[0].mxu0
      %6203 = vmatprep.mubr.f32.mxu0 0.0
      %6204 = vmatmul.mubr.f32.gmra.mrb[0].mxu0 %v6106
      %v6205 = vpop.f32.mrb[0].mxu0
      %v6206 = vadd.f32 %v6088, %v6205
      %v6207 = vpop.f32.mrb[0].mxu0
      %6208 = vmatprep.mubr.f32.mxu0 0.0
      %6209 = vmatmul.mubr.f32.gmra.mrb[0].mxu0 %v6109
      %v6210 = vpop.f32.mrb[0].mxu0
      %v6211 = vadd.f32 %v6088, %v6210
      %v6212 = vpop.f32.mrb[0].mxu0
      %6213 = vmatprep.mubr.f32.mxu0 0.0
      %6214 = vmatmul.mubr.f32.gmra.mrb[0].mxu0 %v6112
      %v6215 = vpop.f32.mrb[0].mxu0
      %v6216 = vadd.f32 %v6088, %v6215
      %v6217 = vpop.f32.mrb[0].mxu0
      %6218 = vdwg.mxu0
      %v6220 = vsel %vm383, %v6033, 0
      %v6223 = vsel %vm383, %v6181, 0
      %6225 = vmatprep.subr.mxu0 0.0
      %6226 = vmatpush1.xpose.msra.mxu0 %v6223
      %6227 = vmatprep.subr.mxu0 0.0
      %6228 = vmatpush1.xpose.msra.mxu0 0.0
      %6229 = vmatprep.subr.mxu0 0.0
      %6230 = vmatpush1.xpose.msra.mxu0 0.0
      %6231 = vmatprep.subr.mxu0 0.0
      %6232 = vmatpush1.xpose.msra.mxu0 0.0
      %6233 = vmatprep.subr.mxu0 0.0
      %6234 = vmatpush1.xpose.msra.mxu0 0.0
      %6235 = vmatprep.subr.mxu0 0.0
      %6236 = vmatpush1.xpose.msra.mxu0 0.0
      %6237 = vmatprep.subr.mxu0 0.0
      %6238 = vmatpush1.xpose.msra.mxu0 0.0
      %6239 = vmatprep.subr.mxu0 0.0
      %6240 = vmatpush1.xpose.msra.mxu0 0.0
      %6241 = vmatprep.subr.mxu0 0.0
      %6242 = vmatpush1.xpose.msra.mxu0 0.0
      %6243 = vmatprep.subr.mxu0 0.0
      %6244 = vmatpush1.xpose.msra.mxu0 0.0
      %6245 = vmatprep.subr.mxu0 0.0
      %6246 = vmatpush1.xpose.msra.mxu0 0.0
      %6247 = vmatprep.subr.mxu0 0.0
      %6248 = vmatpush1.xpose.msra.mxu0 0.0
      %6249 = vmatprep.subr.mxu0 0.0
      %6250 = vmatpush1.xpose.msra.mxu0 0.0
      %6251 = vmatprep.subr.mxu0 0.0
      %6252 = vmatpush1.xpose.msra.mxu0 0.0
      %6253 = vmatprep.subr.mxu0 0.0
      %6254 = vmatpush1.xpose.msra.mxu0 0.0
      %6255 = vmatprep.subr.mxu0 0.0
      %6256 = vmatpush1.xpose.msra.mxu0 0.0
      %6257 = vmatprep.subr.mxu0 0.0
      %6258 = vmatpush1.xpose.msra.mxu0 0.0
      %6259 = vmatprep.subr.mxu0 0.0
      %6260 = vmatpush1.xpose.msra.mxu0 0.0
      %6261 = vmatprep.subr.mxu0 0.0
      %6262 = vmatpush1.xpose.msra.mxu0 0.0
      %6263 = vmatprep.subr.mxu0 0.0
      %6264 = vmatpush1.xpose.msra.mxu0 0.0
      %6265 = vmatprep.subr.mxu0 0.0
      %6266 = vmatpush1.xpose.msra.mxu0 0.0
      %6267 = vmatprep.subr.mxu0 0.0
      %6268 = vmatpush1.xpose.msra.mxu0 0.0
      %6269 = vmatprep.subr.mxu0 0.0
      %6270 = vmatpush1.xpose.msra.mxu0 0.0
      %6271 = vmatprep.subr.mxu0 0.0
      %6272 = vmatpush1.xpose.msra.mxu0 0.0
      %6273 = vmatprep.subr.mxu0 0.0
      %6274 = vmatpush1.xpose.msra.mxu0 0.0
      %6275 = vmatprep.subr.mxu0 0.0
      %6276 = vmatpush1.xpose.msra.mxu0 0.0
      %6277 = vmatprep.subr.mxu0 0.0
      %6278 = vmatpush1.xpose.msra.mxu0 0.0
      %6279 = vmatprep.subr.mxu0 0.0
      %6280 = vmatpush1.xpose.msra.mxu0 0.0
      %6281 = vmatprep.subr.mxu0 0.0
      %6282 = vmatpush1.xpose.msra.mxu0 0.0
      %6283 = vmatprep.subr.mxu0 0.0
      %6284 = vmatpush1.xpose.msra.mxu0 0.0
      %6285 = vmatprep.subr.mxu0 0.0
      %6286 = vmatpush1.xpose.msra.mxu0 0.0
      %6287 = vmatprep.subr.mxu0 0.0
      %6288 = vmatpush1.xpose.msra.mxu0 0.0
      %6289 = vmatprep.mubr.f32.mxu0 0.0
      %6290 = vmatmul.mubr.f32.gmra.mrb[0].mxu0 %v6220
      %v6291 = vpop.f32.mrb[0].mxu0
      %v6292 = vadd.f32 0.0, %v6291
      %v6293 = vpop.f32.mrb[0].mxu0
      %6294 = vdwg.mxu0
      %v6296 = vsel %vm383, %v6038, 0
      %v6299 = vsel %vm383, %v6186, 0
      %6301 = vmatprep.subr.mxu0 0.0
      %6302 = vmatpush1.xpose.msra.mxu0 %v6299
      %6303 = vmatprep.subr.mxu0 0.0
      %6304 = vmatpush1.xpose.msra.mxu0 0.0
      %6305 = vmatprep.subr.mxu0 0.0
      %6306 = vmatpush1.xpose.msra.mxu0 0.0
      %6307 = vmatprep.subr.mxu0 0.0
      %6308 = vmatpush1.xpose.msra.mxu0 0.0
      %6309 = vmatprep.subr.mxu0 0.0
      %6310 = vmatpush1.xpose.msra.mxu0 0.0
      %6311 = vmatprep.subr.mxu0 0.0
      %6312 = vmatpush1.xpose.msra.mxu0 0.0
      %6313 = vmatprep.subr.mxu0 0.0
      %6314 = vmatpush1.xpose.msra.mxu0 0.0
      %6315 = vmatprep.subr.mxu0 0.0
      %6316 = vmatpush1.xpose.msra.mxu0 0.0
      %6317 = vmatprep.subr.mxu0 0.0
      %6318 = vmatpush1.xpose.msra.mxu0 0.0
      %6319 = vmatprep.subr.mxu0 0.0
      %6320 = vmatpush1.xpose.msra.mxu0 0.0
      %6321 = vmatprep.subr.mxu0 0.0
      %6322 = vmatpush1.xpose.msra.mxu0 0.0
      %6323 = vmatprep.subr.mxu0 0.0
      %6324 = vmatpush1.xpose.msra.mxu0 0.0
      %6325 = vmatprep.subr.mxu0 0.0
      %6326 = vmatpush1.xpose.msra.mxu0 0.0
      %6327 = vmatprep.subr.mxu0 0.0
      %6328 = vmatpush1.xpose.msra.mxu0 0.0
      %6329 = vmatprep.subr.mxu0 0.0
      %6330 = vmatpush1.xpose.msra.mxu0 0.0
      %6331 = vmatprep.subr.mxu0 0.0
      %6332 = vmatpush1.xpose.msra.mxu0 0.0
      %6333 = vmatprep.subr.mxu0 0.0
      %6334 = vmatpush1.xpose.msra.mxu0 0.0
      %6335 = vmatprep.subr.mxu0 0.0
      %6336 = vmatpush1.xpose.msra.mxu0 0.0
      %6337 = vmatprep.subr.mxu0 0.0
      %6338 = vmatpush1.xpose.msra.mxu0 0.0
      %6339 = vmatprep.subr.mxu0 0.0
      %6340 = vmatpush1.xpose.msra.mxu0 0.0
      %6341 = vmatprep.subr.mxu0 0.0
      %6342 = vmatpush1.xpose.msra.mxu0 0.0
      %6343 = vmatprep.subr.mxu0 0.0
      %6344 = vmatpush1.xpose.msra.mxu0 0.0
      %6345 = vmatprep.subr.mxu0 0.0
      %6346 = vmatpush1.xpose.msra.mxu0 0.0
      %6347 = vmatprep.subr.mxu0 0.0
      %6348 = vmatpush1.xpose.msra.mxu0 0.0
      %6349 = vmatprep.subr.mxu0 0.0
      %6350 = vmatpush1.xpose.msra.mxu0 0.0
      %6351 = vmatprep.subr.mxu0 0.0
      %6352 = vmatpush1.xpose.msra.mxu0 0.0
      %6353 = vmatprep.subr.mxu0 0.0
      %6354 = vmatpush1.xpose.msra.mxu0 0.0
      %6355 = vmatprep.subr.mxu0 0.0
      %6356 = vmatpush1.xpose.msra.mxu0 0.0
      %6357 = vmatprep.subr.mxu0 0.0
      %6358 = vmatpush1.xpose.msra.mxu0 0.0
      %6359 = vmatprep.subr.mxu0 0.0
      %6360 = vmatpush1.xpose.msra.mxu0 0.0
      %6361 = vmatprep.subr.mxu0 0.0
      %6362 = vmatpush1.xpose.msra.mxu0 0.0
      %6363 = vmatprep.subr.mxu0 0.0
      %6364 = vmatpush1.xpose.msra.mxu0 0.0
      %6365 = vmatprep.mubr.f32.mxu0 0.0
      %6366 = vmatmul.mubr.f32.gmra.mrb[0].mxu0 %v6296
      %v6367 = vpop.f32.mrb[0].mxu0
      %v6368 = vadd.f32 0.0, %v6367
      %v6369 = vpop.f32.mrb[0].mxu0
      %6370 = vdwg.mxu0
      %v6372 = vsel %vm383, %v6043, 0
      %v6375 = vsel %vm383, %v6191, 0
      %6377 = vmatprep.subr.mxu0 0.0
      %6378 = vmatpush1.xpose.msra.mxu0 %v6375
      %6379 = vmatprep.subr.mxu0 0.0
      %6380 = vmatpush1.xpose.msra.mxu0 0.0
      %6381 = vmatprep.subr.mxu0 0.0
      %6382 = vmatpush1.xpose.msra.mxu0 0.0
      %6383 = vmatprep.subr.mxu0 0.0
      %6384 = vmatpush1.xpose.msra.mxu0 0.0
      %6385 = vmatprep.subr.mxu0 0.0
      %6386 = vmatpush1.xpose.msra.mxu0 0.0
      %6387 = vmatprep.subr.mxu0 0.0
      %6388 = vmatpush1.xpose.msra.mxu0 0.0
      %6389 = vmatprep.subr.mxu0 0.0
      %6390 = vmatpush1.xpose.msra.mxu0 0.0
      %6391 = vmatprep.subr.mxu0 0.0
      %6392 = vmatpush1.xpose.msra.mxu0 0.0
      %6393 = vmatprep.subr.mxu0 0.0
      %6394 = vmatpush1.xpose.msra.mxu0 0.0
      %6395 = vmatprep.subr.mxu0 0.0
      %6396 = vmatpush1.xpose.msra.mxu0 0.0
      %6397 = vmatprep.subr.mxu0 0.0
      %6398 = vmatpush1.xpose.msra.mxu0 0.0
      %6399 = vmatprep.subr.mxu0 0.0
      %6400 = vmatpush1.xpose.msra.mxu0 0.0
      %6401 = vmatprep.subr.mxu0 0.0
      %6402 = vmatpush1.xpose.msra.mxu0 0.0
      %6403 = vmatprep.subr.mxu0 0.0
      %6404 = vmatpush1.xpose.msra.mxu0 0.0
      %6405 = vmatprep.subr.mxu0 0.0
      %6406 = vmatpush1.xpose.msra.mxu0 0.0
      %6407 = vmatprep.subr.mxu0 0.0
      %6408 = vmatpush1.xpose.msra.mxu0 0.0
      %6409 = vmatprep.subr.mxu0 0.0
      %6410 = vmatpush1.xpose.msra.mxu0 0.0
      %6411 = vmatprep.subr.mxu0 0.0
      %6412 = vmatpush1.xpose.msra.mxu0 0.0
      %6413 = vmatprep.subr.mxu0 0.0
      %6414 = vmatpush1.xpose.msra.mxu0 0.0
      %6415 = vmatprep.subr.mxu0 0.0
      %6416 = vmatpush1.xpose.msra.mxu0 0.0
      %6417 = vmatprep.subr.mxu0 0.0
      %6418 = vmatpush1.xpose.msra.mxu0 0.0
      %6419 = vmatprep.subr.mxu0 0.0
      %6420 = vmatpush1.xpose.msra.mxu0 0.0
      %6421 = vmatprep.subr.mxu0 0.0
      %6422 = vmatpush1.xpose.msra.mxu0 0.0
      %6423 = vmatprep.subr.mxu0 0.0
      %6424 = vmatpush1.xpose.msra.mxu0 0.0
      %6425 = vmatprep.subr.mxu0 0.0
      %6426 = vmatpush1.xpose.msra.mxu0 0.0
      %6427 = vmatprep.subr.mxu0 0.0
      %6428 = vmatpush1.xpose.msra.mxu0 0.0
      %6429 = vmatprep.subr.mxu0 0.0
      %6430 = vmatpush1.xpose.msra.mxu0 0.0
      %6431 = vmatprep.subr.mxu0 0.0
      %6432 = vmatpush1.xpose.msra.mxu0 0.0
      %6433 = vmatprep.subr.mxu0 0.0
      %6434 = vmatpush1.xpose.msra.mxu0 0.0
      %6435 = vmatprep.subr.mxu0 0.0
      %6436 = vmatpush1.xpose.msra.mxu0 0.0
      %6437 = vmatprep.subr.mxu0 0.0
      %6438 = vmatpush1.xpose.msra.mxu0 0.0
      %6439 = vmatprep.subr.mxu0 0.0
      %6440 = vmatpush1.xpose.msra.mxu0 0.0
      %6441 = vmatprep.mubr.f32.mxu0 0.0
      %6442 = vmatmul.mubr.f32.gmra.mrb[0].mxu0 %v6372
      %v6443 = vpop.f32.mrb[0].mxu0
      %v6444 = vadd.f32 0.0, %v6443
      %v6445 = vpop.f32.mrb[0].mxu0
      %6446 = vdwg.mxu0
      %v6448 = vsel %vm383, %v6048, 0
      %v6451 = vsel %vm383, %v6196, 0
      %6453 = vmatprep.subr.mxu0 0.0
      %6454 = vmatpush1.xpose.msra.mxu0 %v6451
      %6455 = vmatprep.subr.mxu0 0.0
      %6456 = vmatpush1.xpose.msra.mxu0 0.0
      %6457 = vmatprep.subr.mxu0 0.0
      %6458 = vmatpush1.xpose.msra.mxu0 0.0
      %6459 = vmatprep.subr.mxu0 0.0
      %6460 = vmatpush1.xpose.msra.mxu0 0.0
      %6461 = vmatprep.subr.mxu0 0.0
      %6462 = vmatpush1.xpose.msra.mxu0 0.0
      %6463 = vmatprep.subr.mxu0 0.0
      %6464 = vmatpush1.xpose.msra.mxu0 0.0
      %6465 = vmatprep.subr.mxu0 0.0
      %6466 = vmatpush1.xpose.msra.mxu0 0.0
      %6467 = vmatprep.subr.mxu0 0.0
      %6468 = vmatpush1.xpose.msra.mxu0 0.0
      %6469 = vmatprep.subr.mxu0 0.0
      %6470 = vmatpush1.xpose.msra.mxu0 0.0
      %6471 = vmatprep.subr.mxu0 0.0
      %6472 = vmatpush1.xpose.msra.mxu0 0.0
      %6473 = vmatprep.subr.mxu0 0.0
      %6474 = vmatpush1.xpose.msra.mxu0 0.0
      %6475 = vmatprep.subr.mxu0 0.0
      %6476 = vmatpush1.xpose.msra.mxu0 0.0
      %6477 = vmatprep.subr.mxu0 0.0
      %6478 = vmatpush1.xpose.msra.mxu0 0.0
      %6479 = vmatprep.subr.mxu0 0.0
      %6480 = vmatpush1.xpose.msra.mxu0 0.0
      %6481 = vmatprep.subr.mxu0 0.0
      %6482 = vmatpush1.xpose.msra.mxu0 0.0
      %6483 = vmatprep.subr.mxu0 0.0
      %6484 = vmatpush1.xpose.msra.mxu0 0.0
      %6485 = vmatprep.subr.mxu0 0.0
      %6486 = vmatpush1.xpose.msra.mxu0 0.0
      %6487 = vmatprep.subr.mxu0 0.0
      %6488 = vmatpush1.xpose.msra.mxu0 0.0
      %6489 = vmatprep.subr.mxu0 0.0
      %6490 = vmatpush1.xpose.msra.mxu0 0.0
      %6491 = vmatprep.subr.mxu0 0.0
      %6492 = vmatpush1.xpose.msra.mxu0 0.0
      %6493 = vmatprep.subr.mxu0 0.0
      %6494 = vmatpush1.xpose.msra.mxu0 0.0
      %6495 = vmatprep.subr.mxu0 0.0
      %6496 = vmatpush1.xpose.msra.mxu0 0.0
      %6497 = vmatprep.subr.mxu0 0.0
      %6498 = vmatpush1.xpose.msra.mxu0 0.0
      %6499 = vmatprep.subr.mxu0 0.0
      %6500 = vmatpush1.xpose.msra.mxu0 0.0
      %6501 = vmatprep.subr.mxu0 0.0
      %6502 = vmatpush1.xpose.msra.mxu0 0.0
      %6503 = vmatprep.subr.mxu0 0.0
      %6504 = vmatpush1.xpose.msra.mxu0 0.0
      %6505 = vmatprep.subr.mxu0 0.0
      %6506 = vmatpush1.xpose.msra.mxu0 0.0
      %6507 = vmatprep.subr.mxu0 0.0
      %6508 = vmatpush1.xpose.msra.mxu0 0.0
      %6509 = vmatprep.subr.mxu0 0.0
      %6510 = vmatpush1.xpose.msra.mxu0 0.0
      %6511 = vmatprep.subr.mxu0 0.0
      %6512 = vmatpush1.xpose.msra.mxu0 0.0
      %6513 = vmatprep.subr.mxu0 0.0
      %6514 = vmatpush1.xpose.msra.mxu0 0.0
      %6515 = vmatprep.subr.mxu0 0.0
      %6516 = vmatpush1.xpose.msra.mxu0 0.0
      %6517 = vmatprep.mubr.f32.mxu0 0.0
      %6518 = vmatmul.mubr.f32.gmra.mrb[0].mxu0 %v6448
      %v6519 = vpop.f32.mrb[0].mxu0
      %v6520 = vadd.f32 0.0, %v6519
      %v6521 = vpop.f32.mrb[0].mxu0
      %6522 = vdwg.mxu0
      %v6524 = vsel %vm383, %v6053, 0
      %v6527 = vsel %vm383, %v6201, 0
      %6529 = vmatprep.subr.mxu0 0.0
      %6530 = vmatpush1.xpose.msra.mxu0 %v6527
      %6531 = vmatprep.subr.mxu0 0.0
      %6532 = vmatpush1.xpose.msra.mxu0 0.0
      %6533 = vmatprep.subr.mxu0 0.0
      %6534 = vmatpush1.xpose.msra.mxu0 0.0
      %6535 = vmatprep.subr.mxu0 0.0
      %6536 = vmatpush1.xpose.msra.mxu0 0.0
      %6537 = vmatprep.subr.mxu0 0.0
      %6538 = vmatpush1.xpose.msra.mxu0 0.0
      %6539 = vmatprep.subr.mxu0 0.0
      %6540 = vmatpush1.xpose.msra.mxu0 0.0
      %6541 = vmatprep.subr.mxu0 0.0
      %6542 = vmatpush1.xpose.msra.mxu0 0.0
      %6543 = vmatprep.subr.mxu0 0.0
      %6544 = vmatpush1.xpose.msra.mxu0 0.0
      %6545 = vmatprep.subr.mxu0 0.0
      %6546 = vmatpush1.xpose.msra.mxu0 0.0
      %6547 = vmatprep.subr.mxu0 0.0
      %6548 = vmatpush1.xpose.msra.mxu0 0.0
      %6549 = vmatprep.subr.mxu0 0.0
      %6550 = vmatpush1.xpose.msra.mxu0 0.0
      %6551 = vmatprep.subr.mxu0 0.0
      %6552 = vmatpush1.xpose.msra.mxu0 0.0
      %6553 = vmatprep.subr.mxu0 0.0
      %6554 = vmatpush1.xpose.msra.mxu0 0.0
      %6555 = vmatprep.subr.mxu0 0.0
      %6556 = vmatpush1.xpose.msra.mxu0 0.0
      %6557 = vmatprep.subr.mxu0 0.0
      %6558 = vmatpush1.xpose.msra.mxu0 0.0
      %6559 = vmatprep.subr.mxu0 0.0
      %6560 = vmatpush1.xpose.msra.mxu0 0.0
      %6561 = vmatprep.subr.mxu0 0.0
      %6562 = vmatpush1.xpose.msra.mxu0 0.0
      %6563 = vmatprep.subr.mxu0 0.0
      %6564 = vmatpush1.xpose.msra.mxu0 0.0
      %6565 = vmatprep.subr.mxu0 0.0
      %6566 = vmatpush1.xpose.msra.mxu0 0.0
      %6567 = vmatprep.subr.mxu0 0.0
      %6568 = vmatpush1.xpose.msra.mxu0 0.0
      %6569 = vmatprep.subr.mxu0 0.0
      %6570 = vmatpush1.xpose.msra.mxu0 0.0
      %6571 = vmatprep.subr.mxu0 0.0
      %6572 = vmatpush1.xpose.msra.mxu0 0.0
      %6573 = vmatprep.subr.mxu0 0.0
      %6574 = vmatpush1.xpose.msra.mxu0 0.0
      %6575 = vmatprep.subr.mxu0 0.0
      %6576 = vmatpush1.xpose.msra.mxu0 0.0
      %6577 = vmatprep.subr.mxu0 0.0
      %6578 = vmatpush1.xpose.msra.mxu0 0.0
      %6579 = vmatprep.subr.mxu0 0.0
      %6580 = vmatpush1.xpose.msra.mxu0 0.0
      %6581 = vmatprep.subr.mxu0 0.0
      %6582 = vmatpush1.xpose.msra.mxu0 0.0
      %6583 = vmatprep.subr.mxu0 0.0
      %6584 = vmatpush1.xpose.msra.mxu0 0.0
      %6585 = vmatprep.subr.mxu0 0.0
      %6586 = vmatpush1.xpose.msra.mxu0 0.0
      %6587 = vmatprep.subr.mxu0 0.0
      %6588 = vmatpush1.xpose.msra.mxu0 0.0
      %6589 = vmatprep.subr.mxu0 0.0
      %6590 = vmatpush1.xpose.msra.mxu0 0.0
      %6591 = vmatprep.subr.mxu0 0.0
      %6592 = vmatpush1.xpose.msra.mxu0 0.0
      %6593 = vmatprep.mubr.f32.mxu0 0.0
      %6594 = vmatmul.mubr.f32.gmra.mrb[0].mxu0 %v6524
      %v6595 = vpop.f32.mrb[0].mxu0
      %v6596 = vadd.f32 0.0, %v6595
      %v6597 = vpop.f32.mrb[0].mxu0
      %6598 = vdwg.mxu0
      %v6600 = vsel %vm383, %v6058, 0
      %v6603 = vsel %vm383, %v6206, 0
      %6605 = vmatprep.subr.mxu0 0.0
      %6606 = vmatpush1.xpose.msra.mxu0 %v6603
      %6607 = vmatprep.subr.mxu0 0.0
      %6608 = vmatpush1.xpose.msra.mxu0 0.0
      %6609 = vmatprep.subr.mxu0 0.0
      %6610 = vmatpush1.xpose.msra.mxu0 0.0
      %6611 = vmatprep.subr.mxu0 0.0
      %6612 = vmatpush1.xpose.msra.mxu0 0.0
      %6613 = vmatprep.subr.mxu0 0.0
      %6614 = vmatpush1.xpose.msra.mxu0 0.0
      %6615 = vmatprep.subr.mxu0 0.0
      %6616 = vmatpush1.xpose.msra.mxu0 0.0
      %6617 = vmatprep.subr.mxu0 0.0
      %6618 = vmatpush1.xpose.msra.mxu0 0.0
      %6619 = vmatprep.subr.mxu0 0.0
      %6620 = vmatpush1.xpose.msra.mxu0 0.0
      %6621 = vmatprep.subr.mxu0 0.0
      %6622 = vmatpush1.xpose.msra.mxu0 0.0
      %6623 = vmatprep.subr.mxu0 0.0
      %6624 = vmatpush1.xpose.msra.mxu0 0.0
      %6625 = vmatprep.subr.mxu0 0.0
      %6626 = vmatpush1.xpose.msra.mxu0 0.0
      %6627 = vmatprep.subr.mxu0 0.0
      %6628 = vmatpush1.xpose.msra.mxu0 0.0
      %6629 = vmatprep.subr.mxu0 0.0
      %6630 = vmatpush1.xpose.msra.mxu0 0.0
      %6631 = vmatprep.subr.mxu0 0.0
      %6632 = vmatpush1.xpose.msra.mxu0 0.0
      %6633 = vmatprep.subr.mxu0 0.0
      %6634 = vmatpush1.xpose.msra.mxu0 0.0
      %6635 = vmatprep.subr.mxu0 0.0
      %6636 = vmatpush1.xpose.msra.mxu0 0.0
      %6637 = vmatprep.subr.mxu0 0.0
      %6638 = vmatpush1.xpose.msra.mxu0 0.0
      %6639 = vmatprep.subr.mxu0 0.0
      %6640 = vmatpush1.xpose.msra.mxu0 0.0
      %6641 = vmatprep.subr.mxu0 0.0
      %6642 = vmatpush1.xpose.msra.mxu0 0.0
      %6643 = vmatprep.subr.mxu0 0.0
      %6644 = vmatpush1.xpose.msra.mxu0 0.0
      %6645 = vmatprep.subr.mxu0 0.0
      %6646 = vmatpush1.xpose.msra.mxu0 0.0
      %6647 = vmatprep.subr.mxu0 0.0
      %6648 = vmatpush1.xpose.msra.mxu0 0.0
      %6649 = vmatprep.subr.mxu0 0.0
      %6650 = vmatpush1.xpose.msra.mxu0 0.0
      %6651 = vmatprep.subr.mxu0 0.0
      %6652 = vmatpush1.xpose.msra.mxu0 0.0
      %6653 = vmatprep.subr.mxu0 0.0
      %6654 = vmatpush1.xpose.msra.mxu0 0.0
      %6655 = vmatprep.subr.mxu0 0.0
      %6656 = vmatpush1.xpose.msra.mxu0 0.0
      %6657 = vmatprep.subr.mxu0 0.0
      %6658 = vmatpush1.xpose.msra.mxu0 0.0
      %6659 = vmatprep.subr.mxu0 0.0
      %6660 = vmatpush1.xpose.msra.mxu0 0.0
      %6661 = vmatprep.subr.mxu0 0.0
      %6662 = vmatpush1.xpose.msra.mxu0 0.0
      %6663 = vmatprep.subr.mxu0 0.0
      %6664 = vmatpush1.xpose.msra.mxu0 0.0
      %6665 = vmatprep.subr.mxu0 0.0
      %6666 = vmatpush1.xpose.msra.mxu0 0.0
      %6667 = vmatprep.subr.mxu0 0.0
      %6668 = vmatpush1.xpose.msra.mxu0 0.0
      %6669 = vmatprep.mubr.f32.mxu0 0.0
      %6670 = vmatmul.mubr.f32.gmra.mrb[0].mxu0 %v6600
      %v6671 = vpop.f32.mrb[0].mxu0
      %v6672 = vadd.f32 0.0, %v6671
      %v6673 = vpop.f32.mrb[0].mxu0
      %6674 = vdwg.mxu0
      %v6676 = vsel %vm383, %v6063, 0
      %v6679 = vsel %vm383, %v6211, 0
      %6681 = vmatprep.subr.mxu0 0.0
      %6682 = vmatpush1.xpose.msra.mxu0 %v6679
      %6683 = vmatprep.subr.mxu0 0.0
      %6684 = vmatpush1.xpose.msra.mxu0 0.0
      %6685 = vmatprep.subr.mxu0 0.0
      %6686 = vmatpush1.xpose.msra.mxu0 0.0
      %6687 = vmatprep.subr.mxu0 0.0
      %6688 = vmatpush1.xpose.msra.mxu0 0.0
      %6689 = vmatprep.subr.mxu0 0.0
      %6690 = vmatpush1.xpose.msra.mxu0 0.0
      %6691 = vmatprep.subr.mxu0 0.0
      %6692 = vmatpush1.xpose.msra.mxu0 0.0
      %6693 = vmatprep.subr.mxu0 0.0
      %6694 = vmatpush1.xpose.msra.mxu0 0.0
      %6695 = vmatprep.subr.mxu0 0.0
      %6696 = vmatpush1.xpose.msra.mxu0 0.0
      %6697 = vmatprep.subr.mxu0 0.0
      %6698 = vmatpush1.xpose.msra.mxu0 0.0
      %6699 = vmatprep.subr.mxu0 0.0
      %6700 = vmatpush1.xpose.msra.mxu0 0.0
      %6701 = vmatprep.subr.mxu0 0.0
      %6702 = vmatpush1.xpose.msra.mxu0 0.0
      %6703 = vmatprep.subr.mxu0 0.0
      %6704 = vmatpush1.xpose.msra.mxu0 0.0
      %6705 = vmatprep.subr.mxu0 0.0
      %6706 = vmatpush1.xpose.msra.mxu0 0.0
      %6707 = vmatprep.subr.mxu0 0.0
      %6708 = vmatpush1.xpose.msra.mxu0 0.0
      %6709 = vmatprep.subr.mxu0 0.0
      %6710 = vmatpush1.xpose.msra.mxu0 0.0
      %6711 = vmatprep.subr.mxu0 0.0
      %6712 = vmatpush1.xpose.msra.mxu0 0.0
      %6713 = vmatprep.subr.mxu0 0.0
      %6714 = vmatpush1.xpose.msra.mxu0 0.0
      %6715 = vmatprep.subr.mxu0 0.0
      %6716 = vmatpush1.xpose.msra.mxu0 0.0
      %6717 = vmatprep.subr.mxu0 0.0
      %6718 = vmatpush1.xpose.msra.mxu0 0.0
      %6719 = vmatprep.subr.mxu0 0.0
      %6720 = vmatpush1.xpose.msra.mxu0 0.0
      %6721 = vmatprep.subr.mxu0 0.0
      %6722 = vmatpush1.xpose.msra.mxu0 0.0
      %6723 = vmatprep.subr.mxu0 0.0
      %6724 = vmatpush1.xpose.msra.mxu0 0.0
      %6725 = vmatprep.subr.mxu0 0.0
      %6726 = vmatpush1.xpose.msra.mxu0 0.0
      %6727 = vmatprep.subr.mxu0 0.0
      %6728 = vmatpush1.xpose.msra.mxu0 0.0
      %6729 = vmatprep.subr.mxu0 0.0
      %6730 = vmatpush1.xpose.msra.mxu0 0.0
      %6731 = vmatprep.subr.mxu0 0.0
      %6732 = vmatpush1.xpose.msra.mxu0 0.0
      %6733 = vmatprep.subr.mxu0 0.0
      %6734 = vmatpush1.xpose.msra.mxu0 0.0
      %6735 = vmatprep.subr.mxu0 0.0
      %6736 = vmatpush1.xpose.msra.mxu0 0.0
      %6737 = vmatprep.subr.mxu0 0.0
      %6738 = vmatpush1.xpose.msra.mxu0 0.0
      %6739 = vmatprep.subr.mxu0 0.0
      %6740 = vmatpush1.xpose.msra.mxu0 0.0
      %6741 = vmatprep.subr.mxu0 0.0
      %6742 = vmatpush1.xpose.msra.mxu0 0.0
      %6743 = vmatprep.subr.mxu0 0.0
      %6744 = vmatpush1.xpose.msra.mxu0 0.0
      %6745 = vmatprep.mubr.f32.mxu0 0.0
      %6746 = vmatmul.mubr.f32.gmra.mrb[0].mxu0 %v6676
      %v6747 = vpop.f32.mrb[0].mxu0
      %v6748 = vadd.f32 0.0, %v6747
      %v6749 = vpop.f32.mrb[0].mxu0
      %6750 = vdwg.mxu0
      %v6752 = vsel %vm383, %v6068, 0
      %v6755 = vsel %vm383, %v6216, 0
      %6757 = vmatprep.subr.mxu0 0.0
      %6758 = vmatpush1.xpose.msra.mxu0 %v6755
      %6759 = vmatprep.subr.mxu0 0.0
      %6760 = vmatpush1.xpose.msra.mxu0 0.0
      %6761 = vmatprep.subr.mxu0 0.0
      %6762 = vmatpush1.xpose.msra.mxu0 0.0
      %6763 = vmatprep.subr.mxu0 0.0
      %6764 = vmatpush1.xpose.msra.mxu0 0.0
      %6765 = vmatprep.subr.mxu0 0.0
      %6766 = vmatpush1.xpose.msra.mxu0 0.0
      %6767 = vmatprep.subr.mxu0 0.0
      %6768 = vmatpush1.xpose.msra.mxu0 0.0
      %6769 = vmatprep.subr.mxu0 0.0
      %6770 = vmatpush1.xpose.msra.mxu0 0.0
      %6771 = vmatprep.subr.mxu0 0.0
      %6772 = vmatpush1.xpose.msra.mxu0 0.0
      %6773 = vmatprep.subr.mxu0 0.0
      %6774 = vmatpush1.xpose.msra.mxu0 0.0
      %6775 = vmatprep.subr.mxu0 0.0
      %6776 = vmatpush1.xpose.msra.mxu0 0.0
      %6777 = vmatprep.subr.mxu0 0.0
      %6778 = vmatpush1.xpose.msra.mxu0 0.0
      %6779 = vmatprep.subr.mxu0 0.0
      %6780 = vmatpush1.xpose.msra.mxu0 0.0
      %6781 = vmatprep.subr.mxu0 0.0
      %6782 = vmatpush1.xpose.msra.mxu0 0.0
      %6783 = vmatprep.subr.mxu0 0.0
      %6784 = vmatpush1.xpose.msra.mxu0 0.0
      %6785 = vmatprep.subr.mxu0 0.0
      %6786 = vmatpush1.xpose.msra.mxu0 0.0
      %6787 = vmatprep.subr.mxu0 0.0
      %6788 = vmatpush1.xpose.msra.mxu0 0.0
      %6789 = vmatprep.subr.mxu0 0.0
      %6790 = vmatpush1.xpose.msra.mxu0 0.0
      %6791 = vmatprep.subr.mxu0 0.0
      %6792 = vmatpush1.xpose.msra.mxu0 0.0
      %6793 = vmatprep.subr.mxu0 0.0
      %6794 = vmatpush1.xpose.msra.mxu0 0.0
      %6795 = vmatprep.subr.mxu0 0.0
      %6796 = vmatpush1.xpose.msra.mxu0 0.0
      %6797 = vmatprep.subr.mxu0 0.0
      %6798 = vmatpush1.xpose.msra.mxu0 0.0
      %6799 = vmatprep.subr.mxu0 0.0
      %6800 = vmatpush1.xpose.msra.mxu0 0.0
      %6801 = vmatprep.subr.mxu0 0.0
      %6802 = vmatpush1.xpose.msra.mxu0 0.0
      %6803 = vmatprep.subr.mxu0 0.0
      %6804 = vmatpush1.xpose.msra.mxu0 0.0
      %6805 = vmatprep.subr.mxu0 0.0
      %6806 = vmatpush1.xpose.msra.mxu0 0.0
      %6807 = vmatprep.subr.mxu0 0.0
      %6808 = vmatpush1.xpose.msra.mxu0 0.0
      %6809 = vmatprep.subr.mxu0 0.0
      %6810 = vmatpush1.xpose.msra.mxu0 0.0
      %6811 = vmatprep.subr.mxu0 0.0
      %6812 = vmatpush1.xpose.msra.mxu0 0.0
      %6813 = vmatprep.subr.mxu0 0.0
      %6814 = vmatpush1.xpose.msra.mxu0 0.0
      %6815 = vmatprep.subr.mxu0 0.0
      %6816 = vmatpush1.xpose.msra.mxu0 0.0
      %6817 = vmatprep.subr.mxu0 0.0
      %6818 = vmatpush1.xpose.msra.mxu0 0.0
      %6819 = vmatprep.subr.mxu0 0.0
      %6820 = vmatpush1.xpose.msra.mxu0 0.0
      %6821 = vmatprep.mubr.f32.mxu0 0.0
      %6822 = vmatmul.mubr.f32.gmra.mrb[0].mxu0 %v6752
      %v6823 = vpop.f32.mrb[0].mxu0
      %v6824 = vadd.f32 0.0, %v6823
      %v6825 = vpop.f32.mrb[0].mxu0
      %6826 = vdwg.mxu0
      %v6827 = vsel %vm383, %v6292, -inf
      %6828 = vmax.xlane.f32.xlu0 %v6827
      %v6829 = vpop.xlane.xlu0 %6828
      %v6830 = vsel %vm383, %v6368, -inf
      %6831 = vmax.xlane.f32.xlu0 %v6830
      %v6832 = vpop.xlane.xlu0 %6831
      %v6833 = vsel %vm383, %v6444, -inf
      %6834 = vmax.xlane.f32.xlu0 %v6833
      %v6835 = vpop.xlane.xlu0 %6834
      %v6836 = vsel %vm383, %v6520, -inf
      %6837 = vmax.xlane.f32.xlu0 %v6836
      %v6838 = vpop.xlane.xlu0 %6837
      %v6839 = vsel %vm383, %v6596, -inf
      %6840 = vmax.xlane.f32.xlu0 %v6839
      %v6841 = vpop.xlane.xlu0 %6840
      %v6842 = vsel %vm383, %v6672, -inf
      %6843 = vmax.xlane.f32.xlu0 %v6842
      %v6844 = vpop.xlane.xlu0 %6843
      %v6845 = vsel %vm383, %v6748, -inf
      %6846 = vmax.xlane.f32.xlu0 %v6845
      %v6847 = vpop.xlane.xlu0 %6846
      %v6848 = vsel %vm383, %v6824, -inf
      %6849 = vmax.xlane.f32.xlu0 %v6848
      %v6850 = vpop.xlane.xlu0 %6849
      %v6851 = vsub.f32 %v6292, %v6829
      %v6852 = vsub.f32 %v6368, %v6832
      %v6853 = vsub.f32 %v6444, %v6835
      %v6854 = vsub.f32 %v6520, %v6838
      %v6855 = vsub.f32 %v6596, %v6841
      %v6856 = vsub.f32 %v6672, %v6844
      %v6857 = vsub.f32 %v6748, %v6847
      %v6858 = vsub.f32 %v6824, %v6850
      %v6859 = vmul.f32 %v6851, 1.442695
      %v6860 = vpow.pop %v6859
      %v6861 = vmul.f32 %v6852, 1.442695
      %v6862 = vpow.pop %v6861
      %v6863 = vmul.f32 %v6853, 1.442695
      %v6864 = vpow.pop %v6863
      %v6865 = vmul.f32 %v6854, 1.442695
      %v6866 = vpow.pop %v6865
      %v6867 = vmul.f32 %v6855, 1.442695
      %v6868 = vpow.pop %v6867
      %v6869 = vmul.f32 %v6856, 1.442695
      %v6870 = vpow.pop %v6869
      %v6871 = vmul.f32 %v6857, 1.442695
      %v6872 = vpow.pop %v6871
      %v6873 = vmul.f32 %v6858, 1.442695
      %v6874 = vpow.pop %v6873
      %v6875 = vsel %vm383, %v6860, 0.0
      %6876 = vadd.xlane.f32.xlu0 %v6875
      %v6877 = vpop.xlane.xlu0 %6876
      %v6878 = vsel %vm383, %v6862, 0.0
      %6879 = vadd.xlane.f32.xlu0 %v6878
      %v6880 = vpop.xlane.xlu0 %6879
      %v6881 = vsel %vm383, %v6864, 0.0
      %6882 = vadd.xlane.f32.xlu0 %v6881
      %v6883 = vpop.xlane.xlu0 %6882
      %v6884 = vsel %vm383, %v6866, 0.0
      %6885 = vadd.xlane.f32.xlu0 %v6884
      %v6886 = vpop.xlane.xlu0 %6885
      %v6887 = vsel %vm383, %v6868, 0.0
      %6888 = vadd.xlane.f32.xlu0 %v6887
      %v6889 = vpop.xlane.xlu0 %6888
      %v6890 = vsel %vm383, %v6870, 0.0
      %6891 = vadd.xlane.f32.xlu0 %v6890
      %v6892 = vpop.xlane.xlu0 %6891
      %v6893 = vsel %vm383, %v6872, 0.0
      %6894 = vadd.xlane.f32.xlu0 %v6893
      %v6895 = vpop.xlane.xlu0 %6894
      %v6896 = vsel %vm383, %v6874, 0.0
      %6897 = vadd.xlane.f32.xlu0 %v6896
      %v6898 = vpop.xlane.xlu0 %6897
      %v6899 = vrcp.pop %v6877
      %v6900 = vmul.f32 %v6860, %v6899
      %v6901 = vrcp.pop %v6880
      %v6902 = vmul.f32 %v6862, %v6901
      %v6903 = vrcp.pop %v6883
      %v6904 = vmul.f32 %v6864, %v6903
      %v6905 = vrcp.pop %v6886
      %v6906 = vmul.f32 %v6866, %v6905
      %v6907 = vrcp.pop %v6889
      %v6908 = vmul.f32 %v6868, %v6907
      %v6909 = vrcp.pop %v6892
      %v6910 = vmul.f32 %v6870, %v6909
      %v6911 = vrcp.pop %v6895
      %v6912 = vmul.f32 %v6872, %v6911
      %v6913 = vrcp.pop %v6898
      %v6914 = vmul.f32 %v6874, %v6913
      %6915 = vrot.lane.b32.xlu0 %v6181, 96
      %v6916 = vpop.permute.xlu0 %6915
      %v6919 = vsel %vm383, %v6900, 0
      %6921 = vmatprep.subr.mxu0 0.0
      %6922 = vmatpush1.msra.mxu0 %v6916
      %6923 = vmatprep.subr.mxu0 0.0
      %6924 = vmatpush1.msra.mxu0 0.0
      %6925 = vmatprep.subr.mxu0 0.0
      %6926 = vmatpush1.msra.mxu0 0.0
      %6927 = vmatprep.subr.mxu0 0.0
      %6928 = vmatpush1.msra.mxu0 0.0
      %6929 = vmatprep.subr.mxu0 0.0
      %6930 = vmatpush1.msra.mxu0 0.0
      %6931 = vmatprep.subr.mxu0 0.0
      %6932 = vmatpush1.msra.mxu0 0.0
      %6933 = vmatprep.subr.mxu0 0.0
      %6934 = vmatpush1.msra.mxu0 0.0
      %6935 = vmatprep.subr.mxu0 0.0
      %6936 = vmatpush1.msra.mxu0 0.0
      %6937 = vmatprep.subr.mxu0 0.0
      %6938 = vmatpush1.msra.mxu0 0.0
      %6939 = vmatprep.subr.mxu0 0.0
      %6940 = vmatpush1.msra.mxu0 0.0
      %6941 = vmatprep.subr.mxu0 0.0
      %6942 = vmatpush1.msra.mxu0 0.0
      %6943 = vmatprep.subr.mxu0 0.0
      %6944 = vmatpush1.msra.mxu0 0.0
      %6945 = vmatprep.subr.mxu0 0.0
      %6946 = vmatpush1.msra.mxu0 0.0
      %6947 = vmatprep.subr.mxu0 0.0
      %6948 = vmatpush1.msra.mxu0 0.0
      %6949 = vmatprep.subr.mxu0 0.0
      %6950 = vmatpush1.msra.mxu0 0.0
      %6951 = vmatprep.subr.mxu0 0.0
      %6952 = vmatpush1.msra.mxu0 0.0
      %6953 = vmatprep.subr.mxu0 0.0
      %6954 = vmatpush1.msra.mxu0 0.0
      %6955 = vmatprep.subr.mxu0 0.0
      %6956 = vmatpush1.msra.mxu0 0.0
      %6957 = vmatprep.subr.mxu0 0.0
      %6958 = vmatpush1.msra.mxu0 0.0
      %6959 = vmatprep.subr.mxu0 0.0
      %6960 = vmatpush1.msra.mxu0 0.0
      %6961 = vmatprep.subr.mxu0 0.0
      %6962 = vmatpush1.msra.mxu0 0.0
      %6963 = vmatprep.subr.mxu0 0.0
      %6964 = vmatpush1.msra.mxu0 0.0
      %6965 = vmatprep.subr.mxu0 0.0
      %6966 = vmatpush1.msra.mxu0 0.0
      %6967 = vmatprep.subr.mxu0 0.0
      %6968 = vmatpush1.msra.mxu0 0.0
      %6969 = vmatprep.subr.mxu0 0.0
      %6970 = vmatpush1.msra.mxu0 0.0
      %6971 = vmatprep.subr.mxu0 0.0
      %6972 = vmatpush1.msra.mxu0 0.0
      %6973 = vmatprep.subr.mxu0 0.0
      %6974 = vmatpush1.msra.mxu0 0.0
      %6975 = vmatprep.subr.mxu0 0.0
      %6976 = vmatpush1.msra.mxu0 0.0
      %6977 = vmatprep.subr.mxu0 0.0
      %6978 = vmatpush1.msra.mxu0 0.0
      %6979 = vmatprep.subr.mxu0 0.0
      %6980 = vmatpush1.msra.mxu0 0.0
      %6981 = vmatprep.subr.mxu0 0.0
      %6982 = vmatpush1.msra.mxu0 0.0
      %6983 = vmatprep.subr.mxu0 0.0
      %6984 = vmatpush1.msra.mxu0 0.0
      %6985 = vmatprep.mubr.f32.mxu0 0.0
      %6986 = vmatmul.mubr.f32.gmra.mrb[0].mxu0 %v6919
      %v6987 = vpop.f32.mrb[0].mxu0
      %v6988 = vadd.f32 0.0, %v6987
      %v6989 = vpop.f32.mrb[0].mxu0
      %6990 = vdwg.mxu0
      %6991 = vrot.lane.b32.xlu0 %v6186, 96
      %v6992 = vpop.permute.xlu0 %6991
      %v6995 = vsel %vm383, %v6902, 0
      %6997 = vmatprep.subr.mxu0 0.0
      %6998 = vmatpush1.msra.mxu0 %v6992
      %6999 = vmatprep.subr.mxu0 0.0
      %7000 = vmatpush1.msra.mxu0 0.0
      %7001 = vmatprep.subr.mxu0 0.0
      %7002 = vmatpush1.msra.mxu0 0.0
      %7003 = vmatprep.subr.mxu0 0.0
      %7004 = vmatpush1.msra.mxu0 0.0
      %7005 = vmatprep.subr.mxu0 0.0
      %7006 = vmatpush1.msra.mxu0 0.0
      %7007 = vmatprep.subr.mxu0 0.0
      %7008 = vmatpush1.msra.mxu0 0.0
      %7009 = vmatprep.subr.mxu0 0.0
      %7010 = vmatpush1.msra.mxu0 0.0
      %7011 = vmatprep.subr.mxu0 0.0
      %7012 = vmatpush1.msra.mxu0 0.0
      %7013 = vmatprep.subr.mxu0 0.0
      %7014 = vmatpush1.msra.mxu0 0.0
      %7015 = vmatprep.subr.mxu0 0.0
      %7016 = vmatpush1.msra.mxu0 0.0
      %7017 = vmatprep.subr.mxu0 0.0
      %7018 = vmatpush1.msra.mxu0 0.0
      %7019 = vmatprep.subr.mxu0 0.0
      %7020 = vmatpush1.msra.mxu0 0.0
      %7021 = vmatprep.subr.mxu0 0.0
      %7022 = vmatpush1.msra.mxu0 0.0
      %7023 = vmatprep.subr.mxu0 0.0
      %7024 = vmatpush1.msra.mxu0 0.0
      %7025 = vmatprep.subr.mxu0 0.0
      %7026 = vmatpush1.msra.mxu0 0.0
      %7027 = vmatprep.subr.mxu0 0.0
      %7028 = vmatpush1.msra.mxu0 0.0
      %7029 = vmatprep.subr.mxu0 0.0
      %7030 = vmatpush1.msra.mxu0 0.0
      %7031 = vmatprep.subr.mxu0 0.0
      %7032 = vmatpush1.msra.mxu0 0.0
      %7033 = vmatprep.subr.mxu0 0.0
      %7034 = vmatpush1.msra.mxu0 0.0
      %7035 = vmatprep.subr.mxu0 0.0
      %7036 = vmatpush1.msra.mxu0 0.0
      %7037 = vmatprep.subr.mxu0 0.0
      %7038 = vmatpush1.msra.mxu0 0.0
      %7039 = vmatprep.subr.mxu0 0.0
      %7040 = vmatpush1.msra.mxu0 0.0
      %7041 = vmatprep.subr.mxu0 0.0
      %7042 = vmatpush1.msra.mxu0 0.0
      %7043 = vmatprep.subr.mxu0 0.0
      %7044 = vmatpush1.msra.mxu0 0.0
      %7045 = vmatprep.subr.mxu0 0.0
      %7046 = vmatpush1.msra.mxu0 0.0
      %7047 = vmatprep.subr.mxu0 0.0
      %7048 = vmatpush1.msra.mxu0 0.0
      %7049 = vmatprep.subr.mxu0 0.0
      %7050 = vmatpush1.msra.mxu0 0.0
      %7051 = vmatprep.subr.mxu0 0.0
      %7052 = vmatpush1.msra.mxu0 0.0
      %7053 = vmatprep.subr.mxu0 0.0
      %7054 = vmatpush1.msra.mxu0 0.0
      %7055 = vmatprep.subr.mxu0 0.0
      %7056 = vmatpush1.msra.mxu0 0.0
      %7057 = vmatprep.subr.mxu0 0.0
      %7058 = vmatpush1.msra.mxu0 0.0
      %7059 = vmatprep.subr.mxu0 0.0
      %7060 = vmatpush1.msra.mxu0 0.0
      %7061 = vmatprep.mubr.f32.mxu0 0.0
      %7062 = vmatmul.mubr.f32.gmra.mrb[0].mxu0 %v6995
      %v7063 = vpop.f32.mrb[0].mxu0
      %v7064 = vadd.f32 0.0, %v7063
      %v7065 = vpop.f32.mrb[0].mxu0
      %7066 = vdwg.mxu0
      %7067 = vrot.lane.b32.xlu0 %v6191, 96
      %v7068 = vpop.permute.xlu0 %7067
      %v7071 = vsel %vm383, %v6904, 0
      %7073 = vmatprep.subr.mxu0 0.0
      %7074 = vmatpush1.msra.mxu0 %v7068
      %7075 = vmatprep.subr.mxu0 0.0
      %7076 = vmatpush1.msra.mxu0 0.0
      %7077 = vmatprep.subr.mxu0 0.0
      %7078 = vmatpush1.msra.mxu0 0.0
      %7079 = vmatprep.subr.mxu0 0.0
      %7080 = vmatpush1.msra.mxu0 0.0
      %7081 = vmatprep.subr.mxu0 0.0
      %7082 = vmatpush1.msra.mxu0 0.0
      %7083 = vmatprep.subr.mxu0 0.0
      %7084 = vmatpush1.msra.mxu0 0.0
      %7085 = vmatprep.subr.mxu0 0.0
      %7086 = vmatpush1.msra.mxu0 0.0
      %7087 = vmatprep.subr.mxu0 0.0
      %7088 = vmatpush1.msra.mxu0 0.0
      %7089 = vmatprep.subr.mxu0 0.0
      %7090 = vmatpush1.msra.mxu0 0.0
      %7091 = vmatprep.subr.mxu0 0.0
      %7092 = vmatpush1.msra.mxu0 0.0
      %7093 = vmatprep.subr.mxu0 0.0
      %7094 = vmatpush1.msra.mxu0 0.0
      %7095 = vmatprep.subr.mxu0 0.0
      %7096 = vmatpush1.msra.mxu0 0.0
      %7097 = vmatprep.subr.mxu0 0.0
      %7098 = vmatpush1.msra.mxu0 0.0
      %7099 = vmatprep.subr.mxu0 0.0
      %7100 = vmatpush1.msra.mxu0 0.0
      %7101 = vmatprep.subr.mxu0 0.0
      %7102 = vmatpush1.msra.mxu0 0.0
      %7103 = vmatprep.subr.mxu0 0.0
      %7104 = vmatpush1.msra.mxu0 0.0
      %7105 = vmatprep.subr.mxu0 0.0
      %7106 = vmatpush1.msra.mxu0 0.0
      %7107 = vmatprep.subr.mxu0 0.0
      %7108 = vmatpush1.msra.mxu0 0.0
      %7109 = vmatprep.subr.mxu0 0.0
      %7110 = vmatpush1.msra.mxu0 0.0
      %7111 = vmatprep.subr.mxu0 0.0
      %7112 = vmatpush1.msra.mxu0 0.0
      %7113 = vmatprep.subr.mxu0 0.0
      %7114 = vmatpush1.msra.mxu0 0.0
      %7115 = vmatprep.subr.mxu0 0.0
      %7116 = vmatpush1.msra.mxu0 0.0
      %7117 = vmatprep.subr.mxu0 0.0
      %7118 = vmatpush1.msra.mxu0 0.0
      %7119 = vmatprep.subr.mxu0 0.0
      %7120 = vmatpush1.msra.mxu0 0.0
      %7121 = vmatprep.subr.mxu0 0.0
      %7122 = vmatpush1.msra.mxu0 0.0
      %7123 = vmatprep.subr.mxu0 0.0
      %7124 = vmatpush1.msra.mxu0 0.0
      %7125 = vmatprep.subr.mxu0 0.0
      %7126 = vmatpush1.msra.mxu0 0.0
      %7127 = vmatprep.subr.mxu0 0.0
      %7128 = vmatpush1.msra.mxu0 0.0
      %7129 = vmatprep.subr.mxu0 0.0
      %7130 = vmatpush1.msra.mxu0 0.0
      %7131 = vmatprep.subr.mxu0 0.0
      %7132 = vmatpush1.msra.mxu0 0.0
      %7133 = vmatprep.subr.mxu0 0.0
      %7134 = vmatpush1.msra.mxu0 0.0
      %7135 = vmatprep.subr.mxu0 0.0
      %7136 = vmatpush1.msra.mxu0 0.0
      %7137 = vmatprep.mubr.f32.mxu0 0.0
      %7138 = vmatmul.mubr.f32.gmra.mrb[0].mxu0 %v7071
      %v7139 = vpop.f32.mrb[0].mxu0
      %v7140 = vadd.f32 0.0, %v7139
      %v7141 = vpop.f32.mrb[0].mxu0
      %7142 = vdwg.mxu0
      %7143 = vrot.lane.b32.xlu0 %v6196, 96
      %v7144 = vpop.permute.xlu0 %7143
      %v7147 = vsel %vm383, %v6906, 0
      %7149 = vmatprep.subr.mxu0 0.0
      %7150 = vmatpush1.msra.mxu0 %v7144
      %7151 = vmatprep.subr.mxu0 0.0
      %7152 = vmatpush1.msra.mxu0 0.0
      %7153 = vmatprep.subr.mxu0 0.0
      %7154 = vmatpush1.msra.mxu0 0.0
      %7155 = vmatprep.subr.mxu0 0.0
      %7156 = vmatpush1.msra.mxu0 0.0
      %7157 = vmatprep.subr.mxu0 0.0
      %7158 = vmatpush1.msra.mxu0 0.0
      %7159 = vmatprep.subr.mxu0 0.0
      %7160 = vmatpush1.msra.mxu0 0.0
      %7161 = vmatprep.subr.mxu0 0.0
      %7162 = vmatpush1.msra.mxu0 0.0
      %7163 = vmatprep.subr.mxu0 0.0
      %7164 = vmatpush1.msra.mxu0 0.0
      %7165 = vmatprep.subr.mxu0 0.0
      %7166 = vmatpush1.msra.mxu0 0.0
      %7167 = vmatprep.subr.mxu0 0.0
      %7168 = vmatpush1.msra.mxu0 0.0
      %7169 = vmatprep.subr.mxu0 0.0
      %7170 = vmatpush1.msra.mxu0 0.0
      %7171 = vmatprep.subr.mxu0 0.0
      %7172 = vmatpush1.msra.mxu0 0.0
      %7173 = vmatprep.subr.mxu0 0.0
      %7174 = vmatpush1.msra.mxu0 0.0
      %7175 = vmatprep.subr.mxu0 0.0
      %7176 = vmatpush1.msra.mxu0 0.0
      %7177 = vmatprep.subr.mxu0 0.0
      %7178 = vmatpush1.msra.mxu0 0.0
      %7179 = vmatprep.subr.mxu0 0.0
      %7180 = vmatpush1.msra.mxu0 0.0
      %7181 = vmatprep.subr.mxu0 0.0
      %7182 = vmatpush1.msra.mxu0 0.0
      %7183 = vmatprep.subr.mxu0 0.0
      %7184 = vmatpush1.msra.mxu0 0.0
      %7185 = vmatprep.subr.mxu0 0.0
      %7186 = vmatpush1.msra.mxu0 0.0
      %7187 = vmatprep.subr.mxu0 0.0
      %7188 = vmatpush1.msra.mxu0 0.0
      %7189 = vmatprep.subr.mxu0 0.0
      %7190 = vmatpush1.msra.mxu0 0.0
      %7191 = vmatprep.subr.mxu0 0.0
      %7192 = vmatpush1.msra.mxu0 0.0
      %7193 = vmatprep.subr.mxu0 0.0
      %7194 = vmatpush1.msra.mxu0 0.0
      %7195 = vmatprep.subr.mxu0 0.0
      %7196 = vmatpush1.msra.mxu0 0.0
      %7197 = vmatprep.subr.mxu0 0.0
      %7198 = vmatpush1.msra.mxu0 0.0
      %7199 = vmatprep.subr.mxu0 0.0
      %7200 = vmatpush1.msra.mxu0 0.0
      %7201 = vmatprep.subr.mxu0 0.0
      %7202 = vmatpush1.msra.mxu0 0.0
      %7203 = vmatprep.subr.mxu0 0.0
      %7204 = vmatpush1.msra.mxu0 0.0
      %7205 = vmatprep.subr.mxu0 0.0
      %7206 = vmatpush1.msra.mxu0 0.0
      %7207 = vmatprep.subr.mxu0 0.0
      %7208 = vmatpush1.msra.mxu0 0.0
      %7209 = vmatprep.subr.mxu0 0.0
      %7210 = vmatpush1.msra.mxu0 0.0
      %7211 = vmatprep.subr.mxu0 0.0
      %7212 = vmatpush1.msra.mxu0 0.0
      %7213 = vmatprep.mubr.f32.mxu0 0.0
      %7214 = vmatmul.mubr.f32.gmra.mrb[0].mxu0 %v7147
      %v7215 = vpop.f32.mrb[0].mxu0
      %v7216 = vadd.f32 0.0, %v7215
      %v7217 = vpop.f32.mrb[0].mxu0
      %7218 = vdwg.mxu0
      %7219 = vrot.lane.b32.xlu0 %v6201, 96
      %v7220 = vpop.permute.xlu0 %7219
      %v7223 = vsel %vm383, %v6908, 0
      %7225 = vmatprep.subr.mxu0 0.0
      %7226 = vmatpush1.msra.mxu0 %v7220
      %7227 = vmatprep.subr.mxu0 0.0
      %7228 = vmatpush1.msra.mxu0 0.0
      %7229 = vmatprep.subr.mxu0 0.0
      %7230 = vmatpush1.msra.mxu0 0.0
      %7231 = vmatprep.subr.mxu0 0.0
      %7232 = vmatpush1.msra.mxu0 0.0
      %7233 = vmatprep.subr.mxu0 0.0
      %7234 = vmatpush1.msra.mxu0 0.0
      %7235 = vmatprep.subr.mxu0 0.0
      %7236 = vmatpush1.msra.mxu0 0.0
      %7237 = vmatprep.subr.mxu0 0.0
      %7238 = vmatpush1.msra.mxu0 0.0
      %7239 = vmatprep.subr.mxu0 0.0
      %7240 = vmatpush1.msra.mxu0 0.0
      %7241 = vmatprep.subr.mxu0 0.0
      %7242 = vmatpush1.msra.mxu0 0.0
      %7243 = vmatprep.subr.mxu0 0.0
      %7244 = vmatpush1.msra.mxu0 0.0
      %7245 = vmatprep.subr.mxu0 0.0
      %7246 = vmatpush1.msra.mxu0 0.0
      %7247 = vmatprep.subr.mxu0 0.0
      %7248 = vmatpush1.msra.mxu0 0.0
      %7249 = vmatprep.subr.mxu0 0.0
      %7250 = vmatpush1.msra.mxu0 0.0
      %7251 = vmatprep.subr.mxu0 0.0
      %7252 = vmatpush1.msra.mxu0 0.0
      %7253 = vmatprep.subr.mxu0 0.0
      %7254 = vmatpush1.msra.mxu0 0.0
      %7255 = vmatprep.subr.mxu0 0.0
      %7256 = vmatpush1.msra.mxu0 0.0
      %7257 = vmatprep.subr.mxu0 0.0
      %7258 = vmatpush1.msra.mxu0 0.0
      %7259 = vmatprep.subr.mxu0 0.0
      %7260 = vmatpush1.msra.mxu0 0.0
      %7261 = vmatprep.subr.mxu0 0.0
      %7262 = vmatpush1.msra.mxu0 0.0
      %7263 = vmatprep.subr.mxu0 0.0
      %7264 = vmatpush1.msra.mxu0 0.0
      %7265 = vmatprep.subr.mxu0 0.0
      %7266 = vmatpush1.msra.mxu0 0.0
      %7267 = vmatprep.subr.mxu0 0.0
      %7268 = vmatpush1.msra.mxu0 0.0
      %7269 = vmatprep.subr.mxu0 0.0
      %7270 = vmatpush1.msra.mxu0 0.0
      %7271 = vmatprep.subr.mxu0 0.0
      %7272 = vmatpush1.msra.mxu0 0.0
      %7273 = vmatprep.subr.mxu0 0.0
      %7274 = vmatpush1.msra.mxu0 0.0
      %7275 = vmatprep.subr.mxu0 0.0
      %7276 = vmatpush1.msra.mxu0 0.0
      %7277 = vmatprep.subr.mxu0 0.0
      %7278 = vmatpush1.msra.mxu0 0.0
      %7279 = vmatprep.subr.mxu0 0.0
      %7280 = vmatpush1.msra.mxu0 0.0
      %7281 = vmatprep.subr.mxu0 0.0
      %7282 = vmatpush1.msra.mxu0 0.0
      %7283 = vmatprep.subr.mxu0 0.0
      %7284 = vmatpush1.msra.mxu0 0.0
      %7285 = vmatprep.subr.mxu0 0.0
      %7286 = vmatpush1.msra.mxu0 0.0
      %7287 = vmatprep.subr.mxu0 0.0
      %7288 = vmatpush1.msra.mxu0 0.0
      %7289 = vmatprep.mubr.f32.mxu0 0.0
      %7290 = vmatmul.mubr.f32.gmra.mrb[0].mxu0 %v7223
      %v7291 = vpop.f32.mrb[0].mxu0
      %v7292 = vadd.f32 0.0, %v7291
      %v7293 = vpop.f32.mrb[0].mxu0
      %7294 = vdwg.mxu0
      %7295 = vrot.lane.b32.xlu0 %v6206, 96
      %v7296 = vpop.permute.xlu0 %7295
      %v7299 = vsel %vm383, %v6910, 0
      %7301 = vmatprep.subr.mxu0 0.0
      %7302 = vmatpush1.msra.mxu0 %v7296
      %7303 = vmatprep.subr.mxu0 0.0
      %7304 = vmatpush1.msra.mxu0 0.0
      %7305 = vmatprep.subr.mxu0 0.0
      %7306 = vmatpush1.msra.mxu0 0.0
      %7307 = vmatprep.subr.mxu0 0.0
      %7308 = vmatpush1.msra.mxu0 0.0
      %7309 = vmatprep.subr.mxu0 0.0
      %7310 = vmatpush1.msra.mxu0 0.0
      %7311 = vmatprep.subr.mxu0 0.0
      %7312 = vmatpush1.msra.mxu0 0.0
      %7313 = vmatprep.subr.mxu0 0.0
      %7314 = vmatpush1.msra.mxu0 0.0
      %7315 = vmatprep.subr.mxu0 0.0
      %7316 = vmatpush1.msra.mxu0 0.0
      %7317 = vmatprep.subr.mxu0 0.0
      %7318 = vmatpush1.msra.mxu0 0.0
      %7319 = vmatprep.subr.mxu0 0.0
      %7320 = vmatpush1.msra.mxu0 0.0
      %7321 = vmatprep.subr.mxu0 0.0
      %7322 = vmatpush1.msra.mxu0 0.0
      %7323 = vmatprep.subr.mxu0 0.0
      %7324 = vmatpush1.msra.mxu0 0.0
      %7325 = vmatprep.subr.mxu0 0.0
      %7326 = vmatpush1.msra.mxu0 0.0
      %7327 = vmatprep.subr.mxu0 0.0
      %7328 = vmatpush1.msra.mxu0 0.0
      %7329 = vmatprep.subr.mxu0 0.0
      %7330 = vmatpush1.msra.mxu0 0.0
      %7331 = vmatprep.subr.mxu0 0.0
      %7332 = vmatpush1.msra.mxu0 0.0
      %7333 = vmatprep.subr.mxu0 0.0
      %7334 = vmatpush1.msra.mxu0 0.0
      %7335 = vmatprep.subr.mxu0 0.0
      %7336 = vmatpush1.msra.mxu0 0.0
      %7337 = vmatprep.subr.mxu0 0.0
      %7338 = vmatpush1.msra.mxu0 0.0
      %7339 = vmatprep.subr.mxu0 0.0
      %7340 = vmatpush1.msra.mxu0 0.0
      %7341 = vmatprep.subr.mxu0 0.0
      %7342 = vmatpush1.msra.mxu0 0.0
      %7343 = vmatprep.subr.mxu0 0.0
      %7344 = vmatpush1.msra.mxu0 0.0
      %7345 = vmatprep.subr.mxu0 0.0
      %7346 = vmatpush1.msra.mxu0 0.0
      %7347 = vmatprep.subr.mxu0 0.0
      %7348 = vmatpush1.msra.mxu0 0.0
      %7349 = vmatprep.subr.mxu0 0.0
      %7350 = vmatpush1.msra.mxu0 0.0
      %7351 = vmatprep.subr.mxu0 0.0
      %7352 = vmatpush1.msra.mxu0 0.0
      %7353 = vmatprep.subr.mxu0 0.0
      %7354 = vmatpush1.msra.mxu0 0.0
      %7355 = vmatprep.subr.mxu0 0.0
      %7356 = vmatpush1.msra.mxu0 0.0
      %7357 = vmatprep.subr.mxu0 0.0
      %7358 = vmatpush1.msra.mxu0 0.0
      %7359 = vmatprep.subr.mxu0 0.0
      %7360 = vmatpush1.msra.mxu0 0.0
      %7361 = vmatprep.subr.mxu0 0.0
      %7362 = vmatpush1.msra.mxu0 0.0
      %7363 = vmatprep.subr.mxu0 0.0
      %7364 = vmatpush1.msra.mxu0 0.0
      %7365 = vmatprep.mubr.f32.mxu0 0.0
      %7366 = vmatmul.mubr.f32.gmra.mrb[0].mxu0 %v7299
      %v7367 = vpop.f32.mrb[0].mxu0
      %v7368 = vadd.f32 0.0, %v7367
      %v7369 = vpop.f32.mrb[0].mxu0
      %7370 = vdwg.mxu0
      %7371 = vrot.lane.b32.xlu0 %v6211, 96
      %v7372 = vpop.permute.xlu0 %7371
      %v7375 = vsel %vm383, %v6912, 0
      %7377 = vmatprep.subr.mxu0 0.0
      %7378 = vmatpush1.msra.mxu0 %v7372
      %7379 = vmatprep.subr.mxu0 0.0
      %7380 = vmatpush1.msra.mxu0 0.0
      %7381 = vmatprep.subr.mxu0 0.0
      %7382 = vmatpush1.msra.mxu0 0.0
      %7383 = vmatprep.subr.mxu0 0.0
      %7384 = vmatpush1.msra.mxu0 0.0
      %7385 = vmatprep.subr.mxu0 0.0
      %7386 = vmatpush1.msra.mxu0 0.0
      %7387 = vmatprep.subr.mxu0 0.0
      %7388 = vmatpush1.msra.mxu0 0.0
      %7389 = vmatprep.subr.mxu0 0.0
      %7390 = vmatpush1.msra.mxu0 0.0
      %7391 = vmatprep.subr.mxu0 0.0
      %7392 = vmatpush1.msra.mxu0 0.0
      %7393 = vmatprep.subr.mxu0 0.0
      %7394 = vmatpush1.msra.mxu0 0.0
      %7395 = vmatprep.subr.mxu0 0.0
      %7396 = vmatpush1.msra.mxu0 0.0
      %7397 = vmatprep.subr.mxu0 0.0
      %7398 = vmatpush1.msra.mxu0 0.0
      %7399 = vmatprep.subr.mxu0 0.0
      %7400 = vmatpush1.msra.mxu0 0.0
      %7401 = vmatprep.subr.mxu0 0.0
      %7402 = vmatpush1.msra.mxu0 0.0
      %7403 = vmatprep.subr.mxu0 0.0
      %7404 = vmatpush1.msra.mxu0 0.0
      %7405 = vmatprep.subr.mxu0 0.0
      %7406 = vmatpush1.msra.mxu0 0.0
      %7407 = vmatprep.subr.mxu0 0.0
      %7408 = vmatpush1.msra.mxu0 0.0
      %7409 = vmatprep.subr.mxu0 0.0
      %7410 = vmatpush1.msra.mxu0 0.0
      %7411 = vmatprep.subr.mxu0 0.0
      %7412 = vmatpush1.msra.mxu0 0.0
      %7413 = vmatprep.subr.mxu0 0.0
      %7414 = vmatpush1.msra.mxu0 0.0
      %7415 = vmatprep.subr.mxu0 0.0
      %7416 = vmatpush1.msra.mxu0 0.0
      %7417 = vmatprep.subr.mxu0 0.0
      %7418 = vmatpush1.msra.mxu0 0.0
      %7419 = vmatprep.subr.mxu0 0.0
      %7420 = vmatpush1.msra.mxu0 0.0
      %7421 = vmatprep.subr.mxu0 0.0
      %7422 = vmatpush1.msra.mxu0 0.0
      %7423 = vmatprep.subr.mxu0 0.0
      %7424 = vmatpush1.msra.mxu0 0.0
      %7425 = vmatprep.subr.mxu0 0.0
      %7426 = vmatpush1.msra.mxu0 0.0
      %7427 = vmatprep.subr.mxu0 0.0
      %7428 = vmatpush1.msra.mxu0 0.0
      %7429 = vmatprep.subr.mxu0 0.0
      %7430 = vmatpush1.msra.mxu0 0.0
      %7431 = vmatprep.subr.mxu0 0.0
      %7432 = vmatpush1.msra.mxu0 0.0
      %7433 = vmatprep.subr.mxu0 0.0
      %7434 = vmatpush1.msra.mxu0 0.0
      %7435 = vmatprep.subr.mxu0 0.0
      %7436 = vmatpush1.msra.mxu0 0.0
      %7437 = vmatprep.subr.mxu0 0.0
      %7438 = vmatpush1.msra.mxu0 0.0
      %7439 = vmatprep.subr.mxu0 0.0
      %7440 = vmatpush1.msra.mxu0 0.0
      %7441 = vmatprep.mubr.f32.mxu0 0.0
      %7442 = vmatmul.mubr.f32.gmra.mrb[0].mxu0 %v7375
      %v7443 = vpop.f32.mrb[0].mxu0
      %v7444 = vadd.f32 0.0, %v7443
      %v7445 = vpop.f32.mrb[0].mxu0
      %7446 = vdwg.mxu0
      %7447 = vrot.lane.b32.xlu0 %v6216, 96
      %v7448 = vpop.permute.xlu0 %7447
      %v7451 = vsel %vm383, %v6914, 0
      %7453 = vmatprep.subr.mxu0 0.0
      %7454 = vmatpush1.msra.mxu0 %v7448
      %7455 = vmatprep.subr.mxu0 0.0
      %7456 = vmatpush1.msra.mxu0 0.0
      %7457 = vmatprep.subr.mxu0 0.0
      %7458 = vmatpush1.msra.mxu0 0.0
      %7459 = vmatprep.subr.mxu0 0.0
      %7460 = vmatpush1.msra.mxu0 0.0
      %7461 = vmatprep.subr.mxu0 0.0
      %7462 = vmatpush1.msra.mxu0 0.0
      %7463 = vmatprep.subr.mxu0 0.0
      %7464 = vmatpush1.msra.mxu0 0.0
      %7465 = vmatprep.subr.mxu0 0.0
      %7466 = vmatpush1.msra.mxu0 0.0
      %7467 = vmatprep.subr.mxu0 0.0
      %7468 = vmatpush1.msra.mxu0 0.0
      %7469 = vmatprep.subr.mxu0 0.0
      %7470 = vmatpush1.msra.mxu0 0.0
      %7471 = vmatprep.subr.mxu0 0.0
      %7472 = vmatpush1.msra.mxu0 0.0
      %7473 = vmatprep.subr.mxu0 0.0
      %7474 = vmatpush1.msra.mxu0 0.0
      %7475 = vmatprep.subr.mxu0 0.0
      %7476 = vmatpush1.msra.mxu0 0.0
      %7477 = vmatprep.subr.mxu0 0.0
      %7478 = vmatpush1.msra.mxu0 0.0
      %7479 = vmatprep.subr.mxu0 0.0
      %7480 = vmatpush1.msra.mxu0 0.0
      %7481 = vmatprep.subr.mxu0 0.0
      %7482 = vmatpush1.msra.mxu0 0.0
      %7483 = vmatprep.subr.mxu0 0.0
      %7484 = vmatpush1.msra.mxu0 0.0
      %7485 = vmatprep.subr.mxu0 0.0
      %7486 = vmatpush1.msra.mxu0 0.0
      %7487 = vmatprep.subr.mxu0 0.0
      %7488 = vmatpush1.msra.mxu0 0.0
      %7489 = vmatprep.subr.mxu0 0.0
      %7490 = vmatpush1.msra.mxu0 0.0
      %7491 = vmatprep.subr.mxu0 0.0
      %7492 = vmatpush1.msra.mxu0 0.0
      %7493 = vmatprep.subr.mxu0 0.0
      %7494 = vmatpush1.msra.mxu0 0.0
      %7495 = vmatprep.subr.mxu0 0.0
      %7496 = vmatpush1.msra.mxu0 0.0
      %7497 = vmatprep.subr.mxu0 0.0
      %7498 = vmatpush1.msra.mxu0 0.0
      %7499 = vmatprep.subr.mxu0 0.0
      %7500 = vmatpush1.msra.mxu0 0.0
      %7501 = vmatprep.subr.mxu0 0.0
      %7502 = vmatpush1.msra.mxu0 0.0
      %7503 = vmatprep.subr.mxu0 0.0
      %7504 = vmatpush1.msra.mxu0 0.0
      %7505 = vmatprep.subr.mxu0 0.0
      %7506 = vmatpush1.msra.mxu0 0.0
      %7507 = vmatprep.subr.mxu0 0.0
      %7508 = vmatpush1.msra.mxu0 0.0
      %7509 = vmatprep.subr.mxu0 0.0
      %7510 = vmatpush1.msra.mxu0 0.0
      %7511 = vmatprep.subr.mxu0 0.0
      %7512 = vmatpush1.msra.mxu0 0.0
      %7513 = vmatprep.subr.mxu0 0.0
      %7514 = vmatpush1.msra.mxu0 0.0
      %7515 = vmatprep.subr.mxu0 0.0
      %7516 = vmatpush1.msra.mxu0 0.0
      %7517 = vmatprep.mubr.f32.mxu0 0.0
      %7518 = vmatmul.mubr.f32.gmra.mrb[0].mxu0 %v7451
      %v7519 = vpop.f32.mrb[0].mxu0
      %v7520 = vadd.f32 0.0, %v7519
      %v7521 = vpop.f32.mrb[0].mxu0
      %7522 = vdwg.mxu0
      %7523 = vrot.lane.b32.xlu0 %v6033, 120
      %v7524 = vpop.permute.xlu0 %7523
      %7525 = vrot.lane.b32.xlu0 %v6181, 120
      %v7526 = vpop.permute.xlu0 %7525
      %v7527 = vsel %vm383, %v7524, 0
      %v7529 = vsel %vm383, %v7526, 0
      %7531 = vmatprep.subr.mxu0 0.0
      %7532 = vmatpush1.xpose.msra.mxu0 %v7529
      %7533 = vmatprep.subr.mxu0 0.0
      %7534 = vmatpush1.xpose.msra.mxu0 0.0
      %7535 = vmatprep.subr.mxu0 0.0
      %7536 = vmatpush1.xpose.msra.mxu0 0.0
      %7537 = vmatprep.subr.mxu0 0.0
      %7538 = vmatpush1.xpose.msra.mxu0 0.0
      %7539 = vmatprep.subr.mxu0 0.0
      %7540 = vmatpush1.xpose.msra.mxu0 0.0
      %7541 = vmatprep.subr.mxu0 0.0
      %7542 = vmatpush1.xpose.msra.mxu0 0.0
      %7543 = vmatprep.subr.mxu0 0.0
      %7544 = vmatpush1.xpose.msra.mxu0 0.0
      %7545 = vmatprep.subr.mxu0 0.0
      %7546 = vmatpush1.xpose.msra.mxu0 0.0
      %7547 = vmatprep.subr.mxu0 0.0
      %7548 = vmatpush1.xpose.msra.mxu0 0.0
      %7549 = vmatprep.subr.mxu0 0.0
      %7550 = vmatpush1.xpose.msra.mxu0 0.0
      %7551 = vmatprep.subr.mxu0 0.0
      %7552 = vmatpush1.xpose.msra.mxu0 0.0
      %7553 = vmatprep.subr.mxu0 0.0
      %7554 = vmatpush1.xpose.msra.mxu0 0.0
      %7555 = vmatprep.subr.mxu0 0.0
      %7556 = vmatpush1.xpose.msra.mxu0 0.0
      %7557 = vmatprep.subr.mxu0 0.0
      %7558 = vmatpush1.xpose.msra.mxu0 0.0
      %7559 = vmatprep.subr.mxu0 0.0
      %7560 = vmatpush1.xpose.msra.mxu0 0.0
      %7561 = vmatprep.subr.mxu0 0.0
      %7562 = vmatpush1.xpose.msra.mxu0 0.0
      %7563 = vmatprep.subr.mxu0 0.0
      %7564 = vmatpush1.xpose.msra.mxu0 0.0
      %7565 = vmatprep.subr.mxu0 0.0
      %7566 = vmatpush1.xpose.msra.mxu0 0.0
      %7567 = vmatprep.subr.mxu0 0.0
      %7568 = vmatpush1.xpose.msra.mxu0 0.0
      %7569 = vmatprep.subr.mxu0 0.0
      %7570 = vmatpush1.xpose.msra.mxu0 0.0
      %7571 = vmatprep.subr.mxu0 0.0
      %7572 = vmatpush1.xpose.msra.mxu0 0.0
      %7573 = vmatprep.subr.mxu0 0.0
      %7574 = vmatpush1.xpose.msra.mxu0 0.0
      %7575 = vmatprep.subr.mxu0 0.0
      %7576 = vmatpush1.xpose.msra.mxu0 0.0
      %7577 = vmatprep.subr.mxu0 0.0
      %7578 = vmatpush1.xpose.msra.mxu0 0.0
      %7579 = vmatprep.subr.mxu0 0.0
      %7580 = vmatpush1.xpose.msra.mxu0 0.0
      %7581 = vmatprep.subr.mxu0 0.0
      %7582 = vmatpush1.xpose.msra.mxu0 0.0
      %7583 = vmatprep.subr.mxu0 0.0
      %7584 = vmatpush1.xpose.msra.mxu0 0.0
      %7585 = vmatprep.subr.mxu0 0.0
      %7586 = vmatpush1.xpose.msra.mxu0 0.0
      %7587 = vmatprep.subr.mxu0 0.0
      %7588 = vmatpush1.xpose.msra.mxu0 0.0
      %7589 = vmatprep.subr.mxu0 0.0
      %7590 = vmatpush1.xpose.msra.mxu0 0.0
      %7591 = vmatprep.subr.mxu0 0.0
      %7592 = vmatpush1.xpose.msra.mxu0 0.0
      %7593 = vmatprep.subr.mxu0 0.0
      %7594 = vmatpush1.xpose.msra.mxu0 0.0
      %7595 = vmatprep.mubr.f32.mxu0 0.0
      %7596 = vmatmul.mubr.f32.gmra.mrb[0].mxu0 %v7527
      %v7597 = vpop.f32.mrb[0].mxu0
      %v7598 = vadd.f32 0.0, %v7597
      %v7599 = vpop.f32.mrb[0].mxu0
      %7600 = vdwg.mxu0
      %7601 = vrot.lane.b32.xlu0 %v6038, 120
      %v7602 = vpop.permute.xlu0 %7601
      %7603 = vrot.lane.b32.xlu0 %v6186, 120
      %v7604 = vpop.permute.xlu0 %7603
      %v7605 = vsel %vm383, %v7602, 0
      %v7607 = vsel %vm383, %v7604, 0
      %7609 = vmatprep.subr.mxu0 0.0
      %7610 = vmatpush1.xpose.msra.mxu0 %v7607
      %7611 = vmatprep.subr.mxu0 0.0
      %7612 = vmatpush1.xpose.msra.mxu0 0.0
      %7613 = vmatprep.subr.mxu0 0.0
      %7614 = vmatpush1.xpose.msra.mxu0 0.0
      %7615 = vmatprep.subr.mxu0 0.0
      %7616 = vmatpush1.xpose.msra.mxu0 0.0
      %7617 = vmatprep.subr.mxu0 0.0
      %7618 = vmatpush1.xpose.msra.mxu0 0.0
      %7619 = vmatprep.subr.mxu0 0.0
      %7620 = vmatpush1.xpose.msra.mxu0 0.0
      %7621 = vmatprep.subr.mxu0 0.0
      %7622 = vmatpush1.xpose.msra.mxu0 0.0
      %7623 = vmatprep.subr.mxu0 0.0
      %7624 = vmatpush1.xpose.msra.mxu0 0.0
      %7625 = vmatprep.subr.mxu0 0.0
      %7626 = vmatpush1.xpose.msra.mxu0 0.0
      %7627 = vmatprep.subr.mxu0 0.0
      %7628 = vmatpush1.xpose.msra.mxu0 0.0
      %7629 = vmatprep.subr.mxu0 0.0
      %7630 = vmatpush1.xpose.msra.mxu0 0.0
      %7631 = vmatprep.subr.mxu0 0.0
      %7632 = vmatpush1.xpose.msra.mxu0 0.0
      %7633 = vmatprep.subr.mxu0 0.0
      %7634 = vmatpush1.xpose.msra.mxu0 0.0
      %7635 = vmatprep.subr.mxu0 0.0
      %7636 = vmatpush1.xpose.msra.mxu0 0.0
      %7637 = vmatprep.subr.mxu0 0.0
      %7638 = vmatpush1.xpose.msra.mxu0 0.0
      %7639 = vmatprep.subr.mxu0 0.0
      %7640 = vmatpush1.xpose.msra.mxu0 0.0
      %7641 = vmatprep.subr.mxu0 0.0
      %7642 = vmatpush1.xpose.msra.mxu0 0.0
      %7643 = vmatprep.subr.mxu0 0.0
      %7644 = vmatpush1.xpose.msra.mxu0 0.0
      %7645 = vmatprep.subr.mxu0 0.0
      %7646 = vmatpush1.xpose.msra.mxu0 0.0
      %7647 = vmatprep.subr.mxu0 0.0
      %7648 = vmatpush1.xpose.msra.mxu0 0.0
      %7649 = vmatprep.subr.mxu0 0.0
      %7650 = vmatpush1.xpose.msra.mxu0 0.0
      %7651 = vmatprep.subr.mxu0 0.0
      %7652 = vmatpush1.xpose.msra.mxu0 0.0
      %7653 = vmatprep.subr.mxu0 0.0
      %7654 = vmatpush1.xpose.msra.mxu0 0.0
      %7655 = vmatprep.subr.mxu0 0.0
      %7656 = vmatpush1.xpose.msra.mxu0 0.0
      %7657 = vmatprep.subr.mxu0 0.0
      %7658 = vmatpush1.xpose.msra.mxu0 0.0
      %7659 = vmatprep.subr.mxu0 0.0
      %7660 = vmatpush1.xpose.msra.mxu0 0.0
      %7661 = vmatprep.subr.mxu0 0.0
      %7662 = vmatpush1.xpose.msra.mxu0 0.0
      %7663 = vmatprep.subr.mxu0 0.0
      %7664 = vmatpush1.xpose.msra.mxu0 0.0
      %7665 = vmatprep.subr.mxu0 0.0
      %7666 = vmatpush1.xpose.msra.mxu0 0.0
      %7667 = vmatprep.subr.mxu0 0.0
      %7668 = vmatpush1.xpose.msra.mxu0 0.0
      %7669 = vmatprep.subr.mxu0 0.0
      %7670 = vmatpush1.xpose.msra.mxu0 0.0
      %7671 = vmatprep.subr.mxu0 0.0
      %7672 = vmatpush1.xpose.msra.mxu0 0.0
      %7673 = vmatprep.mubr.f32.mxu0 0.0
      %7674 = vmatmul.mubr.f32.gmra.mrb[0].mxu0 %v7605
      %v7675 = vpop.f32.mrb[0].mxu0
      %v7676 = vadd.f32 0.0, %v7675
      %v7677 = vpop.f32.mrb[0].mxu0
      %7678 = vdwg.mxu0
      %7679 = vrot.lane.b32.xlu0 %v6043, 120
      %v7680 = vpop.permute.xlu0 %7679
      %7681 = vrot.lane.b32.xlu0 %v6191, 120
      %v7682 = vpop.permute.xlu0 %7681
      %v7683 = vsel %vm383, %v7680, 0
      %v7685 = vsel %vm383, %v7682, 0
      %7687 = vmatprep.subr.mxu0 0.0
      %7688 = vmatpush1.xpose.msra.mxu0 %v7685
      %7689 = vmatprep.subr.mxu0 0.0
      %7690 = vmatpush1.xpose.msra.mxu0 0.0
      %7691 = vmatprep.subr.mxu0 0.0
      %7692 = vmatpush1.xpose.msra.mxu0 0.0
      %7693 = vmatprep.subr.mxu0 0.0
      %7694 = vmatpush1.xpose.msra.mxu0 0.0
      %7695 = vmatprep.subr.mxu0 0.0
      %7696 = vmatpush1.xpose.msra.mxu0 0.0
      %7697 = vmatprep.subr.mxu0 0.0
      %7698 = vmatpush1.xpose.msra.mxu0 0.0
      %7699 = vmatprep.subr.mxu0 0.0
      %7700 = vmatpush1.xpose.msra.mxu0 0.0
      %7701 = vmatprep.subr.mxu0 0.0
      %7702 = vmatpush1.xpose.msra.mxu0 0.0
      %7703 = vmatprep.subr.mxu0 0.0
      %7704 = vmatpush1.xpose.msra.mxu0 0.0
      %7705 = vmatprep.subr.mxu0 0.0
      %7706 = vmatpush1.xpose.msra.mxu0 0.0
      %7707 = vmatprep.subr.mxu0 0.0
      %7708 = vmatpush1.xpose.msra.mxu0 0.0
      %7709 = vmatprep.subr.mxu0 0.0
      %7710 = vmatpush1.xpose.msra.mxu0 0.0
      %7711 = vmatprep.subr.mxu0 0.0
      %7712 = vmatpush1.xpose.msra.mxu0 0.0
      %7713 = vmatprep.subr.mxu0 0.0
      %7714 = vmatpush1.xpose.msra.mxu0 0.0
      %7715 = vmatprep.subr.mxu0 0.0
      %7716 = vmatpush1.xpose.msra.mxu0 0.0
      %7717 = vmatprep.subr.mxu0 0.0
      %7718 = vmatpush1.xpose.msra.mxu0 0.0
      %7719 = vmatprep.subr.mxu0 0.0
      %7720 = vmatpush1.xpose.msra.mxu0 0.0
      %7721 = vmatprep.subr.mxu0 0.0
      %7722 = vmatpush1.xpose.msra.mxu0 0.0
      %7723 = vmatprep.subr.mxu0 0.0
      %7724 = vmatpush1.xpose.msra.mxu0 0.0
      %7725 = vmatprep.subr.mxu0 0.0
      %7726 = vmatpush1.xpose.msra.mxu0 0.0
      %7727 = vmatprep.subr.mxu0 0.0
      %7728 = vmatpush1.xpose.msra.mxu0 0.0
      %7729 = vmatprep.subr.mxu0 0.0
      %7730 = vmatpush1.xpose.msra.mxu0 0.0
      %7731 = vmatprep.subr.mxu0 0.0
      %7732 = vmatpush1.xpose.msra.mxu0 0.0
      %7733 = vmatprep.subr.mxu0 0.0
      %7734 = vmatpush1.xpose.msra.mxu0 0.0
      %7735 = vmatprep.subr.mxu0 0.0
      %7736 = vmatpush1.xpose.msra.mxu0 0.0
      %7737 = vmatprep.subr.mxu0 0.0
      %7738 = vmatpush1.xpose.msra.mxu0 0.0
      %7739 = vmatprep.subr.mxu0 0.0
      %7740 = vmatpush1.xpose.msra.mxu0 0.0
      %7741 = vmatprep.subr.mxu0 0.0
      %7742 = vmatpush1.xpose.msra.mxu0 0.0
      %7743 = vmatprep.subr.mxu0 0.0
      %7744 = vmatpush1.xpose.msra.mxu0 0.0
      %7745 = vmatprep.subr.mxu0 0.0
      %7746 = vmatpush1.xpose.msra.mxu0 0.0
      %7747 = vmatprep.subr.mxu0 0.0
      %7748 = vmatpush1.xpose.msra.mxu0 0.0
      %7749 = vmatprep.subr.mxu0 0.0
      %7750 = vmatpush1.xpose.msra.mxu0 0.0
      %7751 = vmatprep.mubr.f32.mxu0 0.0
      %7752 = vmatmul.mubr.f32.gmra.mrb[0].mxu0 %v7683
      %v7753 = vpop.f32.mrb[0].mxu0
      %v7754 = vadd.f32 0.0, %v7753
      %v7755 = vpop.f32.mrb[0].mxu0
      %7756 = vdwg.mxu0
      %7757 = vrot.lane.b32.xlu0 %v6048, 120
      %v7758 = vpop.permute.xlu0 %7757
      %7759 = vrot.lane.b32.xlu0 %v6196, 120
      %v7760 = vpop.permute.xlu0 %7759
      %v7761 = vsel %vm383, %v7758, 0
      %v7763 = vsel %vm383, %v7760, 0
      %7765 = vmatprep.subr.mxu0 0.0
      %7766 = vmatpush1.xpose.msra.mxu0 %v7763
      %7767 = vmatprep.subr.mxu0 0.0
      %7768 = vmatpush1.xpose.msra.mxu0 0.0
      %7769 = vmatprep.subr.mxu0 0.0
      %7770 = vmatpush1.xpose.msra.mxu0 0.0
      %7771 = vmatprep.subr.mxu0 0.0
      %7772 = vmatpush1.xpose.msra.mxu0 0.0
      %7773 = vmatprep.subr.mxu0 0.0
      %7774 = vmatpush1.xpose.msra.mxu0 0.0
      %7775 = vmatprep.subr.mxu0 0.0
      %7776 = vmatpush1.xpose.msra.mxu0 0.0
      %7777 = vmatprep.subr.mxu0 0.0
      %7778 = vmatpush1.xpose.msra.mxu0 0.0
      %7779 = vmatprep.subr.mxu0 0.0
      %7780 = vmatpush1.xpose.msra.mxu0 0.0
      %7781 = vmatprep.subr.mxu0 0.0
      %7782 = vmatpush1.xpose.msra.mxu0 0.0
      %7783 = vmatprep.subr.mxu0 0.0
      %7784 = vmatpush1.xpose.msra.mxu0 0.0
      %7785 = vmatprep.subr.mxu0 0.0
      %7786 = vmatpush1.xpose.msra.mxu0 0.0
      %7787 = vmatprep.subr.mxu0 0.0
      %7788 = vmatpush1.xpose.msra.mxu0 0.0
      %7789 = vmatprep.subr.mxu0 0.0
      %7790 = vmatpush1.xpose.msra.mxu0 0.0
      %7791 = vmatprep.subr.mxu0 0.0
      %7792 = vmatpush1.xpose.msra.mxu0 0.0
      %7793 = vmatprep.subr.mxu0 0.0
      %7794 = vmatpush1.xpose.msra.mxu0 0.0
      %7795 = vmatprep.subr.mxu0 0.0
      %7796 = vmatpush1.xpose.msra.mxu0 0.0
      %7797 = vmatprep.subr.mxu0 0.0
      %7798 = vmatpush1.xpose.msra.mxu0 0.0
      %7799 = vmatprep.subr.mxu0 0.0
      %7800 = vmatpush1.xpose.msra.mxu0 0.0
      %7801 = vmatprep.subr.mxu0 0.0
      %7802 = vmatpush1.xpose.msra.mxu0 0.0
      %7803 = vmatprep.subr.mxu0 0.0
      %7804 = vmatpush1.xpose.msra.mxu0 0.0
      %7805 = vmatprep.subr.mxu0 0.0
      %7806 = vmatpush1.xpose.msra.mxu0 0.0
      %7807 = vmatprep.subr.mxu0 0.0
      %7808 = vmatpush1.xpose.msra.mxu0 0.0
      %7809 = vmatprep.subr.mxu0 0.0
      %7810 = vmatpush1.xpose.msra.mxu0 0.0
      %7811 = vmatprep.subr.mxu0 0.0
      %7812 = vmatpush1.xpose.msra.mxu0 0.0
      %7813 = vmatprep.subr.mxu0 0.0
      %7814 = vmatpush1.xpose.msra.mxu0 0.0
      %7815 = vmatprep.subr.mxu0 0.0
      %7816 = vmatpush1.xpose.msra.mxu0 0.0
      %7817 = vmatprep.subr.mxu0 0.0
      %7818 = vmatpush1.xpose.msra.mxu0 0.0
      %7819 = vmatprep.subr.mxu0 0.0
      %7820 = vmatpush1.xpose.msra.mxu0 0.0
      %7821 = vmatprep.subr.mxu0 0.0
      %7822 = vmatpush1.xpose.msra.mxu0 0.0
      %7823 = vmatprep.subr.mxu0 0.0
      %7824 = vmatpush1.xpose.msra.mxu0 0.0
      %7825 = vmatprep.subr.mxu0 0.0
      %7826 = vmatpush1.xpose.msra.mxu0 0.0
      %7827 = vmatprep.subr.mxu0 0.0
      %7828 = vmatpush1.xpose.msra.mxu0 0.0
      %7829 = vmatprep.mubr.f32.mxu0 0.0
      %7830 = vmatmul.mubr.f32.gmra.mrb[0].mxu0 %v7761
      %v7831 = vpop.f32.mrb[0].mxu0
      %v7832 = vadd.f32 0.0, %v7831
      %v7833 = vpop.f32.mrb[0].mxu0
      %7834 = vdwg.mxu0
      %7835 = vrot.lane.b32.xlu0 %v6053, 120
      %v7836 = vpop.permute.xlu0 %7835
      %7837 = vrot.lane.b32.xlu0 %v6201, 120
      %v7838 = vpop.permute.xlu0 %7837
      %v7839 = vsel %vm383, %v7836, 0
      %v7841 = vsel %vm383, %v7838, 0
      %7843 = vmatprep.subr.mxu0 0.0
      %7844 = vmatpush1.xpose.msra.mxu0 %v7841
      %7845 = vmatprep.subr.mxu0 0.0
      %7846 = vmatpush1.xpose.msra.mxu0 0.0
      %7847 = vmatprep.subr.mxu0 0.0
      %7848 = vmatpush1.xpose.msra.mxu0 0.0
      %7849 = vmatprep.subr.mxu0 0.0
      %7850 = vmatpush1.xpose.msra.mxu0 0.0
      %7851 = vmatprep.subr.mxu0 0.0
      %7852 = vmatpush1.xpose.msra.mxu0 0.0
      %7853 = vmatprep.subr.mxu0 0.0
      %7854 = vmatpush1.xpose.msra.mxu0 0.0
      %7855 = vmatprep.subr.mxu0 0.0
      %7856 = vmatpush1.xpose.msra.mxu0 0.0
      %7857 = vmatprep.subr.mxu0 0.0
      %7858 = vmatpush1.xpose.msra.mxu0 0.0
      %7859 = vmatprep.subr.mxu0 0.0
      %7860 = vmatpush1.xpose.msra.mxu0 0.0
      %7861 = vmatprep.subr.mxu0 0.0
      %7862 = vmatpush1.xpose.msra.mxu0 0.0
      %7863 = vmatprep.subr.mxu0 0.0
      %7864 = vmatpush1.xpose.msra.mxu0 0.0
      %7865 = vmatprep.subr.mxu0 0.0
      %7866 = vmatpush1.xpose.msra.mxu0 0.0
      %7867 = vmatprep.subr.mxu0 0.0
      %7868 = vmatpush1.xpose.msra.mxu0 0.0
      %7869 = vmatprep.subr.mxu0 0.0
      %7870 = vmatpush1.xpose.msra.mxu0 0.0
      %7871 = vmatprep.subr.mxu0 0.0
      %7872 = vmatpush1.xpose.msra.mxu0 0.0
      %7873 = vmatprep.subr.mxu0 0.0
      %7874 = vmatpush1.xpose.msra.mxu0 0.0
      %7875 = vmatprep.subr.mxu0 0.0
      %7876 = vmatpush1.xpose.msra.mxu0 0.0
      %7877 = vmatprep.subr.mxu0 0.0
      %7878 = vmatpush1.xpose.msra.mxu0 0.0
      %7879 = vmatprep.subr.mxu0 0.0
      %7880 = vmatpush1.xpose.msra.mxu0 0.0
      %7881 = vmatprep.subr.mxu0 0.0
      %7882 = vmatpush1.xpose.msra.mxu0 0.0
      %7883 = vmatprep.subr.mxu0 0.0
      %7884 = vmatpush1.xpose.msra.mxu0 0.0
      %7885 = vmatprep.subr.mxu0 0.0
      %7886 = vmatpush1.xpose.msra.mxu0 0.0
      %7887 = vmatprep.subr.mxu0 0.0
      %7888 = vmatpush1.xpose.msra.mxu0 0.0
      %7889 = vmatprep.subr.mxu0 0.0
      %7890 = vmatpush1.xpose.msra.mxu0 0.0
      %7891 = vmatprep.subr.mxu0 0.0
      %7892 = vmatpush1.xpose.msra.mxu0 0.0
      %7893 = vmatprep.subr.mxu0 0.0
      %7894 = vmatpush1.xpose.msra.mxu0 0.0
      %7895 = vmatprep.subr.mxu0 0.0
      %7896 = vmatpush1.xpose.msra.mxu0 0.0
      %7897 = vmatprep.subr.mxu0 0.0
      %7898 = vmatpush1.xpose.msra.mxu0 0.0
      %7899 = vmatprep.subr.mxu0 0.0
      %7900 = vmatpush1.xpose.msra.mxu0 0.0
      %7901 = vmatprep.subr.mxu0 0.0
      %7902 = vmatpush1.xpose.msra.mxu0 0.0
      %7903 = vmatprep.subr.mxu0 0.0
      %7904 = vmatpush1.xpose.msra.mxu0 0.0
      %7905 = vmatprep.subr.mxu0 0.0
      %7906 = vmatpush1.xpose.msra.mxu0 0.0
      %7907 = vmatprep.mubr.f32.mxu0 0.0
      %7908 = vmatmul.mubr.f32.gmra.mrb[0].mxu0 %v7839
      %v7909 = vpop.f32.mrb[0].mxu0
      %v7910 = vadd.f32 0.0, %v7909
      %v7911 = vpop.f32.mrb[0].mxu0
      %7912 = vdwg.mxu0
      %7913 = vrot.lane.b32.xlu0 %v6058, 120
      %v7914 = vpop.permute.xlu0 %7913
      %7915 = vrot.lane.b32.xlu0 %v6206, 120
      %v7916 = vpop.permute.xlu0 %7915
      %v7917 = vsel %vm383, %v7914, 0
      %v7919 = vsel %vm383, %v7916, 0
      %7921 = vmatprep.subr.mxu0 0.0
      %7922 = vmatpush1.xpose.msra.mxu0 %v7919
      %7923 = vmatprep.subr.mxu0 0.0
      %7924 = vmatpush1.xpose.msra.mxu0 0.0
      %7925 = vmatprep.subr.mxu0 0.0
      %7926 = vmatpush1.xpose.msra.mxu0 0.0
      %7927 = vmatprep.subr.mxu0 0.0
      %7928 = vmatpush1.xpose.msra.mxu0 0.0
      %7929 = vmatprep.subr.mxu0 0.0
      %7930 = vmatpush1.xpose.msra.mxu0 0.0
      %7931 = vmatprep.subr.mxu0 0.0
      %7932 = vmatpush1.xpose.msra.mxu0 0.0
      %7933 = vmatprep.subr.mxu0 0.0
      %7934 = vmatpush1.xpose.msra.mxu0 0.0
      %7935 = vmatprep.subr.mxu0 0.0
      %7936 = vmatpush1.xpose.msra.mxu0 0.0
      %7937 = vmatprep.subr.mxu0 0.0
      %7938 = vmatpush1.xpose.msra.mxu0 0.0
      %7939 = vmatprep.subr.mxu0 0.0
      %7940 = vmatpush1.xpose.msra.mxu0 0.0
      %7941 = vmatprep.subr.mxu0 0.0
      %7942 = vmatpush1.xpose.msra.mxu0 0.0
      %7943 = vmatprep.subr.mxu0 0.0
      %7944 = vmatpush1.xpose.msra.mxu0 0.0
      %7945 = vmatprep.subr.mxu0 0.0
      %7946 = vmatpush1.xpose.msra.mxu0 0.0
      %7947 = vmatprep.subr.mxu0 0.0
      %7948 = vmatpush1.xpose.msra.mxu0 0.0
      %7949 = vmatprep.subr.mxu0 0.0
      %7950 = vmatpush1.xpose.msra.mxu0 0.0
      %7951 = vmatprep.subr.mxu0 0.0
      %7952 = vmatpush1.xpose.msra.mxu0 0.0
      %7953 = vmatprep.subr.mxu0 0.0
      %7954 = vmatpush1.xpose.msra.mxu0 0.0
      %7955 = vmatprep.subr.mxu0 0.0
      %7956 = vmatpush1.xpose.msra.mxu0 0.0
      %7957 = vmatprep.subr.mxu0 0.0
      %7958 = vmatpush1.xpose.msra.mxu0 0.0
      %7959 = vmatprep.subr.mxu0 0.0
      %7960 = vmatpush1.xpose.msra.mxu0 0.0
      %7961 = vmatprep.subr.mxu0 0.0
      %7962 = vmatpush1.xpose.msra.mxu0 0.0
      %7963 = vmatprep.subr.mxu0 0.0
      %7964 = vmatpush1.xpose.msra.mxu0 0.0
      %7965 = vmatprep.subr.mxu0 0.0
      %7966 = vmatpush1.xpose.msra.mxu0 0.0
      %7967 = vmatprep.subr.mxu0 0.0
      %7968 = vmatpush1.xpose.msra.mxu0 0.0
      %7969 = vmatprep.subr.mxu0 0.0
      %7970 = vmatpush1.xpose.msra.mxu0 0.0
      %7971 = vmatprep.subr.mxu0 0.0
      %7972 = vmatpush1.xpose.msra.mxu0 0.0
      %7973 = vmatprep.subr.mxu0 0.0
      %7974 = vmatpush1.xpose.msra.mxu0 0.0
      %7975 = vmatprep.subr.mxu0 0.0
      %7976 = vmatpush1.xpose.msra.mxu0 0.0
      %7977 = vmatprep.subr.mxu0 0.0
      %7978 = vmatpush1.xpose.msra.mxu0 0.0
      %7979 = vmatprep.subr.mxu0 0.0
      %7980 = vmatpush1.xpose.msra.mxu0 0.0
      %7981 = vmatprep.subr.mxu0 0.0
      %7982 = vmatpush1.xpose.msra.mxu0 0.0
      %7983 = vmatprep.subr.mxu0 0.0
      %7984 = vmatpush1.xpose.msra.mxu0 0.0
      %7985 = vmatprep.mubr.f32.mxu0 0.0
      %7986 = vmatmul.mubr.f32.gmra.mrb[0].mxu0 %v7917
      %v7987 = vpop.f32.mrb[0].mxu0
      %v7988 = vadd.f32 0.0, %v7987
      %v7989 = vpop.f32.mrb[0].mxu0
      %7990 = vdwg.mxu0
      %7991 = vrot.lane.b32.xlu0 %v6063, 120
      %v7992 = vpop.permute.xlu0 %7991
      %7993 = vrot.lane.b32.xlu0 %v6211, 120
      %v7994 = vpop.permute.xlu0 %7993
      %v7995 = vsel %vm383, %v7992, 0
      %v7997 = vsel %vm383, %v7994, 0
      %7999 = vmatprep.subr.mxu0 0.0
      %8000 = vmatpush1.xpose.msra.mxu0 %v7997
      %8001 = vmatprep.subr.mxu0 0.0
      %8002 = vmatpush1.xpose.msra.mxu0 0.0
      %8003 = vmatprep.subr.mxu0 0.0
      %8004 = vmatpush1.xpose.msra.mxu0 0.0
      %8005 = vmatprep.subr.mxu0 0.0
      %8006 = vmatpush1.xpose.msra.mxu0 0.0
      %8007 = vmatprep.subr.mxu0 0.0
      %8008 = vmatpush1.xpose.msra.mxu0 0.0
      %8009 = vmatprep.subr.mxu0 0.0
      %8010 = vmatpush1.xpose.msra.mxu0 0.0
      %8011 = vmatprep.subr.mxu0 0.0
      %8012 = vmatpush1.xpose.msra.mxu0 0.0
      %8013 = vmatprep.subr.mxu0 0.0
      %8014 = vmatpush1.xpose.msra.mxu0 0.0
      %8015 = vmatprep.subr.mxu0 0.0
      %8016 = vmatpush1.xpose.msra.mxu0 0.0
      %8017 = vmatprep.subr.mxu0 0.0
      %8018 = vmatpush1.xpose.msra.mxu0 0.0
      %8019 = vmatprep.subr.mxu0 0.0
      %8020 = vmatpush1.xpose.msra.mxu0 0.0
      %8021 = vmatprep.subr.mxu0 0.0
      %8022 = vmatpush1.xpose.msra.mxu0 0.0
      %8023 = vmatprep.subr.mxu0 0.0
      %8024 = vmatpush1.xpose.msra.mxu0 0.0
      %8025 = vmatprep.subr.mxu0 0.0
      %8026 = vmatpush1.xpose.msra.mxu0 0.0
      %8027 = vmatprep.subr.mxu0 0.0
      %8028 = vmatpush1.xpose.msra.mxu0 0.0
      %8029 = vmatprep.subr.mxu0 0.0
      %8030 = vmatpush1.xpose.msra.mxu0 0.0
      %8031 = vmatprep.subr.mxu0 0.0
      %8032 = vmatpush1.xpose.msra.mxu0 0.0
      %8033 = vmatprep.subr.mxu0 0.0
      %8034 = vmatpush1.xpose.msra.mxu0 0.0
      %8035 = vmatprep.subr.mxu0 0.0
      %8036 = vmatpush1.xpose.msra.mxu0 0.0
      %8037 = vmatprep.subr.mxu0 0.0
      %8038 = vmatpush1.xpose.msra.mxu0 0.0
      %8039 = vmatprep.subr.mxu0 0.0
      %8040 = vmatpush1.xpose.msra.mxu0 0.0
      %8041 = vmatprep.subr.mxu0 0.0
      %8042 = vmatpush1.xpose.msra.mxu0 0.0
      %8043 = vmatprep.subr.mxu0 0.0
      %8044 = vmatpush1.xpose.msra.mxu0 0.0
      %8045 = vmatprep.subr.mxu0 0.0
      %8046 = vmatpush1.xpose.msra.mxu0 0.0
      %8047 = vmatprep.subr.mxu0 0.0
      %8048 = vmatpush1.xpose.msra.mxu0 0.0
      %8049 = vmatprep.subr.mxu0 0.0
      %8050 = vmatpush1.xpose.msra.mxu0 0.0
      %8051 = vmatprep.subr.mxu0 0.0
      %8052 = vmatpush1.xpose.msra.mxu0 0.0
      %8053 = vmatprep.subr.mxu0 0.0
      %8054 = vmatpush1.xpose.msra.mxu0 0.0
      %8055 = vmatprep.subr.mxu0 0.0
      %8056 = vmatpush1.xpose.msra.mxu0 0.0
      %8057 = vmatprep.subr.mxu0 0.0
      %8058 = vmatpush1.xpose.msra.mxu0 0.0
      %8059 = vmatprep.subr.mxu0 0.0
      %8060 = vmatpush1.xpose.msra.mxu0 0.0
      %8061 = vmatprep.subr.mxu0 0.0
      %8062 = vmatpush1.xpose.msra.mxu0 0.0
      %8063 = vmatprep.mubr.f32.mxu0 0.0
      %8064 = vmatmul.mubr.f32.gmra.mrb[0].mxu0 %v7995
      %v8065 = vpop.f32.mrb[0].mxu0
      %v8066 = vadd.f32 0.0, %v8065
      %v8067 = vpop.f32.mrb[0].mxu0
      %8068 = vdwg.mxu0
      %8069 = vrot.lane.b32.xlu0 %v6068, 120
      %v8070 = vpop.permute.xlu0 %8069
      %8071 = vrot.lane.b32.xlu0 %v6216, 120
      %v8072 = vpop.permute.xlu0 %8071
      %v8073 = vsel %vm383, %v8070, 0
      %v8075 = vsel %vm383, %v8072, 0
      %8077 = vmatprep.subr.mxu0 0.0
      %8078 = vmatpush1.xpose.msra.mxu0 %v8075
      %8079 = vmatprep.subr.mxu0 0.0
      %8080 = vmatpush1.xpose.msra.mxu0 0.0
      %8081 = vmatprep.subr.mxu0 0.0
      %8082 = vmatpush1.xpose.msra.mxu0 0.0
      %8083 = vmatprep.subr.mxu0 0.0
      %8084 = vmatpush1.xpose.msra.mxu0 0.0
      %8085 = vmatprep.subr.mxu0 0.0
      %8086 = vmatpush1.xpose.msra.mxu0 0.0
      %8087 = vmatprep.subr.mxu0 0.0
      %8088 = vmatpush1.xpose.msra.mxu0 0.0
      %8089 = vmatprep.subr.mxu0 0.0
      %8090 = vmatpush1.xpose.msra.mxu0 0.0
      %8091 = vmatprep.subr.mxu0 0.0
      %8092 = vmatpush1.xpose.msra.mxu0 0.0
      %8093 = vmatprep.subr.mxu0 0.0
      %8094 = vmatpush1.xpose.msra.mxu0 0.0
      %8095 = vmatprep.subr.mxu0 0.0
      %8096 = vmatpush1.xpose.msra.mxu0 0.0
      %8097 = vmatprep.subr.mxu0 0.0
      %8098 = vmatpush1.xpose.msra.mxu0 0.0
      %8099 = vmatprep.subr.mxu0 0.0
      %8100 = vmatpush1.xpose.msra.mxu0 0.0
      %8101 = vmatprep.subr.mxu0 0.0
      %8102 = vmatpush1.xpose.msra.mxu0 0.0
      %8103 = vmatprep.subr.mxu0 0.0
      %8104 = vmatpush1.xpose.msra.mxu0 0.0
      %8105 = vmatprep.subr.mxu0 0.0
      %8106 = vmatpush1.xpose.msra.mxu0 0.0
      %8107 = vmatprep.subr.mxu0 0.0
      %8108 = vmatpush1.xpose.msra.mxu0 0.0
      %8109 = vmatprep.subr.mxu0 0.0
      %8110 = vmatpush1.xpose.msra.mxu0 0.0
      %8111 = vmatprep.subr.mxu0 0.0
      %8112 = vmatpush1.xpose.msra.mxu0 0.0
      %8113 = vmatprep.subr.mxu0 0.0
      %8114 = vmatpush1.xpose.msra.mxu0 0.0
      %8115 = vmatprep.subr.mxu0 0.0
      %8116 = vmatpush1.xpose.msra.mxu0 0.0
      %8117 = vmatprep.subr.mxu0 0.0
      %8118 = vmatpush1.xpose.msra.mxu0 0.0
      %8119 = vmatprep.subr.mxu0 0.0
      %8120 = vmatpush1.xpose.msra.mxu0 0.0
      %8121 = vmatprep.subr.mxu0 0.0
      %8122 = vmatpush1.xpose.msra.mxu0 0.0
      %8123 = vmatprep.subr.mxu0 0.0
      %8124 = vmatpush1.xpose.msra.mxu0 0.0
      %8125 = vmatprep.subr.mxu0 0.0
      %8126 = vmatpush1.xpose.msra.mxu0 0.0
      %8127 = vmatprep.subr.mxu0 0.0
      %8128 = vmatpush1.xpose.msra.mxu0 0.0
      %8129 = vmatprep.subr.mxu0 0.0
      %8130 = vmatpush1.xpose.msra.mxu0 0.0
      %8131 = vmatprep.subr.mxu0 0.0
      %8132 = vmatpush1.xpose.msra.mxu0 0.0
      %8133 = vmatprep.subr.mxu0 0.0
      %8134 = vmatpush1.xpose.msra.mxu0 0.0
      %8135 = vmatprep.subr.mxu0 0.0
      %8136 = vmatpush1.xpose.msra.mxu0 0.0
      %8137 = vmatprep.subr.mxu0 0.0
      %8138 = vmatpush1.xpose.msra.mxu0 0.0
      %8139 = vmatprep.subr.mxu0 0.0
      %8140 = vmatpush1.xpose.msra.mxu0 0.0
      %8141 = vmatprep.mubr.f32.mxu0 0.0
      %8142 = vmatmul.mubr.f32.gmra.mrb[0].mxu0 %v8073
      %v8143 = vpop.f32.mrb[0].mxu0
      %v8144 = vadd.f32 0.0, %v8143
      %v8145 = vpop.f32.mrb[0].mxu0
      %8146 = vdwg.mxu0
      %v8147 = vsel %vm383, %v7598, -inf
      %8148 = vmax.xlane.f32.xlu0 %v8147
      %v8149 = vpop.xlane.xlu0 %8148
      %v8150 = vsel %vm383, %v7676, -inf
      %8151 = vmax.xlane.f32.xlu0 %v8150
      %v8152 = vpop.xlane.xlu0 %8151
      %v8153 = vsel %vm383, %v7754, -inf
      %8154 = vmax.xlane.f32.xlu0 %v8153
      %v8155 = vpop.xlane.xlu0 %8154
      %v8156 = vsel %vm383, %v7832, -inf
      %8157 = vmax.xlane.f32.xlu0 %v8156
      %v8158 = vpop.xlane.xlu0 %8157
      %v8159 = vsel %vm383, %v7910, -inf
      %8160 = vmax.xlane.f32.xlu0 %v8159
      %v8161 = vpop.xlane.xlu0 %8160
      %v8162 = vsel %vm383, %v7988, -inf
      %8163 = vmax.xlane.f32.xlu0 %v8162
      %v8164 = vpop.xlane.xlu0 %8163
      %v8165 = vsel %vm383, %v8066, -inf
      %8166 = vmax.xlane.f32.xlu0 %v8165
      %v8167 = vpop.xlane.xlu0 %8166
      %v8168 = vsel %vm383, %v8144, -inf
      %8169 = vmax.xlane.f32.xlu0 %v8168
      %v8170 = vpop.xlane.xlu0 %8169
      %v8171 = vsub.f32 %v7598, %v8149
      %v8172 = vsub.f32 %v7676, %v8152
      %v8173 = vsub.f32 %v7754, %v8155
      %v8174 = vsub.f32 %v7832, %v8158
      %v8175 = vsub.f32 %v7910, %v8161
      %v8176 = vsub.f32 %v7988, %v8164
      %v8177 = vsub.f32 %v8066, %v8167
      %v8178 = vsub.f32 %v8144, %v8170
      %v8179 = vmul.f32 %v8171, 1.442695
      %v8180 = vpow.pop %v8179
      %v8181 = vmul.f32 %v8172, 1.442695
      %v8182 = vpow.pop %v8181
      %v8183 = vmul.f32 %v8173, 1.442695
      %v8184 = vpow.pop %v8183
      %v8185 = vmul.f32 %v8174, 1.442695
      %v8186 = vpow.pop %v8185
      %v8187 = vmul.f32 %v8175, 1.442695
      %v8188 = vpow.pop %v8187
      %v8189 = vmul.f32 %v8176, 1.442695
      %v8190 = vpow.pop %v8189
      %v8191 = vmul.f32 %v8177, 1.442695
      %v8192 = vpow.pop %v8191
      %v8193 = vmul.f32 %v8178, 1.442695
      %v8194 = vpow.pop %v8193
      %v8195 = vsel %vm383, %v8180, 0.0
      %8196 = vadd.xlane.f32.xlu0 %v8195
      %v8197 = vpop.xlane.xlu0 %8196
      %v8198 = vsel %vm383, %v8182, 0.0
      %8199 = vadd.xlane.f32.xlu0 %v8198
      %v8200 = vpop.xlane.xlu0 %8199
      %v8201 = vsel %vm383, %v8184, 0.0
      %8202 = vadd.xlane.f32.xlu0 %v8201
      %v8203 = vpop.xlane.xlu0 %8202
      %v8204 = vsel %vm383, %v8186, 0.0
      %8205 = vadd.xlane.f32.xlu0 %v8204
      %v8206 = vpop.xlane.xlu0 %8205
      %v8207 = vsel %vm383, %v8188, 0.0
      %8208 = vadd.xlane.f32.xlu0 %v8207
      %v8209 = vpop.xlane.xlu0 %8208
      %v8210 = vsel %vm383, %v8190, 0.0
      %8211 = vadd.xlane.f32.xlu0 %v8210
      %v8212 = vpop.xlane.xlu0 %8211
      %v8213 = vsel %vm383, %v8192, 0.0
      %8214 = vadd.xlane.f32.xlu0 %v8213
      %v8215 = vpop.xlane.xlu0 %8214
      %v8216 = vsel %vm383, %v8194, 0.0
      %8217 = vadd.xlane.f32.xlu0 %v8216
      %v8218 = vpop.xlane.xlu0 %8217
      %v8219 = vrcp.pop %v8197
      %v8220 = vmul.f32 %v8180, %v8219
      %v8221 = vrcp.pop %v8200
      %v8222 = vmul.f32 %v8182, %v8221
      %v8223 = vrcp.pop %v8203
      %v8224 = vmul.f32 %v8184, %v8223
      %v8225 = vrcp.pop %v8206
      %v8226 = vmul.f32 %v8186, %v8225
      %v8227 = vrcp.pop %v8209
      %v8228 = vmul.f32 %v8188, %v8227
      %v8229 = vrcp.pop %v8212
      %v8230 = vmul.f32 %v8190, %v8229
      %v8231 = vrcp.pop %v8215
      %v8232 = vmul.f32 %v8192, %v8231
      %v8233 = vrcp.pop %v8218
      %v8234 = vmul.f32 %v8194, %v8233
      %8235 = vrot.lane.b32.xlu0 %v6181, 88
      %v8236 = vpop.permute.xlu0 %8235
      %v8239 = vsel %vm383, %v8220, 0
      %8241 = vmatprep.subr.mxu0 0.0
      %8242 = vmatpush1.msra.mxu0 %v8236
      %8243 = vmatprep.subr.mxu0 0.0
      %8244 = vmatpush1.msra.mxu0 0.0
      %8245 = vmatprep.subr.mxu0 0.0
      %8246 = vmatpush1.msra.mxu0 0.0
      %8247 = vmatprep.subr.mxu0 0.0
      %8248 = vmatpush1.msra.mxu0 0.0
      %8249 = vmatprep.subr.mxu0 0.0
      %8250 = vmatpush1.msra.mxu0 0.0
      %8251 = vmatprep.subr.mxu0 0.0
      %8252 = vmatpush1.msra.mxu0 0.0
      %8253 = vmatprep.subr.mxu0 0.0
      %8254 = vmatpush1.msra.mxu0 0.0
      %8255 = vmatprep.subr.mxu0 0.0
      %8256 = vmatpush1.msra.mxu0 0.0
      %8257 = vmatprep.subr.mxu0 0.0
      %8258 = vmatpush1.msra.mxu0 0.0
      %8259 = vmatprep.subr.mxu0 0.0
      %8260 = vmatpush1.msra.mxu0 0.0
      %8261 = vmatprep.subr.mxu0 0.0
      %8262 = vmatpush1.msra.mxu0 0.0
      %8263 = vmatprep.subr.mxu0 0.0
      %8264 = vmatpush1.msra.mxu0 0.0
      %8265 = vmatprep.subr.mxu0 0.0
      %8266 = vmatpush1.msra.mxu0 0.0
      %8267 = vmatprep.subr.mxu0 0.0
      %8268 = vmatpush1.msra.mxu0 0.0
      %8269 = vmatprep.subr.mxu0 0.0
      %8270 = vmatpush1.msra.mxu0 0.0
      %8271 = vmatprep.subr.mxu0 0.0
      %8272 = vmatpush1.msra.mxu0 0.0
      %8273 = vmatprep.subr.mxu0 0.0
      %8274 = vmatpush1.msra.mxu0 0.0
      %8275 = vmatprep.subr.mxu0 0.0
      %8276 = vmatpush1.msra.mxu0 0.0
      %8277 = vmatprep.subr.mxu0 0.0
      %8278 = vmatpush1.msra.mxu0 0.0
      %8279 = vmatprep.subr.mxu0 0.0
      %8280 = vmatpush1.msra.mxu0 0.0
      %8281 = vmatprep.subr.mxu0 0.0
      %8282 = vmatpush1.msra.mxu0 0.0
      %8283 = vmatprep.subr.mxu0 0.0
      %8284 = vmatpush1.msra.mxu0 0.0
      %8285 = vmatprep.subr.mxu0 0.0
      %8286 = vmatpush1.msra.mxu0 0.0
      %8287 = vmatprep.subr.mxu0 0.0
      %8288 = vmatpush1.msra.mxu0 0.0
      %8289 = vmatprep.subr.mxu0 0.0
      %8290 = vmatpush1.msra.mxu0 0.0
      %8291 = vmatprep.subr.mxu0 0.0
      %8292 = vmatpush1.msra.mxu0 0.0
      %8293 = vmatprep.subr.mxu0 0.0
      %8294 = vmatpush1.msra.mxu0 0.0
      %8295 = vmatprep.subr.mxu0 0.0
      %8296 = vmatpush1.msra.mxu0 0.0
      %8297 = vmatprep.subr.mxu0 0.0
      %8298 = vmatpush1.msra.mxu0 0.0
      %8299 = vmatprep.subr.mxu0 0.0
      %8300 = vmatpush1.msra.mxu0 0.0
      %8301 = vmatprep.subr.mxu0 0.0
      %8302 = vmatpush1.msra.mxu0 0.0
      %8303 = vmatprep.subr.mxu0 0.0
      %8304 = vmatpush1.msra.mxu0 0.0
      %8305 = vmatprep.mubr.f32.mxu0 0.0
      %8306 = vmatmul.mubr.f32.gmra.mrb[0].mxu0 %v8239
      %v8307 = vpop.f32.mrb[0].mxu0
      %v8308 = vadd.f32 0.0, %v8307
      %v8309 = vpop.f32.mrb[0].mxu0
      %8310 = vdwg.mxu0
      %8311 = vrot.lane.b32.xlu0 %v6186, 88
      %v8312 = vpop.permute.xlu0 %8311
      %v8315 = vsel %vm383, %v8222, 0
      %8317 = vmatprep.subr.mxu0 0.0
      %8318 = vmatpush1.msra.mxu0 %v8312
      %8319 = vmatprep.subr.mxu0 0.0
      %8320 = vmatpush1.msra.mxu0 0.0
      %8321 = vmatprep.subr.mxu0 0.0
      %8322 = vmatpush1.msra.mxu0 0.0
      %8323 = vmatprep.subr.mxu0 0.0
      %8324 = vmatpush1.msra.mxu0 0.0
      %8325 = vmatprep.subr.mxu0 0.0
      %8326 = vmatpush1.msra.mxu0 0.0
      %8327 = vmatprep.subr.mxu0 0.0
      %8328 = vmatpush1.msra.mxu0 0.0
      %8329 = vmatprep.subr.mxu0 0.0
      %8330 = vmatpush1.msra.mxu0 0.0
      %8331 = vmatprep.subr.mxu0 0.0
      %8332 = vmatpush1.msra.mxu0 0.0
      %8333 = vmatprep.subr.mxu0 0.0
      %8334 = vmatpush1.msra.mxu0 0.0
      %8335 = vmatprep.subr.mxu0 0.0
      %8336 = vmatpush1.msra.mxu0 0.0
      %8337 = vmatprep.subr.mxu0 0.0
      %8338 = vmatpush1.msra.mxu0 0.0
      %8339 = vmatprep.subr.mxu0 0.0
      %8340 = vmatpush1.msra.mxu0 0.0
      %8341 = vmatprep.subr.mxu0 0.0
      %8342 = vmatpush1.msra.mxu0 0.0
      %8343 = vmatprep.subr.mxu0 0.0
      %8344 = vmatpush1.msra.mxu0 0.0
      %8345 = vmatprep.subr.mxu0 0.0
      %8346 = vmatpush1.msra.mxu0 0.0
      %8347 = vmatprep.subr.mxu0 0.0
      %8348 = vmatpush1.msra.mxu0 0.0
      %8349 = vmatprep.subr.mxu0 0.0
      %8350 = vmatpush1.msra.mxu0 0.0
      %8351 = vmatprep.subr.mxu0 0.0
      %8352 = vmatpush1.msra.mxu0 0.0
      %8353 = vmatprep.subr.mxu0 0.0
      %8354 = vmatpush1.msra.mxu0 0.0
      %8355 = vmatprep.subr.mxu0 0.0
      %8356 = vmatpush1.msra.mxu0 0.0
      %8357 = vmatprep.subr.mxu0 0.0
      %8358 = vmatpush1.msra.mxu0 0.0
      %8359 = vmatprep.subr.mxu0 0.0
      %8360 = vmatpush1.msra.mxu0 0.0
      %8361 = vmatprep.subr.mxu0 0.0
      %8362 = vmatpush1.msra.mxu0 0.0
      %8363 = vmatprep.subr.mxu0 0.0
      %8364 = vmatpush1.msra.mxu0 0.0
      %8365 = vmatprep.subr.mxu0 0.0
      %8366 = vmatpush1.msra.mxu0 0.0
      %8367 = vmatprep.subr.mxu0 0.0
      %8368 = vmatpush1.msra.mxu0 0.0
      %8369 = vmatprep.subr.mxu0 0.0
      %8370 = vmatpush1.msra.mxu0 0.0
      %8371 = vmatprep.subr.mxu0 0.0
      %8372 = vmatpush1.msra.mxu0 0.0
      %8373 = vmatprep.subr.mxu0 0.0
      %8374 = vmatpush1.msra.mxu0 0.0
      %8375 = vmatprep.subr.mxu0 0.0
      %8376 = vmatpush1.msra.mxu0 0.0
      %8377 = vmatprep.subr.mxu0 0.0
      %8378 = vmatpush1.msra.mxu0 0.0
      %8379 = vmatprep.subr.mxu0 0.0
      %8380 = vmatpush1.msra.mxu0 0.0
      %8381 = vmatprep.mubr.f32.mxu0 0.0
      %8382 = vmatmul.mubr.f32.gmra.mrb[0].mxu0 %v8315
      %v8383 = vpop.f32.mrb[0].mxu0
      %v8384 = vadd.f32 0.0, %v8383
      %v8385 = vpop.f32.mrb[0].mxu0
      %8386 = vdwg.mxu0
      %8387 = vrot.lane.b32.xlu0 %v6191, 88
      %v8388 = vpop.permute.xlu0 %8387
      %v8391 = vsel %vm383, %v8224, 0
      %8393 = vmatprep.subr.mxu0 0.0
      %8394 = vmatpush1.msra.mxu0 %v8388
      %8395 = vmatprep.subr.mxu0 0.0
      %8396 = vmatpush1.msra.mxu0 0.0
      %8397 = vmatprep.subr.mxu0 0.0
      %8398 = vmatpush1.msra.mxu0 0.0
      %8399 = vmatprep.subr.mxu0 0.0
      %8400 = vmatpush1.msra.mxu0 0.0
      %8401 = vmatprep.subr.mxu0 0.0
      %8402 = vmatpush1.msra.mxu0 0.0
      %8403 = vmatprep.subr.mxu0 0.0
      %8404 = vmatpush1.msra.mxu0 0.0
      %8405 = vmatprep.subr.mxu0 0.0
      %8406 = vmatpush1.msra.mxu0 0.0
      %8407 = vmatprep.subr.mxu0 0.0
      %8408 = vmatpush1.msra.mxu0 0.0
      %8409 = vmatprep.subr.mxu0 0.0
      %8410 = vmatpush1.msra.mxu0 0.0
      %8411 = vmatprep.subr.mxu0 0.0
      %8412 = vmatpush1.msra.mxu0 0.0
      %8413 = vmatprep.subr.mxu0 0.0
      %8414 = vmatpush1.msra.mxu0 0.0
      %8415 = vmatprep.subr.mxu0 0.0
      %8416 = vmatpush1.msra.mxu0 0.0
      %8417 = vmatprep.subr.mxu0 0.0
      %8418 = vmatpush1.msra.mxu0 0.0
      %8419 = vmatprep.subr.mxu0 0.0
      %8420 = vmatpush1.msra.mxu0 0.0
      %8421 = vmatprep.subr.mxu0 0.0
      %8422 = vmatpush1.msra.mxu0 0.0
      %8423 = vmatprep.subr.mxu0 0.0
      %8424 = vmatpush1.msra.mxu0 0.0
      %8425 = vmatprep.subr.mxu0 0.0
      %8426 = vmatpush1.msra.mxu0 0.0
      %8427 = vmatprep.subr.mxu0 0.0
      %8428 = vmatpush1.msra.mxu0 0.0
      %8429 = vmatprep.subr.mxu0 0.0
      %8430 = vmatpush1.msra.mxu0 0.0
      %8431 = vmatprep.subr.mxu0 0.0
      %8432 = vmatpush1.msra.mxu0 0.0
      %8433 = vmatprep.subr.mxu0 0.0
      %8434 = vmatpush1.msra.mxu0 0.0
      %8435 = vmatprep.subr.mxu0 0.0
      %8436 = vmatpush1.msra.mxu0 0.0
      %8437 = vmatprep.subr.mxu0 0.0
      %8438 = vmatpush1.msra.mxu0 0.0
      %8439 = vmatprep.subr.mxu0 0.0
      %8440 = vmatpush1.msra.mxu0 0.0
      %8441 = vmatprep.subr.mxu0 0.0
      %8442 = vmatpush1.msra.mxu0 0.0
      %8443 = vmatprep.subr.mxu0 0.0
      %8444 = vmatpush1.msra.mxu0 0.0
      %8445 = vmatprep.subr.mxu0 0.0
      %8446 = vmatpush1.msra.mxu0 0.0
      %8447 = vmatprep.subr.mxu0 0.0
      %8448 = vmatpush1.msra.mxu0 0.0
      %8449 = vmatprep.subr.mxu0 0.0
      %8450 = vmatpush1.msra.mxu0 0.0
      %8451 = vmatprep.subr.mxu0 0.0
      %8452 = vmatpush1.msra.mxu0 0.0
      %8453 = vmatprep.subr.mxu0 0.0
      %8454 = vmatpush1.msra.mxu0 0.0
      %8455 = vmatprep.subr.mxu0 0.0
      %8456 = vmatpush1.msra.mxu0 0.0
      %8457 = vmatprep.mubr.f32.mxu0 0.0
      %8458 = vmatmul.mubr.f32.gmra.mrb[0].mxu0 %v8391
      %v8459 = vpop.f32.mrb[0].mxu0
      %v8460 = vadd.f32 0.0, %v8459
      %v8461 = vpop.f32.mrb[0].mxu0
      %8462 = vdwg.mxu0
      %8463 = vrot.lane.b32.xlu0 %v6196, 88
      %v8464 = vpop.permute.xlu0 %8463
      %v8467 = vsel %vm383, %v8226, 0
      %8469 = vmatprep.subr.mxu0 0.0
      %8470 = vmatpush1.msra.mxu0 %v8464
      %8471 = vmatprep.subr.mxu0 0.0
      %8472 = vmatpush1.msra.mxu0 0.0
      %8473 = vmatprep.subr.mxu0 0.0
      %8474 = vmatpush1.msra.mxu0 0.0
      %8475 = vmatprep.subr.mxu0 0.0
      %8476 = vmatpush1.msra.mxu0 0.0
      %8477 = vmatprep.subr.mxu0 0.0
      %8478 = vmatpush1.msra.mxu0 0.0
      %8479 = vmatprep.subr.mxu0 0.0
      %8480 = vmatpush1.msra.mxu0 0.0
      %8481 = vmatprep.subr.mxu0 0.0
      %8482 = vmatpush1.msra.mxu0 0.0
      %8483 = vmatprep.subr.mxu0 0.0
      %8484 = vmatpush1.msra.mxu0 0.0
      %8485 = vmatprep.subr.mxu0 0.0
      %8486 = vmatpush1.msra.mxu0 0.0
      %8487 = vmatprep.subr.mxu0 0.0
      %8488 = vmatpush1.msra.mxu0 0.0
      %8489 = vmatprep.subr.mxu0 0.0
      %8490 = vmatpush1.msra.mxu0 0.0
      %8491 = vmatprep.subr.mxu0 0.0
      %8492 = vmatpush1.msra.mxu0 0.0
      %8493 = vmatprep.subr.mxu0 0.0
      %8494 = vmatpush1.msra.mxu0 0.0
      %8495 = vmatprep.subr.mxu0 0.0
      %8496 = vmatpush1.msra.mxu0 0.0
      %8497 = vmatprep.subr.mxu0 0.0
      %8498 = vmatpush1.msra.mxu0 0.0
      %8499 = vmatprep.subr.mxu0 0.0
      %8500 = vmatpush1.msra.mxu0 0.0
      %8501 = vmatprep.subr.mxu0 0.0
      %8502 = vmatpush1.msra.mxu0 0.0
      %8503 = vmatprep.subr.mxu0 0.0
      %8504 = vmatpush1.msra.mxu0 0.0
      %8505 = vmatprep.subr.mxu0 0.0
      %8506 = vmatpush1.msra.mxu0 0.0
      %8507 = vmatprep.subr.mxu0 0.0
      %8508 = vmatpush1.msra.mxu0 0.0
      %8509 = vmatprep.subr.mxu0 0.0
      %8510 = vmatpush1.msra.mxu0 0.0
      %8511 = vmatprep.subr.mxu0 0.0
      %8512 = vmatpush1.msra.mxu0 0.0
      %8513 = vmatprep.subr.mxu0 0.0
      %8514 = vmatpush1.msra.mxu0 0.0
      %8515 = vmatprep.subr.mxu0 0.0
      %8516 = vmatpush1.msra.mxu0 0.0
      %8517 = vmatprep.subr.mxu0 0.0
      %8518 = vmatpush1.msra.mxu0 0.0
      %8519 = vmatprep.subr.mxu0 0.0
      %8520 = vmatpush1.msra.mxu0 0.0
      %8521 = vmatprep.subr.mxu0 0.0
      %8522 = vmatpush1.msra.mxu0 0.0
      %8523 = vmatprep.subr.mxu0 0.0
      %8524 = vmatpush1.msra.mxu0 0.0
      %8525 = vmatprep.subr.mxu0 0.0
      %8526 = vmatpush1.msra.mxu0 0.0
      %8527 = vmatprep.subr.mxu0 0.0
      %8528 = vmatpush1.msra.mxu0 0.0
      %8529 = vmatprep.subr.mxu0 0.0
      %8530 = vmatpush1.msra.mxu0 0.0
      %8531 = vmatprep.subr.mxu0 0.0
      %8532 = vmatpush1.msra.mxu0 0.0
      %8533 = vmatprep.mubr.f32.mxu0 0.0
      %8534 = vmatmul.mubr.f32.gmra.mrb[0].mxu0 %v8467
      %v8535 = vpop.f32.mrb[0].mxu0
      %v8536 = vadd.f32 0.0, %v8535
      %v8537 = vpop.f32.mrb[0].mxu0
      %8538 = vdwg.mxu0
      %8539 = vrot.lane.b32.xlu0 %v6201, 88
      %v8540 = vpop.permute.xlu0 %8539
      %v8543 = vsel %vm383, %v8228, 0
      %8545 = vmatprep.subr.mxu0 0.0
      %8546 = vmatpush1.msra.mxu0 %v8540
      %8547 = vmatprep.subr.mxu0 0.0
      %8548 = vmatpush1.msra.mxu0 0.0
      %8549 = vmatprep.subr.mxu0 0.0
      %8550 = vmatpush1.msra.mxu0 0.0
      %8551 = vmatprep.subr.mxu0 0.0
      %8552 = vmatpush1.msra.mxu0 0.0
      %8553 = vmatprep.subr.mxu0 0.0
      %8554 = vmatpush1.msra.mxu0 0.0
      %8555 = vmatprep.subr.mxu0 0.0
      %8556 = vmatpush1.msra.mxu0 0.0
      %8557 = vmatprep.subr.mxu0 0.0
      %8558 = vmatpush1.msra.mxu0 0.0
      %8559 = vmatprep.subr.mxu0 0.0
      %8560 = vmatpush1.msra.mxu0 0.0
      %8561 = vmatprep.subr.mxu0 0.0
      %8562 = vmatpush1.msra.mxu0 0.0
      %8563 = vmatprep.subr.mxu0 0.0
      %8564 = vmatpush1.msra.mxu0 0.0
      %8565 = vmatprep.subr.mxu0 0.0
      %8566 = vmatpush1.msra.mxu0 0.0
      %8567 = vmatprep.subr.mxu0 0.0
      %8568 = vmatpush1.msra.mxu0 0.0
      %8569 = vmatprep.subr.mxu0 0.0
      %8570 = vmatpush1.msra.mxu0 0.0
      %8571 = vmatprep.subr.mxu0 0.0
      %8572 = vmatpush1.msra.mxu0 0.0
      %8573 = vmatprep.subr.mxu0 0.0
      %8574 = vmatpush1.msra.mxu0 0.0
      %8575 = vmatprep.subr.mxu0 0.0
      %8576 = vmatpush1.msra.mxu0 0.0
      %8577 = vmatprep.subr.mxu0 0.0
      %8578 = vmatpush1.msra.mxu0 0.0
      %8579 = vmatprep.subr.mxu0 0.0
      %8580 = vmatpush1.msra.mxu0 0.0
      %8581 = vmatprep.subr.mxu0 0.0
      %8582 = vmatpush1.msra.mxu0 0.0
      %8583 = vmatprep.subr.mxu0 0.0
      %8584 = vmatpush1.msra.mxu0 0.0
      %8585 = vmatprep.subr.mxu0 0.0
      %8586 = vmatpush1.msra.mxu0 0.0
      %8587 = vmatprep.subr.mxu0 0.0
      %8588 = vmatpush1.msra.mxu0 0.0
      %8589 = vmatprep.subr.mxu0 0.0
      %8590 = vmatpush1.msra.mxu0 0.0
      %8591 = vmatprep.subr.mxu0 0.0
      %8592 = vmatpush1.msra.mxu0 0.0
      %8593 = vmatprep.subr.mxu0 0.0
      %8594 = vmatpush1.msra.mxu0 0.0
      %8595 = vmatprep.subr.mxu0 0.0
      %8596 = vmatpush1.msra.mxu0 0.0
      %8597 = vmatprep.subr.mxu0 0.0
      %8598 = vmatpush1.msra.mxu0 0.0
      %8599 = vmatprep.subr.mxu0 0.0
      %8600 = vmatpush1.msra.mxu0 0.0
      %8601 = vmatprep.subr.mxu0 0.0
      %8602 = vmatpush1.msra.mxu0 0.0
      %8603 = vmatprep.subr.mxu0 0.0
      %8604 = vmatpush1.msra.mxu0 0.0
      %8605 = vmatprep.subr.mxu0 0.0
      %8606 = vmatpush1.msra.mxu0 0.0
      %8607 = vmatprep.subr.mxu0 0.0
      %8608 = vmatpush1.msra.mxu0 0.0
      %8609 = vmatprep.mubr.f32.mxu0 0.0
      %8610 = vmatmul.mubr.f32.gmra.mrb[0].mxu0 %v8543
      %v8611 = vpop.f32.mrb[0].mxu0
      %v8612 = vadd.f32 0.0, %v8611
      %v8613 = vpop.f32.mrb[0].mxu0
      %8614 = vdwg.mxu0
      %8615 = vrot.lane.b32.xlu0 %v6206, 88
      %v8616 = vpop.permute.xlu0 %8615
      %v8619 = vsel %vm383, %v8230, 0
      %8621 = vmatprep.subr.mxu0 0.0
      %8622 = vmatpush1.msra.mxu0 %v8616
      %8623 = vmatprep.subr.mxu0 0.0
      %8624 = vmatpush1.msra.mxu0 0.0
      %8625 = vmatprep.subr.mxu0 0.0
      %8626 = vmatpush1.msra.mxu0 0.0
      %8627 = vmatprep.subr.mxu0 0.0
      %8628 = vmatpush1.msra.mxu0 0.0
      %8629 = vmatprep.subr.mxu0 0.0
      %8630 = vmatpush1.msra.mxu0 0.0
      %8631 = vmatprep.subr.mxu0 0.0
      %8632 = vmatpush1.msra.mxu0 0.0
      %8633 = vmatprep.subr.mxu0 0.0
      %8634 = vmatpush1.msra.mxu0 0.0
      %8635 = vmatprep.subr.mxu0 0.0
      %8636 = vmatpush1.msra.mxu0 0.0
      %8637 = vmatprep.subr.mxu0 0.0
      %8638 = vmatpush1.msra.mxu0 0.0
      %8639 = vmatprep.subr.mxu0 0.0
      %8640 = vmatpush1.msra.mxu0 0.0
      %8641 = vmatprep.subr.mxu0 0.0
      %8642 = vmatpush1.msra.mxu0 0.0
      %8643 = vmatprep.subr.mxu0 0.0
      %8644 = vmatpush1.msra.mxu0 0.0
      %8645 = vmatprep.subr.mxu0 0.0
      %8646 = vmatpush1.msra.mxu0 0.0
      %8647 = vmatprep.subr.mxu0 0.0
      %8648 = vmatpush1.msra.mxu0 0.0
      %8649 = vmatprep.subr.mxu0 0.0
      %8650 = vmatpush1.msra.mxu0 0.0
      %8651 = vmatprep.subr.mxu0 0.0
      %8652 = vmatpush1.msra.mxu0 0.0
      %8653 = vmatprep.subr.mxu0 0.0
      %8654 = vmatpush1.msra.mxu0 0.0
      %8655 = vmatprep.subr.mxu0 0.0
      %8656 = vmatpush1.msra.mxu0 0.0
      %8657 = vmatprep.subr.mxu0 0.0
      %8658 = vmatpush1.msra.mxu0 0.0
      %8659 = vmatprep.subr.mxu0 0.0
      %8660 = vmatpush1.msra.mxu0 0.0
      %8661 = vmatprep.subr.mxu0 0.0
      %8662 = vmatpush1.msra.mxu0 0.0
      %8663 = vmatprep.subr.mxu0 0.0
      %8664 = vmatpush1.msra.mxu0 0.0
      %8665 = vmatprep.subr.mxu0 0.0
      %8666 = vmatpush1.msra.mxu0 0.0
      %8667 = vmatprep.subr.mxu0 0.0
      %8668 = vmatpush1.msra.mxu0 0.0
      %8669 = vmatprep.subr.mxu0 0.0
      %8670 = vmatpush1.msra.mxu0 0.0
      %8671 = vmatprep.subr.mxu0 0.0
      %8672 = vmatpush1.msra.mxu0 0.0
      %8673 = vmatprep.subr.mxu0 0.0
      %8674 = vmatpush1.msra.mxu0 0.0
      %8675 = vmatprep.subr.mxu0 0.0
      %8676 = vmatpush1.msra.mxu0 0.0
      %8677 = vmatprep.subr.mxu0 0.0
      %8678 = vmatpush1.msra.mxu0 0.0
      %8679 = vmatprep.subr.mxu0 0.0
      %8680 = vmatpush1.msra.mxu0 0.0
      %8681 = vmatprep.subr.mxu0 0.0
      %8682 = vmatpush1.msra.mxu0 0.0
      %8683 = vmatprep.subr.mxu0 0.0
      %8684 = vmatpush1.msra.mxu0 0.0
      %8685 = vmatprep.mubr.f32.mxu0 0.0
      %8686 = vmatmul.mubr.f32.gmra.mrb[0].mxu0 %v8619
      %v8687 = vpop.f32.mrb[0].mxu0
      %v8688 = vadd.f32 0.0, %v8687
      %v8689 = vpop.f32.mrb[0].mxu0
      %8690 = vdwg.mxu0
      %8691 = vrot.lane.b32.xlu0 %v6211, 88
      %v8692 = vpop.permute.xlu0 %8691
      %v8695 = vsel %vm383, %v8232, 0
      %8697 = vmatprep.subr.mxu0 0.0
      %8698 = vmatpush1.msra.mxu0 %v8692
      %8699 = vmatprep.subr.mxu0 0.0
      %8700 = vmatpush1.msra.mxu0 0.0
      %8701 = vmatprep.subr.mxu0 0.0
      %8702 = vmatpush1.msra.mxu0 0.0
      %8703 = vmatprep.subr.mxu0 0.0
      %8704 = vmatpush1.msra.mxu0 0.0
      %8705 = vmatprep.subr.mxu0 0.0
      %8706 = vmatpush1.msra.mxu0 0.0
      %8707 = vmatprep.subr.mxu0 0.0
      %8708 = vmatpush1.msra.mxu0 0.0
      %8709 = vmatprep.subr.mxu0 0.0
      %8710 = vmatpush1.msra.mxu0 0.0
      %8711 = vmatprep.subr.mxu0 0.0
      %8712 = vmatpush1.msra.mxu0 0.0
      %8713 = vmatprep.subr.mxu0 0.0
      %8714 = vmatpush1.msra.mxu0 0.0
      %8715 = vmatprep.subr.mxu0 0.0
      %8716 = vmatpush1.msra.mxu0 0.0
      %8717 = vmatprep.subr.mxu0 0.0
      %8718 = vmatpush1.msra.mxu0 0.0
      %8719 = vmatprep.subr.mxu0 0.0
      %8720 = vmatpush1.msra.mxu0 0.0
      %8721 = vmatprep.subr.mxu0 0.0
      %8722 = vmatpush1.msra.mxu0 0.0
      %8723 = vmatprep.subr.mxu0 0.0
      %8724 = vmatpush1.msra.mxu0 0.0
      %8725 = vmatprep.subr.mxu0 0.0
      %8726 = vmatpush1.msra.mxu0 0.0
      %8727 = vmatprep.subr.mxu0 0.0
      %8728 = vmatpush1.msra.mxu0 0.0
      %8729 = vmatprep.subr.mxu0 0.0
      %8730 = vmatpush1.msra.mxu0 0.0
      %8731 = vmatprep.subr.mxu0 0.0
      %8732 = vmatpush1.msra.mxu0 0.0
      %8733 = vmatprep.subr.mxu0 0.0
      %8734 = vmatpush1.msra.mxu0 0.0
      %8735 = vmatprep.subr.mxu0 0.0
      %8736 = vmatpush1.msra.mxu0 0.0
      %8737 = vmatprep.subr.mxu0 0.0
      %8738 = vmatpush1.msra.mxu0 0.0
      %8739 = vmatprep.subr.mxu0 0.0
      %8740 = vmatpush1.msra.mxu0 0.0
      %8741 = vmatprep.subr.mxu0 0.0
      %8742 = vmatpush1.msra.mxu0 0.0
      %8743 = vmatprep.subr.mxu0 0.0
      %8744 = vmatpush1.msra.mxu0 0.0
      %8745 = vmatprep.subr.mxu0 0.0
      %8746 = vmatpush1.msra.mxu0 0.0
      %8747 = vmatprep.subr.mxu0 0.0
      %8748 = vmatpush1.msra.mxu0 0.0
      %8749 = vmatprep.subr.mxu0 0.0
      %8750 = vmatpush1.msra.mxu0 0.0
      %8751 = vmatprep.subr.mxu0 0.0
      %8752 = vmatpush1.msra.mxu0 0.0
      %8753 = vmatprep.subr.mxu0 0.0
      %8754 = vmatpush1.msra.mxu0 0.0
      %8755 = vmatprep.subr.mxu0 0.0
      %8756 = vmatpush1.msra.mxu0 0.0
      %8757 = vmatprep.subr.mxu0 0.0
      %8758 = vmatpush1.msra.mxu0 0.0
      %8759 = vmatprep.subr.mxu0 0.0
      %8760 = vmatpush1.msra.mxu0 0.0
      %8761 = vmatprep.mubr.f32.mxu0 0.0
      %8762 = vmatmul.mubr.f32.gmra.mrb[0].mxu0 %v8695
      %v8763 = vpop.f32.mrb[0].mxu0
      %v8764 = vadd.f32 0.0, %v8763
      %v8765 = vpop.f32.mrb[0].mxu0
      %8766 = vdwg.mxu0
      %8767 = vrot.lane.b32.xlu0 %v6216, 88
      %v8768 = vpop.permute.xlu0 %8767
      %v8771 = vsel %vm383, %v8234, 0
      %8773 = vmatprep.subr.mxu0 0.0
      %8774 = vmatpush1.msra.mxu0 %v8768
      %8775 = vmatprep.subr.mxu0 0.0
      %8776 = vmatpush1.msra.mxu0 0.0
      %8777 = vmatprep.subr.mxu0 0.0
      %8778 = vmatpush1.msra.mxu0 0.0
      %8779 = vmatprep.subr.mxu0 0.0
      %8780 = vmatpush1.msra.mxu0 0.0
      %8781 = vmatprep.subr.mxu0 0.0
      %8782 = vmatpush1.msra.mxu0 0.0
      %8783 = vmatprep.subr.mxu0 0.0
      %8784 = vmatpush1.msra.mxu0 0.0
      %8785 = vmatprep.subr.mxu0 0.0
      %8786 = vmatpush1.msra.mxu0 0.0
      %8787 = vmatprep.subr.mxu0 0.0
      %8788 = vmatpush1.msra.mxu0 0.0
      %8789 = vmatprep.subr.mxu0 0.0
      %8790 = vmatpush1.msra.mxu0 0.0
      %8791 = vmatprep.subr.mxu0 0.0
      %8792 = vmatpush1.msra.mxu0 0.0
      %8793 = vmatprep.subr.mxu0 0.0
      %8794 = vmatpush1.msra.mxu0 0.0
      %8795 = vmatprep.subr.mxu0 0.0
      %8796 = vmatpush1.msra.mxu0 0.0
      %8797 = vmatprep.subr.mxu0 0.0
      %8798 = vmatpush1.msra.mxu0 0.0
      %8799 = vmatprep.subr.mxu0 0.0
      %8800 = vmatpush1.msra.mxu0 0.0
      %8801 = vmatprep.subr.mxu0 0.0
      %8802 = vmatpush1.msra.mxu0 0.0
      %8803 = vmatprep.subr.mxu0 0.0
      %8804 = vmatpush1.msra.mxu0 0.0
      %8805 = vmatprep.subr.mxu0 0.0
      %8806 = vmatpush1.msra.mxu0 0.0
      %8807 = vmatprep.subr.mxu0 0.0
      %8808 = vmatpush1.msra.mxu0 0.0
      %8809 = vmatprep.subr.mxu0 0.0
      %8810 = vmatpush1.msra.mxu0 0.0
      %8811 = vmatprep.subr.mxu0 0.0
      %8812 = vmatpush1.msra.mxu0 0.0
      %8813 = vmatprep.subr.mxu0 0.0
      %8814 = vmatpush1.msra.mxu0 0.0
      %8815 = vmatprep.subr.mxu0 0.0
      %8816 = vmatpush1.msra.mxu0 0.0
      %8817 = vmatprep.subr.mxu0 0.0
      %8818 = vmatpush1.msra.mxu0 0.0
      %8819 = vmatprep.subr.mxu0 0.0
      %8820 = vmatpush1.msra.mxu0 0.0
      %8821 = vmatprep.subr.mxu0 0.0
      %8822 = vmatpush1.msra.mxu0 0.0
      %8823 = vmatprep.subr.mxu0 0.0
      %8824 = vmatpush1.msra.mxu0 0.0
      %8825 = vmatprep.subr.mxu0 0.0
      %8826 = vmatpush1.msra.mxu0 0.0
      %8827 = vmatprep.subr.mxu0 0.0
      %8828 = vmatpush1.msra.mxu0 0.0
      %8829 = vmatprep.subr.mxu0 0.0
      %8830 = vmatpush1.msra.mxu0 0.0
      %8831 = vmatprep.subr.mxu0 0.0
      %8832 = vmatpush1.msra.mxu0 0.0
      %8833 = vmatprep.subr.mxu0 0.0
      %8834 = vmatpush1.msra.mxu0 0.0
      %8835 = vmatprep.subr.mxu0 0.0
      %8836 = vmatpush1.msra.mxu0 0.0
      %8837 = vmatprep.mubr.f32.mxu0 0.0
      %8838 = vmatmul.mubr.f32.gmra.mrb[0].mxu0 %v8771
      %v8839 = vpop.f32.mrb[0].mxu0
      %v8840 = vadd.f32 0.0, %v8839
      %v8841 = vpop.f32.mrb[0].mxu0
      %8842 = vdwg.mxu0
      %8843 = vrot.lane.b32.xlu0 %v6033, 112
      %v8844 = vpop.permute.xlu0 %8843
      %8845 = vrot.lane.b32.xlu0 %v6181, 112
      %v8846 = vpop.permute.xlu0 %8845
      %v8847 = vsel %vm383, %v8844, 0
      %v8849 = vsel %vm383, %v8846, 0
      %8851 = vmatprep.subr.mxu0 0.0
      %8852 = vmatpush1.xpose.msra.mxu0 %v8849
      %8853 = vmatprep.subr.mxu0 0.0
      %8854 = vmatpush1.xpose.msra.mxu0 0.0
      %8855 = vmatprep.subr.mxu0 0.0
      %8856 = vmatpush1.xpose.msra.mxu0 0.0
      %8857 = vmatprep.subr.mxu0 0.0
      %8858 = vmatpush1.xpose.msra.mxu0 0.0
      %8859 = vmatprep.subr.mxu0 0.0
      %8860 = vmatpush1.xpose.msra.mxu0 0.0
      %8861 = vmatprep.subr.mxu0 0.0
      %8862 = vmatpush1.xpose.msra.mxu0 0.0
      %8863 = vmatprep.subr.mxu0 0.0
      %8864 = vmatpush1.xpose.msra.mxu0 0.0
      %8865 = vmatprep.subr.mxu0 0.0
      %8866 = vmatpush1.xpose.msra.mxu0 0.0
      %8867 = vmatprep.subr.mxu0 0.0
      %8868 = vmatpush1.xpose.msra.mxu0 0.0
      %8869 = vmatprep.subr.mxu0 0.0
      %8870 = vmatpush1.xpose.msra.mxu0 0.0
      %8871 = vmatprep.subr.mxu0 0.0
      %8872 = vmatpush1.xpose.msra.mxu0 0.0
      %8873 = vmatprep.subr.mxu0 0.0
      %8874 = vmatpush1.xpose.msra.mxu0 0.0
      %8875 = vmatprep.subr.mxu0 0.0
      %8876 = vmatpush1.xpose.msra.mxu0 0.0
      %8877 = vmatprep.subr.mxu0 0.0
      %8878 = vmatpush1.xpose.msra.mxu0 0.0
      %8879 = vmatprep.subr.mxu0 0.0
      %8880 = vmatpush1.xpose.msra.mxu0 0.0
      %8881 = vmatprep.subr.mxu0 0.0
      %8882 = vmatpush1.xpose.msra.mxu0 0.0
      %8883 = vmatprep.subr.mxu0 0.0
      %8884 = vmatpush1.xpose.msra.mxu0 0.0
      %8885 = vmatprep.subr.mxu0 0.0
      %8886 = vmatpush1.xpose.msra.mxu0 0.0
      %8887 = vmatprep.subr.mxu0 0.0
      %8888 = vmatpush1.xpose.msra.mxu0 0.0
      %8889 = vmatprep.subr.mxu0 0.0
      %8890 = vmatpush1.xpose.msra.mxu0 0.0
      %8891 = vmatprep.subr.mxu0 0.0
      %8892 = vmatpush1.xpose.msra.mxu0 0.0
      %8893 = vmatprep.subr.mxu0 0.0
      %8894 = vmatpush1.xpose.msra.mxu0 0.0
      %8895 = vmatprep.subr.mxu0 0.0
      %8896 = vmatpush1.xpose.msra.mxu0 0.0
      %8897 = vmatprep.subr.mxu0 0.0
      %8898 = vmatpush1.xpose.msra.mxu0 0.0
      %8899 = vmatprep.subr.mxu0 0.0
      %8900 = vmatpush1.xpose.msra.mxu0 0.0
      %8901 = vmatprep.subr.mxu0 0.0
      %8902 = vmatpush1.xpose.msra.mxu0 0.0
      %8903 = vmatprep.subr.mxu0 0.0
      %8904 = vmatpush1.xpose.msra.mxu0 0.0
      %8905 = vmatprep.subr.mxu0 0.0
      %8906 = vmatpush1.xpose.msra.mxu0 0.0
      %8907 = vmatprep.subr.mxu0 0.0
      %8908 = vmatpush1.xpose.msra.mxu0 0.0
      %8909 = vmatprep.subr.mxu0 0.0
      %8910 = vmatpush1.xpose.msra.mxu0 0.0
      %8911 = vmatprep.subr.mxu0 0.0
      %8912 = vmatpush1.xpose.msra.mxu0 0.0
      %8913 = vmatprep.subr.mxu0 0.0
      %8914 = vmatpush1.xpose.msra.mxu0 0.0
      %8915 = vmatprep.mubr.f32.mxu0 0.0
      %8916 = vmatmul.mubr.f32.gmra.mrb[0].mxu0 %v8847
      %v8917 = vpop.f32.mrb[0].mxu0
      %v8918 = vadd.f32 0.0, %v8917
      %v8919 = vpop.f32.mrb[0].mxu0
      %8920 = vdwg.mxu0
      %8921 = vrot.lane.b32.xlu0 %v6038, 112
      %v8922 = vpop.permute.xlu0 %8921
      %8923 = vrot.lane.b32.xlu0 %v6186, 112
      %v8924 = vpop.permute.xlu0 %8923
      %v8925 = vsel %vm383, %v8922, 0
      %v8927 = vsel %vm383, %v8924, 0
      %8929 = vmatprep.subr.mxu0 0.0
      %8930 = vmatpush1.xpose.msra.mxu0 %v8927
      %8931 = vmatprep.subr.mxu0 0.0
      %8932 = vmatpush1.xpose.msra.mxu0 0.0
      %8933 = vmatprep.subr.mxu0 0.0
      %8934 = vmatpush1.xpose.msra.mxu0 0.0
      %8935 = vmatprep.subr.mxu0 0.0
      %8936 = vmatpush1.xpose.msra.mxu0 0.0
      %8937 = vmatprep.subr.mxu0 0.0
      %8938 = vmatpush1.xpose.msra.mxu0 0.0
      %8939 = vmatprep.subr.mxu0 0.0
      %8940 = vmatpush1.xpose.msra.mxu0 0.0
      %8941 = vmatprep.subr.mxu0 0.0
      %8942 = vmatpush1.xpose.msra.mxu0 0.0
      %8943 = vmatprep.subr.mxu0 0.0
      %8944 = vmatpush1.xpose.msra.mxu0 0.0
      %8945 = vmatprep.subr.mxu0 0.0
      %8946 = vmatpush1.xpose.msra.mxu0 0.0
      %8947 = vmatprep.subr.mxu0 0.0
      %8948 = vmatpush1.xpose.msra.mxu0 0.0
      %8949 = vmatprep.subr.mxu0 0.0
      %8950 = vmatpush1.xpose.msra.mxu0 0.0
      %8951 = vmatprep.subr.mxu0 0.0
      %8952 = vmatpush1.xpose.msra.mxu0 0.0
      %8953 = vmatprep.subr.mxu0 0.0
      %8954 = vmatpush1.xpose.msra.mxu0 0.0
      %8955 = vmatprep.subr.mxu0 0.0
      %8956 = vmatpush1.xpose.msra.mxu0 0.0
      %8957 = vmatprep.subr.mxu0 0.0
      %8958 = vmatpush1.xpose.msra.mxu0 0.0
      %8959 = vmatprep.subr.mxu0 0.0
      %8960 = vmatpush1.xpose.msra.mxu0 0.0
      %8961 = vmatprep.subr.mxu0 0.0
      %8962 = vmatpush1.xpose.msra.mxu0 0.0
      %8963 = vmatprep.subr.mxu0 0.0
      %8964 = vmatpush1.xpose.msra.mxu0 0.0
      %8965 = vmatprep.subr.mxu0 0.0
      %8966 = vmatpush1.xpose.msra.mxu0 0.0
      %8967 = vmatprep.subr.mxu0 0.0
      %8968 = vmatpush1.xpose.msra.mxu0 0.0
      %8969 = vmatprep.subr.mxu0 0.0
      %8970 = vmatpush1.xpose.msra.mxu0 0.0
      %8971 = vmatprep.subr.mxu0 0.0
      %8972 = vmatpush1.xpose.msra.mxu0 0.0
      %8973 = vmatprep.subr.mxu0 0.0
      %8974 = vmatpush1.xpose.msra.mxu0 0.0
      %8975 = vmatprep.subr.mxu0 0.0
      %8976 = vmatpush1.xpose.msra.mxu0 0.0
      %8977 = vmatprep.subr.mxu0 0.0
      %8978 = vmatpush1.xpose.msra.mxu0 0.0
      %8979 = vmatprep.subr.mxu0 0.0
      %8980 = vmatpush1.xpose.msra.mxu0 0.0
      %8981 = vmatprep.subr.mxu0 0.0
      %8982 = vmatpush1.xpose.msra.mxu0 0.0
      %8983 = vmatprep.subr.mxu0 0.0
      %8984 = vmatpush1.xpose.msra.mxu0 0.0
      %8985 = vmatprep.subr.mxu0 0.0
      %8986 = vmatpush1.xpose.msra.mxu0 0.0
      %8987 = vmatprep.subr.mxu0 0.0
      %8988 = vmatpush1.xpose.msra.mxu0 0.0
      %8989 = vmatprep.subr.mxu0 0.0
      %8990 = vmatpush1.xpose.msra.mxu0 0.0
      %8991 = vmatprep.subr.mxu0 0.0
      %8992 = vmatpush1.xpose.msra.mxu0 0.0
      %8993 = vmatprep.mubr.f32.mxu0 0.0
      %8994 = vmatmul.mubr.f32.gmra.mrb[0].mxu0 %v8925
      %v8995 = vpop.f32.mrb[0].mxu0
      %v8996 = vadd.f32 0.0, %v8995
      %v8997 = vpop.f32.mrb[0].mxu0
      %8998 = vdwg.mxu0
      %8999 = vrot.lane.b32.xlu0 %v6043, 112
      %v9000 = vpop.permute.xlu0 %8999
      %9001 = vrot.lane.b32.xlu0 %v6191, 112
      %v9002 = vpop.permute.xlu0 %9001
      %v9003 = vsel %vm383, %v9000, 0
      %v9005 = vsel %vm383, %v9002, 0
      %9007 = vmatprep.subr.mxu0 0.0
      %9008 = vmatpush1.xpose.msra.mxu0 %v9005
      %9009 = vmatprep.subr.mxu0 0.0
      %9010 = vmatpush1.xpose.msra.mxu0 0.0
      %9011 = vmatprep.subr.mxu0 0.0
      %9012 = vmatpush1.xpose.msra.mxu0 0.0
      %9013 = vmatprep.subr.mxu0 0.0
      %9014 = vmatpush1.xpose.msra.mxu0 0.0
      %9015 = vmatprep.subr.mxu0 0.0
      %9016 = vmatpush1.xpose.msra.mxu0 0.0
      %9017 = vmatprep.subr.mxu0 0.0
      %9018 = vmatpush1.xpose.msra.mxu0 0.0
      %9019 = vmatprep.subr.mxu0 0.0
      %9020 = vmatpush1.xpose.msra.mxu0 0.0
      %9021 = vmatprep.subr.mxu0 0.0
      %9022 = vmatpush1.xpose.msra.mxu0 0.0
      %9023 = vmatprep.subr.mxu0 0.0
      %9024 = vmatpush1.xpose.msra.mxu0 0.0
      %9025 = vmatprep.subr.mxu0 0.0
      %9026 = vmatpush1.xpose.msra.mxu0 0.0
      %9027 = vmatprep.subr.mxu0 0.0
      %9028 = vmatpush1.xpose.msra.mxu0 0.0
      %9029 = vmatprep.subr.mxu0 0.0
      %9030 = vmatpush1.xpose.msra.mxu0 0.0
      %9031 = vmatprep.subr.mxu0 0.0
      %9032 = vmatpush1.xpose.msra.mxu0 0.0
      %9033 = vmatprep.subr.mxu0 0.0
      %9034 = vmatpush1.xpose.msra.mxu0 0.0
      %9035 = vmatprep.subr.mxu0 0.0
      %9036 = vmatpush1.xpose.msra.mxu0 0.0
      %9037 = vmatprep.subr.mxu0 0.0
      %9038 = vmatpush1.xpose.msra.mxu0 0.0
      %9039 = vmatprep.subr.mxu0 0.0
      %9040 = vmatpush1.xpose.msra.mxu0 0.0
      %9041 = vmatprep.subr.mxu0 0.0
      %9042 = vmatpush1.xpose.msra.mxu0 0.0
      %9043 = vmatprep.subr.mxu0 0.0
      %9044 = vmatpush1.xpose.msra.mxu0 0.0
      %9045 = vmatprep.subr.mxu0 0.0
      %9046 = vmatpush1.xpose.msra.mxu0 0.0
      %9047 = vmatprep.subr.mxu0 0.0
      %9048 = vmatpush1.xpose.msra.mxu0 0.0
      %9049 = vmatprep.subr.mxu0 0.0
      %9050 = vmatpush1.xpose.msra.mxu0 0.0
      %9051 = vmatprep.subr.mxu0 0.0
      %9052 = vmatpush1.xpose.msra.mxu0 0.0
      %9053 = vmatprep.subr.mxu0 0.0
      %9054 = vmatpush1.xpose.msra.mxu0 0.0
      %9055 = vmatprep.subr.mxu0 0.0
      %9056 = vmatpush1.xpose.msra.mxu0 0.0
      %9057 = vmatprep.subr.mxu0 0.0
      %9058 = vmatpush1.xpose.msra.mxu0 0.0
      %9059 = vmatprep.subr.mxu0 0.0
      %9060 = vmatpush1.xpose.msra.mxu0 0.0
      %9061 = vmatprep.subr.mxu0 0.0
      %9062 = vmatpush1.xpose.msra.mxu0 0.0
      %9063 = vmatprep.subr.mxu0 0.0
      %9064 = vmatpush1.xpose.msra.mxu0 0.0
      %9065 = vmatprep.subr.mxu0 0.0
      %9066 = vmatpush1.xpose.msra.mxu0 0.0
      %9067 = vmatprep.subr.mxu0 0.0
      %9068 = vmatpush1.xpose.msra.mxu0 0.0
      %9069 = vmatprep.subr.mxu0 0.0
      %9070 = vmatpush1.xpose.msra.mxu0 0.0
      %9071 = vmatprep.mubr.f32.mxu0 0.0
      %9072 = vmatmul.mubr.f32.gmra.mrb[0].mxu0 %v9003
      %v9073 = vpop.f32.mrb[0].mxu0
      %v9074 = vadd.f32 0.0, %v9073
      %v9075 = vpop.f32.mrb[0].mxu0
      %9076 = vdwg.mxu0
      %9077 = vrot.lane.b32.xlu0 %v6048, 112
      %v9078 = vpop.permute.xlu0 %9077
      %9079 = vrot.lane.b32.xlu0 %v6196, 112
      %v9080 = vpop.permute.xlu0 %9079
      %v9081 = vsel %vm383, %v9078, 0
      %v9083 = vsel %vm383, %v9080, 0
      %9085 = vmatprep.subr.mxu0 0.0
      %9086 = vmatpush1.xpose.msra.mxu0 %v9083
      %9087 = vmatprep.subr.mxu0 0.0
      %9088 = vmatpush1.xpose.msra.mxu0 0.0
      %9089 = vmatprep.subr.mxu0 0.0
      %9090 = vmatpush1.xpose.msra.mxu0 0.0
      %9091 = vmatprep.subr.mxu0 0.0
      %9092 = vmatpush1.xpose.msra.mxu0 0.0
      %9093 = vmatprep.subr.mxu0 0.0
      %9094 = vmatpush1.xpose.msra.mxu0 0.0
      %9095 = vmatprep.subr.mxu0 0.0
      %9096 = vmatpush1.xpose.msra.mxu0 0.0
      %9097 = vmatprep.subr.mxu0 0.0
      %9098 = vmatpush1.xpose.msra.mxu0 0.0
      %9099 = vmatprep.subr.mxu0 0.0
      %9100 = vmatpush1.xpose.msra.mxu0 0.0
      %9101 = vmatprep.subr.mxu0 0.0
      %9102 = vmatpush1.xpose.msra.mxu0 0.0
      %9103 = vmatprep.subr.mxu0 0.0
      %9104 = vmatpush1.xpose.msra.mxu0 0.0
      %9105 = vmatprep.subr.mxu0 0.0
      %9106 = vmatpush1.xpose.msra.mxu0 0.0
      %9107 = vmatprep.subr.mxu0 0.0
      %9108 = vmatpush1.xpose.msra.mxu0 0.0
      %9109 = vmatprep.subr.mxu0 0.0
      %9110 = vmatpush1.xpose.msra.mxu0 0.0
      %9111 = vmatprep.subr.mxu0 0.0
      %9112 = vmatpush1.xpose.msra.mxu0 0.0
      %9113 = vmatprep.subr.mxu0 0.0
      %9114 = vmatpush1.xpose.msra.mxu0 0.0
      %9115 = vmatprep.subr.mxu0 0.0
      %9116 = vmatpush1.xpose.msra.mxu0 0.0
      %9117 = vmatprep.subr.mxu0 0.0
      %9118 = vmatpush1.xpose.msra.mxu0 0.0
      %9119 = vmatprep.subr.mxu0 0.0
      %9120 = vmatpush1.xpose.msra.mxu0 0.0
      %9121 = vmatprep.subr.mxu0 0.0
      %9122 = vmatpush1.xpose.msra.mxu0 0.0
      %9123 = vmatprep.subr.mxu0 0.0
      %9124 = vmatpush1.xpose.msra.mxu0 0.0
      %9125 = vmatprep.subr.mxu0 0.0
      %9126 = vmatpush1.xpose.msra.mxu0 0.0
      %9127 = vmatprep.subr.mxu0 0.0
      %9128 = vmatpush1.xpose.msra.mxu0 0.0
      %9129 = vmatprep.subr.mxu0 0.0
      %9130 = vmatpush1.xpose.msra.mxu0 0.0
      %9131 = vmatprep.subr.mxu0 0.0
      %9132 = vmatpush1.xpose.msra.mxu0 0.0
      %9133 = vmatprep.subr.mxu0 0.0
      %9134 = vmatpush1.xpose.msra.mxu0 0.0
      %9135 = vmatprep.subr.mxu0 0.0
      %9136 = vmatpush1.xpose.msra.mxu0 0.0
      %9137 = vmatprep.subr.mxu0 0.0
      %9138 = vmatpush1.xpose.msra.mxu0 0.0
      %9139 = vmatprep.subr.mxu0 0.0
      %9140 = vmatpush1.xpose.msra.mxu0 0.0
      %9141 = vmatprep.subr.mxu0 0.0
      %9142 = vmatpush1.xpose.msra.mxu0 0.0
      %9143 = vmatprep.subr.mxu0 0.0
      %9144 = vmatpush1.xpose.msra.mxu0 0.0
      %9145 = vmatprep.subr.mxu0 0.0
      %9146 = vmatpush1.xpose.msra.mxu0 0.0
      %9147 = vmatprep.subr.mxu0 0.0
      %9148 = vmatpush1.xpose.msra.mxu0 0.0
      %9149 = vmatprep.mubr.f32.mxu0 0.0
      %9150 = vmatmul.mubr.f32.gmra.mrb[0].mxu0 %v9081
      %v9151 = vpop.f32.mrb[0].mxu0
      %v9152 = vadd.f32 0.0, %v9151
      %v9153 = vpop.f32.mrb[0].mxu0
      %9154 = vdwg.mxu0
      %9155 = vrot.lane.b32.xlu0 %v6053, 112
      %v9156 = vpop.permute.xlu0 %9155
      %9157 = vrot.lane.b32.xlu0 %v6201, 112
      %v9158 = vpop.permute.xlu0 %9157
      %v9159 = vsel %vm383, %v9156, 0
      %v9161 = vsel %vm383, %v9158, 0
      %9163 = vmatprep.subr.mxu0 0.0
      %9164 = vmatpush1.xpose.msra.mxu0 %v9161
      %9165 = vmatprep.subr.mxu0 0.0
      %9166 = vmatpush1.xpose.msra.mxu0 0.0
      %9167 = vmatprep.subr.mxu0 0.0
      %9168 = vmatpush1.xpose.msra.mxu0 0.0
      %9169 = vmatprep.subr.mxu0 0.0
      %9170 = vmatpush1.xpose.msra.mxu0 0.0
      %9171 = vmatprep.subr.mxu0 0.0
      %9172 = vmatpush1.xpose.msra.mxu0 0.0
      %9173 = vmatprep.subr.mxu0 0.0
      %9174 = vmatpush1.xpose.msra.mxu0 0.0
      %9175 = vmatprep.subr.mxu0 0.0
      %9176 = vmatpush1.xpose.msra.mxu0 0.0
      %9177 = vmatprep.subr.mxu0 0.0
      %9178 = vmatpush1.xpose.msra.mxu0 0.0
      %9179 = vmatprep.subr.mxu0 0.0
      %9180 = vmatpush1.xpose.msra.mxu0 0.0
      %9181 = vmatprep.subr.mxu0 0.0
      %9182 = vmatpush1.xpose.msra.mxu0 0.0
      %9183 = vmatprep.subr.mxu0 0.0
      %9184 = vmatpush1.xpose.msra.mxu0 0.0
      %9185 = vmatprep.subr.mxu0 0.0
      %9186 = vmatpush1.xpose.msra.mxu0 0.0
      %9187 = vmatprep.subr.mxu0 0.0
      %9188 = vmatpush1.xpose.msra.mxu0 0.0
      %9189 = vmatprep.subr.mxu0 0.0
      %9190 = vmatpush1.xpose.msra.mxu0 0.0
      %9191 = vmatprep.subr.mxu0 0.0
      %9192 = vmatpush1.xpose.msra.mxu0 0.0
      %9193 = vmatprep.subr.mxu0 0.0
      %9194 = vmatpush1.xpose.msra.mxu0 0.0
      %9195 = vmatprep.subr.mxu0 0.0
      %9196 = vmatpush1.xpose.msra.mxu0 0.0
      %9197 = vmatprep.subr.mxu0 0.0
      %9198 = vmatpush1.xpose.msra.mxu0 0.0
      %9199 = vmatprep.subr.mxu0 0.0
      %9200 = vmatpush1.xpose.msra.mxu0 0.0
      %9201 = vmatprep.subr.mxu0 0.0
      %9202 = vmatpush1.xpose.msra.mxu0 0.0
      %9203 = vmatprep.subr.mxu0 0.0
      %9204 = vmatpush1.xpose.msra.mxu0 0.0
      %9205 = vmatprep.subr.mxu0 0.0
      %9206 = vmatpush1.xpose.msra.mxu0 0.0
      %9207 = vmatprep.subr.mxu0 0.0
      %9208 = vmatpush1.xpose.msra.mxu0 0.0
      %9209 = vmatprep.subr.mxu0 0.0
      %9210 = vmatpush1.xpose.msra.mxu0 0.0
      %9211 = vmatprep.subr.mxu0 0.0
      %9212 = vmatpush1.xpose.msra.mxu0 0.0
      %9213 = vmatprep.subr.mxu0 0.0
      %9214 = vmatpush1.xpose.msra.mxu0 0.0
      %9215 = vmatprep.subr.mxu0 0.0
      %9216 = vmatpush1.xpose.msra.mxu0 0.0
      %9217 = vmatprep.subr.mxu0 0.0
      %9218 = vmatpush1.xpose.msra.mxu0 0.0
      %9219 = vmatprep.subr.mxu0 0.0
      %9220 = vmatpush1.xpose.msra.mxu0 0.0
      %9221 = vmatprep.subr.mxu0 0.0
      %9222 = vmatpush1.xpose.msra.mxu0 0.0
      %9223 = vmatprep.subr.mxu0 0.0
      %9224 = vmatpush1.xpose.msra.mxu0 0.0
      %9225 = vmatprep.subr.mxu0 0.0
      %9226 = vmatpush1.xpose.msra.mxu0 0.0
      %9227 = vmatprep.mubr.f32.mxu0 0.0
      %9228 = vmatmul.mubr.f32.gmra.mrb[0].mxu0 %v9159
      %v9229 = vpop.f32.mrb[0].mxu0
      %v9230 = vadd.f32 0.0, %v9229
      %v9231 = vpop.f32.mrb[0].mxu0
      %9232 = vdwg.mxu0
      %9233 = vrot.lane.b32.xlu0 %v6058, 112
      %v9234 = vpop.permute.xlu0 %9233
      %9235 = vrot.lane.b32.xlu0 %v6206, 112
      %v9236 = vpop.permute.xlu0 %9235
      %v9237 = vsel %vm383, %v9234, 0
      %v9239 = vsel %vm383, %v9236, 0
      %9241 = vmatprep.subr.mxu0 0.0
      %9242 = vmatpush1.xpose.msra.mxu0 %v9239
      %9243 = vmatprep.subr.mxu0 0.0
      %9244 = vmatpush1.xpose.msra.mxu0 0.0
      %9245 = vmatprep.subr.mxu0 0.0
      %9246 = vmatpush1.xpose.msra.mxu0 0.0
      %9247 = vmatprep.subr.mxu0 0.0
      %9248 = vmatpush1.xpose.msra.mxu0 0.0
      %9249 = vmatprep.subr.mxu0 0.0
      %9250 = vmatpush1.xpose.msra.mxu0 0.0
      %9251 = vmatprep.subr.mxu0 0.0
      %9252 = vmatpush1.xpose.msra.mxu0 0.0
      %9253 = vmatprep.subr.mxu0 0.0
      %9254 = vmatpush1.xpose.msra.mxu0 0.0
      %9255 = vmatprep.subr.mxu0 0.0
      %9256 = vmatpush1.xpose.msra.mxu0 0.0
      %9257 = vmatprep.subr.mxu0 0.0
      %9258 = vmatpush1.xpose.msra.mxu0 0.0
      %9259 = vmatprep.subr.mxu0 0.0
      %9260 = vmatpush1.xpose.msra.mxu0 0.0
      %9261 = vmatprep.subr.mxu0 0.0
      %9262 = vmatpush1.xpose.msra.mxu0 0.0
      %9263 = vmatprep.subr.mxu0 0.0
      %9264 = vmatpush1.xpose.msra.mxu0 0.0
      %9265 = vmatprep.subr.mxu0 0.0
      %9266 = vmatpush1.xpose.msra.mxu0 0.0
      %9267 = vmatprep.subr.mxu0 0.0
      %9268 = vmatpush1.xpose.msra.mxu0 0.0
      %9269 = vmatprep.subr.mxu0 0.0
      %9270 = vmatpush1.xpose.msra.mxu0 0.0
      %9271 = vmatprep.subr.mxu0 0.0
      %9272 = vmatpush1.xpose.msra.mxu0 0.0
      %9273 = vmatprep.subr.mxu0 0.0
      %9274 = vmatpush1.xpose.msra.mxu0 0.0
      %9275 = vmatprep.subr.mxu0 0.0
      %9276 = vmatpush1.xpose.msra.mxu0 0.0
      %9277 = vmatprep.subr.mxu0 0.0
      %9278 = vmatpush1.xpose.msra.mxu0 0.0
      %9279 = vmatprep.subr.mxu0 0.0
      %9280 = vmatpush1.xpose.msra.mxu0 0.0
      %9281 = vmatprep.subr.mxu0 0.0
      %9282 = vmatpush1.xpose.msra.mxu0 0.0
      %9283 = vmatprep.subr.mxu0 0.0
      %9284 = vmatpush1.xpose.msra.mxu0 0.0
      %9285 = vmatprep.subr.mxu0 0.0
      %9286 = vmatpush1.xpose.msra.mxu0 0.0
      %9287 = vmatprep.subr.mxu0 0.0
      %9288 = vmatpush1.xpose.msra.mxu0 0.0
      %9289 = vmatprep.subr.mxu0 0.0
      %9290 = vmatpush1.xpose.msra.mxu0 0.0
      %9291 = vmatprep.subr.mxu0 0.0
      %9292 = vmatpush1.xpose.msra.mxu0 0.0
      %9293 = vmatprep.subr.mxu0 0.0
      %9294 = vmatpush1.xpose.msra.mxu0 0.0
      %9295 = vmatprep.subr.mxu0 0.0
      %9296 = vmatpush1.xpose.msra.mxu0 0.0
      %9297 = vmatprep.subr.mxu0 0.0
      %9298 = vmatpush1.xpose.msra.mxu0 0.0
      %9299 = vmatprep.subr.mxu0 0.0
      %9300 = vmatpush1.xpose.msra.mxu0 0.0
      %9301 = vmatprep.subr.mxu0 0.0
      %9302 = vmatpush1.xpose.msra.mxu0 0.0
      %9303 = vmatprep.subr.mxu0 0.0
      %9304 = vmatpush1.xpose.msra.mxu0 0.0
      %9305 = vmatprep.mubr.f32.mxu0 0.0
      %9306 = vmatmul.mubr.f32.gmra.mrb[0].mxu0 %v9237
      %v9307 = vpop.f32.mrb[0].mxu0
      %v9308 = vadd.f32 0.0, %v9307
      %v9309 = vpop.f32.mrb[0].mxu0
      %9310 = vdwg.mxu0
      %9311 = vrot.lane.b32.xlu0 %v6063, 112
      %v9312 = vpop.permute.xlu0 %9311
      %9313 = vrot.lane.b32.xlu0 %v6211, 112
      %v9314 = vpop.permute.xlu0 %9313
      %v9315 = vsel %vm383, %v9312, 0
      %v9317 = vsel %vm383, %v9314, 0
      %9319 = vmatprep.subr.mxu0 0.0
      %9320 = vmatpush1.xpose.msra.mxu0 %v9317
      %9321 = vmatprep.subr.mxu0 0.0
      %9322 = vmatpush1.xpose.msra.mxu0 0.0
      %9323 = vmatprep.subr.mxu0 0.0
      %9324 = vmatpush1.xpose.msra.mxu0 0.0
      %9325 = vmatprep.subr.mxu0 0.0
      %9326 = vmatpush1.xpose.msra.mxu0 0.0
      %9327 = vmatprep.subr.mxu0 0.0
      %9328 = vmatpush1.xpose.msra.mxu0 0.0
      %9329 = vmatprep.subr.mxu0 0.0
      %9330 = vmatpush1.xpose.msra.mxu0 0.0
      %9331 = vmatprep.subr.mxu0 0.0
      %9332 = vmatpush1.xpose.msra.mxu0 0.0
      %9333 = vmatprep.subr.mxu0 0.0
      %9334 = vmatpush1.xpose.msra.mxu0 0.0
      %9335 = vmatprep.subr.mxu0 0.0
      %9336 = vmatpush1.xpose.msra.mxu0 0.0
      %9337 = vmatprep.subr.mxu0 0.0
      %9338 = vmatpush1.xpose.msra.mxu0 0.0
      %9339 = vmatprep.subr.mxu0 0.0
      %9340 = vmatpush1.xpose.msra.mxu0 0.0
      %9341 = vmatprep.subr.mxu0 0.0
      %9342 = vmatpush1.xpose.msra.mxu0 0.0
      %9343 = vmatprep.subr.mxu0 0.0
      %9344 = vmatpush1.xpose.msra.mxu0 0.0
      %9345 = vmatprep.subr.mxu0 0.0
      %9346 = vmatpush1.xpose.msra.mxu0 0.0
      %9347 = vmatprep.subr.mxu0 0.0
      %9348 = vmatpush1.xpose.msra.mxu0 0.0
      %9349 = vmatprep.subr.mxu0 0.0
      %9350 = vmatpush1.xpose.msra.mxu0 0.0
      %9351 = vmatprep.subr.mxu0 0.0
      %9352 = vmatpush1.xpose.msra.mxu0 0.0
      %9353 = vmatprep.subr.mxu0 0.0
      %9354 = vmatpush1.xpose.msra.mxu0 0.0
      %9355 = vmatprep.subr.mxu0 0.0
      %9356 = vmatpush1.xpose.msra.mxu0 0.0
      %9357 = vmatprep.subr.mxu0 0.0
      %9358 = vmatpush1.xpose.msra.mxu0 0.0
      %9359 = vmatprep.subr.mxu0 0.0
      %9360 = vmatpush1.xpose.msra.mxu0 0.0
      %9361 = vmatprep.subr.mxu0 0.0
      %9362 = vmatpush1.xpose.msra.mxu0 0.0
      %9363 = vmatprep.subr.mxu0 0.0
      %9364 = vmatpush1.xpose.msra.mxu0 0.0
      %9365 = vmatprep.subr.mxu0 0.0
      %9366 = vmatpush1.xpose.msra.mxu0 0.0
      %9367 = vmatprep.subr.mxu0 0.0
      %9368 = vmatpush1.xpose.msra.mxu0 0.0
      %9369 = vmatprep.subr.mxu0 0.0
      %9370 = vmatpush1.xpose.msra.mxu0 0.0
      %9371 = vmatprep.subr.mxu0 0.0
      %9372 = vmatpush1.xpose.msra.mxu0 0.0
      %9373 = vmatprep.subr.mxu0 0.0
      %9374 = vmatpush1.xpose.msra.mxu0 0.0
      %9375 = vmatprep.subr.mxu0 0.0
      %9376 = vmatpush1.xpose.msra.mxu0 0.0
      %9377 = vmatprep.subr.mxu0 0.0
      %9378 = vmatpush1.xpose.msra.mxu0 0.0
      %9379 = vmatprep.subr.mxu0 0.0
      %9380 = vmatpush1.xpose.msra.mxu0 0.0
      %9381 = vmatprep.subr.mxu0 0.0
      %9382 = vmatpush1.xpose.msra.mxu0 0.0
      %9383 = vmatprep.mubr.f32.mxu0 0.0
      %9384 = vmatmul.mubr.f32.gmra.mrb[0].mxu0 %v9315
      %v9385 = vpop.f32.mrb[0].mxu0
      %v9386 = vadd.f32 0.0, %v9385
      %v9387 = vpop.f32.mrb[0].mxu0
      %9388 = vdwg.mxu0
      %9389 = vrot.lane.b32.xlu0 %v6068, 112
      %v9390 = vpop.permute.xlu0 %9389
      %9391 = vrot.lane.b32.xlu0 %v6216, 112
      %v9392 = vpop.permute.xlu0 %9391
      %v9393 = vsel %vm383, %v9390, 0
      %v9395 = vsel %vm383, %v9392, 0
      %9397 = vmatprep.subr.mxu0 0.0
      %9398 = vmatpush1.xpose.msra.mxu0 %v9395
      %9399 = vmatprep.subr.mxu0 0.0
      %9400 = vmatpush1.xpose.msra.mxu0 0.0
      %9401 = vmatprep.subr.mxu0 0.0
      %9402 = vmatpush1.xpose.msra.mxu0 0.0
      %9403 = vmatprep.subr.mxu0 0.0
      %9404 = vmatpush1.xpose.msra.mxu0 0.0
      %9405 = vmatprep.subr.mxu0 0.0
      %9406 = vmatpush1.xpose.msra.mxu0 0.0
      %9407 = vmatprep.subr.mxu0 0.0
      %9408 = vmatpush1.xpose.msra.mxu0 0.0
      %9409 = vmatprep.subr.mxu0 0.0
      %9410 = vmatpush1.xpose.msra.mxu0 0.0
      %9411 = vmatprep.subr.mxu0 0.0
      %9412 = vmatpush1.xpose.msra.mxu0 0.0
      %9413 = vmatprep.subr.mxu0 0.0
      %9414 = vmatpush1.xpose.msra.mxu0 0.0
      %9415 = vmatprep.subr.mxu0 0.0
      %9416 = vmatpush1.xpose.msra.mxu0 0.0
      %9417 = vmatprep.subr.mxu0 0.0
      %9418 = vmatpush1.xpose.msra.mxu0 0.0
      %9419 = vmatprep.subr.mxu0 0.0
      %9420 = vmatpush1.xpose.msra.mxu0 0.0
      %9421 = vmatprep.subr.mxu0 0.0
      %9422 = vmatpush1.xpose.msra.mxu0 0.0
      %9423 = vmatprep.subr.mxu0 0.0
      %9424 = vmatpush1.xpose.msra.mxu0 0.0
      %9425 = vmatprep.subr.mxu0 0.0
      %9426 = vmatpush1.xpose.msra.mxu0 0.0
      %9427 = vmatprep.subr.mxu0 0.0
      %9428 = vmatpush1.xpose.msra.mxu0 0.0
      %9429 = vmatprep.subr.mxu0 0.0
      %9430 = vmatpush1.xpose.msra.mxu0 0.0
      %9431 = vmatprep.subr.mxu0 0.0
      %9432 = vmatpush1.xpose.msra.mxu0 0.0
      %9433 = vmatprep.subr.mxu0 0.0
      %9434 = vmatpush1.xpose.msra.mxu0 0.0
      %9435 = vmatprep.subr.mxu0 0.0
      %9436 = vmatpush1.xpose.msra.mxu0 0.0
      %9437 = vmatprep.subr.mxu0 0.0
      %9438 = vmatpush1.xpose.msra.mxu0 0.0
      %9439 = vmatprep.subr.mxu0 0.0
      %9440 = vmatpush1.xpose.msra.mxu0 0.0
      %9441 = vmatprep.subr.mxu0 0.0
      %9442 = vmatpush1.xpose.msra.mxu0 0.0
      %9443 = vmatprep.subr.mxu0 0.0
      %9444 = vmatpush1.xpose.msra.mxu0 0.0
      %9445 = vmatprep.subr.mxu0 0.0
      %9446 = vmatpush1.xpose.msra.mxu0 0.0
      %9447 = vmatprep.subr.mxu0 0.0
      %9448 = vmatpush1.xpose.msra.mxu0 0.0
      %9449 = vmatprep.subr.mxu0 0.0
      %9450 = vmatpush1.xpose.msra.mxu0 0.0
      %9451 = vmatprep.subr.mxu0 0.0
      %9452 = vmatpush1.xpose.msra.mxu0 0.0
      %9453 = vmatprep.subr.mxu0 0.0
      %9454 = vmatpush1.xpose.msra.mxu0 0.0
      %9455 = vmatprep.subr.mxu0 0.0
      %9456 = vmatpush1.xpose.msra.mxu0 0.0
      %9457 = vmatprep.subr.mxu0 0.0
      %9458 = vmatpush1.xpose.msra.mxu0 0.0
      %9459 = vmatprep.subr.mxu0 0.0
      %9460 = vmatpush1.xpose.msra.mxu0 0.0
      %9461 = vmatprep.mubr.f32.mxu0 0.0
      %9462 = vmatmul.mubr.f32.gmra.mrb[0].mxu0 %v9393
      %v9463 = vpop.f32.mrb[0].mxu0
      %v9464 = vadd.f32 0.0, %v9463
      %v9465 = vpop.f32.mrb[0].mxu0
      %9466 = vdwg.mxu0
      %v9467 = vsel %vm383, %v8918, -inf
      %9468 = vmax.xlane.f32.xlu0 %v9467
      %v9469 = vpop.xlane.xlu0 %9468
      %v9470 = vsel %vm383, %v8996, -inf
      %9471 = vmax.xlane.f32.xlu0 %v9470
      %v9472 = vpop.xlane.xlu0 %9471
      %v9473 = vsel %vm383, %v9074, -inf
      %9474 = vmax.xlane.f32.xlu0 %v9473
      %v9475 = vpop.xlane.xlu0 %9474
      %v9476 = vsel %vm383, %v9152, -inf
      %9477 = vmax.xlane.f32.xlu0 %v9476
      %v9478 = vpop.xlane.xlu0 %9477
      %v9479 = vsel %vm383, %v9230, -inf
      %9480 = vmax.xlane.f32.xlu0 %v9479
      %v9481 = vpop.xlane.xlu0 %9480
      %v9482 = vsel %vm383, %v9308, -inf
      %9483 = vmax.xlane.f32.xlu0 %v9482
      %v9484 = vpop.xlane.xlu0 %9483
      %v9485 = vsel %vm383, %v9386, -inf
      %9486 = vmax.xlane.f32.xlu0 %v9485
      %v9487 = vpop.xlane.xlu0 %9486
      %v9488 = vsel %vm383, %v9464, -inf
      %9489 = vmax.xlane.f32.xlu0 %v9488
      %v9490 = vpop.xlane.xlu0 %9489
      %v9491 = vsub.f32 %v8918, %v9469
      %v9492 = vsub.f32 %v8996, %v9472
      %v9493 = vsub.f32 %v9074, %v9475
      %v9494 = vsub.f32 %v9152, %v9478
      %v9495 = vsub.f32 %v9230, %v9481
      %v9496 = vsub.f32 %v9308, %v9484
      %v9497 = vsub.f32 %v9386, %v9487
      %v9498 = vsub.f32 %v9464, %v9490
      %v9499 = vmul.f32 %v9491, 1.442695
      %v9500 = vpow.pop %v9499
      %v9501 = vmul.f32 %v9492, 1.442695
      %v9502 = vpow.pop %v9501
      %v9503 = vmul.f32 %v9493, 1.442695
      %v9504 = vpow.pop %v9503
      %v9505 = vmul.f32 %v9494, 1.442695
      %v9506 = vpow.pop %v9505
      %v9507 = vmul.f32 %v9495, 1.442695
      %v9508 = vpow.pop %v9507
      %v9509 = vmul.f32 %v9496, 1.442695
      %v9510 = vpow.pop %v9509
      %v9511 = vmul.f32 %v9497, 1.442695
      %v9512 = vpow.pop %v9511
      %v9513 = vmul.f32 %v9498, 1.442695
      %v9514 = vpow.pop %v9513
      %v9515 = vsel %vm383, %v9500, 0.0
      %9516 = vadd.xlane.f32.xlu0 %v9515
      %v9517 = vpop.xlane.xlu0 %9516
      %v9518 = vsel %vm383, %v9502, 0.0
      %9519 = vadd.xlane.f32.xlu0 %v9518
      %v9520 = vpop.xlane.xlu0 %9519
      %v9521 = vsel %vm383, %v9504, 0.0
      %9522 = vadd.xlane.f32.xlu0 %v9521
      %v9523 = vpop.xlane.xlu0 %9522
      %v9524 = vsel %vm383, %v9506, 0.0
      %9525 = vadd.xlane.f32.xlu0 %v9524
      %v9526 = vpop.xlane.xlu0 %9525
      %v9527 = vsel %vm383, %v9508, 0.0
      %9528 = vadd.xlane.f32.xlu0 %v9527
      %v9529 = vpop.xlane.xlu0 %9528
      %v9530 = vsel %vm383, %v9510, 0.0
      %9531 = vadd.xlane.f32.xlu0 %v9530
      %v9532 = vpop.xlane.xlu0 %9531
      %v9533 = vsel %vm383, %v9512, 0.0
      %9534 = vadd.xlane.f32.xlu0 %v9533
      %v9535 = vpop.xlane.xlu0 %9534
      %v9536 = vsel %vm383, %v9514, 0.0
      %9537 = vadd.xlane.f32.xlu0 %v9536
      %v9538 = vpop.xlane.xlu0 %9537
      %v9539 = vrcp.pop %v9517
      %v9540 = vmul.f32 %v9500, %v9539
      %v9541 = vrcp.pop %v9520
      %v9542 = vmul.f32 %v9502, %v9541
      %v9543 = vrcp.pop %v9523
      %v9544 = vmul.f32 %v9504, %v9543
      %v9545 = vrcp.pop %v9526
      %v9546 = vmul.f32 %v9506, %v9545
      %v9547 = vrcp.pop %v9529
      %v9548 = vmul.f32 %v9508, %v9547
      %v9549 = vrcp.pop %v9532
      %v9550 = vmul.f32 %v9510, %v9549
      %v9551 = vrcp.pop %v9535
      %v9552 = vmul.f32 %v9512, %v9551
      %v9553 = vrcp.pop %v9538
      %v9554 = vmul.f32 %v9514, %v9553
      %9555 = vrot.lane.b32.xlu0 %v6181, 80
      %v9556 = vpop.permute.xlu0 %9555
      %v9559 = vsel %vm383, %v9540, 0
      %9561 = vmatprep.subr.mxu0 0.0
      %9562 = vmatpush1.msra.mxu0 %v9556
      %9563 = vmatprep.subr.mxu0 0.0
      %9564 = vmatpush1.msra.mxu0 0.0
      %9565 = vmatprep.subr.mxu0 0.0
      %9566 = vmatpush1.msra.mxu0 0.0
      %9567 = vmatprep.subr.mxu0 0.0
      %9568 = vmatpush1.msra.mxu0 0.0
      %9569 = vmatprep.subr.mxu0 0.0
      %9570 = vmatpush1.msra.mxu0 0.0
      %9571 = vmatprep.subr.mxu0 0.0
      %9572 = vmatpush1.msra.mxu0 0.0
      %9573 = vmatprep.subr.mxu0 0.0
      %9574 = vmatpush1.msra.mxu0 0.0
      %9575 = vmatprep.subr.mxu0 0.0
      %9576 = vmatpush1.msra.mxu0 0.0
      %9577 = vmatprep.subr.mxu0 0.0
      %9578 = vmatpush1.msra.mxu0 0.0
      %9579 = vmatprep.subr.mxu0 0.0
      %9580 = vmatpush1.msra.mxu0 0.0
      %9581 = vmatprep.subr.mxu0 0.0
      %9582 = vmatpush1.msra.mxu0 0.0
      %9583 = vmatprep.subr.mxu0 0.0
      %9584 = vmatpush1.msra.mxu0 0.0
      %9585 = vmatprep.subr.mxu0 0.0
      %9586 = vmatpush1.msra.mxu0 0.0
      %9587 = vmatprep.subr.mxu0 0.0
      %9588 = vmatpush1.msra.mxu0 0.0
      %9589 = vmatprep.subr.mxu0 0.0
      %9590 = vmatpush1.msra.mxu0 0.0
      %9591 = vmatprep.subr.mxu0 0.0
      %9592 = vmatpush1.msra.mxu0 0.0
      %9593 = vmatprep.subr.mxu0 0.0
      %9594 = vmatpush1.msra.mxu0 0.0
      %9595 = vmatprep.subr.mxu0 0.0
      %9596 = vmatpush1.msra.mxu0 0.0
      %9597 = vmatprep.subr.mxu0 0.0
      %9598 = vmatpush1.msra.mxu0 0.0
      %9599 = vmatprep.subr.mxu0 0.0
      %9600 = vmatpush1.msra.mxu0 0.0
      %9601 = vmatprep.subr.mxu0 0.0
      %9602 = vmatpush1.msra.mxu0 0.0
      %9603 = vmatprep.subr.mxu0 0.0
      %9604 = vmatpush1.msra.mxu0 0.0
      %9605 = vmatprep.subr.mxu0 0.0
      %9606 = vmatpush1.msra.mxu0 0.0
      %9607 = vmatprep.subr.mxu0 0.0
      %9608 = vmatpush1.msra.mxu0 0.0
      %9609 = vmatprep.subr.mxu0 0.0
      %9610 = vmatpush1.msra.mxu0 0.0
      %9611 = vmatprep.subr.mxu0 0.0
      %9612 = vmatpush1.msra.mxu0 0.0
      %9613 = vmatprep.subr.mxu0 0.0
      %9614 = vmatpush1.msra.mxu0 0.0
      %9615 = vmatprep.subr.mxu0 0.0
      %9616 = vmatpush1.msra.mxu0 0.0
      %9617 = vmatprep.subr.mxu0 0.0
      %9618 = vmatpush1.msra.mxu0 0.0
      %9619 = vmatprep.subr.mxu0 0.0
      %9620 = vmatpush1.msra.mxu0 0.0
      %9621 = vmatprep.subr.mxu0 0.0
      %9622 = vmatpush1.msra.mxu0 0.0
      %9623 = vmatprep.subr.mxu0 0.0
      %9624 = vmatpush1.msra.mxu0 0.0
      %9625 = vmatprep.mubr.f32.mxu0 0.0
      %9626 = vmatmul.mubr.f32.gmra.mrb[0].mxu0 %v9559
      %v9627 = vpop.f32.mrb[0].mxu0
      %v9628 = vadd.f32 0.0, %v9627
      %v9629 = vpop.f32.mrb[0].mxu0
      %9630 = vdwg.mxu0
      %9631 = vrot.lane.b32.xlu0 %v6186, 80
      %v9632 = vpop.permute.xlu0 %9631
      %v9635 = vsel %vm383, %v9542, 0
      %9637 = vmatprep.subr.mxu0 0.0
      %9638 = vmatpush1.msra.mxu0 %v9632
      %9639 = vmatprep.subr.mxu0 0.0
      %9640 = vmatpush1.msra.mxu0 0.0
      %9641 = vmatprep.subr.mxu0 0.0
      %9642 = vmatpush1.msra.mxu0 0.0
      %9643 = vmatprep.subr.mxu0 0.0
      %9644 = vmatpush1.msra.mxu0 0.0
      %9645 = vmatprep.subr.mxu0 0.0
      %9646 = vmatpush1.msra.mxu0 0.0
      %9647 = vmatprep.subr.mxu0 0.0
      %9648 = vmatpush1.msra.mxu0 0.0
      %9649 = vmatprep.subr.mxu0 0.0
      %9650 = vmatpush1.msra.mxu0 0.0
      %9651 = vmatprep.subr.mxu0 0.0
      %9652 = vmatpush1.msra.mxu0 0.0
      %9653 = vmatprep.subr.mxu0 0.0
      %9654 = vmatpush1.msra.mxu0 0.0
      %9655 = vmatprep.subr.mxu0 0.0
      %9656 = vmatpush1.msra.mxu0 0.0
      %9657 = vmatprep.subr.mxu0 0.0
      %9658 = vmatpush1.msra.mxu0 0.0
      %9659 = vmatprep.subr.mxu0 0.0
      %9660 = vmatpush1.msra.mxu0 0.0
      %9661 = vmatprep.subr.mxu0 0.0
      %9662 = vmatpush1.msra.mxu0 0.0
      %9663 = vmatprep.subr.mxu0 0.0
      %9664 = vmatpush1.msra.mxu0 0.0
      %9665 = vmatprep.subr.mxu0 0.0
      %9666 = vmatpush1.msra.mxu0 0.0
      %9667 = vmatprep.subr.mxu0 0.0
      %9668 = vmatpush1.msra.mxu0 0.0
      %9669 = vmatprep.subr.mxu0 0.0
      %9670 = vmatpush1.msra.mxu0 0.0
      %9671 = vmatprep.subr.mxu0 0.0
      %9672 = vmatpush1.msra.mxu0 0.0
      %9673 = vmatprep.subr.mxu0 0.0
      %9674 = vmatpush1.msra.mxu0 0.0
      %9675 = vmatprep.subr.mxu0 0.0
      %9676 = vmatpush1.msra.mxu0 0.0
      %9677 = vmatprep.subr.mxu0 0.0
      %9678 = vmatpush1.msra.mxu0 0.0
      %9679 = vmatprep.subr.mxu0 0.0
      %9680 = vmatpush1.msra.mxu0 0.0
      %9681 = vmatprep.subr.mxu0 0.0
      %9682 = vmatpush1.msra.mxu0 0.0
      %9683 = vmatprep.subr.mxu0 0.0
      %9684 = vmatpush1.msra.mxu0 0.0
      %9685 = vmatprep.subr.mxu0 0.0
      %9686 = vmatpush1.msra.mxu0 0.0
      %9687 = vmatprep.subr.mxu0 0.0
      %9688 = vmatpush1.msra.mxu0 0.0
      %9689 = vmatprep.subr.mxu0 0.0
      %9690 = vmatpush1.msra.mxu0 0.0
      %9691 = vmatprep.subr.mxu0 0.0
      %9692 = vmatpush1.msra.mxu0 0.0
      %9693 = vmatprep.subr.mxu0 0.0
      %9694 = vmatpush1.msra.mxu0 0.0
      %9695 = vmatprep.subr.mxu0 0.0
      %9696 = vmatpush1.msra.mxu0 0.0
      %9697 = vmatprep.subr.mxu0 0.0
      %9698 = vmatpush1.msra.mxu0 0.0
      %9699 = vmatprep.subr.mxu0 0.0
      %9700 = vmatpush1.msra.mxu0 0.0
      %9701 = vmatprep.mubr.f32.mxu0 0.0
      %9702 = vmatmul.mubr.f32.gmra.mrb[0].mxu0 %v9635
      %v9703 = vpop.f32.mrb[0].mxu0
      %v9704 = vadd.f32 0.0, %v9703
      %v9705 = vpop.f32.mrb[0].mxu0
      %9706 = vdwg.mxu0
      %9707 = vrot.lane.b32.xlu0 %v6191, 80
      %v9708 = vpop.permute.xlu0 %9707
      %v9711 = vsel %vm383, %v9544, 0
      %9713 = vmatprep.subr.mxu0 0.0
      %9714 = vmatpush1.msra.mxu0 %v9708
      %9715 = vmatprep.subr.mxu0 0.0
      %9716 = vmatpush1.msra.mxu0 0.0
      %9717 = vmatprep.subr.mxu0 0.0
      %9718 = vmatpush1.msra.mxu0 0.0
      %9719 = vmatprep.subr.mxu0 0.0
      %9720 = vmatpush1.msra.mxu0 0.0
      %9721 = vmatprep.subr.mxu0 0.0
      %9722 = vmatpush1.msra.mxu0 0.0
      %9723 = vmatprep.subr.mxu0 0.0
      %9724 = vmatpush1.msra.mxu0 0.0
      %9725 = vmatprep.subr.mxu0 0.0
      %9726 = vmatpush1.msra.mxu0 0.0
      %9727 = vmatprep.subr.mxu0 0.0
      %9728 = vmatpush1.msra.mxu0 0.0
      %9729 = vmatprep.subr.mxu0 0.0
      %9730 = vmatpush1.msra.mxu0 0.0
      %9731 = vmatprep.subr.mxu0 0.0
      %9732 = vmatpush1.msra.mxu0 0.0
      %9733 = vmatprep.subr.mxu0 0.0
      %9734 = vmatpush1.msra.mxu0 0.0
      %9735 = vmatprep.subr.mxu0 0.0
      %9736 = vmatpush1.msra.mxu0 0.0
      %9737 = vmatprep.subr.mxu0 0.0
      %9738 = vmatpush1.msra.mxu0 0.0
      %9739 = vmatprep.subr.mxu0 0.0
      %9740 = vmatpush1.msra.mxu0 0.0
      %9741 = vmatprep.subr.mxu0 0.0
      %9742 = vmatpush1.msra.mxu0 0.0
      %9743 = vmatprep.subr.mxu0 0.0
      %9744 = vmatpush1.msra.mxu0 0.0
      %9745 = vmatprep.subr.mxu0 0.0
      %9746 = vmatpush1.msra.mxu0 0.0
      %9747 = vmatprep.subr.mxu0 0.0
      %9748 = vmatpush1.msra.mxu0 0.0
      %9749 = vmatprep.subr.mxu0 0.0
      %9750 = vmatpush1.msra.mxu0 0.0
      %9751 = vmatprep.subr.mxu0 0.0
      %9752 = vmatpush1.msra.mxu0 0.0
      %9753 = vmatprep.subr.mxu0 0.0
      %9754 = vmatpush1.msra.mxu0 0.0
      %9755 = vmatprep.subr.mxu0 0.0
      %9756 = vmatpush1.msra.mxu0 0.0
      %9757 = vmatprep.subr.mxu0 0.0
      %9758 = vmatpush1.msra.mxu0 0.0
      %9759 = vmatprep.subr.mxu0 0.0
      %9760 = vmatpush1.msra.mxu0 0.0
      %9761 = vmatprep.subr.mxu0 0.0
      %9762 = vmatpush1.msra.mxu0 0.0
      %9763 = vmatprep.subr.mxu0 0.0
      %9764 = vmatpush1.msra.mxu0 0.0
      %9765 = vmatprep.subr.mxu0 0.0
      %9766 = vmatpush1.msra.mxu0 0.0
      %9767 = vmatprep.subr.mxu0 0.0
      %9768 = vmatpush1.msra.mxu0 0.0
      %9769 = vmatprep.subr.mxu0 0.0
      %9770 = vmatpush1.msra.mxu0 0.0
      %9771 = vmatprep.subr.mxu0 0.0
      %9772 = vmatpush1.msra.mxu0 0.0
      %9773 = vmatprep.subr.mxu0 0.0
      %9774 = vmatpush1.msra.mxu0 0.0
      %9775 = vmatprep.subr.mxu0 0.0
      %9776 = vmatpush1.msra.mxu0 0.0
      %9777 = vmatprep.mubr.f32.mxu0 0.0
      %9778 = vmatmul.mubr.f32.gmra.mrb[0].mxu0 %v9711
      %v9779 = vpop.f32.mrb[0].mxu0
      %v9780 = vadd.f32 0.0, %v9779
      %v9781 = vpop.f32.mrb[0].mxu0
      %9782 = vdwg.mxu0
      %9783 = vrot.lane.b32.xlu0 %v6196, 80
      %v9784 = vpop.permute.xlu0 %9783
      %v9787 = vsel %vm383, %v9546, 0
      %9789 = vmatprep.subr.mxu0 0.0
      %9790 = vmatpush1.msra.mxu0 %v9784
      %9791 = vmatprep.subr.mxu0 0.0
      %9792 = vmatpush1.msra.mxu0 0.0
      %9793 = vmatprep.subr.mxu0 0.0
      %9794 = vmatpush1.msra.mxu0 0.0
      %9795 = vmatprep.subr.mxu0 0.0
      %9796 = vmatpush1.msra.mxu0 0.0
      %9797 = vmatprep.subr.mxu0 0.0
      %9798 = vmatpush1.msra.mxu0 0.0
      %9799 = vmatprep.subr.mxu0 0.0
      %9800 = vmatpush1.msra.mxu0 0.0
      %9801 = vmatprep.subr.mxu0 0.0
      %9802 = vmatpush1.msra.mxu0 0.0
      %9803 = vmatprep.subr.mxu0 0.0
      %9804 = vmatpush1.msra.mxu0 0.0
      %9805 = vmatprep.subr.mxu0 0.0
      %9806 = vmatpush1.msra.mxu0 0.0
      %9807 = vmatprep.subr.mxu0 0.0
      %9808 = vmatpush1.msra.mxu0 0.0
      %9809 = vmatprep.subr.mxu0 0.0
      %9810 = vmatpush1.msra.mxu0 0.0
      %9811 = vmatprep.subr.mxu0 0.0
      %9812 = vmatpush1.msra.mxu0 0.0
      %9813 = vmatprep.subr.mxu0 0.0
      %9814 = vmatpush1.msra.mxu0 0.0
      %9815 = vmatprep.subr.mxu0 0.0
      %9816 = vmatpush1.msra.mxu0 0.0
      %9817 = vmatprep.subr.mxu0 0.0
      %9818 = vmatpush1.msra.mxu0 0.0
      %9819 = vmatprep.subr.mxu0 0.0
      %9820 = vmatpush1.msra.mxu0 0.0
      %9821 = vmatprep.subr.mxu0 0.0
      %9822 = vmatpush1.msra.mxu0 0.0
      %9823 = vmatprep.subr.mxu0 0.0
      %9824 = vmatpush1.msra.mxu0 0.0
      %9825 = vmatprep.subr.mxu0 0.0
      %9826 = vmatpush1.msra.mxu0 0.0
      %9827 = vmatprep.subr.mxu0 0.0
      %9828 = vmatpush1.msra.mxu0 0.0
      %9829 = vmatprep.subr.mxu0 0.0
      %9830 = vmatpush1.msra.mxu0 0.0
      %9831 = vmatprep.subr.mxu0 0.0
      %9832 = vmatpush1.msra.mxu0 0.0
      %9833 = vmatprep.subr.mxu0 0.0
      %9834 = vmatpush1.msra.mxu0 0.0
      %9835 = vmatprep.subr.mxu0 0.0
      %9836 = vmatpush1.msra.mxu0 0.0
      %9837 = vmatprep.subr.mxu0 0.0
      %9838 = vmatpush1.msra.mxu0 0.0
      %9839 = vmatprep.subr.mxu0 0.0
      %9840 = vmatpush1.msra.mxu0 0.0
      %9841 = vmatprep.subr.mxu0 0.0
      %9842 = vmatpush1.msra.mxu0 0.0
      %9843 = vmatprep.subr.mxu0 0.0
      %9844 = vmatpush1.msra.mxu0 0.0
      %9845 = vmatprep.subr.mxu0 0.0
      %9846 = vmatpush1.msra.mxu0 0.0
      %9847 = vmatprep.subr.mxu0 0.0
      %9848 = vmatpush1.msra.mxu0 0.0
      %9849 = vmatprep.subr.mxu0 0.0
      %9850 = vmatpush1.msra.mxu0 0.0
      %9851 = vmatprep.subr.mxu0 0.0
      %9852 = vmatpush1.msra.mxu0 0.0
      %9853 = vmatprep.mubr.f32.mxu0 0.0
      %9854 = vmatmul.mubr.f32.gmra.mrb[0].mxu0 %v9787
      %v9855 = vpop.f32.mrb[0].mxu0
      %v9856 = vadd.f32 0.0, %v9855
      %v9857 = vpop.f32.mrb[0].mxu0
      %9858 = vdwg.mxu0
      %9859 = vrot.lane.b32.xlu0 %v6201, 80
      %v9860 = vpop.permute.xlu0 %9859
      %v9863 = vsel %vm383, %v9548, 0
      %9865 = vmatprep.subr.mxu0 0.0
      %9866 = vmatpush1.msra.mxu0 %v9860
      %9867 = vmatprep.subr.mxu0 0.0
      %9868 = vmatpush1.msra.mxu0 0.0
      %9869 = vmatprep.subr.mxu0 0.0
      %9870 = vmatpush1.msra.mxu0 0.0
      %9871 = vmatprep.subr.mxu0 0.0
      %9872 = vmatpush1.msra.mxu0 0.0
      %9873 = vmatprep.subr.mxu0 0.0
      %9874 = vmatpush1.msra.mxu0 0.0
      %9875 = vmatprep.subr.mxu0 0.0
      %9876 = vmatpush1.msra.mxu0 0.0
      %9877 = vmatprep.subr.mxu0 0.0
      %9878 = vmatpush1.msra.mxu0 0.0
      %9879 = vmatprep.subr.mxu0 0.0
      %9880 = vmatpush1.msra.mxu0 0.0
      %9881 = vmatprep.subr.mxu0 0.0
      %9882 = vmatpush1.msra.mxu0 0.0
      %9883 = vmatprep.subr.mxu0 0.0
      %9884 = vmatpush1.msra.mxu0 0.0
      %9885 = vmatprep.subr.mxu0 0.0
      %9886 = vmatpush1.msra.mxu0 0.0
      %9887 = vmatprep.subr.mxu0 0.0
      %9888 = vmatpush1.msra.mxu0 0.0
      %9889 = vmatprep.subr.mxu0 0.0
      %9890 = vmatpush1.msra.mxu0 0.0
      %9891 = vmatprep.subr.mxu0 0.0
      %9892 = vmatpush1.msra.mxu0 0.0
      %9893 = vmatprep.subr.mxu0 0.0
      %9894 = vmatpush1.msra.mxu0 0.0
      %9895 = vmatprep.subr.mxu0 0.0
      %9896 = vmatpush1.msra.mxu0 0.0
      %9897 = vmatprep.subr.mxu0 0.0
      %9898 = vmatpush1.msra.mxu0 0.0
      %9899 = vmatprep.subr.mxu0 0.0
      %9900 = vmatpush1.msra.mxu0 0.0
      %9901 = vmatprep.subr.mxu0 0.0
      %9902 = vmatpush1.msra.mxu0 0.0
      %9903 = vmatprep.subr.mxu0 0.0
      %9904 = vmatpush1.msra.mxu0 0.0
      %9905 = vmatprep.subr.mxu0 0.0
      %9906 = vmatpush1.msra.mxu0 0.0
      %9907 = vmatprep.subr.mxu0 0.0
      %9908 = vmatpush1.msra.mxu0 0.0
      %9909 = vmatprep.subr.mxu0 0.0
      %9910 = vmatpush1.msra.mxu0 0.0
      %9911 = vmatprep.subr.mxu0 0.0
      %9912 = vmatpush1.msra.mxu0 0.0
      %9913 = vmatprep.subr.mxu0 0.0
      %9914 = vmatpush1.msra.mxu0 0.0
      %9915 = vmatprep.subr.mxu0 0.0
      %9916 = vmatpush1.msra.mxu0 0.0
      %9917 = vmatprep.subr.mxu0 0.0
      %9918 = vmatpush1.msra.mxu0 0.0
      %9919 = vmatprep.subr.mxu0 0.0
      %9920 = vmatpush1.msra.mxu0 0.0
      %9921 = vmatprep.subr.mxu0 0.0
      %9922 = vmatpush1.msra.mxu0 0.0
      %9923 = vmatprep.subr.mxu0 0.0
      %9924 = vmatpush1.msra.mxu0 0.0
      %9925 = vmatprep.subr.mxu0 0.0
      %9926 = vmatpush1.msra.mxu0 0.0
      %9927 = vmatprep.subr.mxu0 0.0
      %9928 = vmatpush1.msra.mxu0 0.0
      %9929 = vmatprep.mubr.f32.mxu0 0.0
      %9930 = vmatmul.mubr.f32.gmra.mrb[0].mxu0 %v9863
      %v9931 = vpop.f32.mrb[0].mxu0
      %v9932 = vadd.f32 0.0, %v9931
      %v9933 = vpop.f32.mrb[0].mxu0
      %9934 = vdwg.mxu0
      %9935 = vrot.lane.b32.xlu0 %v6206, 80
      %v9936 = vpop.permute.xlu0 %9935
      %v9939 = vsel %vm383, %v9550, 0
      %9941 = vmatprep.subr.mxu0 0.0
      %9942 = vmatpush1.msra.mxu0 %v9936
      %9943 = vmatprep.subr.mxu0 0.0
      %9944 = vmatpush1.msra.mxu0 0.0
      %9945 = vmatprep.subr.mxu0 0.0
      %9946 = vmatpush1.msra.mxu0 0.0
      %9947 = vmatprep.subr.mxu0 0.0
      %9948 = vmatpush1.msra.mxu0 0.0
      %9949 = vmatprep.subr.mxu0 0.0
      %9950 = vmatpush1.msra.mxu0 0.0
      %9951 = vmatprep.subr.mxu0 0.0
      %9952 = vmatpush1.msra.mxu0 0.0
      %9953 = vmatprep.subr.mxu0 0.0
      %9954 = vmatpush1.msra.mxu0 0.0
      %9955 = vmatprep.subr.mxu0 0.0
      %9956 = vmatpush1.msra.mxu0 0.0
      %9957 = vmatprep.subr.mxu0 0.0
      %9958 = vmatpush1.msra.mxu0 0.0
      %9959 = vmatprep.subr.mxu0 0.0
      %9960 = vmatpush1.msra.mxu0 0.0
      %9961 = vmatprep.subr.mxu0 0.0
      %9962 = vmatpush1.msra.mxu0 0.0
      %9963 = vmatprep.subr.mxu0 0.0
      %9964 = vmatpush1.msra.mxu0 0.0
      %9965 = vmatprep.subr.mxu0 0.0
      %9966 = vmatpush1.msra.mxu0 0.0
      %9967 = vmatprep.subr.mxu0 0.0
      %9968 = vmatpush1.msra.mxu0 0.0
      %9969 = vmatprep.subr.mxu0 0.0
      %9970 = vmatpush1.msra.mxu0 0.0
      %9971 = vmatprep.subr.mxu0 0.0
      %9972 = vmatpush1.msra.mxu0 0.0
      %9973 = vmatprep.subr.mxu0 0.0
      %9974 = vmatpush1.msra.mxu0 0.0
      %9975 = vmatprep.subr.mxu0 0.0
      %9976 = vmatpush1.msra.mxu0 0.0
      %9977 = vmatprep.subr.mxu0 0.0
      %9978 = vmatpush1.msra.mxu0 0.0
      %9979 = vmatprep.subr.mxu0 0.0
      %9980 = vmatpush1.msra.mxu0 0.0
      %9981 = vmatprep.subr.mxu0 0.0
      %9982 = vmatpush1.msra.mxu0 0.0
      %9983 = vmatprep.subr.mxu0 0.0
      %9984 = vmatpush1.msra.mxu0 0.0
      %9985 = vmatprep.subr.mxu0 0.0
      %9986 = vmatpush1.msra.mxu0 0.0
      %9987 = vmatprep.subr.mxu0 0.0
      %9988 = vmatpush1.msra.mxu0 0.0
      %9989 = vmatprep.subr.mxu0 0.0
      %9990 = vmatpush1.msra.mxu0 0.0
      %9991 = vmatprep.subr.mxu0 0.0
      %9992 = vmatpush1.msra.mxu0 0.0
      %9993 = vmatprep.subr.mxu0 0.0
      %9994 = vmatpush1.msra.mxu0 0.0
      %9995 = vmatprep.subr.mxu0 0.0
      %9996 = vmatpush1.msra.mxu0 0.0
      %9997 = vmatprep.subr.mxu0 0.0
      %9998 = vmatpush1.msra.mxu0 0.0
      %9999 = vmatprep.subr.mxu0 0.0
      %10000 = vmatpush1.msra.mxu0 0.0
      %10001 = vmatprep.subr.mxu0 0.0
      %10002 = vmatpush1.msra.mxu0 0.0
      %10003 = vmatprep.subr.mxu0 0.0
      %10004 = vmatpush1.msra.mxu0 0.0
      %10005 = vmatprep.mubr.f32.mxu0 0.0
      %10006 = vmatmul.mubr.f32.gmra.mrb[0].mxu0 %v9939
      %v10007 = vpop.f32.mrb[0].mxu0
      %v10008 = vadd.f32 0.0, %v10007
      %v10009 = vpop.f32.mrb[0].mxu0
      %10010 = vdwg.mxu0
      %10011 = vrot.lane.b32.xlu0 %v6211, 80
      %v10012 = vpop.permute.xlu0 %10011
      %v10015 = vsel %vm383, %v9552, 0
      %10017 = vmatprep.subr.mxu0 0.0
      %10018 = vmatpush1.msra.mxu0 %v10012
      %10019 = vmatprep.subr.mxu0 0.0
      %10020 = vmatpush1.msra.mxu0 0.0
      %10021 = vmatprep.subr.mxu0 0.0
      %10022 = vmatpush1.msra.mxu0 0.0
      %10023 = vmatprep.subr.mxu0 0.0
      %10024 = vmatpush1.msra.mxu0 0.0
      %10025 = vmatprep.subr.mxu0 0.0
      %10026 = vmatpush1.msra.mxu0 0.0
      %10027 = vmatprep.subr.mxu0 0.0
      %10028 = vmatpush1.msra.mxu0 0.0
      %10029 = vmatprep.subr.mxu0 0.0
      %10030 = vmatpush1.msra.mxu0 0.0
      %10031 = vmatprep.subr.mxu0 0.0
      %10032 = vmatpush1.msra.mxu0 0.0
      %10033 = vmatprep.subr.mxu0 0.0
      %10034 = vmatpush1.msra.mxu0 0.0
      %10035 = vmatprep.subr.mxu0 0.0
      %10036 = vmatpush1.msra.mxu0 0.0
      %10037 = vmatprep.subr.mxu0 0.0
      %10038 = vmatpush1.msra.mxu0 0.0
      %10039 = vmatprep.subr.mxu0 0.0
      %10040 = vmatpush1.msra.mxu0 0.0
      %10041 = vmatprep.subr.mxu0 0.0
      %10042 = vmatpush1.msra.mxu0 0.0
      %10043 = vmatprep.subr.mxu0 0.0
      %10044 = vmatpush1.msra.mxu0 0.0
      %10045 = vmatprep.subr.mxu0 0.0
      %10046 = vmatpush1.msra.mxu0 0.0
      %10047 = vmatprep.subr.mxu0 0.0
      %10048 = vmatpush1.msra.mxu0 0.0
      %10049 = vmatprep.subr.mxu0 0.0
      %10050 = vmatpush1.msra.mxu0 0.0
      %10051 = vmatprep.subr.mxu0 0.0
      %10052 = vmatpush1.msra.mxu0 0.0
      %10053 = vmatprep.subr.mxu0 0.0
      %10054 = vmatpush1.msra.mxu0 0.0
      %10055 = vmatprep.subr.mxu0 0.0
      %10056 = vmatpush1.msra.mxu0 0.0
      %10057 = vmatprep.subr.mxu0 0.0
      %10058 = vmatpush1.msra.mxu0 0.0
      %10059 = vmatprep.subr.mxu0 0.0
      %10060 = vmatpush1.msra.mxu0 0.0
      %10061 = vmatprep.subr.mxu0 0.0
      %10062 = vmatpush1.msra.mxu0 0.0
      %10063 = vmatprep.subr.mxu0 0.0
      %10064 = vmatpush1.msra.mxu0 0.0
      %10065 = vmatprep.subr.mxu0 0.0
      %10066 = vmatpush1.msra.mxu0 0.0
      %10067 = vmatprep.subr.mxu0 0.0
      %10068 = vmatpush1.msra.mxu0 0.0
      %10069 = vmatprep.subr.mxu0 0.0
      %10070 = vmatpush1.msra.mxu0 0.0
      %10071 = vmatprep.subr.mxu0 0.0
      %10072 = vmatpush1.msra.mxu0 0.0
      %10073 = vmatprep.subr.mxu0 0.0
      %10074 = vmatpush1.msra.mxu0 0.0
      %10075 = vmatprep.subr.mxu0 0.0
      %10076 = vmatpush1.msra.mxu0 0.0
      %10077 = vmatprep.subr.mxu0 0.0
      %10078 = vmatpush1.msra.mxu0 0.0
      %10079 = vmatprep.subr.mxu0 0.0
      %10080 = vmatpush1.msra.mxu0 0.0
      %10081 = vmatprep.mubr.f32.mxu0 0.0
      %10082 = vmatmul.mubr.f32.gmra.mrb[0].mxu0 %v10015
      %v10083 = vpop.f32.mrb[0].mxu0
      %v10084 = vadd.f32 0.0, %v10083
      %v10085 = vpop.f32.mrb[0].mxu0
      %10086 = vdwg.mxu0
      %10087 = vrot.lane.b32.xlu0 %v6216, 80
      %v10088 = vpop.permute.xlu0 %10087
      %v10091 = vsel %vm383, %v9554, 0
      %10093 = vmatprep.subr.mxu0 0.0
      %10094 = vmatpush1.msra.mxu0 %v10088
      %10095 = vmatprep.subr.mxu0 0.0
      %10096 = vmatpush1.msra.mxu0 0.0
      %10097 = vmatprep.subr.mxu0 0.0
      %10098 = vmatpush1.msra.mxu0 0.0
      %10099 = vmatprep.subr.mxu0 0.0
      %10100 = vmatpush1.msra.mxu0 0.0
      %10101 = vmatprep.subr.mxu0 0.0
      %10102 = vmatpush1.msra.mxu0 0.0
      %10103 = vmatprep.subr.mxu0 0.0
      %10104 = vmatpush1.msra.mxu0 0.0
      %10105 = vmatprep.subr.mxu0 0.0
      %10106 = vmatpush1.msra.mxu0 0.0
      %10107 = vmatprep.subr.mxu0 0.0
      %10108 = vmatpush1.msra.mxu0 0.0
      %10109 = vmatprep.subr.mxu0 0.0
      %10110 = vmatpush1.msra.mxu0 0.0
      %10111 = vmatprep.subr.mxu0 0.0
      %10112 = vmatpush1.msra.mxu0 0.0
      %10113 = vmatprep.subr.mxu0 0.0
      %10114 = vmatpush1.msra.mxu0 0.0
      %10115 = vmatprep.subr.mxu0 0.0
      %10116 = vmatpush1.msra.mxu0 0.0
      %10117 = vmatprep.subr.mxu0 0.0
      %10118 = vmatpush1.msra.mxu0 0.0
      %10119 = vmatprep.subr.mxu0 0.0
      %10120 = vmatpush1.msra.mxu0 0.0
      %10121 = vmatprep.subr.mxu0 0.0
      %10122 = vmatpush1.msra.mxu0 0.0
      %10123 = vmatprep.subr.mxu0 0.0
      %10124 = vmatpush1.msra.mxu0 0.0
      %10125 = vmatprep.subr.mxu0 0.0
      %10126 = vmatpush1.msra.mxu0 0.0
      %10127 = vmatprep.subr.mxu0 0.0
      %10128 = vmatpush1.msra.mxu0 0.0
      %10129 = vmatprep.subr.mxu0 0.0
      %10130 = vmatpush1.msra.mxu0 0.0
      %10131 = vmatprep.subr.mxu0 0.0
      %10132 = vmatpush1.msra.mxu0 0.0
      %10133 = vmatprep.subr.mxu0 0.0
      %10134 = vmatpush1.msra.mxu0 0.0
      %10135 = vmatprep.subr.mxu0 0.0
      %10136 = vmatpush1.msra.mxu0 0.0
      %10137 = vmatprep.subr.mxu0 0.0
      %10138 = vmatpush1.msra.mxu0 0.0
      %10139 = vmatprep.subr.mxu0 0.0
      %10140 = vmatpush1.msra.mxu0 0.0
      %10141 = vmatprep.subr.mxu0 0.0
      %10142 = vmatpush1.msra.mxu0 0.0
      %10143 = vmatprep.subr.mxu0 0.0
      %10144 = vmatpush1.msra.mxu0 0.0
      %10145 = vmatprep.subr.mxu0 0.0
      %10146 = vmatpush1.msra.mxu0 0.0
      %10147 = vmatprep.subr.mxu0 0.0
      %10148 = vmatpush1.msra.mxu0 0.0
      %10149 = vmatprep.subr.mxu0 0.0
      %10150 = vmatpush1.msra.mxu0 0.0
      %10151 = vmatprep.subr.mxu0 0.0
      %10152 = vmatpush1.msra.mxu0 0.0
      %10153 = vmatprep.subr.mxu0 0.0
      %10154 = vmatpush1.msra.mxu0 0.0
      %10155 = vmatprep.subr.mxu0 0.0
      %10156 = vmatpush1.msra.mxu0 0.0
      %10157 = vmatprep.mubr.f32.mxu0 0.0
      %10158 = vmatmul.mubr.f32.gmra.mrb[0].mxu0 %v10091
      %v10159 = vpop.f32.mrb[0].mxu0
      %v10160 = vadd.f32 0.0, %v10159
      %v10161 = vpop.f32.mrb[0].mxu0
      %10162 = vdwg.mxu0
      %10163 = vrot.lane.b32.xlu0 %v6033, 104
      %v10164 = vpop.permute.xlu0 %10163
      %10165 = vrot.lane.b32.xlu0 %v6181, 104
      %v10166 = vpop.permute.xlu0 %10165
      %v10167 = vsel %vm383, %v10164, 0
      %v10169 = vsel %vm383, %v10166, 0
      %10171 = vmatprep.subr.mxu0 0.0
      %10172 = vmatpush1.xpose.msra.mxu0 %v10169
      %10173 = vmatprep.subr.mxu0 0.0
      %10174 = vmatpush1.xpose.msra.mxu0 0.0
      %10175 = vmatprep.subr.mxu0 0.0
      %10176 = vmatpush1.xpose.msra.mxu0 0.0
      %10177 = vmatprep.subr.mxu0 0.0
      %10178 = vmatpush1.xpose.msra.mxu0 0.0
      %10179 = vmatprep.subr.mxu0 0.0
      %10180 = vmatpush1.xpose.msra.mxu0 0.0
      %10181 = vmatprep.subr.mxu0 0.0
      %10182 = vmatpush1.xpose.msra.mxu0 0.0
      %10183 = vmatprep.subr.mxu0 0.0
      %10184 = vmatpush1.xpose.msra.mxu0 0.0
      %10185 = vmatprep.subr.mxu0 0.0
      %10186 = vmatpush1.xpose.msra.mxu0 0.0
      %10187 = vmatprep.subr.mxu0 0.0
      %10188 = vmatpush1.xpose.msra.mxu0 0.0
      %10189 = vmatprep.subr.mxu0 0.0
      %10190 = vmatpush1.xpose.msra.mxu0 0.0
      %10191 = vmatprep.subr.mxu0 0.0
      %10192 = vmatpush1.xpose.msra.mxu0 0.0
      %10193 = vmatprep.subr.mxu0 0.0
      %10194 = vmatpush1.xpose.msra.mxu0 0.0
      %10195 = vmatprep.subr.mxu0 0.0
      %10196 = vmatpush1.xpose.msra.mxu0 0.0
      %10197 = vmatprep.subr.mxu0 0.0
      %10198 = vmatpush1.xpose.msra.mxu0 0.0
      %10199 = vmatprep.subr.mxu0 0.0
      %10200 = vmatpush1.xpose.msra.mxu0 0.0
      %10201 = vmatprep.subr.mxu0 0.0
      %10202 = vmatpush1.xpose.msra.mxu0 0.0
      %10203 = vmatprep.subr.mxu0 0.0
      %10204 = vmatpush1.xpose.msra.mxu0 0.0
      %10205 = vmatprep.subr.mxu0 0.0
      %10206 = vmatpush1.xpose.msra.mxu0 0.0
      %10207 = vmatprep.subr.mxu0 0.0
      %10208 = vmatpush1.xpose.msra.mxu0 0.0
      %10209 = vmatprep.subr.mxu0 0.0
      %10210 = vmatpush1.xpose.msra.mxu0 0.0
      %10211 = vmatprep.subr.mxu0 0.0
      %10212 = vmatpush1.xpose.msra.mxu0 0.0
      %10213 = vmatprep.subr.mxu0 0.0
      %10214 = vmatpush1.xpose.msra.mxu0 0.0
      %10215 = vmatprep.subr.mxu0 0.0
      %10216 = vmatpush1.xpose.msra.mxu0 0.0
      %10217 = vmatprep.subr.mxu0 0.0
      %10218 = vmatpush1.xpose.msra.mxu0 0.0
      %10219 = vmatprep.subr.mxu0 0.0
      %10220 = vmatpush1.xpose.msra.mxu0 0.0
      %10221 = vmatprep.subr.mxu0 0.0
      %10222 = vmatpush1.xpose.msra.mxu0 0.0
      %10223 = vmatprep.subr.mxu0 0.0
      %10224 = vmatpush1.xpose.msra.mxu0 0.0
      %10225 = vmatprep.subr.mxu0 0.0
      %10226 = vmatpush1.xpose.msra.mxu0 0.0
      %10227 = vmatprep.subr.mxu0 0.0
      %10228 = vmatpush1.xpose.msra.mxu0 0.0
      %10229 = vmatprep.subr.mxu0 0.0
      %10230 = vmatpush1.xpose.msra.mxu0 0.0
      %10231 = vmatprep.subr.mxu0 0.0
      %10232 = vmatpush1.xpose.msra.mxu0 0.0
      %10233 = vmatprep.subr.mxu0 0.0
      %10234 = vmatpush1.xpose.msra.mxu0 0.0
      %10235 = vmatprep.mubr.f32.mxu0 0.0
      %10236 = vmatmul.mubr.f32.gmra.mrb[0].mxu0 %v10167
      %v10237 = vpop.f32.mrb[0].mxu0
      %v10238 = vadd.f32 0.0, %v10237
      %v10239 = vpop.f32.mrb[0].mxu0
      %10240 = vdwg.mxu0
      %10241 = vrot.lane.b32.xlu0 %v6038, 104
      %v10242 = vpop.permute.xlu0 %10241
      %10243 = vrot.lane.b32.xlu0 %v6186, 104
      %v10244 = vpop.permute.xlu0 %10243
      %v10245 = vsel %vm383, %v10242, 0
      %v10247 = vsel %vm383, %v10244, 0
      %10249 = vmatprep.subr.mxu0 0.0
      %10250 = vmatpush1.xpose.msra.mxu0 %v10247
      %10251 = vmatprep.subr.mxu0 0.0
      %10252 = vmatpush1.xpose.msra.mxu0 0.0
      %10253 = vmatprep.subr.mxu0 0.0
      %10254 = vmatpush1.xpose.msra.mxu0 0.0
      %10255 = vmatprep.subr.mxu0 0.0
      %10256 = vmatpush1.xpose.msra.mxu0 0.0
      %10257 = vmatprep.subr.mxu0 0.0
      %10258 = vmatpush1.xpose.msra.mxu0 0.0
      %10259 = vmatprep.subr.mxu0 0.0
      %10260 = vmatpush1.xpose.msra.mxu0 0.0
      %10261 = vmatprep.subr.mxu0 0.0
      %10262 = vmatpush1.xpose.msra.mxu0 0.0
      %10263 = vmatprep.subr.mxu0 0.0
      %10264 = vmatpush1.xpose.msra.mxu0 0.0
      %10265 = vmatprep.subr.mxu0 0.0
      %10266 = vmatpush1.xpose.msra.mxu0 0.0
      %10267 = vmatprep.subr.mxu0 0.0
      %10268 = vmatpush1.xpose.msra.mxu0 0.0
      %10269 = vmatprep.subr.mxu0 0.0
      %10270 = vmatpush1.xpose.msra.mxu0 0.0
      %10271 = vmatprep.subr.mxu0 0.0
      %10272 = vmatpush1.xpose.msra.mxu0 0.0
      %10273 = vmatprep.subr.mxu0 0.0
      %10274 = vmatpush1.xpose.msra.mxu0 0.0
      %10275 = vmatprep.subr.mxu0 0.0
      %10276 = vmatpush1.xpose.msra.mxu0 0.0
      %10277 = vmatprep.subr.mxu0 0.0
      %10278 = vmatpush1.xpose.msra.mxu0 0.0
      %10279 = vmatprep.subr.mxu0 0.0
      %10280 = vmatpush1.xpose.msra.mxu0 0.0
      %10281 = vmatprep.subr.mxu0 0.0
      %10282 = vmatpush1.xpose.msra.mxu0 0.0
      %10283 = vmatprep.subr.mxu0 0.0
      %10284 = vmatpush1.xpose.msra.mxu0 0.0
      %10285 = vmatprep.subr.mxu0 0.0
      %10286 = vmatpush1.xpose.msra.mxu0 0.0
      %10287 = vmatprep.subr.mxu0 0.0
      %10288 = vmatpush1.xpose.msra.mxu0 0.0
      %10289 = vmatprep.subr.mxu0 0.0
      %10290 = vmatpush1.xpose.msra.mxu0 0.0
      %10291 = vmatprep.subr.mxu0 0.0
      %10292 = vmatpush1.xpose.msra.mxu0 0.0
      %10293 = vmatprep.subr.mxu0 0.0
      %10294 = vmatpush1.xpose.msra.mxu0 0.0
      %10295 = vmatprep.subr.mxu0 0.0
      %10296 = vmatpush1.xpose.msra.mxu0 0.0
      %10297 = vmatprep.subr.mxu0 0.0
      %10298 = vmatpush1.xpose.msra.mxu0 0.0
      %10299 = vmatprep.subr.mxu0 0.0
      %10300 = vmatpush1.xpose.msra.mxu0 0.0
      %10301 = vmatprep.subr.mxu0 0.0
      %10302 = vmatpush1.xpose.msra.mxu0 0.0
      %10303 = vmatprep.subr.mxu0 0.0
      %10304 = vmatpush1.xpose.msra.mxu0 0.0
      %10305 = vmatprep.subr.mxu0 0.0
      %10306 = vmatpush1.xpose.msra.mxu0 0.0
      %10307 = vmatprep.subr.mxu0 0.0
      %10308 = vmatpush1.xpose.msra.mxu0 0.0
      %10309 = vmatprep.subr.mxu0 0.0
      %10310 = vmatpush1.xpose.msra.mxu0 0.0
      %10311 = vmatprep.subr.mxu0 0.0
      %10312 = vmatpush1.xpose.msra.mxu0 0.0
      %10313 = vmatprep.mubr.f32.mxu0 0.0
      %10314 = vmatmul.mubr.f32.gmra.mrb[0].mxu0 %v10245
      %v10315 = vpop.f32.mrb[0].mxu0
      %v10316 = vadd.f32 0.0, %v10315
      %v10317 = vpop.f32.mrb[0].mxu0
      %10318 = vdwg.mxu0
      %10319 = vrot.lane.b32.xlu0 %v6043, 104
      %v10320 = vpop.permute.xlu0 %10319
      %10321 = vrot.lane.b32.xlu0 %v6191, 104
      %v10322 = vpop.permute.xlu0 %10321
      %v10323 = vsel %vm383, %v10320, 0
      %v10325 = vsel %vm383, %v10322, 0
      %10327 = vmatprep.subr.mxu0 0.0
      %10328 = vmatpush1.xpose.msra.mxu0 %v10325
      %10329 = vmatprep.subr.mxu0 0.0
      %10330 = vmatpush1.xpose.msra.mxu0 0.0
      %10331 = vmatprep.subr.mxu0 0.0
      %10332 = vmatpush1.xpose.msra.mxu0 0.0
      %10333 = vmatprep.subr.mxu0 0.0
      %10334 = vmatpush1.xpose.msra.mxu0 0.0
      %10335 = vmatprep.subr.mxu0 0.0
      %10336 = vmatpush1.xpose.msra.mxu0 0.0
      %10337 = vmatprep.subr.mxu0 0.0
      %10338 = vmatpush1.xpose.msra.mxu0 0.0
      %10339 = vmatprep.subr.mxu0 0.0
      %10340 = vmatpush1.xpose.msra.mxu0 0.0
      %10341 = vmatprep.subr.mxu0 0.0
      %10342 = vmatpush1.xpose.msra.mxu0 0.0
      %10343 = vmatprep.subr.mxu0 0.0
      %10344 = vmatpush1.xpose.msra.mxu0 0.0
      %10345 = vmatprep.subr.mxu0 0.0
      %10346 = vmatpush1.xpose.msra.mxu0 0.0
      %10347 = vmatprep.subr.mxu0 0.0
      %10348 = vmatpush1.xpose.msra.mxu0 0.0
      %10349 = vmatprep.subr.mxu0 0.0
      %10350 = vmatpush1.xpose.msra.mxu0 0.0
      %10351 = vmatprep.subr.mxu0 0.0
      %10352 = vmatpush1.xpose.msra.mxu0 0.0
      %10353 = vmatprep.subr.mxu0 0.0
      %10354 = vmatpush1.xpose.msra.mxu0 0.0
      %10355 = vmatprep.subr.mxu0 0.0
      %10356 = vmatpush1.xpose.msra.mxu0 0.0
      %10357 = vmatprep.subr.mxu0 0.0
      %10358 = vmatpush1.xpose.msra.mxu0 0.0
      %10359 = vmatprep.subr.mxu0 0.0
      %10360 = vmatpush1.xpose.msra.mxu0 0.0
      %10361 = vmatprep.subr.mxu0 0.0
      %10362 = vmatpush1.xpose.msra.mxu0 0.0
      %10363 = vmatprep.subr.mxu0 0.0
      %10364 = vmatpush1.xpose.msra.mxu0 0.0
      %10365 = vmatprep.subr.mxu0 0.0
      %10366 = vmatpush1.xpose.msra.mxu0 0.0
      %10367 = vmatprep.subr.mxu0 0.0
      %10368 = vmatpush1.xpose.msra.mxu0 0.0
      %10369 = vmatprep.subr.mxu0 0.0
      %10370 = vmatpush1.xpose.msra.mxu0 0.0
      %10371 = vmatprep.subr.mxu0 0.0
      %10372 = vmatpush1.xpose.msra.mxu0 0.0
      %10373 = vmatprep.subr.mxu0 0.0
      %10374 = vmatpush1.xpose.msra.mxu0 0.0
      %10375 = vmatprep.subr.mxu0 0.0
      %10376 = vmatpush1.xpose.msra.mxu0 0.0
      %10377 = vmatprep.subr.mxu0 0.0
      %10378 = vmatpush1.xpose.msra.mxu0 0.0
      %10379 = vmatprep.subr.mxu0 0.0
      %10380 = vmatpush1.xpose.msra.mxu0 0.0
      %10381 = vmatprep.subr.mxu0 0.0
      %10382 = vmatpush1.xpose.msra.mxu0 0.0
      %10383 = vmatprep.subr.mxu0 0.0
      %10384 = vmatpush1.xpose.msra.mxu0 0.0
      %10385 = vmatprep.subr.mxu0 0.0
      %10386 = vmatpush1.xpose.msra.mxu0 0.0
      %10387 = vmatprep.subr.mxu0 0.0
      %10388 = vmatpush1.xpose.msra.mxu0 0.0
      %10389 = vmatprep.subr.mxu0 0.0
      %10390 = vmatpush1.xpose.msra.mxu0 0.0
      %10391 = vmatprep.mubr.f32.mxu0 0.0
      %10392 = vmatmul.mubr.f32.gmra.mrb[0].mxu0 %v10323
      %v10393 = vpop.f32.mrb[0].mxu0
      %v10394 = vadd.f32 0.0, %v10393
      %v10395 = vpop.f32.mrb[0].mxu0
      %10396 = vdwg.mxu0
      %10397 = vrot.lane.b32.xlu0 %v6048, 104
      %v10398 = vpop.permute.xlu0 %10397
      %10399 = vrot.lane.b32.xlu0 %v6196, 104
      %v10400 = vpop.permute.xlu0 %10399
      %v10401 = vsel %vm383, %v10398, 0
      %v10403 = vsel %vm383, %v10400, 0
      %10405 = vmatprep.subr.mxu0 0.0
      %10406 = vmatpush1.xpose.msra.mxu0 %v10403
      %10407 = vmatprep.subr.mxu0 0.0
      %10408 = vmatpush1.xpose.msra.mxu0 0.0
      %10409 = vmatprep.subr.mxu0 0.0
      %10410 = vmatpush1.xpose.msra.mxu0 0.0
      %10411 = vmatprep.subr.mxu0 0.0
      %10412 = vmatpush1.xpose.msra.mxu0 0.0
      %10413 = vmatprep.subr.mxu0 0.0
      %10414 = vmatpush1.xpose.msra.mxu0 0.0
      %10415 = vmatprep.subr.mxu0 0.0
      %10416 = vmatpush1.xpose.msra.mxu0 0.0
      %10417 = vmatprep.subr.mxu0 0.0
      %10418 = vmatpush1.xpose.msra.mxu0 0.0
      %10419 = vmatprep.subr.mxu0 0.0
      %10420 = vmatpush1.xpose.msra.mxu0 0.0
      %10421 = vmatprep.subr.mxu0 0.0
      %10422 = vmatpush1.xpose.msra.mxu0 0.0
      %10423 = vmatprep.subr.mxu0 0.0
      %10424 = vmatpush1.xpose.msra.mxu0 0.0
      %10425 = vmatprep.subr.mxu0 0.0
      %10426 = vmatpush1.xpose.msra.mxu0 0.0
      %10427 = vmatprep.subr.mxu0 0.0
      %10428 = vmatpush1.xpose.msra.mxu0 0.0
      %10429 = vmatprep.subr.mxu0 0.0
      %10430 = vmatpush1.xpose.msra.mxu0 0.0
      %10431 = vmatprep.subr.mxu0 0.0
      %10432 = vmatpush1.xpose.msra.mxu0 0.0
      %10433 = vmatprep.subr.mxu0 0.0
      %10434 = vmatpush1.xpose.msra.mxu0 0.0
      %10435 = vmatprep.subr.mxu0 0.0
      %10436 = vmatpush1.xpose.msra.mxu0 0.0
      %10437 = vmatprep.subr.mxu0 0.0
      %10438 = vmatpush1.xpose.msra.mxu0 0.0
      %10439 = vmatprep.subr.mxu0 0.0
      %10440 = vmatpush1.xpose.msra.mxu0 0.0
      %10441 = vmatprep.subr.mxu0 0.0
      %10442 = vmatpush1.xpose.msra.mxu0 0.0
      %10443 = vmatprep.subr.mxu0 0.0
      %10444 = vmatpush1.xpose.msra.mxu0 0.0
      %10445 = vmatprep.subr.mxu0 0.0
      %10446 = vmatpush1.xpose.msra.mxu0 0.0
      %10447 = vmatprep.subr.mxu0 0.0
      %10448 = vmatpush1.xpose.msra.mxu0 0.0
      %10449 = vmatprep.subr.mxu0 0.0
      %10450 = vmatpush1.xpose.msra.mxu0 0.0
      %10451 = vmatprep.subr.mxu0 0.0
      %10452 = vmatpush1.xpose.msra.mxu0 0.0
      %10453 = vmatprep.subr.mxu0 0.0
      %10454 = vmatpush1.xpose.msra.mxu0 0.0
      %10455 = vmatprep.subr.mxu0 0.0
      %10456 = vmatpush1.xpose.msra.mxu0 0.0
      %10457 = vmatprep.subr.mxu0 0.0
      %10458 = vmatpush1.xpose.msra.mxu0 0.0
      %10459 = vmatprep.subr.mxu0 0.0
      %10460 = vmatpush1.xpose.msra.mxu0 0.0
      %10461 = vmatprep.subr.mxu0 0.0
      %10462 = vmatpush1.xpose.msra.mxu0 0.0
      %10463 = vmatprep.subr.mxu0 0.0
      %10464 = vmatpush1.xpose.msra.mxu0 0.0
      %10465 = vmatprep.subr.mxu0 0.0
      %10466 = vmatpush1.xpose.msra.mxu0 0.0
      %10467 = vmatprep.subr.mxu0 0.0
      %10468 = vmatpush1.xpose.msra.mxu0 0.0
      %10469 = vmatprep.mubr.f32.mxu0 0.0
      %10470 = vmatmul.mubr.f32.gmra.mrb[0].mxu0 %v10401
      %v10471 = vpop.f32.mrb[0].mxu0
      %v10472 = vadd.f32 0.0, %v10471
      %v10473 = vpop.f32.mrb[0].mxu0
      %10474 = vdwg.mxu0
      %10475 = vrot.lane.b32.xlu0 %v6053, 104
      %v10476 = vpop.permute.xlu0 %10475
      %10477 = vrot.lane.b32.xlu0 %v6201, 104
      %v10478 = vpop.permute.xlu0 %10477
      %v10479 = vsel %vm383, %v10476, 0
      %v10481 = vsel %vm383, %v10478, 0
      %10483 = vmatprep.subr.mxu0 0.0
      %10484 = vmatpush1.xpose.msra.mxu0 %v10481
      %10485 = vmatprep.subr.mxu0 0.0
      %10486 = vmatpush1.xpose.msra.mxu0 0.0
      %10487 = vmatprep.subr.mxu0 0.0
      %10488 = vmatpush1.xpose.msra.mxu0 0.0
      %10489 = vmatprep.subr.mxu0 0.0
      %10490 = vmatpush1.xpose.msra.mxu0 0.0
      %10491 = vmatprep.subr.mxu0 0.0
      %10492 = vmatpush1.xpose.msra.mxu0 0.0
      %10493 = vmatprep.subr.mxu0 0.0
      %10494 = vmatpush1.xpose.msra.mxu0 0.0
      %10495 = vmatprep.subr.mxu0 0.0
      %10496 = vmatpush1.xpose.msra.mxu0 0.0
      %10497 = vmatprep.subr.mxu0 0.0
      %10498 = vmatpush1.xpose.msra.mxu0 0.0
      %10499 = vmatprep.subr.mxu0 0.0
      %10500 = vmatpush1.xpose.msra.mxu0 0.0
      %10501 = vmatprep.subr.mxu0 0.0
      %10502 = vmatpush1.xpose.msra.mxu0 0.0
      %10503 = vmatprep.subr.mxu0 0.0
      %10504 = vmatpush1.xpose.msra.mxu0 0.0
      %10505 = vmatprep.subr.mxu0 0.0
      %10506 = vmatpush1.xpose.msra.mxu0 0.0
      %10507 = vmatprep.subr.mxu0 0.0
      %10508 = vmatpush1.xpose.msra.mxu0 0.0
      %10509 = vmatprep.subr.mxu0 0.0
      %10510 = vmatpush1.xpose.msra.mxu0 0.0
      %10511 = vmatprep.subr.mxu0 0.0
      %10512 = vmatpush1.xpose.msra.mxu0 0.0
      %10513 = vmatprep.subr.mxu0 0.0
      %10514 = vmatpush1.xpose.msra.mxu0 0.0
      %10515 = vmatprep.subr.mxu0 0.0
      %10516 = vmatpush1.xpose.msra.mxu0 0.0
      %10517 = vmatprep.subr.mxu0 0.0
      %10518 = vmatpush1.xpose.msra.mxu0 0.0
      %10519 = vmatprep.subr.mxu0 0.0
      %10520 = vmatpush1.xpose.msra.mxu0 0.0
      %10521 = vmatprep.subr.mxu0 0.0
      %10522 = vmatpush1.xpose.msra.mxu0 0.0
      %10523 = vmatprep.subr.mxu0 0.0
      %10524 = vmatpush1.xpose.msra.mxu0 0.0
      %10525 = vmatprep.subr.mxu0 0.0
      %10526 = vmatpush1.xpose.msra.mxu0 0.0
      %10527 = vmatprep.subr.mxu0 0.0
      %10528 = vmatpush1.xpose.msra.mxu0 0.0
      %10529 = vmatprep.subr.mxu0 0.0
      %10530 = vmatpush1.xpose.msra.mxu0 0.0
      %10531 = vmatprep.subr.mxu0 0.0
      %10532 = vmatpush1.xpose.msra.mxu0 0.0
      %10533 = vmatprep.subr.mxu0 0.0
      %10534 = vmatpush1.xpose.msra.mxu0 0.0
      %10535 = vmatprep.subr.mxu0 0.0
      %10536 = vmatpush1.xpose.msra.mxu0 0.0
      %10537 = vmatprep.subr.mxu0 0.0
      %10538 = vmatpush1.xpose.msra.mxu0 0.0
      %10539 = vmatprep.subr.mxu0 0.0
      %10540 = vmatpush1.xpose.msra.mxu0 0.0
      %10541 = vmatprep.subr.mxu0 0.0
      %10542 = vmatpush1.xpose.msra.mxu0 0.0
      %10543 = vmatprep.subr.mxu0 0.0
      %10544 = vmatpush1.xpose.msra.mxu0 0.0
      %10545 = vmatprep.subr.mxu0 0.0
      %10546 = vmatpush1.xpose.msra.mxu0 0.0
      %10547 = vmatprep.mubr.f32.mxu0 0.0
      %10548 = vmatmul.mubr.f32.gmra.mrb[0].mxu0 %v10479
      %v10549 = vpop.f32.mrb[0].mxu0
      %v10550 = vadd.f32 0.0, %v10549
      %v10551 = vpop.f32.mrb[0].mxu0
      %10552 = vdwg.mxu0
      %10553 = vrot.lane.b32.xlu0 %v6058, 104
      %v10554 = vpop.permute.xlu0 %10553
      %10555 = vrot.lane.b32.xlu0 %v6206, 104
      %v10556 = vpop.permute.xlu0 %10555
      %v10557 = vsel %vm383, %v10554, 0
      %v10559 = vsel %vm383, %v10556, 0
      %10561 = vmatprep.subr.mxu0 0.0
      %10562 = vmatpush1.xpose.msra.mxu0 %v10559
      %10563 = vmatprep.subr.mxu0 0.0
      %10564 = vmatpush1.xpose.msra.mxu0 0.0
      %10565 = vmatprep.subr.mxu0 0.0
      %10566 = vmatpush1.xpose.msra.mxu0 0.0
      %10567 = vmatprep.subr.mxu0 0.0
      %10568 = vmatpush1.xpose.msra.mxu0 0.0
      %10569 = vmatprep.subr.mxu0 0.0
      %10570 = vmatpush1.xpose.msra.mxu0 0.0
      %10571 = vmatprep.subr.mxu0 0.0
      %10572 = vmatpush1.xpose.msra.mxu0 0.0
      %10573 = vmatprep.subr.mxu0 0.0
      %10574 = vmatpush1.xpose.msra.mxu0 0.0
      %10575 = vmatprep.subr.mxu0 0.0
      %10576 = vmatpush1.xpose.msra.mxu0 0.0
      %10577 = vmatprep.subr.mxu0 0.0
      %10578 = vmatpush1.xpose.msra.mxu0 0.0
      %10579 = vmatprep.subr.mxu0 0.0
      %10580 = vmatpush1.xpose.msra.mxu0 0.0
      %10581 = vmatprep.subr.mxu0 0.0
      %10582 = vmatpush1.xpose.msra.mxu0 0.0
      %10583 = vmatprep.subr.mxu0 0.0
      %10584 = vmatpush1.xpose.msra.mxu0 0.0
      %10585 = vmatprep.subr.mxu0 0.0
      %10586 = vmatpush1.xpose.msra.mxu0 0.0
      %10587 = vmatprep.subr.mxu0 0.0
      %10588 = vmatpush1.xpose.msra.mxu0 0.0
      %10589 = vmatprep.subr.mxu0 0.0
      %10590 = vmatpush1.xpose.msra.mxu0 0.0
      %10591 = vmatprep.subr.mxu0 0.0
      %10592 = vmatpush1.xpose.msra.mxu0 0.0
      %10593 = vmatprep.subr.mxu0 0.0
      %10594 = vmatpush1.xpose.msra.mxu0 0.0
      %10595 = vmatprep.subr.mxu0 0.0
      %10596 = vmatpush1.xpose.msra.mxu0 0.0
      %10597 = vmatprep.subr.mxu0 0.0
      %10598 = vmatpush1.xpose.msra.mxu0 0.0
      %10599 = vmatprep.subr.mxu0 0.0
      %10600 = vmatpush1.xpose.msra.mxu0 0.0
      %10601 = vmatprep.subr.mxu0 0.0
      %10602 = vmatpush1.xpose.msra.mxu0 0.0
      %10603 = vmatprep.subr.mxu0 0.0
      %10604 = vmatpush1.xpose.msra.mxu0 0.0
      %10605 = vmatprep.subr.mxu0 0.0
      %10606 = vmatpush1.xpose.msra.mxu0 0.0
      %10607 = vmatprep.subr.mxu0 0.0
      %10608 = vmatpush1.xpose.msra.mxu0 0.0
      %10609 = vmatprep.subr.mxu0 0.0
      %10610 = vmatpush1.xpose.msra.mxu0 0.0
      %10611 = vmatprep.subr.mxu0 0.0
      %10612 = vmatpush1.xpose.msra.mxu0 0.0
      %10613 = vmatprep.subr.mxu0 0.0
      %10614 = vmatpush1.xpose.msra.mxu0 0.0
      %10615 = vmatprep.subr.mxu0 0.0
      %10616 = vmatpush1.xpose.msra.mxu0 0.0
      %10617 = vmatprep.subr.mxu0 0.0
      %10618 = vmatpush1.xpose.msra.mxu0 0.0
      %10619 = vmatprep.subr.mxu0 0.0
      %10620 = vmatpush1.xpose.msra.mxu0 0.0
      %10621 = vmatprep.subr.mxu0 0.0
      %10622 = vmatpush1.xpose.msra.mxu0 0.0
      %10623 = vmatprep.subr.mxu0 0.0
      %10624 = vmatpush1.xpose.msra.mxu0 0.0
      %10625 = vmatprep.mubr.f32.mxu0 0.0
      %10626 = vmatmul.mubr.f32.gmra.mrb[0].mxu0 %v10557
      %v10627 = vpop.f32.mrb[0].mxu0
      %v10628 = vadd.f32 0.0, %v10627
      %v10629 = vpop.f32.mrb[0].mxu0
      %10630 = vdwg.mxu0
      %10631 = vrot.lane.b32.xlu0 %v6063, 104
      %v10632 = vpop.permute.xlu0 %10631
      %10633 = vrot.lane.b32.xlu0 %v6211, 104
      %v10634 = vpop.permute.xlu0 %10633
      %v10635 = vsel %vm383, %v10632, 0
      %v10637 = vsel %vm383, %v10634, 0
      %10639 = vmatprep.subr.mxu0 0.0
      %10640 = vmatpush1.xpose.msra.mxu0 %v10637
      %10641 = vmatprep.subr.mxu0 0.0
      %10642 = vmatpush1.xpose.msra.mxu0 0.0
      %10643 = vmatprep.subr.mxu0 0.0
      %10644 = vmatpush1.xpose.msra.mxu0 0.0
      %10645 = vmatprep.subr.mxu0 0.0
      %10646 = vmatpush1.xpose.msra.mxu0 0.0
      %10647 = vmatprep.subr.mxu0 0.0
      %10648 = vmatpush1.xpose.msra.mxu0 0.0
      %10649 = vmatprep.subr.mxu0 0.0
      %10650 = vmatpush1.xpose.msra.mxu0 0.0
      %10651 = vmatprep.subr.mxu0 0.0
      %10652 = vmatpush1.xpose.msra.mxu0 0.0
      %10653 = vmatprep.subr.mxu0 0.0
      %10654 = vmatpush1.xpose.msra.mxu0 0.0
      %10655 = vmatprep.subr.mxu0 0.0
      %10656 = vmatpush1.xpose.msra.mxu0 0.0
      %10657 = vmatprep.subr.mxu0 0.0
      %10658 = vmatpush1.xpose.msra.mxu0 0.0
      %10659 = vmatprep.subr.mxu0 0.0
      %10660 = vmatpush1.xpose.msra.mxu0 0.0
      %10661 = vmatprep.subr.mxu0 0.0
      %10662 = vmatpush1.xpose.msra.mxu0 0.0
      %10663 = vmatprep.subr.mxu0 0.0
      %10664 = vmatpush1.xpose.msra.mxu0 0.0
      %10665 = vmatprep.subr.mxu0 0.0
      %10666 = vmatpush1.xpose.msra.mxu0 0.0
      %10667 = vmatprep.subr.mxu0 0.0
      %10668 = vmatpush1.xpose.msra.mxu0 0.0
      %10669 = vmatprep.subr.mxu0 0.0
      %10670 = vmatpush1.xpose.msra.mxu0 0.0
      %10671 = vmatprep.subr.mxu0 0.0
      %10672 = vmatpush1.xpose.msra.mxu0 0.0
      %10673 = vmatprep.subr.mxu0 0.0
      %10674 = vmatpush1.xpose.msra.mxu0 0.0
      %10675 = vmatprep.subr.mxu0 0.0
      %10676 = vmatpush1.xpose.msra.mxu0 0.0
      %10677 = vmatprep.subr.mxu0 0.0
      %10678 = vmatpush1.xpose.msra.mxu0 0.0
      %10679 = vmatprep.subr.mxu0 0.0
      %10680 = vmatpush1.xpose.msra.mxu0 0.0
      %10681 = vmatprep.subr.mxu0 0.0
      %10682 = vmatpush1.xpose.msra.mxu0 0.0
      %10683 = vmatprep.subr.mxu0 0.0
      %10684 = vmatpush1.xpose.msra.mxu0 0.0
      %10685 = vmatprep.subr.mxu0 0.0
      %10686 = vmatpush1.xpose.msra.mxu0 0.0
      %10687 = vmatprep.subr.mxu0 0.0
      %10688 = vmatpush1.xpose.msra.mxu0 0.0
      %10689 = vmatprep.subr.mxu0 0.0
      %10690 = vmatpush1.xpose.msra.mxu0 0.0
      %10691 = vmatprep.subr.mxu0 0.0
      %10692 = vmatpush1.xpose.msra.mxu0 0.0
      %10693 = vmatprep.subr.mxu0 0.0
      %10694 = vmatpush1.xpose.msra.mxu0 0.0
      %10695 = vmatprep.subr.mxu0 0.0
      %10696 = vmatpush1.xpose.msra.mxu0 0.0
      %10697 = vmatprep.subr.mxu0 0.0
      %10698 = vmatpush1.xpose.msra.mxu0 0.0
      %10699 = vmatprep.subr.mxu0 0.0
      %10700 = vmatpush1.xpose.msra.mxu0 0.0
      %10701 = vmatprep.subr.mxu0 0.0
      %10702 = vmatpush1.xpose.msra.mxu0 0.0
      %10703 = vmatprep.mubr.f32.mxu0 0.0
      %10704 = vmatmul.mubr.f32.gmra.mrb[0].mxu0 %v10635
      %v10705 = vpop.f32.mrb[0].mxu0
      %v10706 = vadd.f32 0.0, %v10705
      %v10707 = vpop.f32.mrb[0].mxu0
      %10708 = vdwg.mxu0
      %10709 = vrot.lane.b32.xlu0 %v6068, 104
      %v10710 = vpop.permute.xlu0 %10709
      %10711 = vrot.lane.b32.xlu0 %v6216, 104
      %v10712 = vpop.permute.xlu0 %10711
      %v10713 = vsel %vm383, %v10710, 0
      %v10715 = vsel %vm383, %v10712, 0
      %10717 = vmatprep.subr.mxu0 0.0
      %10718 = vmatpush1.xpose.msra.mxu0 %v10715
      %10719 = vmatprep.subr.mxu0 0.0
      %10720 = vmatpush1.xpose.msra.mxu0 0.0
      %10721 = vmatprep.subr.mxu0 0.0
      %10722 = vmatpush1.xpose.msra.mxu0 0.0
      %10723 = vmatprep.subr.mxu0 0.0
      %10724 = vmatpush1.xpose.msra.mxu0 0.0
      %10725 = vmatprep.subr.mxu0 0.0
      %10726 = vmatpush1.xpose.msra.mxu0 0.0
      %10727 = vmatprep.subr.mxu0 0.0
      %10728 = vmatpush1.xpose.msra.mxu0 0.0
      %10729 = vmatprep.subr.mxu0 0.0
      %10730 = vmatpush1.xpose.msra.mxu0 0.0
      %10731 = vmatprep.subr.mxu0 0.0
      %10732 = vmatpush1.xpose.msra.mxu0 0.0
      %10733 = vmatprep.subr.mxu0 0.0
      %10734 = vmatpush1.xpose.msra.mxu0 0.0
      %10735 = vmatprep.subr.mxu0 0.0
      %10736 = vmatpush1.xpose.msra.mxu0 0.0
      %10737 = vmatprep.subr.mxu0 0.0
      %10738 = vmatpush1.xpose.msra.mxu0 0.0
      %10739 = vmatprep.subr.mxu0 0.0
      %10740 = vmatpush1.xpose.msra.mxu0 0.0
      %10741 = vmatprep.subr.mxu0 0.0
      %10742 = vmatpush1.xpose.msra.mxu0 0.0
      %10743 = vmatprep.subr.mxu0 0.0
      %10744 = vmatpush1.xpose.msra.mxu0 0.0
      %10745 = vmatprep.subr.mxu0 0.0
      %10746 = vmatpush1.xpose.msra.mxu0 0.0
      %10747 = vmatprep.subr.mxu0 0.0
      %10748 = vmatpush1.xpose.msra.mxu0 0.0
      %10749 = vmatprep.subr.mxu0 0.0
      %10750 = vmatpush1.xpose.msra.mxu0 0.0
      %10751 = vmatprep.subr.mxu0 0.0
      %10752 = vmatpush1.xpose.msra.mxu0 0.0
      %10753 = vmatprep.subr.mxu0 0.0
      %10754 = vmatpush1.xpose.msra.mxu0 0.0
      %10755 = vmatprep.subr.mxu0 0.0
      %10756 = vmatpush1.xpose.msra.mxu0 0.0
      %10757 = vmatprep.subr.mxu0 0.0
      %10758 = vmatpush1.xpose.msra.mxu0 0.0
      %10759 = vmatprep.subr.mxu0 0.0
      %10760 = vmatpush1.xpose.msra.mxu0 0.0
      %10761 = vmatprep.subr.mxu0 0.0
      %10762 = vmatpush1.xpose.msra.mxu0 0.0
      %10763 = vmatprep.subr.mxu0 0.0
      %10764 = vmatpush1.xpose.msra.mxu0 0.0
      %10765 = vmatprep.subr.mxu0 0.0
      %10766 = vmatpush1.xpose.msra.mxu0 0.0
      %10767 = vmatprep.subr.mxu0 0.0
      %10768 = vmatpush1.xpose.msra.mxu0 0.0
      %10769 = vmatprep.subr.mxu0 0.0
      %10770 = vmatpush1.xpose.msra.mxu0 0.0
      %10771 = vmatprep.subr.mxu0 0.0
      %10772 = vmatpush1.xpose.msra.mxu0 0.0
      %10773 = vmatprep.subr.mxu0 0.0
      %10774 = vmatpush1.xpose.msra.mxu0 0.0
      %10775 = vmatprep.subr.mxu0 0.0
      %10776 = vmatpush1.xpose.msra.mxu0 0.0
      %10777 = vmatprep.subr.mxu0 0.0
      %10778 = vmatpush1.xpose.msra.mxu0 0.0
      %10779 = vmatprep.subr.mxu0 0.0
      %10780 = vmatpush1.xpose.msra.mxu0 0.0
      %10781 = vmatprep.mubr.f32.mxu0 0.0
      %10782 = vmatmul.mubr.f32.gmra.mrb[0].mxu0 %v10713
      %v10783 = vpop.f32.mrb[0].mxu0
      %v10784 = vadd.f32 0.0, %v10783
      %v10785 = vpop.f32.mrb[0].mxu0
      %10786 = vdwg.mxu0
      %v10787 = vsel %vm383, %v10238, -inf
      %10788 = vmax.xlane.f32.xlu0 %v10787
      %v10789 = vpop.xlane.xlu0 %10788
      %v10790 = vsel %vm383, %v10316, -inf
      %10791 = vmax.xlane.f32.xlu0 %v10790
      %v10792 = vpop.xlane.xlu0 %10791
      %v10793 = vsel %vm383, %v10394, -inf
      %10794 = vmax.xlane.f32.xlu0 %v10793
      %v10795 = vpop.xlane.xlu0 %10794
      %v10796 = vsel %vm383, %v10472, -inf
      %10797 = vmax.xlane.f32.xlu0 %v10796
      %v10798 = vpop.xlane.xlu0 %10797
      %v10799 = vsel %vm383, %v10550, -inf
      %10800 = vmax.xlane.f32.xlu0 %v10799
      %v10801 = vpop.xlane.xlu0 %10800
      %v10802 = vsel %vm383, %v10628, -inf
      %10803 = vmax.xlane.f32.xlu0 %v10802
      %v10804 = vpop.xlane.xlu0 %10803
      %v10805 = vsel %vm383, %v10706, -inf
      %10806 = vmax.xlane.f32.xlu0 %v10805
      %v10807 = vpop.xlane.xlu0 %10806
      %v10808 = vsel %vm383, %v10784, -inf
      %10809 = vmax.xlane.f32.xlu0 %v10808
      %v10810 = vpop.xlane.xlu0 %10809
      %v10811 = vsub.f32 %v10238, %v10789
      %v10812 = vsub.f32 %v10316, %v10792
      %v10813 = vsub.f32 %v10394, %v10795
      %v10814 = vsub.f32 %v10472, %v10798
      %v10815 = vsub.f32 %v10550, %v10801
      %v10816 = vsub.f32 %v10628, %v10804
      %v10817 = vsub.f32 %v10706, %v10807
      %v10818 = vsub.f32 %v10784, %v10810
      %v10819 = vmul.f32 %v10811, 1.442695
      %v10820 = vpow.pop %v10819
      %v10821 = vmul.f32 %v10812, 1.442695
      %v10822 = vpow.pop %v10821
      %v10823 = vmul.f32 %v10813, 1.442695
      %v10824 = vpow.pop %v10823
      %v10825 = vmul.f32 %v10814, 1.442695
      %v10826 = vpow.pop %v10825
      %v10827 = vmul.f32 %v10815, 1.442695
      %v10828 = vpow.pop %v10827
      %v10829 = vmul.f32 %v10816, 1.442695
      %v10830 = vpow.pop %v10829
      %v10831 = vmul.f32 %v10817, 1.442695
      %v10832 = vpow.pop %v10831
      %v10833 = vmul.f32 %v10818, 1.442695
      %v10834 = vpow.pop %v10833
      %v10835 = vsel %vm383, %v10820, 0.0
      %10836 = vadd.xlane.f32.xlu0 %v10835
      %v10837 = vpop.xlane.xlu0 %10836
      %v10838 = vsel %vm383, %v10822, 0.0
      %10839 = vadd.xlane.f32.xlu0 %v10838
      %v10840 = vpop.xlane.xlu0 %10839
      %v10841 = vsel %vm383, %v10824, 0.0
      %10842 = vadd.xlane.f32.xlu0 %v10841
      %v10843 = vpop.xlane.xlu0 %10842
      %v10844 = vsel %vm383, %v10826, 0.0
      %10845 = vadd.xlane.f32.xlu0 %v10844
      %v10846 = vpop.xlane.xlu0 %10845
      %v10847 = vsel %vm383, %v10828, 0.0
      %10848 = vadd.xlane.f32.xlu0 %v10847
      %v10849 = vpop.xlane.xlu0 %10848
      %v10850 = vsel %vm383, %v10830, 0.0
      %10851 = vadd.xlane.f32.xlu0 %v10850
      %v10852 = vpop.xlane.xlu0 %10851
      %v10853 = vsel %vm383, %v10832, 0.0
      %10854 = vadd.xlane.f32.xlu0 %v10853
      %v10855 = vpop.xlane.xlu0 %10854
      %v10856 = vsel %vm383, %v10834, 0.0
      %10857 = vadd.xlane.f32.xlu0 %v10856
      %v10858 = vpop.xlane.xlu0 %10857
      %v10859 = vrcp.pop %v10837
      %v10860 = vmul.f32 %v10820, %v10859
      %v10861 = vrcp.pop %v10840
      %v10862 = vmul.f32 %v10822, %v10861
      %v10863 = vrcp.pop %v10843
      %v10864 = vmul.f32 %v10824, %v10863
      %v10865 = vrcp.pop %v10846
      %v10866 = vmul.f32 %v10826, %v10865
      %v10867 = vrcp.pop %v10849
      %v10868 = vmul.f32 %v10828, %v10867
      %v10869 = vrcp.pop %v10852
      %v10870 = vmul.f32 %v10830, %v10869
      %v10871 = vrcp.pop %v10855
      %v10872 = vmul.f32 %v10832, %v10871
      %v10873 = vrcp.pop %v10858
      %v10874 = vmul.f32 %v10834, %v10873
      %10875 = vrot.lane.b32.xlu0 %v6181, 72
      %v10876 = vpop.permute.xlu0 %10875
      %v10879 = vsel %vm383, %v10860, 0
      %10881 = vmatprep.subr.mxu0 0.0
      %10882 = vmatpush1.msra.mxu0 %v10876
      %10883 = vmatprep.subr.mxu0 0.0
      %10884 = vmatpush1.msra.mxu0 0.0
      %10885 = vmatprep.subr.mxu0 0.0
      %10886 = vmatpush1.msra.mxu0 0.0
      %10887 = vmatprep.subr.mxu0 0.0
      %10888 = vmatpush1.msra.mxu0 0.0
      %10889 = vmatprep.subr.mxu0 0.0
      %10890 = vmatpush1.msra.mxu0 0.0
      %10891 = vmatprep.subr.mxu0 0.0
      %10892 = vmatpush1.msra.mxu0 0.0
      %10893 = vmatprep.subr.mxu0 0.0
      %10894 = vmatpush1.msra.mxu0 0.0
      %10895 = vmatprep.subr.mxu0 0.0
      %10896 = vmatpush1.msra.mxu0 0.0
      %10897 = vmatprep.subr.mxu0 0.0
      %10898 = vmatpush1.msra.mxu0 0.0
      %10899 = vmatprep.subr.mxu0 0.0
      %10900 = vmatpush1.msra.mxu0 0.0
      %10901 = vmatprep.subr.mxu0 0.0
      %10902 = vmatpush1.msra.mxu0 0.0
      %10903 = vmatprep.subr.mxu0 0.0
      %10904 = vmatpush1.msra.mxu0 0.0
      %10905 = vmatprep.subr.mxu0 0.0
      %10906 = vmatpush1.msra.mxu0 0.0
      %10907 = vmatprep.subr.mxu0 0.0
      %10908 = vmatpush1.msra.mxu0 0.0
      %10909 = vmatprep.subr.mxu0 0.0
      %10910 = vmatpush1.msra.mxu0 0.0
      %10911 = vmatprep.subr.mxu0 0.0
      %10912 = vmatpush1.msra.mxu0 0.0
      %10913 = vmatprep.subr.mxu0 0.0
      %10914 = vmatpush1.msra.mxu0 0.0
      %10915 = vmatprep.subr.mxu0 0.0
      %10916 = vmatpush1.msra.mxu0 0.0
      %10917 = vmatprep.subr.mxu0 0.0
      %10918 = vmatpush1.msra.mxu0 0.0
      %10919 = vmatprep.subr.mxu0 0.0
      %10920 = vmatpush1.msra.mxu0 0.0
      %10921 = vmatprep.subr.mxu0 0.0
      %10922 = vmatpush1.msra.mxu0 0.0
      %10923 = vmatprep.subr.mxu0 0.0
      %10924 = vmatpush1.msra.mxu0 0.0
      %10925 = vmatprep.subr.mxu0 0.0
      %10926 = vmatpush1.msra.mxu0 0.0
      %10927 = vmatprep.subr.mxu0 0.0
      %10928 = vmatpush1.msra.mxu0 0.0
      %10929 = vmatprep.subr.mxu0 0.0
      %10930 = vmatpush1.msra.mxu0 0.0
      %10931 = vmatprep.subr.mxu0 0.0
      %10932 = vmatpush1.msra.mxu0 0.0
      %10933 = vmatprep.subr.mxu0 0.0
      %10934 = vmatpush1.msra.mxu0 0.0
      %10935 = vmatprep.subr.mxu0 0.0
      %10936 = vmatpush1.msra.mxu0 0.0
      %10937 = vmatprep.subr.mxu0 0.0
      %10938 = vmatpush1.msra.mxu0 0.0
      %10939 = vmatprep.subr.mxu0 0.0
      %10940 = vmatpush1.msra.mxu0 0.0
      %10941 = vmatprep.subr.mxu0 0.0
      %10942 = vmatpush1.msra.mxu0 0.0
      %10943 = vmatprep.subr.mxu0 0.0
      %10944 = vmatpush1.msra.mxu0 0.0
      %10945 = vmatprep.mubr.f32.mxu0 0.0
      %10946 = vmatmul.mubr.f32.gmra.mrb[0].mxu0 %v10879
      %v10947 = vpop.f32.mrb[0].mxu0
      %v10948 = vadd.f32 0.0, %v10947
      %v10949 = vpop.f32.mrb[0].mxu0
      %10950 = vdwg.mxu0
      %10951 = vrot.lane.b32.xlu0 %v6186, 72
      %v10952 = vpop.permute.xlu0 %10951
      %v10955 = vsel %vm383, %v10862, 0
      %10957 = vmatprep.subr.mxu0 0.0
      %10958 = vmatpush1.msra.mxu0 %v10952
      %10959 = vmatprep.subr.mxu0 0.0
      %10960 = vmatpush1.msra.mxu0 0.0
      %10961 = vmatprep.subr.mxu0 0.0
      %10962 = vmatpush1.msra.mxu0 0.0
      %10963 = vmatprep.subr.mxu0 0.0
      %10964 = vmatpush1.msra.mxu0 0.0
      %10965 = vmatprep.subr.mxu0 0.0
      %10966 = vmatpush1.msra.mxu0 0.0
      %10967 = vmatprep.subr.mxu0 0.0
      %10968 = vmatpush1.msra.mxu0 0.0
      %10969 = vmatprep.subr.mxu0 0.0
      %10970 = vmatpush1.msra.mxu0 0.0
      %10971 = vmatprep.subr.mxu0 0.0
      %10972 = vmatpush1.msra.mxu0 0.0
      %10973 = vmatprep.subr.mxu0 0.0
      %10974 = vmatpush1.msra.mxu0 0.0
      %10975 = vmatprep.subr.mxu0 0.0
      %10976 = vmatpush1.msra.mxu0 0.0
      %10977 = vmatprep.subr.mxu0 0.0
      %10978 = vmatpush1.msra.mxu0 0.0
      %10979 = vmatprep.subr.mxu0 0.0
      %10980 = vmatpush1.msra.mxu0 0.0
      %10981 = vmatprep.subr.mxu0 0.0
      %10982 = vmatpush1.msra.mxu0 0.0
      %10983 = vmatprep.subr.mxu0 0.0
      %10984 = vmatpush1.msra.mxu0 0.0
      %10985 = vmatprep.subr.mxu0 0.0
      %10986 = vmatpush1.msra.mxu0 0.0
      %10987 = vmatprep.subr.mxu0 0.0
      %10988 = vmatpush1.msra.mxu0 0.0
      %10989 = vmatprep.subr.mxu0 0.0
      %10990 = vmatpush1.msra.mxu0 0.0
      %10991 = vmatprep.subr.mxu0 0.0
      %10992 = vmatpush1.msra.mxu0 0.0
      %10993 = vmatprep.subr.mxu0 0.0
      %10994 = vmatpush1.msra.mxu0 0.0
      %10995 = vmatprep.subr.mxu0 0.0
      %10996 = vmatpush1.msra.mxu0 0.0
      %10997 = vmatprep.subr.mxu0 0.0
      %10998 = vmatpush1.msra.mxu0 0.0
      %10999 = vmatprep.subr.mxu0 0.0
      %11000 = vmatpush1.msra.mxu0 0.0
      %11001 = vmatprep.subr.mxu0 0.0
      %11002 = vmatpush1.msra.mxu0 0.0
      %11003 = vmatprep.subr.mxu0 0.0
      %11004 = vmatpush1.msra.mxu0 0.0
      %11005 = vmatprep.subr.mxu0 0.0
      %11006 = vmatpush1.msra.mxu0 0.0
      %11007 = vmatprep.subr.mxu0 0.0
      %11008 = vmatpush1.msra.mxu0 0.0
      %11009 = vmatprep.subr.mxu0 0.0
      %11010 = vmatpush1.msra.mxu0 0.0
      %11011 = vmatprep.subr.mxu0 0.0
      %11012 = vmatpush1.msra.mxu0 0.0
      %11013 = vmatprep.subr.mxu0 0.0
      %11014 = vmatpush1.msra.mxu0 0.0
      %11015 = vmatprep.subr.mxu0 0.0
      %11016 = vmatpush1.msra.mxu0 0.0
      %11017 = vmatprep.subr.mxu0 0.0
      %11018 = vmatpush1.msra.mxu0 0.0
      %11019 = vmatprep.subr.mxu0 0.0
      %11020 = vmatpush1.msra.mxu0 0.0
      %11021 = vmatprep.mubr.f32.mxu0 0.0
      %11022 = vmatmul.mubr.f32.gmra.mrb[0].mxu0 %v10955
      %v11023 = vpop.f32.mrb[0].mxu0
      %v11024 = vadd.f32 0.0, %v11023
      %v11025 = vpop.f32.mrb[0].mxu0
      %11026 = vdwg.mxu0
      %11027 = vrot.lane.b32.xlu0 %v6191, 72
      %v11028 = vpop.permute.xlu0 %11027
      %v11031 = vsel %vm383, %v10864, 0
      %11033 = vmatprep.subr.mxu0 0.0
      %11034 = vmatpush1.msra.mxu0 %v11028
      %11035 = vmatprep.subr.mxu0 0.0
      %11036 = vmatpush1.msra.mxu0 0.0
      %11037 = vmatprep.subr.mxu0 0.0
      %11038 = vmatpush1.msra.mxu0 0.0
      %11039 = vmatprep.subr.mxu0 0.0
      %11040 = vmatpush1.msra.mxu0 0.0
      %11041 = vmatprep.subr.mxu0 0.0
      %11042 = vmatpush1.msra.mxu0 0.0
      %11043 = vmatprep.subr.mxu0 0.0
      %11044 = vmatpush1.msra.mxu0 0.0
      %11045 = vmatprep.subr.mxu0 0.0
      %11046 = vmatpush1.msra.mxu0 0.0
      %11047 = vmatprep.subr.mxu0 0.0
      %11048 = vmatpush1.msra.mxu0 0.0
      %11049 = vmatprep.subr.mxu0 0.0
      %11050 = vmatpush1.msra.mxu0 0.0
      %11051 = vmatprep.subr.mxu0 0.0
      %11052 = vmatpush1.msra.mxu0 0.0
      %11053 = vmatprep.subr.mxu0 0.0
      %11054 = vmatpush1.msra.mxu0 0.0
      %11055 = vmatprep.subr.mxu0 0.0
      %11056 = vmatpush1.msra.mxu0 0.0
      %11057 = vmatprep.subr.mxu0 0.0
      %11058 = vmatpush1.msra.mxu0 0.0
      %11059 = vmatprep.subr.mxu0 0.0
      %11060 = vmatpush1.msra.mxu0 0.0
      %11061 = vmatprep.subr.mxu0 0.0
      %11062 = vmatpush1.msra.mxu0 0.0
      %11063 = vmatprep.subr.mxu0 0.0
      %11064 = vmatpush1.msra.mxu0 0.0
      %11065 = vmatprep.subr.mxu0 0.0
      %11066 = vmatpush1.msra.mxu0 0.0
      %11067 = vmatprep.subr.mxu0 0.0
      %11068 = vmatpush1.msra.mxu0 0.0
      %11069 = vmatprep.subr.mxu0 0.0
      %11070 = vmatpush1.msra.mxu0 0.0
      %11071 = vmatprep.subr.mxu0 0.0
      %11072 = vmatpush1.msra.mxu0 0.0
      %11073 = vmatprep.subr.mxu0 0.0
      %11074 = vmatpush1.msra.mxu0 0.0
      %11075 = vmatprep.subr.mxu0 0.0
      %11076 = vmatpush1.msra.mxu0 0.0
      %11077 = vmatprep.subr.mxu0 0.0
      %11078 = vmatpush1.msra.mxu0 0.0
      %11079 = vmatprep.subr.mxu0 0.0
      %11080 = vmatpush1.msra.mxu0 0.0
      %11081 = vmatprep.subr.mxu0 0.0
      %11082 = vmatpush1.msra.mxu0 0.0
      %11083 = vmatprep.subr.mxu0 0.0
      %11084 = vmatpush1.msra.mxu0 0.0
      %11085 = vmatprep.subr.mxu0 0.0
      %11086 = vmatpush1.msra.mxu0 0.0
      %11087 = vmatprep.subr.mxu0 0.0
      %11088 = vmatpush1.msra.mxu0 0.0
      %11089 = vmatprep.subr.mxu0 0.0
      %11090 = vmatpush1.msra.mxu0 0.0
      %11091 = vmatprep.subr.mxu0 0.0
      %11092 = vmatpush1.msra.mxu0 0.0
      %11093 = vmatprep.subr.mxu0 0.0
      %11094 = vmatpush1.msra.mxu0 0.0
      %11095 = vmatprep.subr.mxu0 0.0
      %11096 = vmatpush1.msra.mxu0 0.0
      %11097 = vmatprep.mubr.f32.mxu0 0.0
      %11098 = vmatmul.mubr.f32.gmra.mrb[0].mxu0 %v11031
      %v11099 = vpop.f32.mrb[0].mxu0
      %v11100 = vadd.f32 0.0, %v11099
      %v11101 = vpop.f32.mrb[0].mxu0
      %11102 = vdwg.mxu0
      %11103 = vrot.lane.b32.xlu0 %v6196, 72
      %v11104 = vpop.permute.xlu0 %11103
      %v11107 = vsel %vm383, %v10866, 0
      %11109 = vmatprep.subr.mxu0 0.0
      %11110 = vmatpush1.msra.mxu0 %v11104
      %11111 = vmatprep.subr.mxu0 0.0
      %11112 = vmatpush1.msra.mxu0 0.0
      %11113 = vmatprep.subr.mxu0 0.0
      %11114 = vmatpush1.msra.mxu0 0.0
      %11115 = vmatprep.subr.mxu0 0.0
      %11116 = vmatpush1.msra.mxu0 0.0
      %11117 = vmatprep.subr.mxu0 0.0
      %11118 = vmatpush1.msra.mxu0 0.0
      %11119 = vmatprep.subr.mxu0 0.0
      %11120 = vmatpush1.msra.mxu0 0.0
      %11121 = vmatprep.subr.mxu0 0.0
      %11122 = vmatpush1.msra.mxu0 0.0
      %11123 = vmatprep.subr.mxu0 0.0
      %11124 = vmatpush1.msra.mxu0 0.0
      %11125 = vmatprep.subr.mxu0 0.0
      %11126 = vmatpush1.msra.mxu0 0.0
      %11127 = vmatprep.subr.mxu0 0.0
      %11128 = vmatpush1.msra.mxu0 0.0
      %11129 = vmatprep.subr.mxu0 0.0
      %11130 = vmatpush1.msra.mxu0 0.0
      %11131 = vmatprep.subr.mxu0 0.0
      %11132 = vmatpush1.msra.mxu0 0.0
      %11133 = vmatprep.subr.mxu0 0.0
      %11134 = vmatpush1.msra.mxu0 0.0
      %11135 = vmatprep.subr.mxu0 0.0
      %11136 = vmatpush1.msra.mxu0 0.0
      %11137 = vmatprep.subr.mxu0 0.0
      %11138 = vmatpush1.msra.mxu0 0.0
      %11139 = vmatprep.subr.mxu0 0.0
      %11140 = vmatpush1.msra.mxu0 0.0
      %11141 = vmatprep.subr.mxu0 0.0
      %11142 = vmatpush1.msra.mxu0 0.0
      %11143 = vmatprep.subr.mxu0 0.0
      %11144 = vmatpush1.msra.mxu0 0.0
      %11145 = vmatprep.subr.mxu0 0.0
      %11146 = vmatpush1.msra.mxu0 0.0
      %11147 = vmatprep.subr.mxu0 0.0
      %11148 = vmatpush1.msra.mxu0 0.0
      %11149 = vmatprep.subr.mxu0 0.0
      %11150 = vmatpush1.msra.mxu0 0.0
      %11151 = vmatprep.subr.mxu0 0.0
      %11152 = vmatpush1.msra.mxu0 0.0
      %11153 = vmatprep.subr.mxu0 0.0
      %11154 = vmatpush1.msra.mxu0 0.0
      %11155 = vmatprep.subr.mxu0 0.0
      %11156 = vmatpush1.msra.mxu0 0.0
      %11157 = vmatprep.subr.mxu0 0.0
      %11158 = vmatpush1.msra.mxu0 0.0
      %11159 = vmatprep.subr.mxu0 0.0
      %11160 = vmatpush1.msra.mxu0 0.0
      %11161 = vmatprep.subr.mxu0 0.0
      %11162 = vmatpush1.msra.mxu0 0.0
      %11163 = vmatprep.subr.mxu0 0.0
      %11164 = vmatpush1.msra.mxu0 0.0
      %11165 = vmatprep.subr.mxu0 0.0
      %11166 = vmatpush1.msra.mxu0 0.0
      %11167 = vmatprep.subr.mxu0 0.0
      %11168 = vmatpush1.msra.mxu0 0.0
      %11169 = vmatprep.subr.mxu0 0.0
      %11170 = vmatpush1.msra.mxu0 0.0
      %11171 = vmatprep.subr.mxu0 0.0
      %11172 = vmatpush1.msra.mxu0 0.0
      %11173 = vmatprep.mubr.f32.mxu0 0.0
      %11174 = vmatmul.mubr.f32.gmra.mrb[0].mxu0 %v11107
      %v11175 = vpop.f32.mrb[0].mxu0
      %v11176 = vadd.f32 0.0, %v11175
      %v11177 = vpop.f32.mrb[0].mxu0
      %11178 = vdwg.mxu0
      %11179 = vrot.lane.b32.xlu0 %v6201, 72
      %v11180 = vpop.permute.xlu0 %11179
      %v11183 = vsel %vm383, %v10868, 0
      %11185 = vmatprep.subr.mxu0 0.0
      %11186 = vmatpush1.msra.mxu0 %v11180
      %11187 = vmatprep.subr.mxu0 0.0
      %11188 = vmatpush1.msra.mxu0 0.0
      %11189 = vmatprep.subr.mxu0 0.0
      %11190 = vmatpush1.msra.mxu0 0.0
      %11191 = vmatprep.subr.mxu0 0.0
      %11192 = vmatpush1.msra.mxu0 0.0
      %11193 = vmatprep.subr.mxu0 0.0
      %11194 = vmatpush1.msra.mxu0 0.0
      %11195 = vmatprep.subr.mxu0 0.0
      %11196 = vmatpush1.msra.mxu0 0.0
      %11197 = vmatprep.subr.mxu0 0.0
      %11198 = vmatpush1.msra.mxu0 0.0
      %11199 = vmatprep.subr.mxu0 0.0
      %11200 = vmatpush1.msra.mxu0 0.0
      %11201 = vmatprep.subr.mxu0 0.0
      %11202 = vmatpush1.msra.mxu0 0.0
      %11203 = vmatprep.subr.mxu0 0.0
      %11204 = vmatpush1.msra.mxu0 0.0
      %11205 = vmatprep.subr.mxu0 0.0
      %11206 = vmatpush1.msra.mxu0 0.0
      %11207 = vmatprep.subr.mxu0 0.0
      %11208 = vmatpush1.msra.mxu0 0.0
      %11209 = vmatprep.subr.mxu0 0.0
      %11210 = vmatpush1.msra.mxu0 0.0
      %11211 = vmatprep.subr.mxu0 0.0
      %11212 = vmatpush1.msra.mxu0 0.0
      %11213 = vmatprep.subr.mxu0 0.0
      %11214 = vmatpush1.msra.mxu0 0.0
      %11215 = vmatprep.subr.mxu0 0.0
      %11216 = vmatpush1.msra.mxu0 0.0
      %11217 = vmatprep.subr.mxu0 0.0
      %11218 = vmatpush1.msra.mxu0 0.0
      %11219 = vmatprep.subr.mxu0 0.0
      %11220 = vmatpush1.msra.mxu0 0.0
      %11221 = vmatprep.subr.mxu0 0.0
      %11222 = vmatpush1.msra.mxu0 0.0
      %11223 = vmatprep.subr.mxu0 0.0
      %11224 = vmatpush1.msra.mxu0 0.0
      %11225 = vmatprep.subr.mxu0 0.0
      %11226 = vmatpush1.msra.mxu0 0.0
      %11227 = vmatprep.subr.mxu0 0.0
      %11228 = vmatpush1.msra.mxu0 0.0
      %11229 = vmatprep.subr.mxu0 0.0
      %11230 = vmatpush1.msra.mxu0 0.0
      %11231 = vmatprep.subr.mxu0 0.0
      %11232 = vmatpush1.msra.mxu0 0.0
      %11233 = vmatprep.subr.mxu0 0.0
      %11234 = vmatpush1.msra.mxu0 0.0
      %11235 = vmatprep.subr.mxu0 0.0
      %11236 = vmatpush1.msra.mxu0 0.0
      %11237 = vmatprep.subr.mxu0 0.0
      %11238 = vmatpush1.msra.mxu0 0.0
      %11239 = vmatprep.subr.mxu0 0.0
      %11240 = vmatpush1.msra.mxu0 0.0
      %11241 = vmatprep.subr.mxu0 0.0
      %11242 = vmatpush1.msra.mxu0 0.0
      %11243 = vmatprep.subr.mxu0 0.0
      %11244 = vmatpush1.msra.mxu0 0.0
      %11245 = vmatprep.subr.mxu0 0.0
      %11246 = vmatpush1.msra.mxu0 0.0
      %11247 = vmatprep.subr.mxu0 0.0
      %11248 = vmatpush1.msra.mxu0 0.0
      %11249 = vmatprep.mubr.f32.mxu0 0.0
      %11250 = vmatmul.mubr.f32.gmra.mrb[0].mxu0 %v11183
      %v11251 = vpop.f32.mrb[0].mxu0
      %v11252 = vadd.f32 0.0, %v11251
      %v11253 = vpop.f32.mrb[0].mxu0
      %11254 = vdwg.mxu0
      %11255 = vrot.lane.b32.xlu0 %v6206, 72
      %v11256 = vpop.permute.xlu0 %11255
      %v11259 = vsel %vm383, %v10870, 0
      %11261 = vmatprep.subr.mxu0 0.0
      %11262 = vmatpush1.msra.mxu0 %v11256
      %11263 = vmatprep.subr.mxu0 0.0
      %11264 = vmatpush1.msra.mxu0 0.0
      %11265 = vmatprep.subr.mxu0 0.0
      %11266 = vmatpush1.msra.mxu0 0.0
      %11267 = vmatprep.subr.mxu0 0.0
      %11268 = vmatpush1.msra.mxu0 0.0
      %11269 = vmatprep.subr.mxu0 0.0
      %11270 = vmatpush1.msra.mxu0 0.0
      %11271 = vmatprep.subr.mxu0 0.0
      %11272 = vmatpush1.msra.mxu0 0.0
      %11273 = vmatprep.subr.mxu0 0.0
      %11274 = vmatpush1.msra.mxu0 0.0
      %11275 = vmatprep.subr.mxu0 0.0
      %11276 = vmatpush1.msra.mxu0 0.0
      %11277 = vmatprep.subr.mxu0 0.0
      %11278 = vmatpush1.msra.mxu0 0.0
      %11279 = vmatprep.subr.mxu0 0.0
      %11280 = vmatpush1.msra.mxu0 0.0
      %11281 = vmatprep.subr.mxu0 0.0
      %11282 = vmatpush1.msra.mxu0 0.0
      %11283 = vmatprep.subr.mxu0 0.0
      %11284 = vmatpush1.msra.mxu0 0.0
      %11285 = vmatprep.subr.mxu0 0.0
      %11286 = vmatpush1.msra.mxu0 0.0
      %11287 = vmatprep.subr.mxu0 0.0
      %11288 = vmatpush1.msra.mxu0 0.0
      %11289 = vmatprep.subr.mxu0 0.0
      %11290 = vmatpush1.msra.mxu0 0.0
      %11291 = vmatprep.subr.mxu0 0.0
      %11292 = vmatpush1.msra.mxu0 0.0
      %11293 = vmatprep.subr.mxu0 0.0
      %11294 = vmatpush1.msra.mxu0 0.0
      %11295 = vmatprep.subr.mxu0 0.0
      %11296 = vmatpush1.msra.mxu0 0.0
      %11297 = vmatprep.subr.mxu0 0.0
      %11298 = vmatpush1.msra.mxu0 0.0
      %11299 = vmatprep.subr.mxu0 0.0
      %11300 = vmatpush1.msra.mxu0 0.0
      %11301 = vmatprep.subr.mxu0 0.0
      %11302 = vmatpush1.msra.mxu0 0.0
      %11303 = vmatprep.subr.mxu0 0.0
      %11304 = vmatpush1.msra.mxu0 0.0
      %11305 = vmatprep.subr.mxu0 0.0
      %11306 = vmatpush1.msra.mxu0 0.0
      %11307 = vmatprep.subr.mxu0 0.0
      %11308 = vmatpush1.msra.mxu0 0.0
      %11309 = vmatprep.subr.mxu0 0.0
      %11310 = vmatpush1.msra.mxu0 0.0
      %11311 = vmatprep.subr.mxu0 0.0
      %11312 = vmatpush1.msra.mxu0 0.0
      %11313 = vmatprep.subr.mxu0 0.0
      %11314 = vmatpush1.msra.mxu0 0.0
      %11315 = vmatprep.subr.mxu0 0.0
      %11316 = vmatpush1.msra.mxu0 0.0
      %11317 = vmatprep.subr.mxu0 0.0
      %11318 = vmatpush1.msra.mxu0 0.0
      %11319 = vmatprep.subr.mxu0 0.0
      %11320 = vmatpush1.msra.mxu0 0.0
      %11321 = vmatprep.subr.mxu0 0.0
      %11322 = vmatpush1.msra.mxu0 0.0
      %11323 = vmatprep.subr.mxu0 0.0
      %11324 = vmatpush1.msra.mxu0 0.0
      %11325 = vmatprep.mubr.f32.mxu0 0.0
      %11326 = vmatmul.mubr.f32.gmra.mrb[0].mxu0 %v11259
      %v11327 = vpop.f32.mrb[0].mxu0
      %v11328 = vadd.f32 0.0, %v11327
      %v11329 = vpop.f32.mrb[0].mxu0
      %11330 = vdwg.mxu0
      %11331 = vrot.lane.b32.xlu0 %v6211, 72
      %v11332 = vpop.permute.xlu0 %11331
      %v11335 = vsel %vm383, %v10872, 0
      %11337 = vmatprep.subr.mxu0 0.0
      %11338 = vmatpush1.msra.mxu0 %v11332
      %11339 = vmatprep.subr.mxu0 0.0
      %11340 = vmatpush1.msra.mxu0 0.0
      %11341 = vmatprep.subr.mxu0 0.0
      %11342 = vmatpush1.msra.mxu0 0.0
      %11343 = vmatprep.subr.mxu0 0.0
      %11344 = vmatpush1.msra.mxu0 0.0
      %11345 = vmatprep.subr.mxu0 0.0
      %11346 = vmatpush1.msra.mxu0 0.0
      %11347 = vmatprep.subr.mxu0 0.0
      %11348 = vmatpush1.msra.mxu0 0.0
      %11349 = vmatprep.subr.mxu0 0.0
      %11350 = vmatpush1.msra.mxu0 0.0
      %11351 = vmatprep.subr.mxu0 0.0
      %11352 = vmatpush1.msra.mxu0 0.0
      %11353 = vmatprep.subr.mxu0 0.0
      %11354 = vmatpush1.msra.mxu0 0.0
      %11355 = vmatprep.subr.mxu0 0.0
      %11356 = vmatpush1.msra.mxu0 0.0
      %11357 = vmatprep.subr.mxu0 0.0
      %11358 = vmatpush1.msra.mxu0 0.0
      %11359 = vmatprep.subr.mxu0 0.0
      %11360 = vmatpush1.msra.mxu0 0.0
      %11361 = vmatprep.subr.mxu0 0.0
      %11362 = vmatpush1.msra.mxu0 0.0
      %11363 = vmatprep.subr.mxu0 0.0
      %11364 = vmatpush1.msra.mxu0 0.0
      %11365 = vmatprep.subr.mxu0 0.0
      %11366 = vmatpush1.msra.mxu0 0.0
      %11367 = vmatprep.subr.mxu0 0.0
      %11368 = vmatpush1.msra.mxu0 0.0
      %11369 = vmatprep.subr.mxu0 0.0
      %11370 = vmatpush1.msra.mxu0 0.0
      %11371 = vmatprep.subr.mxu0 0.0
      %11372 = vmatpush1.msra.mxu0 0.0
      %11373 = vmatprep.subr.mxu0 0.0
      %11374 = vmatpush1.msra.mxu0 0.0
      %11375 = vmatprep.subr.mxu0 0.0
      %11376 = vmatpush1.msra.mxu0 0.0
      %11377 = vmatprep.subr.mxu0 0.0
      %11378 = vmatpush1.msra.mxu0 0.0
      %11379 = vmatprep.subr.mxu0 0.0
      %11380 = vmatpush1.msra.mxu0 0.0
      %11381 = vmatprep.subr.mxu0 0.0
      %11382 = vmatpush1.msra.mxu0 0.0
      %11383 = vmatprep.subr.mxu0 0.0
      %11384 = vmatpush1.msra.mxu0 0.0
      %11385 = vmatprep.subr.mxu0 0.0
      %11386 = vmatpush1.msra.mxu0 0.0
      %11387 = vmatprep.subr.mxu0 0.0
      %11388 = vmatpush1.msra.mxu0 0.0
      %11389 = vmatprep.subr.mxu0 0.0
      %11390 = vmatpush1.msra.mxu0 0.0
      %11391 = vmatprep.subr.mxu0 0.0
      %11392 = vmatpush1.msra.mxu0 0.0
      %11393 = vmatprep.subr.mxu0 0.0
      %11394 = vmatpush1.msra.mxu0 0.0
      %11395 = vmatprep.subr.mxu0 0.0
      %11396 = vmatpush1.msra.mxu0 0.0
      %11397 = vmatprep.subr.mxu0 0.0
      %11398 = vmatpush1.msra.mxu0 0.0
      %11399 = vmatprep.subr.mxu0 0.0
      %11400 = vmatpush1.msra.mxu0 0.0
      %11401 = vmatprep.mubr.f32.mxu0 0.0
      %11402 = vmatmul.mubr.f32.gmra.mrb[0].mxu0 %v11335
      %v11403 = vpop.f32.mrb[0].mxu0
      %v11404 = vadd.f32 0.0, %v11403
      %v11405 = vpop.f32.mrb[0].mxu0
      %11406 = vdwg.mxu0
      %11407 = vrot.lane.b32.xlu0 %v6216, 72
      %v11408 = vpop.permute.xlu0 %11407
      %v11411 = vsel %vm383, %v10874, 0
      %11413 = vmatprep.subr.mxu0 0.0
      %11414 = vmatpush1.msra.mxu0 %v11408
      %11415 = vmatprep.subr.mxu0 0.0
      %11416 = vmatpush1.msra.mxu0 0.0
      %11417 = vmatprep.subr.mxu0 0.0
      %11418 = vmatpush1.msra.mxu0 0.0
      %11419 = vmatprep.subr.mxu0 0.0
      %11420 = vmatpush1.msra.mxu0 0.0
      %11421 = vmatprep.subr.mxu0 0.0
      %11422 = vmatpush1.msra.mxu0 0.0
      %11423 = vmatprep.subr.mxu0 0.0
      %11424 = vmatpush1.msra.mxu0 0.0
      %11425 = vmatprep.subr.mxu0 0.0
      %11426 = vmatpush1.msra.mxu0 0.0
      %11427 = vmatprep.subr.mxu0 0.0
      %11428 = vmatpush1.msra.mxu0 0.0
      %11429 = vmatprep.subr.mxu0 0.0
      %11430 = vmatpush1.msra.mxu0 0.0
      %11431 = vmatprep.subr.mxu0 0.0
      %11432 = vmatpush1.msra.mxu0 0.0
      %11433 = vmatprep.subr.mxu0 0.0
      %11434 = vmatpush1.msra.mxu0 0.0
      %11435 = vmatprep.subr.mxu0 0.0
      %11436 = vmatpush1.msra.mxu0 0.0
      %11437 = vmatprep.subr.mxu0 0.0
      %11438 = vmatpush1.msra.mxu0 0.0
      %11439 = vmatprep.subr.mxu0 0.0
      %11440 = vmatpush1.msra.mxu0 0.0
      %11441 = vmatprep.subr.mxu0 0.0
      %11442 = vmatpush1.msra.mxu0 0.0
      %11443 = vmatprep.subr.mxu0 0.0
      %11444 = vmatpush1.msra.mxu0 0.0
      %11445 = vmatprep.subr.mxu0 0.0
      %11446 = vmatpush1.msra.mxu0 0.0
      %11447 = vmatprep.subr.mxu0 0.0
      %11448 = vmatpush1.msra.mxu0 0.0
      %11449 = vmatprep.subr.mxu0 0.0
      %11450 = vmatpush1.msra.mxu0 0.0
      %11451 = vmatprep.subr.mxu0 0.0
      %11452 = vmatpush1.msra.mxu0 0.0
      %11453 = vmatprep.subr.mxu0 0.0
      %11454 = vmatpush1.msra.mxu0 0.0
      %11455 = vmatprep.subr.mxu0 0.0
      %11456 = vmatpush1.msra.mxu0 0.0
      %11457 = vmatprep.subr.mxu0 0.0
      %11458 = vmatpush1.msra.mxu0 0.0
      %11459 = vmatprep.subr.mxu0 0.0
      %11460 = vmatpush1.msra.mxu0 0.0
      %11461 = vmatprep.subr.mxu0 0.0
      %11462 = vmatpush1.msra.mxu0 0.0
      %11463 = vmatprep.subr.mxu0 0.0
      %11464 = vmatpush1.msra.mxu0 0.0
      %11465 = vmatprep.subr.mxu0 0.0
      %11466 = vmatpush1.msra.mxu0 0.0
      %11467 = vmatprep.subr.mxu0 0.0
      %11468 = vmatpush1.msra.mxu0 0.0
      %11469 = vmatprep.subr.mxu0 0.0
      %11470 = vmatpush1.msra.mxu0 0.0
      %11471 = vmatprep.subr.mxu0 0.0
      %11472 = vmatpush1.msra.mxu0 0.0
      %11473 = vmatprep.subr.mxu0 0.0
      %11474 = vmatpush1.msra.mxu0 0.0
      %11475 = vmatprep.subr.mxu0 0.0
      %11476 = vmatpush1.msra.mxu0 0.0
      %11477 = vmatprep.mubr.f32.mxu0 0.0
      %11478 = vmatmul.mubr.f32.gmra.mrb[0].mxu0 %v11411
      %v11479 = vpop.f32.mrb[0].mxu0
      %v11480 = vadd.f32 0.0, %v11479
      %v11481 = vpop.f32.mrb[0].mxu0
      %11482 = vdwg.mxu0
      %11491 = vrot.lane.b32.xlu0 %v8308, 8
      %v11492 = vpop.permute.xlu0 %11491
      %11493 = vrot.lane.b32.xlu0 %v8384, 8
      %v11494 = vpop.permute.xlu0 %11493
      %11495 = vrot.lane.b32.xlu0 %v8460, 8
      %v11496 = vpop.permute.xlu0 %11495
      %11497 = vrot.lane.b32.xlu0 %v8536, 8
      %v11498 = vpop.permute.xlu0 %11497
      %11499 = vrot.lane.b32.xlu0 %v8612, 8
      %v11500 = vpop.permute.xlu0 %11499
      %11501 = vrot.lane.b32.xlu0 %v8688, 8
      %v11502 = vpop.permute.xlu0 %11501
      %11503 = vrot.lane.b32.xlu0 %v8764, 8
      %v11504 = vpop.permute.xlu0 %11503
      %11505 = vrot.lane.b32.xlu0 %v8840, 8
      %v11506 = vpop.permute.xlu0 %11505
      %11523 = vrot.lane.b32.xlu0 %v9628, 16
      %v11524 = vpop.permute.xlu0 %11523
      %11525 = vrot.lane.b32.xlu0 %v9704, 16
      %v11526 = vpop.permute.xlu0 %11525
      %11527 = vrot.lane.b32.xlu0 %v9780, 16
      %v11528 = vpop.permute.xlu0 %11527
      %11529 = vrot.lane.b32.xlu0 %v9856, 16
      %v11530 = vpop.permute.xlu0 %11529
      %11531 = vrot.lane.b32.xlu0 %v9932, 16
      %v11532 = vpop.permute.xlu0 %11531
      %11533 = vrot.lane.b32.xlu0 %v10008, 16
      %v11534 = vpop.permute.xlu0 %11533
      %11535 = vrot.lane.b32.xlu0 %v10084, 16
      %v11536 = vpop.permute.xlu0 %11535
      %11537 = vrot.lane.b32.xlu0 %v10160, 16
      %v11538 = vpop.permute.xlu0 %11537
      %11555 = vrot.lane.b32.xlu0 %v10948, 24
      %v11556 = vpop.permute.xlu0 %11555
      %11557 = vrot.lane.b32.xlu0 %v11024, 24
      %v11558 = vpop.permute.xlu0 %11557
      %11559 = vrot.lane.b32.xlu0 %v11100, 24
      %v11560 = vpop.permute.xlu0 %11559
      %11561 = vrot.lane.b32.xlu0 %v11176, 24
      %v11562 = vpop.permute.xlu0 %11561
      %11563 = vrot.lane.b32.xlu0 %v11252, 24
      %v11564 = vpop.permute.xlu0 %11563
      %11565 = vrot.lane.b32.xlu0 %v11328, 24
      %v11566 = vpop.permute.xlu0 %11565
      %11567 = vrot.lane.b32.xlu0 %v11404, 24
      %v11568 = vpop.permute.xlu0 %11567
      %11569 = vrot.lane.b32.xlu0 %v11480, 24
      %v11570 = vpop.permute.xlu0 %11569
      %v11579 = vsel %vm383, %v6988, %v11492
      %v11580 = vsel %vm383, %v7064, %v11494
      %v11581 = vsel %vm383, %v7140, %v11496
      %v11582 = vsel %vm383, %v7216, %v11498
      %v11583 = vsel %vm383, %v7292, %v11500
      %v11584 = vsel %vm383, %v7368, %v11502
      %v11585 = vsel %vm383, %v7444, %v11504
      %v11586 = vsel %vm383, %v7520, %v11506
      %v11587 = vsel %vm5757, %v11579, %v11524
      %v11588 = vsel %vm5757, %v11580, %v11526
      %v11589 = vsel %vm5757, %v11581, %v11528
      %v11590 = vsel %vm5757, %v11582, %v11530
      %v11591 = vsel %vm5757, %v11583, %v11532
      %v11592 = vsel %vm5757, %v11584, %v11534
      %v11593 = vsel %vm5757, %v11585, %v11536
      %v11594 = vsel %vm5757, %v11586, %v11538
      %v11595 = vsel %vm5766, %v11587, %v11556
      %v11596 = vsel %vm5766, %v11588, %v11558
      %v11597 = vsel %vm5766, %v11589, %v11560
      %v11598 = vsel %vm5766, %v11590, %v11562
      %v11599 = vsel %vm5766, %v11591, %v11564
      %v11600 = vsel %vm5766, %v11592, %v11566
      %v11601 = vsel %vm5766, %v11593, %v11568
      %v11602 = vsel %vm5766, %v11594, %v11570
      %11603 = vrot.lane.b32.xlu0 %v5931, 32
      %v11604 = vpop.permute.xlu0 %11603
      %11605 = vrot.lane.b32.xlu0 %v5932, 32
      %v11606 = vpop.permute.xlu0 %11605
      %11607 = vrot.lane.b32.xlu0 %v5933, 32
      %v11608 = vpop.permute.xlu0 %11607
      %11609 = vrot.lane.b32.xlu0 %v5934, 32
      %v11610 = vpop.permute.xlu0 %11609
      %11615 = vrot.lane.b32.xlu0 %v5940, 32
      %v11616 = vpop.permute.xlu0 %11615
      %v11619 = vsel %vm250, %v11595, 0
      %v11622 = vsel %vm250, %v11596, 0
      %v11625 = vsel %vm250, %v11597, 0
      %v11628 = vsel %vm250, %v11598, 0
      %v11631 = vsel %vm250, %v11599, 0
      %v11634 = vsel %vm250, %v11600, 0
      %v11637 = vsel %vm250, %v11601, 0
      %v11640 = vsel %vm250, %v11602, 0
      %11642 = vmatprep.subr.mxu0 0.0
      %11643 = vmatpush1.msra.mxu0 %v11604
      %11644 = vmatprep.subr.mxu0 0.0
      %11645 = vmatpush1.msra.mxu0 %v11606
      %11646 = vmatprep.subr.mxu0 0.0
      %11647 = vmatpush1.msra.mxu0 %v11608
      %11648 = vmatprep.subr.mxu0 0.0
      %11649 = vmatpush1.msra.mxu0 %v11610
      %11650 = vmatprep.subr.mxu0 0.0
      %11651 = vmatpush1.msra.mxu0 0.0
      %11652 = vmatprep.subr.mxu0 0.0
      %11653 = vmatpush1.msra.mxu0 0.0
      %11654 = vmatprep.subr.mxu0 0.0
      %11655 = vmatpush1.msra.mxu0 0.0
      %11656 = vmatprep.subr.mxu0 0.0
      %11657 = vmatpush1.msra.mxu0 0.0
      %11658 = vmatprep.subr.mxu0 0.0
      %11659 = vmatpush1.msra.mxu0 0.0
      %11660 = vmatprep.subr.mxu0 0.0
      %11661 = vmatpush1.msra.mxu0 0.0
      %11662 = vmatprep.subr.mxu0 0.0
      %11663 = vmatpush1.msra.mxu0 0.0
      %11664 = vmatprep.subr.mxu0 0.0
      %11665 = vmatpush1.msra.mxu0 0.0
      %11666 = vmatprep.subr.mxu0 0.0
      %11667 = vmatpush1.msra.mxu0 0.0
      %11668 = vmatprep.subr.mxu0 0.0
      %11669 = vmatpush1.msra.mxu0 0.0
      %11670 = vmatprep.subr.mxu0 0.0
      %11671 = vmatpush1.msra.mxu0 0.0
      %11672 = vmatprep.subr.mxu0 0.0
      %11673 = vmatpush1.msra.mxu0 0.0
      %11674 = vmatprep.subr.mxu0 0.0
      %11675 = vmatpush1.msra.mxu0 0.0
      %11676 = vmatprep.subr.mxu0 0.0
      %11677 = vmatpush1.msra.mxu0 0.0
      %11678 = vmatprep.subr.mxu0 0.0
      %11679 = vmatpush1.msra.mxu0 0.0
      %11680 = vmatprep.subr.mxu0 0.0
      %11681 = vmatpush1.msra.mxu0 0.0
      %11682 = vmatprep.subr.mxu0 0.0
      %11683 = vmatpush1.msra.mxu0 0.0
      %11684 = vmatprep.subr.mxu0 0.0
      %11685 = vmatpush1.msra.mxu0 0.0
      %11686 = vmatprep.subr.mxu0 0.0
      %11687 = vmatpush1.msra.mxu0 0.0
      %11688 = vmatprep.subr.mxu0 0.0
      %11689 = vmatpush1.msra.mxu0 0.0
      %11690 = vmatprep.subr.mxu0 0.0
      %11691 = vmatpush1.msra.mxu0 0.0
      %11692 = vmatprep.subr.mxu0 0.0
      %11693 = vmatpush1.msra.mxu0 0.0
      %11694 = vmatprep.subr.mxu0 0.0
      %11695 = vmatpush1.msra.mxu0 0.0
      %11696 = vmatprep.subr.mxu0 0.0
      %11697 = vmatpush1.msra.mxu0 0.0
      %11698 = vmatprep.subr.mxu0 0.0
      %11699 = vmatpush1.msra.mxu0 0.0
      %11700 = vmatprep.subr.mxu0 0.0
      %11701 = vmatpush1.msra.mxu0 0.0
      %11702 = vmatprep.subr.mxu0 0.0
      %11703 = vmatpush1.msra.mxu0 0.0
      %11704 = vmatprep.subr.mxu0 0.0
      %11705 = vmatpush1.msra.mxu0 0.0
      %11706 = vmatprep.mubr.f32.mxu0 0.0
      %11707 = vmatmul.mubr.f32.gmra.mrb[0].mxu0 %v11619
      %v11708 = vpop.f32.mrb[0].mxu0
      %v11709 = vadd.f32 %v11616, %v11708
      %v11710 = vpop.f32.mrb[0].mxu0
      %11711 = vmatprep.mubr.f32.mxu0 0.0
      %11712 = vmatmul.mubr.f32.gmra.mrb[0].mxu0 %v11622
      %v11713 = vpop.f32.mrb[0].mxu0
      %v11714 = vadd.f32 %v11616, %v11713
      %v11715 = vpop.f32.mrb[0].mxu0
      %11716 = vmatprep.mubr.f32.mxu0 0.0
      %11717 = vmatmul.mubr.f32.gmra.mrb[0].mxu0 %v11625
      %v11718 = vpop.f32.mrb[0].mxu0
      %v11719 = vadd.f32 %v11616, %v11718
      %v11720 = vpop.f32.mrb[0].mxu0
      %11721 = vmatprep.mubr.f32.mxu0 0.0
      %11722 = vmatmul.mubr.f32.gmra.mrb[0].mxu0 %v11628
      %v11723 = vpop.f32.mrb[0].mxu0
      %v11724 = vadd.f32 %v11616, %v11723
      %v11725 = vpop.f32.mrb[0].mxu0
      %11726 = vmatprep.mubr.f32.mxu0 0.0
      %11727 = vmatmul.mubr.f32.gmra.mrb[0].mxu0 %v11631
      %v11728 = vpop.f32.mrb[0].mxu0
      %v11729 = vadd.f32 %v11616, %v11728
      %v11730 = vpop.f32.mrb[0].mxu0
      %11731 = vmatprep.mubr.f32.mxu0 0.0
      %11732 = vmatmul.mubr.f32.gmra.mrb[0].mxu0 %v11634
      %v11733 = vpop.f32.mrb[0].mxu0
      %v11734 = vadd.f32 %v11616, %v11733
      %v11735 = vpop.f32.mrb[0].mxu0
      %11736 = vmatprep.mubr.f32.mxu0 0.0
      %11737 = vmatmul.mubr.f32.gmra.mrb[0].mxu0 %v11637
      %v11738 = vpop.f32.mrb[0].mxu0
      %v11739 = vadd.f32 %v11616, %v11738
      %v11740 = vpop.f32.mrb[0].mxu0
      %11741 = vmatprep.mubr.f32.mxu0 0.0
      %11742 = vmatmul.mubr.f32.gmra.mrb[0].mxu0 %v11640
      %v11743 = vpop.f32.mrb[0].mxu0
      %v11744 = vadd.f32 %v11616, %v11743
      %v11745 = vpop.f32.mrb[0].mxu0
      %11746 = vdwg.mxu0
      %v11747 = vadd.f32 %v5923, %v11709
      %v11748 = vadd.f32 %v5924, %v11714
      %v11749 = vadd.f32 %v5925, %v11719
      %v11750 = vadd.f32 %v5926, %v11724
      %v11751 = vadd.f32 %v5927, %v11729
      %v11752 = vadd.f32 %v5928, %v11734
      %v11753 = vadd.f32 %v5929, %v11739
      %v11754 = vadd.f32 %v5930, %v11744
      %v11755 = vld [vmem:[%s2 + $0x10] sm:$0xff]
      %v11756 = vld [vmem:[%s2 + $0x28] sm:$0xff]
      %v11757 = vld [vmem:[%s2 + $0x40] sm:$0xff]
      %v11758 = vld [vmem:[%s2 + $0x58] sm:$0xff]
      %v11759 = vld [vmem:[%s3 + $0x2] sm:$0x1]
      %v11761 = vlaneseq
      %v11762 = vshrl.u32 %v11761, 7
      %v11763 = vsub.s32 0, %v11762
      %v11764 = vrot.slane %v11759, %v11763
      %v11767 = vsel %vm250, %v11747, 0
      %v11770 = vsel %vm250, %v11748, 0
      %v11773 = vsel %vm250, %v11749, 0
      %v11776 = vsel %vm250, %v11750, 0
      %v11779 = vsel %vm250, %v11751, 0
      %v11782 = vsel %vm250, %v11752, 0
      %v11785 = vsel %vm250, %v11753, 0
      %v11788 = vsel %vm250, %v11754, 0
      %11790 = vmatprep.subr.mxu0 0.0
      %11791 = vmatpush1.msra.mxu0 %v11755
      %11792 = vmatprep.subr.mxu0 0.0
      %11793 = vmatpush1.msra.mxu0 %v11756
      %11794 = vmatprep.subr.mxu0 0.0
      %11795 = vmatpush1.msra.mxu0 %v11757
      %11796 = vmatprep.subr.mxu0 0.0
      %11797 = vmatpush1.msra.mxu0 %v11758
      %11798 = vmatprep.subr.mxu0 0.0
      %11799 = vmatpush1.msra.mxu0 0.0
      %11800 = vmatprep.subr.mxu0 0.0
      %11801 = vmatpush1.msra.mxu0 0.0
      %11802 = vmatprep.subr.mxu0 0.0
      %11803 = vmatpush1.msra.mxu0 0.0
      %11804 = vmatprep.subr.mxu0 0.0
      %11805 = vmatpush1.msra.mxu0 0.0
      %11806 = vmatprep.subr.mxu0 0.0
      %11807 = vmatpush1.msra.mxu0 0.0
      %11808 = vmatprep.subr.mxu0 0.0
      %11809 = vmatpush1.msra.mxu0 0.0
      %11810 = vmatprep.subr.mxu0 0.0
      %11811 = vmatpush1.msra.mxu0 0.0
      %11812 = vmatprep.subr.mxu0 0.0
      %11813 = vmatpush1.msra.mxu0 0.0
      %11814 = vmatprep.subr.mxu0 0.0
      %11815 = vmatpush1.msra.mxu0 0.0
      %11816 = vmatprep.subr.mxu0 0.0
      %11817 = vmatpush1.msra.mxu0 0.0
      %11818 = vmatprep.subr.mxu0 0.0
      %11819 = vmatpush1.msra.mxu0 0.0
      %11820 = vmatprep.subr.mxu0 0.0
      %11821 = vmatpush1.msra.mxu0 0.0
      %11822 = vmatprep.subr.mxu0 0.0
      %11823 = vmatpush1.msra.mxu0 0.0
      %11824 = vmatprep.subr.mxu0 0.0
      %11825 = vmatpush1.msra.mxu0 0.0
      %11826 = vmatprep.subr.mxu0 0.0
      %11827 = vmatpush1.msra.mxu0 0.0
      %11828 = vmatprep.subr.mxu0 0.0
      %11829 = vmatpush1.msra.mxu0 0.0
      %11830 = vmatprep.subr.mxu0 0.0
      %11831 = vmatpush1.msra.mxu0 0.0
      %11832 = vmatprep.subr.mxu0 0.0
      %11833 = vmatpush1.msra.mxu0 0.0
      %11834 = vmatprep.subr.mxu0 0.0
      %11835 = vmatpush1.msra.mxu0 0.0
      %11836 = vmatprep.subr.mxu0 0.0
      %11837 = vmatpush1.msra.mxu0 0.0
      %11838 = vmatprep.subr.mxu0 0.0
      %11839 = vmatpush1.msra.mxu0 0.0
      %11840 = vmatprep.subr.mxu0 0.0
      %11841 = vmatpush1.msra.mxu0 0.0
      %11842 = vmatprep.subr.mxu0 0.0
      %11843 = vmatpush1.msra.mxu0 0.0
      %11844 = vmatprep.subr.mxu0 0.0
      %11845 = vmatpush1.msra.mxu0 0.0
      %11846 = vmatprep.subr.mxu0 0.0
      %11847 = vmatpush1.msra.mxu0 0.0
      %11848 = vmatprep.subr.mxu0 0.0
      %11849 = vmatpush1.msra.mxu0 0.0
      %11850 = vmatprep.subr.mxu0 0.0
      %11851 = vmatpush1.msra.mxu0 0.0
      %11852 = vmatprep.subr.mxu0 0.0
      %11853 = vmatpush1.msra.mxu0 0.0
      %11854 = vmatprep.mubr.f32.mxu0 0.0
      %11855 = vmatmul.mubr.f32.gmra.mrb[0].mxu0 %v11767
      %v11856 = vpop.f32.mrb[0].mxu0
      %v11857 = vadd.f32 %v11764, %v11856
      %v11858 = vpop.f32.mrb[0].mxu0
      %11859 = vmatprep.mubr.f32.mxu0 0.0
      %11860 = vmatmul.mubr.f32.gmra.mrb[0].mxu0 %v11770
      %v11861 = vpop.f32.mrb[0].mxu0
      %v11862 = vadd.f32 %v11764, %v11861
      %v11863 = vpop.f32.mrb[0].mxu0
      %11864 = vmatprep.mubr.f32.mxu0 0.0
      %11865 = vmatmul.mubr.f32.gmra.mrb[0].mxu0 %v11773
      %v11866 = vpop.f32.mrb[0].mxu0
      %v11867 = vadd.f32 %v11764, %v11866
      %v11868 = vpop.f32.mrb[0].mxu0
      %11869 = vmatprep.mubr.f32.mxu0 0.0
      %11870 = vmatmul.mubr.f32.gmra.mrb[0].mxu0 %v11776
      %v11871 = vpop.f32.mrb[0].mxu0
      %v11872 = vadd.f32 %v11764, %v11871
      %v11873 = vpop.f32.mrb[0].mxu0
      %11874 = vmatprep.mubr.f32.mxu0 0.0
      %11875 = vmatmul.mubr.f32.gmra.mrb[0].mxu0 %v11779
      %v11876 = vpop.f32.mrb[0].mxu0
      %v11877 = vadd.f32 %v11764, %v11876
      %v11878 = vpop.f32.mrb[0].mxu0
      %11879 = vmatprep.mubr.f32.mxu0 0.0
      %11880 = vmatmul.mubr.f32.gmra.mrb[0].mxu0 %v11782
      %v11881 = vpop.f32.mrb[0].mxu0
      %v11882 = vadd.f32 %v11764, %v11881
      %v11883 = vpop.f32.mrb[0].mxu0
      %11884 = vmatprep.mubr.f32.mxu0 0.0
      %11885 = vmatmul.mubr.f32.gmra.mrb[0].mxu0 %v11785
      %v11886 = vpop.f32.mrb[0].mxu0
      %v11887 = vadd.f32 %v11764, %v11886
      %v11888 = vpop.f32.mrb[0].mxu0
      %11889 = vmatprep.mubr.f32.mxu0 0.0
      %11890 = vmatmul.mubr.f32.gmra.mrb[0].mxu0 %v11788
      %v11891 = vpop.f32.mrb[0].mxu0
      %v11892 = vadd.f32 %v11764, %v11891
      %v11893 = vpop.f32.mrb[0].mxu0
      %11894 = vdwg.mxu0
      %11899 = vrot.lane.b32.xlu0 %v11755, 112
      %v11900 = vpop.permute.xlu0 %11899
      %11901 = vrot.lane.b32.xlu0 %v11756, 112
      %v11902 = vpop.permute.xlu0 %11901
      %11903 = vrot.lane.b32.xlu0 %v11757, 112
      %v11904 = vpop.permute.xlu0 %11903
      %11905 = vrot.lane.b32.xlu0 %v11758, 112
      %v11906 = vpop.permute.xlu0 %11905
      %11907 = vrot.lane.b32.xlu0 %v11764, 112
      %v11908 = vpop.permute.xlu0 %11907
      %v11911 = vsel %vm5757, %v11857, 0
      %v11914 = vsel %vm5757, %v11862, 0
      %v11917 = vsel %vm5757, %v11867, 0
      %v11920 = vsel %vm5757, %v11872, 0
      %v11923 = vsel %vm5757, %v11877, 0
      %v11926 = vsel %vm5757, %v11882, 0
      %v11929 = vsel %vm5757, %v11887, 0
      %v11932 = vsel %vm5757, %v11892, 0
      %v11934 = vsel %vm5757, %v11900, 0
      %v11936 = vsel %vm5757, %v11902, 0
      %v11938 = vsel %vm5757, %v11904, 0
      %v11940 = vsel %vm5757, %v11906, 0
      %11942 = vmatprep.subr.mxu0 0.0
      %11943 = vmatpush1.xpose.msra.mxu0 %v11934
      %11944 = vmatprep.subr.mxu0 0.0
      %11945 = vmatpush1.xpose.msra.mxu0 %v11936
      %11946 = vmatprep.subr.mxu0 0.0
      %11947 = vmatpush1.xpose.msra.mxu0 %v11938
      %11948 = vmatprep.subr.mxu0 0.0
      %11949 = vmatpush1.xpose.msra.mxu0 %v11940
      %11950 = vmatprep.subr.mxu0 0.0
      %11951 = vmatpush1.xpose.msra.mxu0 0.0
      %11952 = vmatprep.subr.mxu0 0.0
      %11953 = vmatpush1.xpose.msra.mxu0 0.0
      %11954 = vmatprep.subr.mxu0 0.0
      %11955 = vmatpush1.xpose.msra.mxu0 0.0
      %11956 = vmatprep.subr.mxu0 0.0
      %11957 = vmatpush1.xpose.msra.mxu0 0.0
      %11958 = vmatprep.subr.mxu0 0.0
      %11959 = vmatpush1.xpose.msra.mxu0 0.0
      %11960 = vmatprep.subr.mxu0 0.0
      %11961 = vmatpush1.xpose.msra.mxu0 0.0
      %11962 = vmatprep.subr.mxu0 0.0
      %11963 = vmatpush1.xpose.msra.mxu0 0.0
      %11964 = vmatprep.subr.mxu0 0.0
      %11965 = vmatpush1.xpose.msra.mxu0 0.0
      %11966 = vmatprep.subr.mxu0 0.0
      %11967 = vmatpush1.xpose.msra.mxu0 0.0
      %11968 = vmatprep.subr.mxu0 0.0
      %11969 = vmatpush1.xpose.msra.mxu0 0.0
      %11970 = vmatprep.subr.mxu0 0.0
      %11971 = vmatpush1.xpose.msra.mxu0 0.0
      %11972 = vmatprep.subr.mxu0 0.0
      %11973 = vmatpush1.xpose.msra.mxu0 0.0
      %11974 = vmatprep.subr.mxu0 0.0
      %11975 = vmatpush1.xpose.msra.mxu0 0.0
      %11976 = vmatprep.subr.mxu0 0.0
      %11977 = vmatpush1.xpose.msra.mxu0 0.0
      %11978 = vmatprep.subr.mxu0 0.0
      %11979 = vmatpush1.xpose.msra.mxu0 0.0
      %11980 = vmatprep.subr.mxu0 0.0
      %11981 = vmatpush1.xpose.msra.mxu0 0.0
      %11982 = vmatprep.subr.mxu0 0.0
      %11983 = vmatpush1.xpose.msra.mxu0 0.0
      %11984 = vmatprep.subr.mxu0 0.0
      %11985 = vmatpush1.xpose.msra.mxu0 0.0
      %11986 = vmatprep.subr.mxu0 0.0
      %11987 = vmatpush1.xpose.msra.mxu0 0.0
      %11988 = vmatprep.subr.mxu0 0.0
      %11989 = vmatpush1.xpose.msra.mxu0 0.0
      %11990 = vmatprep.subr.mxu0 0.0
      %11991 = vmatpush1.xpose.msra.mxu0 0.0
      %11992 = vmatprep.subr.mxu0 0.0
      %11993 = vmatpush1.xpose.msra.mxu0 0.0
      %11994 = vmatprep.subr.mxu0 0.0
      %11995 = vmatpush1.xpose.msra.mxu0 0.0
      %11996 = vmatprep.subr.mxu0 0.0
      %11997 = vmatpush1.xpose.msra.mxu0 0.0
      %11998 = vmatprep.subr.mxu0 0.0
      %11999 = vmatpush1.xpose.msra.mxu0 0.0
      %12000 = vmatprep.subr.mxu0 0.0
      %12001 = vmatpush1.xpose.msra.mxu0 0.0
      %12002 = vmatprep.subr.mxu0 0.0
      %12003 = vmatpush1.xpose.msra.mxu0 0.0
      %12004 = vmatprep.subr.mxu0 0.0
      %12005 = vmatpush1.xpose.msra.mxu0 0.0
      %12006 = vmatprep.mubr.f32.mxu0 0.0
      %12007 = vmatmul.mubr.f32.gmra.mrb[0].mxu0 %v11911
      %v12008 = vpop.f32.mrb[0].mxu0
      %v12009 = vadd.f32 %v11908, %v12008
      %v12010 = vpop.f32.mrb[0].mxu0
      %12011 = vmatprep.mubr.f32.mxu0 0.0
      %12012 = vmatmul.mubr.f32.gmra.mrb[0].mxu0 %v11914
      %v12013 = vpop.f32.mrb[0].mxu0
      %v12014 = vadd.f32 %v11908, %v12013
      %v12015 = vpop.f32.mrb[0].mxu0
      %12016 = vmatprep.mubr.f32.mxu0 0.0
      %12017 = vmatmul.mubr.f32.gmra.mrb[0].mxu0 %v11917
      %v12018 = vpop.f32.mrb[0].mxu0
      %v12019 = vadd.f32 %v11908, %v12018
      %v12020 = vpop.f32.mrb[0].mxu0
      %12021 = vmatprep.mubr.f32.mxu0 0.0
      %12022 = vmatmul.mubr.f32.gmra.mrb[0].mxu0 %v11920
      %v12023 = vpop.f32.mrb[0].mxu0
      %v12024 = vadd.f32 %v11908, %v12023
      %v12025 = vpop.f32.mrb[0].mxu0
      %12026 = vmatprep.mubr.f32.mxu0 0.0
      %12027 = vmatmul.mubr.f32.gmra.mrb[0].mxu0 %v11923
      %v12028 = vpop.f32.mrb[0].mxu0
      %v12029 = vadd.f32 %v11908, %v12028
      %v12030 = vpop.f32.mrb[0].mxu0
      %12031 = vmatprep.mubr.f32.mxu0 0.0
      %12032 = vmatmul.mubr.f32.gmra.mrb[0].mxu0 %v11926
      %v12033 = vpop.f32.mrb[0].mxu0
      %v12034 = vadd.f32 %v11908, %v12033
      %v12035 = vpop.f32.mrb[0].mxu0
      %12036 = vmatprep.mubr.f32.mxu0 0.0
      %12037 = vmatmul.mubr.f32.gmra.mrb[0].mxu0 %v11929
      %v12038 = vpop.f32.mrb[0].mxu0
      %v12039 = vadd.f32 %v11908, %v12038
      %v12040 = vpop.f32.mrb[0].mxu0
      %12041 = vmatprep.mubr.f32.mxu0 0.0
      %12042 = vmatmul.mubr.f32.gmra.mrb[0].mxu0 %v11932
      %v12043 = vpop.f32.mrb[0].mxu0
      %v12044 = vadd.f32 %v11908, %v12043
      %v12045 = vpop.f32.mrb[0].mxu0
      %12046 = vdwg.mxu0
      %v12047 = vadd.f32 %v11747, %v12009
      %v12048 = vadd.f32 %v11748, %v12014
      %v12049 = vadd.f32 %v11749, %v12019
      %v12050 = vadd.f32 %v11750, %v12024
      %v12051 = vadd.f32 %v11751, %v12029
      %v12052 = vadd.f32 %v11752, %v12034
      %v12053 = vadd.f32 %v11753, %v12039
      %v12054 = vadd.f32 %v11754, %v12044
      %12055 = vst.msk [vmem:[%s221] sm:$0xff] %vm250, %v12047
      %12056 = vst.msk [vmem:[%s221 + $0x8] sm:$0xff] %vm250, %v12048
      %12057 = vst.msk [vmem:[%s221 + $0x10] sm:$0xff] %vm250, %v12049
      %12058 = vst.msk [vmem:[%s221 + $0x18] sm:$0xff] %vm250, %v12050
      %12059 = vst.msk [vmem:[%s221 + $0x20] sm:$0xff] %vm250, %v12051
      %12060 = vst.msk [vmem:[%s221 + $0x28] sm:$0xff] %vm250, %v12052
      %12061 = vst.msk [vmem:[%s221 + $0x30] sm:$0xff] %vm250, %v12053
      %12062 = vst.msk [vmem:[%s221 + $0x38] sm:$0xff] %vm250, %v12054
      %s12063 = smul.u32 8, %s15
      %p12064 = scmp.lt.s32.totalorder %s12063, 15
      %s12065 = scalar_select %p12064, %s12063, 15
      %s12066 = smul.addr %s12065, 8
      %s12067 = scalar_lea.vmem %s4, %s12066
      // Predicated region
      $region37: #{tpu_custom_call.1} parent=35 // pred_check
        %p12068 = pneg %p127
      $region38: #{tpu_custom_call.1} parent=35 // pred_check_branch
        %12070 = sbr.rel (%p12068) target = $region40
      $region39: #{tpu_custom_call.1} parent=35 // pred_region
        %s12071 = smul.u32 8, %s15
      $region40: #{tpu_custom_call.1} parent=35 // pred_fallthru
        _
    $region36: #{tpu_custom_call.1} parent=5 // pred_fallthru
      _
    %p12072 = scmp.le.s32.totalorder 2, %s10
    // Predicated region
    $region41: #{tpu_custom_call.1} parent=5 // pred_check
      %p12073 = pneg %p12072
    $region42: #{tpu_custom_call.1} parent=5 // pred_check_branch
      %12075 = sbr.rel (%p12073) target = $region44
    $region43: #{tpu_custom_call.1} parent=5 // pred_region
      %s12076 = ssub.s32 %s10, 2
      // Predicated region
      $region45: #{tpu_custom_call.1} parent=43 // pred_check
        %p12077 = pneg %p133
      $region46: #{tpu_custom_call.1} parent=43 // pred_check_branch
        %12079 = sbr.rel (%p12077) target = $region48
      $region47: #{tpu_custom_call.1} parent=43 // pred_region
        %s12080 = smul.u32 8, %s16
        %p12081 = scmp.lt.s32.totalorder %s12080, 15
        %s12082 = scalar_select %p12081, %s12080, 15
        %s12083 = smul.addr %s12082, 8
        %s12084 = scalar_lea.vmem %s4, %s12083
      $region48: #{tpu_custom_call.1} parent=43 // pred_fallthru
        _
    $region44: #{tpu_custom_call.1} parent=5 // pred_fallthru
      _
  $region6: #{tpu_custom_call.1} parent=0 // loop_footer
    %s14 = sadd.s32 1, %s10
  $region7: #{tpu_custom_call.1} parent=0 // loop_footer_branch
    %9 = sbr.rel target = $region3
  $region8: #{tpu_custom_call.1} parent=0 // loop_exit
    _

</llo_original>
